<compile_context>
chip_gen: v6e
topology: v6e:2x2x1
jax: 0.10.0
libtpu: 0.0.40
codegen_flags: <defaults>
</compile_context>

<pallas_src>
import functools
import math

import jax
import jax.numpy as jnp
from jax.experimental import pallas as pl
from jax.experimental.pallas import tpu as pltpu


# ---------------------------------------------------------------------------
# Pallas kernels
# ---------------------------------------------------------------------------

def _apply_act(y, act):
    if act == "relu":          # stem nn.ReLU
        return jnp.maximum(y, 0.0)
    if act == "hardtanh":      # custom ReLU = Hardtanh(0, 20)
        return jnp.clip(y, 0.0, 20.0)
    return y                   # act == "none"


def _gemm_bn_act_kernel(x_ref, w_ref, scale_ref, bias_ref, out_ref, *, act):
    # x_ref: (M, K) im2col patches, w_ref: (K, Cout), scale/bias: (1, Cout)
    y = jnp.dot(x_ref[...], w_ref[...], preferred_element_type=jnp.float32)
    y = y * scale_ref[...] + bias_ref[...]
    out_ref[...] = _apply_act(y, act).astype(out_ref.dtype)


def _gemm_bn_add_act_kernel(x_ref, w_ref, scale_ref, bias_ref, res_ref,
                            out_ref, *, act):
    # Same as above + fused residual add before the activation.
    y = jnp.dot(x_ref[...], w_ref[...], preferred_element_type=jnp.float32)
    y = y * scale_ref[...] + bias_ref[...] + res_ref[...]
    out_ref[...] = _apply_act(y, act).astype(out_ref.dtype)


def _head_kernel(x_ref, pool_ref, w_ref, b_ref, out_ref, *, scale_factor):
    # x_ref: (N*P, C) final feature map, pool_ref: (N, N*P) avg-pool matrix,
    # w_ref: (C, E) fc weight (already transposed), b_ref: (1, E).
    pooled = jnp.dot(pool_ref[...], x_ref[...],
                     preferred_element_type=jnp.float32)          # (N, C)
    emb = jnp.dot(pooled, w_ref[...],
                  preferred_element_type=jnp.float32) + b_ref[...]  # (N, E)
    # l2_norm: x / sqrt(sum(x^2, dim=1) + 1e-10)   (rsqrt -> EUP)
    sumsq = jnp.sum(emb * emb, axis=1, keepdims=True)
    emb = emb * jax.lax.rsqrt(sumsq + 1e-10)
    out_ref[...] = (scale_factor * emb).astype(out_ref.dtype)


# ---------------------------------------------------------------------------
# Wrappers around pallas_call
# ---------------------------------------------------------------------------

def _vmem_specs(n):
    return [pl.BlockSpec(memory_space=pltpu.MemorySpace.VMEM) for _ in range(n)]


def _fold_bn(bn, eps=1e-5):
    scale = bn["gamma"] / jnp.sqrt(bn["var"] + eps)
    bias = bn["beta"] - bn["mean"] * scale
    return scale.reshape(1, -1), bias.reshape(1, -1)


def _conv_bn_act(x_nhwc, w_oihw, bn, *, stride, pad, act, residual=None):
    """Fused conv + BN(+residual) + activation as a single Pallas GEMM."""
    N, H, W, Cin = x_nhwc.shape
    Cout, _, KH, KW = w_oihw.shape
    Ho = (H + 2 * pad - KH) // stride + 1
    Wo = (W + 2 * pad - KW) // stride + 1
    M = N * Ho * Wo

    # im2col (wrapper-side layout glue).
    xp = jnp.pad(x_nhwc, ((0, 0), (pad, pad), (pad, pad), (0, 0)))
    cols = []
    for kh in range(KH):
        for kw in range(KW):
            sl = xp[:, kh::stride, kw::stride, :][:, :Ho, :Wo, :]
            cols.append(sl.reshape(M, Cin))
    x_col = jnp.concatenate(cols, axis=1)                        # (M, KH*KW*Cin)
    w_col = jnp.transpose(w_oihw, (2, 3, 1, 0)).reshape(KH * KW * Cin, Cout)

    scale, bias = _fold_bn(bn)
    K = KH * KW * Cin
    cost = pl.CostEstimate(flops=2 * M * K * Cout, transcendentals=0,
                           bytes_accessed=4 * (M * K + K * Cout + 2 * M * Cout))

    if residual is None:
        kern = functools.partial(_gemm_bn_act_kernel, act=act)
        operands = (x_col, w_col, scale, bias)
    else:
        kern = functools.partial(_gemm_bn_add_act_kernel, act=act)
        operands = (x_col, w_col, scale, bias, residual.reshape(M, Cout))

    y = pl.pallas_call(
        kern,
        out_shape=jax.ShapeDtypeStruct((M, Cout), jnp.float32),
        in_specs=_vmem_specs(len(operands)),
        out_specs=pl.BlockSpec(memory_space=pltpu.MemorySpace.VMEM),
        cost_estimate=cost,
    )(*operands)
    return y.reshape(N, Ho, Wo, Cout)


def _basic_block(x, p):
    s = p["stride"]
    out = _conv_bn_act(x, p["conv1"], p["bn1"], stride=s, pad=1, act="hardtanh")
    if "down_conv" in p:
        residual = _conv_bn_act(x, p["down_conv"], p["down_bn"],
                                stride=s, pad=0, act="none")
    else:
        residual = x
    return _conv_bn_act(out, p["conv2"], p["bn2"], stride=1, pad=1,
                        act="hardtanh", residual=residual)


def resnet_vari_cale_forward(x_nchw, params, scale_factor=1.0):
    # NCHW -> NHWC (channels on the lane axis) — layout glue only.
    x = jnp.transpose(x_nchw, (0, 2, 3, 1))
    # Stem: 7x7/2 conv + BN + plain ReLU.
    x = _conv_bn_act(x, params["conv1"], params["bn1"], stride=2, pad=3,
                     act="relu")
    for layer in params["layers"]:
        for blk in layer:
            x = _basic_block(x, blk)

    N, Hf, Wf, C = x.shape
    P = Hf * Wf
    x_flat = x.reshape(N * P, C)
    pool = jnp.repeat(jnp.eye(N, dtype=jnp.float32), P, axis=1) / float(P)
    w_fc = jnp.transpose(params["fc_w"])                         # (C, E)
    b_fc = params["fc_b"].reshape(1, -1)
    E = w_fc.shape[1]

    kern = functools.partial(_head_kernel, scale_factor=float(scale_factor))
    feat = pl.pallas_call(
        kern,
        out_shape=jax.ShapeDtypeStruct((N, E), jnp.float32),
        in_specs=_vmem_specs(4),
        out_specs=pl.BlockSpec(memory_space=pltpu.MemorySpace.VMEM),
        cost_estimate=pl.CostEstimate(
            flops=2 * (N * N * P * C + N * C * E), transcendentals=N,
            bytes_accessed=4 * (N * P * C + C * E + N * E)),
    )(x_flat, pool, w_fc, b_fc)
    return feat


# ---------------------------------------------------------------------------
# Parameter construction (mirrors the PyTorch init; inference-mode BN stats)
# ---------------------------------------------------------------------------

def build_params(key, embedding_size):
    keys = iter(jax.random.split(key, 128))

    def conv_w(cout, cin, k):
        n = k * k * cout
        return jax.random.normal(next(keys), (cout, cin, k, k),
                                 jnp.float32) * math.sqrt(2.0 / n)

    def bn_p(c):
        k1, k2, k3, k4 = jax.random.split(next(keys), 4)
        return {
            "gamma": 1.0 + 0.1 * jax.random.normal(k1, (c,), jnp.float32),
            "beta": 0.1 * jax.random.normal(k2, (c,), jnp.float32),
            "mean": 0.1 * jax.random.normal(k3, (c,), jnp.float32),
            "var": jax.random.uniform(k4, (c,), jnp.float32,
                                      minval=0.5, maxval=1.5),
        }

    params = {"conv1": conv_w(16, 1, 7), "bn1": bn_p(16)}
    inplanes = 16
    layers = []
    for planes, blocks, stride in ((16, 3, 1), (32, 4, 2), (64, 6, 2), (128, 3, 2)):
        layer = []
        for bi in range(blocks):
            s = stride if bi == 0 else 1
            blk = {
                "stride": s,
                "conv1": conv_w(planes, inplanes, 3), "bn1": bn_p(planes),
                "conv2": conv_w(planes, planes, 3), "bn2": bn_p(planes),
            }
            if s != 1 or inplanes != planes:
                blk["down_conv"] = conv_w(planes, inplanes, 1)
                blk["down_bn"] = bn_p(planes)
            layer.append(blk)
            inplanes = planes
        layers.append(layer)
    params["layers"] = layers

    std = math.sqrt(2.0 / (128 + embedding_size))     # xavier_normal_
    params["fc_w"] = std * jax.random.normal(next(keys),
                                             (embedding_size, 128), jnp.float32)
    params["fc_b"] = jnp.zeros((embedding_size,), jnp.float32)
    return params


# ---------------------------------------------------------------------------
# Pure-JAX reference (mirrors the PyTorch forward) for a sanity check
# ---------------------------------------------------------------------------

def reference_forward(x_nchw, params, scale_factor=1.0):
    hp = jax.lax.Precision.HIGHEST

    def conv(x, w, stride, pad):
        return jax.lax.conv_general_dilated(
            x, jnp.transpose(w, (2, 3, 1, 0)),
            window_strides=(stride, stride), padding=((pad, pad), (pad, pad)),
            dimension_numbers=("NHWC", "HWIO", "NHWC"), precision=hp)

    def bn(x, p, eps=1e-5):
        return (x - p["mean"]) / jnp.sqrt(p["var"] + eps) * p["gamma"] + p["beta"]

    x = jnp.transpose(x_nchw, (0, 2, 3, 1))
    x = jnp.maximum(bn(conv(x, params["conv1"], 2, 3), params["bn1"]), 0.0)
    for layer in params["layers"]:
        for p in layer:
            s = p["stride"]
            out = jnp.clip(bn(conv(x, p["conv1"], s, 1), p["bn1"]), 0.0, 20.0)
            if "down_conv" in p:
                res = bn(conv(x, p["down_conv"], s, 0), p["down_bn"])
            else:
                res = x
            x = jnp.clip(bn(conv(out, p["conv2"], 1, 1), p["bn2"]) + res, 0.0, 20.0)

    pooled = jnp.mean(x, axis=(1, 2))
    emb = jnp.dot(pooled, params["fc_w"].T, precision=hp) + params["fc_b"]
    emb = emb / jnp.sqrt(jnp.sum(emb * emb, axis=1, keepdims=True) + 1e-10)
    return scale_factor * emb


# ---------------------------------------------------------------------------

if __name__ == "__main__":
    N, H, W = 2, 32, 32
    embedding_size = 64        # num_classes / self.classifier only used in
                               # forward_classifier, not in forward() -> skipped
    key = jax.random.PRNGKey(0)
    kp, kx = jax.random.split(key)
    params = build_params(kp, embedding_size)
    x = jax.random.normal(kx, (N, 1, H, W), dtype=jnp.float32)

    fwd = jax.jit(lambda xin: resnet_vari_cale_forward(xin, params,
                                                       scale_factor=1.0))
    out = jax.block_until_ready(fwd(x))

    ref = reference_forward(x, params, scale_factor=1.0)
    assert out.shape == (N, embedding_size)
    err = float(jnp.max(jnp.abs(out - ref)))
    assert err < 5e-3, f"max abs error vs reference: {err}"

    print("KERNEL_OK")
</pallas_src>

<mosaic_0001>
module attributes {stable_mosaic.version = 11 : i64} {
  func.func @_gemm_bn_act_kernel(%arg0: memref<512x49xf32, #tpu.memory_space<vmem>>, %arg1: memref<49x16xf32, #tpu.memory_space<vmem>>, %arg2: memref<1x16xf32, #tpu.memory_space<vmem>>, %arg3: memref<1x16xf32, #tpu.memory_space<vmem>>, %arg4: memref<512x16xf32, #tpu.memory_space<vmem>>) attributes {dimension_semantics = [], scalar_prefetch = 0 : i64, scratch_operands = 0 : i64, tpu.core_type = #tpu.core_type<tc>} {
    %c0 = arith.constant 0 : index
    %c0_0 = arith.constant 0 : index
    %0 = vector.load %arg0[%c0, %c0_0] : memref<512x49xf32, #tpu.memory_space<vmem>>, vector<512x49xf32>
    %c0_1 = arith.constant 0 : index
    %c0_2 = arith.constant 0 : index
    %1 = vector.load %arg1[%c0_1, %c0_2] : memref<49x16xf32, #tpu.memory_space<vmem>>, vector<49x16xf32>
    %cst = arith.constant dense<0.000000e+00> : vector<512x16xf32>
    %2 = tpu.matmul %0, %1, %cst {dimension_numbers = #tpu.dot_dimension_numbers<[1], [0], [0], [1], [0, 0, 1, 1], [], []>} : vector<512x49xf32>, vector<49x16xf32>, vector<512x16xf32> -> vector<512x16xf32>
    %c0_3 = arith.constant 0 : index
    %c0_4 = arith.constant 0 : index
    %3 = vector.load %arg2[%c0_3, %c0_4] : memref<1x16xf32, #tpu.memory_space<vmem>>, vector<1x16xf32>
    %4 = vector.broadcast %3 : vector<1x16xf32> to vector<512x16xf32>
    %5 = arith.mulf %2, %4 : vector<512x16xf32>
    %c0_5 = arith.constant 0 : index
    %c0_6 = arith.constant 0 : index
    %6 = vector.load %arg3[%c0_5, %c0_6] : memref<1x16xf32, #tpu.memory_space<vmem>>, vector<1x16xf32>
    %7 = vector.broadcast %6 : vector<1x16xf32> to vector<512x16xf32>
    %8 = arith.addf %5, %7 : vector<512x16xf32>
    %cst_7 = arith.constant 0.000000e+00 : f32
    %9 = vector.broadcast %cst_7 : f32 to vector<512x16xf32>
    %10 = arith.maximumf %8, %9 : vector<512x16xf32>
    %c0_8 = arith.constant 0 : index
    %c0_9 = arith.constant 0 : index
    %11 = vector.load %arg4[%c0_8, %c0_9] : memref<512x16xf32, #tpu.memory_space<vmem>>, vector<512x16xf32>
    tpu.vector_store %arg4[%c0_8, %c0_9], %10 {strides = array<i32>} : memref<512x16xf32, #tpu.memory_space<vmem>>, vector<512x16xf32>,
    return
  }
}

module attributes {stable_mosaic.version = 11 : i64} {
  func.func @_gemm_bn_act_kernel(%arg0: memref<512x144xf32, #tpu.memory_space<vmem>>, %arg1: memref<144x16xf32, #tpu.memory_space<vmem>>, %arg2: memref<1x16xf32, #tpu.memory_space<vmem>>, %arg3: memref<1x16xf32, #tpu.memory_space<vmem>>, %arg4: memref<512x16xf32, #tpu.memory_space<vmem>>) attributes {dimension_semantics = [], scalar_prefetch = 0 : i64, scratch_operands = 0 : i64, tpu.core_type = #tpu.core_type<tc>} {
    %c0 = arith.constant 0 : index
    %c0_0 = arith.constant 0 : index
    %0 = vector.load %arg0[%c0, %c0_0] : memref<512x144xf32, #tpu.memory_space<vmem>>, vector<512x144xf32>
    %c0_1 = arith.constant 0 : index
    %c0_2 = arith.constant 0 : index
    %1 = vector.load %arg1[%c0_1, %c0_2] : memref<144x16xf32, #tpu.memory_space<vmem>>, vector<144x16xf32>
    %cst = arith.constant dense<0.000000e+00> : vector<512x16xf32>
    %2 = tpu.matmul %0, %1, %cst {dimension_numbers = #tpu.dot_dimension_numbers<[1], [0], [0], [1], [0, 0, 1, 1], [], []>} : vector<512x144xf32>, vector<144x16xf32>, vector<512x16xf32> -> vector<512x16xf32>
    %c0_3 = arith.constant 0 : index
    %c0_4 = arith.constant 0 : index
    %3 = vector.load %arg2[%c0_3, %c0_4] : memref<1x16xf32, #tpu.memory_space<vmem>>, vector<1x16xf32>
    %4 = vector.broadcast %3 : vector<1x16xf32> to vector<512x16xf32>
    %5 = arith.mulf %2, %4 : vector<512x16xf32>
    %c0_5 = arith.constant 0 : index
    %c0_6 = arith.constant 0 : index
    %6 = vector.load %arg3[%c0_5, %c0_6] : memref<1x16xf32, #tpu.memory_space<vmem>>, vector<1x16xf32>
    %7 = vector.broadcast %6 : vector<1x16xf32> to vector<512x16xf32>
    %8 = arith.addf %5, %7 : vector<512x16xf32>
    %cst_7 = arith.constant 0.000000e+00 : f32
    %cst_8 = arith.constant 2.000000e+01 : f32
    %9 = vector.broadcast %cst_7 : f32 to vector<512x16xf32>
    %10 = arith.maximumf %9, %8 : vector<512x16xf32>
    %11 = vector.broadcast %cst_8 : f32 to vector<512x16xf32>
    %12 = arith.minimumf %11, %10 : vector<512x16xf32>
    %c0_9 = arith.constant 0 : index
    %c0_10 = arith.constant 0 : index
    %13 = vector.load %arg4[%c0_9, %c0_10] : memref<512x16xf32, #tpu.memory_space<vmem>>, vector<512x16xf32>
    tpu.vector_store %arg4[%c0_9, %c0_10], %12 {strides = array<i32>} : memref<512x16xf32, #tpu.memory_space<vmem>>, vector<512x16xf32>,
    return
  }
}

module attributes {stable_mosaic.version = 11 : i64} {
  func.func @_gemm_bn_add_act_kernel(%arg0: memref<512x144xf32, #tpu.memory_space<vmem>>, %arg1: memref<144x16xf32, #tpu.memory_space<vmem>>, %arg2: memref<1x16xf32, #tpu.memory_space<vmem>>, %arg3: memref<1x16xf32, #tpu.memory_space<vmem>>, %arg4: memref<512x16xf32, #tpu.memory_space<vmem>>, %arg5: memref<512x16xf32, #tpu.memory_space<vmem>>) attributes {dimension_semantics = [], scalar_prefetch = 0 : i64, scratch_operands = 0 : i64, tpu.core_type = #tpu.core_type<tc>} {
    %c0 = arith.constant 0 : index
    %c0_0 = arith.constant 0 : index
    %0 = vector.load %arg0[%c0, %c0_0] : memref<512x144xf32, #tpu.memory_space<vmem>>, vector<512x144xf32>
    %c0_1 = arith.constant 0 : index
    %c0_2 = arith.constant 0 : index
    %1 = vector.load %arg1[%c0_1, %c0_2] : memref<144x16xf32, #tpu.memory_space<vmem>>, vector<144x16xf32>
    %cst = arith.constant dense<0.000000e+00> : vector<512x16xf32>
    %2 = tpu.matmul %0, %1, %cst {dimension_numbers = #tpu.dot_dimension_numbers<[1], [0], [0], [1], [0, 0, 1, 1], [], []>} : vector<512x144xf32>, vector<144x16xf32>, vector<512x16xf32> -> vector<512x16xf32>
    %c0_3 = arith.constant 0 : index
    %c0_4 = arith.constant 0 : index
    %3 = vector.load %arg2[%c0_3, %c0_4] : memref<1x16xf32, #tpu.memory_space<vmem>>, vector<1x16xf32>
    %4 = vector.broadcast %3 : vector<1x16xf32> to vector<512x16xf32>
    %5 = arith.mulf %2, %4 : vector<512x16xf32>
    %c0_5 = arith.constant 0 : index
    %c0_6 = arith.constant 0 : index
    %6 = vector.load %arg3[%c0_5, %c0_6] : memref<1x16xf32, #tpu.memory_space<vmem>>, vector<1x16xf32>
    %7 = vector.broadcast %6 : vector<1x16xf32> to vector<512x16xf32>
    %8 = arith.addf %5, %7 : vector<512x16xf32>
    %c0_7 = arith.constant 0 : index
    %c0_8 = arith.constant 0 : index
    %9 = vector.load %arg4[%c0_7, %c0_8] : memref<512x16xf32, #tpu.memory_space<vmem>>, vector<512x16xf32>
    %10 = arith.addf %8, %9 : vector<512x16xf32>
    %cst_9 = arith.constant 0.000000e+00 : f32
    %cst_10 = arith.constant 2.000000e+01 : f32
    %11 = vector.broadcast %cst_9 : f32 to vector<512x16xf32>
    %12 = arith.maximumf %11, %10 : vector<512x16xf32>
    %13 = vector.broadcast %cst_10 : f32 to vector<512x16xf32>
    %14 = arith.minimumf %13, %12 : vector<512x16xf32>
    %c0_11 = arith.constant 0 : index
    %c0_12 = arith.constant 0 : index
    %15 = vector.load %arg5[%c0_11, %c0_12] : memref<512x16xf32, #tpu.memory_space<vmem>>, vector<512x16xf32>
    tpu.vector_store %arg5[%c0_11, %c0_12], %14 {strides = array<i32>} : memref<512x16xf32, #tpu.memory_space<vmem>>, vector<512x16xf32>,
    return
  }
}

module attributes {stable_mosaic.version = 11 : i64} {
  func.func @_gemm_bn_act_kernel(%arg0: memref<128x144xf32, #tpu.memory_space<vmem>>, %arg1: memref<144x32xf32, #tpu.memory_space<vmem>>, %arg2: memref<1x32xf32, #tpu.memory_space<vmem>>, %arg3: memref<1x32xf32, #tpu.memory_space<vmem>>, %arg4: memref<128x32xf32, #tpu.memory_space<vmem>>) attributes {dimension_semantics = [], scalar_prefetch = 0 : i64, scratch_operands = 0 : i64, tpu.core_type = #tpu.core_type<tc>} {
    %c0 = arith.constant 0 : index
    %c0_0 = arith.constant 0 : index
    %0 = vector.load %arg0[%c0, %c0_0] : memref<128x144xf32, #tpu.memory_space<vmem>>, vector<128x144xf32>
    %c0_1 = arith.constant 0 : index
    %c0_2 = arith.constant 0 : index
    %1 = vector.load %arg1[%c0_1, %c0_2] : memref<144x32xf32, #tpu.memory_space<vmem>>, vector<144x32xf32>
    %cst = arith.constant dense<0.000000e+00> : vector<128x32xf32>
    %2 = tpu.matmul %0, %1, %cst {dimension_numbers = #tpu.dot_dimension_numbers<[1], [0], [0], [1], [0, 0, 1, 1], [], []>} : vector<128x144xf32>, vector<144x32xf32>, vector<128x32xf32> -> vector<128x32xf32>
    %c0_3 = arith.constant 0 : index
    %c0_4 = arith.constant 0 : index
    %3 = vector.load %arg2[%c0_3, %c0_4] : memref<1x32xf32, #tpu.memory_space<vmem>>, vector<1x32xf32>
    %4 = vector.broadcast %3 : vector<1x32xf32> to vector<128x32xf32>
    %5 = arith.mulf %2, %4 : vector<128x32xf32>
    %c0_5 = arith.constant 0 : index
    %c0_6 = arith.constant 0 : index
    %6 = vector.load %arg3[%c0_5, %c0_6] : memref<1x32xf32, #tpu.memory_space<vmem>>, vector<1x32xf32>
    %7 = vector.broadcast %6 : vector<1x32xf32> to vector<128x32xf32>
    %8 = arith.addf %5, %7 : vector<128x32xf32>
    %cst_7 = arith.constant 0.000000e+00 : f32
    %cst_8 = arith.constant 2.000000e+01 : f32
    %9 = vector.broadcast %cst_7 : f32 to vector<128x32xf32>
    %10 = arith.maximumf %9, %8 : vector<128x32xf32>
    %11 = vector.broadcast %cst_8 : f32 to vector<128x32xf32>
    %12 = arith.minimumf %11, %10 : vector<128x32xf32>
    %c0_9 = arith.constant 0 : index
    %c0_10 = arith.constant 0 : index
    %13 = vector.load %arg4[%c0_9, %c0_10] : memref<128x32xf32, #tpu.memory_space<vmem>>, vector<128x32xf32>
    tpu.vector_store %arg4[%c0_9, %c0_10], %12 {strides = array<i32>} : memref<128x32xf32, #tpu.memory_space<vmem>>, vector<128x32xf32>,
    return
  }
}

module attributes {stable_mosaic.version = 11 : i64} {
  func.func @_gemm_bn_add_act_kernel(%arg0: memref<128x288xf32, #tpu.memory_space<vmem>>, %arg1: memref<288x32xf32, #tpu.memory_space<vmem>>, %arg2: memref<1x32xf32, #tpu.memory_space<vmem>>, %arg3: memref<1x32xf32, #tpu.memory_space<vmem>>, %arg4: memref<128x32xf32, #tpu.memory_space<vmem>>, %arg5: memref<128x32xf32, #tpu.memory_space<vmem>>) attributes {dimension_semantics = [], scalar_prefetch = 0 : i64, scratch_operands = 0 : i64, tpu.core_type = #tpu.core_type<tc>} {
    %c0 = arith.constant 0 : index
    %c0_0 = arith.constant 0 : index
    %0 = vector.load %arg0[%c0, %c0_0] : memref<128x288xf32, #tpu.memory_space<vmem>>, vector<128x288xf32>
    %c0_1 = arith.constant 0 : index
    %c0_2 = arith.constant 0 : index
    %1 = vector.load %arg1[%c0_1, %c0_2] : memref<288x32xf32, #tpu.memory_space<vmem>>, vector<288x32xf32>
    %cst = arith.constant dense<0.000000e+00> : vector<128x32xf32>
    %2 = tpu.matmul %0, %1, %cst {dimension_numbers = #tpu.dot_dimension_numbers<[1], [0], [0], [1], [0, 0, 1, 1], [], []>} : vector<128x288xf32>, vector<288x32xf32>, vector<128x32xf32> -> vector<128x32xf32>
    %c0_3 = arith.constant 0 : index
    %c0_4 = arith.constant 0 : index
    %3 = vector.load %arg2[%c0_3, %c0_4] : memref<1x32xf32, #tpu.memory_space<vmem>>, vector<1x32xf32>
    %4 = vector.broadcast %3 : vector<1x32xf32> to vector<128x32xf32>
    %5 = arith.mulf %2, %4 : vector<128x32xf32>
    %c0_5 = arith.constant 0 : index
    %c0_6 = arith.constant 0 : index
    %6 = vector.load %arg3[%c0_5, %c0_6] : memref<1x32xf32, #tpu.memory_space<vmem>>, vector<1x32xf32>
    %7 = vector.broadcast %6 : vector<1x32xf32> to vector<128x32xf32>
    %8 = arith.addf %5, %7 : vector<128x32xf32>
    %c0_7 = arith.constant 0 : index
    %c0_8 = arith.constant 0 : index
    %9 = vector.load %arg4[%c0_7, %c0_8] : memref<128x32xf32, #tpu.memory_space<vmem>>, vector<128x32xf32>
    %10 = arith.addf %8, %9 : vector<128x32xf32>
    %cst_9 = arith.constant 0.000000e+00 : f32
    %cst_10 = arith.constant 2.000000e+01 : f32
    %11 = vector.broadcast %cst_9 : f32 to vector<128x32xf32>
    %12 = arith.maximumf %11, %10 : vector<128x32xf32>
    %13 = vector.broadcast %cst_10 : f32 to vector<128x32xf32>
    %14 = arith.minimumf %13, %12 : vector<128x32xf32>
    %c0_11 = arith.constant 0 : index
    %c0_12 = arith.constant 0 : index
    %15 = vector.load %arg5[%c0_11, %c0_12] : memref<128x32xf32, #tpu.memory_space<vmem>>, vector<128x32xf32>
    tpu.vector_store %arg5[%c0_11, %c0_12], %14 {strides = array<i32>} : memref<128x32xf32, #tpu.memory_space<vmem>>, vector<128x32xf32>,
    return
  }
}

module attributes {stable_mosaic.version = 11 : i64} {
  func.func @_gemm_bn_act_kernel(%arg0: memref<128x16xf32, #tpu.memory_space<vmem>>, %arg1: memref<16x32xf32, #tpu.memory_space<vmem>>, %arg2: memref<1x32xf32, #tpu.memory_space<vmem>>, %arg3: memref<1x32xf32, #tpu.memory_space<vmem>>, %arg4: memref<128x32xf32, #tpu.memory_space<vmem>>) attributes {dimension_semantics = [], scalar_prefetch = 0 : i64, scratch_operands = 0 : i64, tpu.core_type = #tpu.core_type<tc>} {
    %c0 = arith.constant 0 : index
    %c0_0 = arith.constant 0 : index
    %0 = vector.load %arg0[%c0, %c0_0] : memref<128x16xf32, #tpu.memory_space<vmem>>, vector<128x16xf32>
    %c0_1 = arith.constant 0 : index
    %c0_2 = arith.constant 0 : index
    %1 = vector.load %arg1[%c0_1, %c0_2] : memref<16x32xf32, #tpu.memory_space<vmem>>, vector<16x32xf32>
    %cst = arith.constant dense<0.000000e+00> : vector<128x32xf32>
    %2 = tpu.matmul %0, %1, %cst {dimension_numbers = #tpu.dot_dimension_numbers<[1], [0], [0], [1], [0, 0, 1, 1], [], []>} : vector<128x16xf32>, vector<16x32xf32>, vector<128x32xf32> -> vector<128x32xf32>
    %c0_3 = arith.constant 0 : index
    %c0_4 = arith.constant 0 : index
    %3 = vector.load %arg2[%c0_3, %c0_4] : memref<1x32xf32, #tpu.memory_space<vmem>>, vector<1x32xf32>
    %4 = vector.broadcast %3 : vector<1x32xf32> to vector<128x32xf32>
    %5 = arith.mulf %2, %4 : vector<128x32xf32>
    %c0_5 = arith.constant 0 : index
    %c0_6 = arith.constant 0 : index
    %6 = vector.load %arg3[%c0_5, %c0_6] : memref<1x32xf32, #tpu.memory_space<vmem>>, vector<1x32xf32>
    %7 = vector.broadcast %6 : vector<1x32xf32> to vector<128x32xf32>
    %8 = arith.addf %5, %7 : vector<128x32xf32>
    %c0_7 = arith.constant 0 : index
    %c0_8 = arith.constant 0 : index
    %9 = vector.load %arg4[%c0_7, %c0_8] : memref<128x32xf32, #tpu.memory_space<vmem>>, vector<128x32xf32>
    tpu.vector_store %arg4[%c0_7, %c0_8], %8 {strides = array<i32>} : memref<128x32xf32, #tpu.memory_space<vmem>>, vector<128x32xf32>,
    return
  }
}

module attributes {stable_mosaic.version = 11 : i64} {
  func.func @_gemm_bn_act_kernel(%arg0: memref<128x288xf32, #tpu.memory_space<vmem>>, %arg1: memref<288x32xf32, #tpu.memory_space<vmem>>, %arg2: memref<1x32xf32, #tpu.memory_space<vmem>>, %arg3: memref<1x32xf32, #tpu.memory_space<vmem>>, %arg4: memref<128x32xf32, #tpu.memory_space<vmem>>) attributes {dimension_semantics = [], scalar_prefetch = 0 : i64, scratch_operands = 0 : i64, tpu.core_type = #tpu.core_type<tc>} {
    %c0 = arith.constant 0 : index
    %c0_0 = arith.constant 0 : index
    %0 = vector.load %arg0[%c0, %c0_0] : memref<128x288xf32, #tpu.memory_space<vmem>>, vector<128x288xf32>
    %c0_1 = arith.constant 0 : index
    %c0_2 = arith.constant 0 : index
    %1 = vector.load %arg1[%c0_1, %c0_2] : memref<288x32xf32, #tpu.memory_space<vmem>>, vector<288x32xf32>
    %cst = arith.constant dense<0.000000e+00> : vector<128x32xf32>
    %2 = tpu.matmul %0, %1, %cst {dimension_numbers = #tpu.dot_dimension_numbers<[1], [0], [0], [1], [0, 0, 1, 1], [], []>} : vector<128x288xf32>, vector<288x32xf32>, vector<128x32xf32> -> vector<128x32xf32>
    %c0_3 = arith.constant 0 : index
    %c0_4 = arith.constant 0 : index
    %3 = vector.load %arg2[%c0_3, %c0_4] : memref<1x32xf32, #tpu.memory_space<vmem>>, vector<1x32xf32>
    %4 = vector.broadcast %3 : vector<1x32xf32> to vector<128x32xf32>
    %5 = arith.mulf %2, %4 : vector<128x32xf32>
    %c0_5 = arith.constant 0 : index
    %c0_6 = arith.constant 0 : index
    %6 = vector.load %arg3[%c0_5, %c0_6] : memref<1x32xf32, #tpu.memory_space<vmem>>, vector<1x32xf32>
    %7 = vector.broadcast %6 : vector<1x32xf32> to vector<128x32xf32>
    %8 = arith.addf %5, %7 : vector<128x32xf32>
    %cst_7 = arith.constant 0.000000e+00 : f32
    %cst_8 = arith.constant 2.000000e+01 : f32
    %9 = vector.broadcast %cst_7 : f32 to vector<128x32xf32>
    %10 = arith.maximumf %9, %8 : vector<128x32xf32>
    %11 = vector.broadcast %cst_8 : f32 to vector<128x32xf32>
    %12 = arith.minimumf %11, %10 : vector<128x32xf32>
    %c0_9 = arith.constant 0 : index
    %c0_10 = arith.constant 0 : index
    %13 = vector.load %arg4[%c0_9, %c0_10] : memref<128x32xf32, #tpu.memory_space<vmem>>, vector<128x32xf32>
    tpu.vector_store %arg4[%c0_9, %c0_10], %12 {strides = array<i32>} : memref<128x32xf32, #tpu.memory_space<vmem>>, vector<128x32xf32>,
    return
  }
}

module attributes {stable_mosaic.version = 11 : i64} {
  func.func @_gemm_bn_act_kernel(%arg0: memref<32x288xf32, #tpu.memory_space<vmem>>, %arg1: memref<288x64xf32, #tpu.memory_space<vmem>>, %arg2: memref<1x64xf32, #tpu.memory_space<vmem>>, %arg3: memref<1x64xf32, #tpu.memory_space<vmem>>, %arg4: memref<32x64xf32, #tpu.memory_space<vmem>>) attributes {dimension_semantics = [], scalar_prefetch = 0 : i64, scratch_operands = 0 : i64, tpu.core_type = #tpu.core_type<tc>} {
    %c0 = arith.constant 0 : index
    %c0_0 = arith.constant 0 : index
    %0 = vector.load %arg0[%c0, %c0_0] : memref<32x288xf32, #tpu.memory_space<vmem>>, vector<32x288xf32>
    %c0_1 = arith.constant 0 : index
    %c0_2 = arith.constant 0 : index
    %1 = vector.load %arg1[%c0_1, %c0_2] : memref<288x64xf32, #tpu.memory_space<vmem>>, vector<288x64xf32>
    %cst = arith.constant dense<0.000000e+00> : vector<32x64xf32>
    %2 = tpu.matmul %0, %1, %cst {dimension_numbers = #tpu.dot_dimension_numbers<[1], [0], [0], [1], [0, 0, 1, 1], [], []>} : vector<32x288xf32>, vector<288x64xf32>, vector<32x64xf32> -> vector<32x64xf32>
    %c0_3 = arith.constant 0 : index
    %c0_4 = arith.constant 0 : index
    %3 = vector.load %arg2[%c0_3, %c0_4] : memref<1x64xf32, #tpu.memory_space<vmem>>, vector<1x64xf32>
    %4 = vector.broadcast %3 : vector<1x64xf32> to vector<32x64xf32>
    %5 = arith.mulf %2, %4 : vector<32x64xf32>
    %c0_5 = arith.constant 0 : index
    %c0_6 = arith.constant 0 : index
    %6 = vector.load %arg3[%c0_5, %c0_6] : memref<1x64xf32, #tpu.memory_space<vmem>>, vector<1x64xf32>
    %7 = vector.broadcast %6 : vector<1x64xf32> to vector<32x64xf32>
    %8 = arith.addf %5, %7 : vector<32x64xf32>
    %cst_7 = arith.constant 0.000000e+00 : f32
    %cst_8 = arith.constant 2.000000e+01 : f32
    %9 = vector.broadcast %cst_7 : f32 to vector<32x64xf32>
    %10 = arith.maximumf %9, %8 : vector<32x64xf32>
    %11 = vector.broadcast %cst_8 : f32 to vector<32x64xf32>
    %12 = arith.minimumf %11, %10 : vector<32x64xf32>
    %c0_9 = arith.constant 0 : index
    %c0_10 = arith.constant 0 : index
    %13 = vector.load %arg4[%c0_9, %c0_10] : memref<32x64xf32, #tpu.memory_space<vmem>>, vector<32x64xf32>
    tpu.vector_store %arg4[%c0_9, %c0_10], %12 {strides = array<i32>} : memref<32x64xf32, #tpu.memory_space<vmem>>, vector<32x64xf32>,
    return
  }
}

module attributes {stable_mosaic.version = 11 : i64} {
  func.func @_gemm_bn_add_act_kernel(%arg0: memref<32x576xf32, #tpu.memory_space<vmem>>, %arg1: memref<576x64xf32, #tpu.memory_space<vmem>>, %arg2: memref<1x64xf32, #tpu.memory_space<vmem>>, %arg3: memref<1x64xf32, #tpu.memory_space<vmem>>, %arg4: memref<32x64xf32, #tpu.memory_space<vmem>>, %arg5: memref<32x64xf32, #tpu.memory_space<vmem>>) attributes {dimension_semantics = [], scalar_prefetch = 0 : i64, scratch_operands = 0 : i64, tpu.core_type = #tpu.core_type<tc>} {
    %c0 = arith.constant 0 : index
    %c0_0 = arith.constant 0 : index
    %0 = vector.load %arg0[%c0, %c0_0] : memref<32x576xf32, #tpu.memory_space<vmem>>, vector<32x576xf32>
    %c0_1 = arith.constant 0 : index
    %c0_2 = arith.constant 0 : index
    %1 = vector.load %arg1[%c0_1, %c0_2] : memref<576x64xf32, #tpu.memory_space<vmem>>, vector<576x64xf32>
    %cst = arith.constant dense<0.000000e+00> : vector<32x64xf32>
    %2 = tpu.matmul %0, %1, %cst {dimension_numbers = #tpu.dot_dimension_numbers<[1], [0], [0], [1], [0, 0, 1, 1], [], []>} : vector<32x576xf32>, vector<576x64xf32>, vector<32x64xf32> -> vector<32x64xf32>
    %c0_3 = arith.constant 0 : index
    %c0_4 = arith.constant 0 : index
    %3 = vector.load %arg2[%c0_3, %c0_4] : memref<1x64xf32, #tpu.memory_space<vmem>>, vector<1x64xf32>
    %4 = vector.broadcast %3 : vector<1x64xf32> to vector<32x64xf32>
    %5 = arith.mulf %2, %4 : vector<32x64xf32>
    %c0_5 = arith.constant 0 : index
    %c0_6 = arith.constant 0 : index
    %6 = vector.load %arg3[%c0_5, %c0_6] : memref<1x64xf32, #tpu.memory_space<vmem>>, vector<1x64xf32>
    %7 = vector.broadcast %6 : vector<1x64xf32> to vector<32x64xf32>
    %8 = arith.addf %5, %7 : vector<32x64xf32>
    %c0_7 = arith.constant 0 : index
    %c0_8 = arith.constant 0 : index
    %9 = vector.load %arg4[%c0_7, %c0_8] : memref<32x64xf32, #tpu.memory_space<vmem>>, vector<32x64xf32>
    %10 = arith.addf %8, %9 : vector<32x64xf32>
    %cst_9 = arith.constant 0.000000e+00 : f32
    %cst_10 = arith.constant 2.000000e+01 : f32
    %11 = vector.broadcast %cst_9 : f32 to vector<32x64xf32>
    %12 = arith.maximumf %11, %10 : vector<32x64xf32>
    %13 = vector.broadcast %cst_10 : f32 to vector<32x64xf32>
    %14 = arith.minimumf %13, %12 : vector<32x64xf32>
    %c0_11 = arith.constant 0 : index
    %c0_12 = arith.constant 0 : index
    %15 = vector.load %arg5[%c0_11, %c0_12] : memref<32x64xf32, #tpu.memory_space<vmem>>, vector<32x64xf32>
    tpu.vector_store %arg5[%c0_11, %c0_12], %14 {strides = array<i32>} : memref<32x64xf32, #tpu.memory_space<vmem>>, vector<32x64xf32>,
    return
  }
}

module attributes {stable_mosaic.version = 11 : i64} {
  func.func @_gemm_bn_act_kernel(%arg0: memref<32x32xf32, #tpu.memory_space<vmem>>, %arg1: memref<32x64xf32, #tpu.memory_space<vmem>>, %arg2: memref<1x64xf32, #tpu.memory_space<vmem>>, %arg3: memref<1x64xf32, #tpu.memory_space<vmem>>, %arg4: memref<32x64xf32, #tpu.memory_space<vmem>>) attributes {dimension_semantics = [], scalar_prefetch = 0 : i64, scratch_operands = 0 : i64, tpu.core_type = #tpu.core_type<tc>} {
    %c0 = arith.constant 0 : index
    %c0_0 = arith.constant 0 : index
    %0 = vector.load %arg0[%c0, %c0_0] : memref<32x32xf32, #tpu.memory_space<vmem>>, vector<32x32xf32>
    %c0_1 = arith.constant 0 : index
    %c0_2 = arith.constant 0 : index
    %1 = vector.load %arg1[%c0_1, %c0_2] : memref<32x64xf32, #tpu.memory_space<vmem>>, vector<32x64xf32>
    %cst = arith.constant dense<0.000000e+00> : vector<32x64xf32>
    %2 = tpu.matmul %0, %1, %cst {dimension_numbers = #tpu.dot_dimension_numbers<[1], [0], [0], [1], [0, 0, 1, 1], [], []>} : vector<32x32xf32>, vector<32x64xf32>, vector<32x64xf32> -> vector<32x64xf32>
    %c0_3 = arith.constant 0 : index
    %c0_4 = arith.constant 0 : index
    %3 = vector.load %arg2[%c0_3, %c0_4] : memref<1x64xf32, #tpu.memory_space<vmem>>, vector<1x64xf32>
    %4 = vector.broadcast %3 : vector<1x64xf32> to vector<32x64xf32>
    %5 = arith.mulf %2, %4 : vector<32x64xf32>
    %c0_5 = arith.constant 0 : index
    %c0_6 = arith.constant 0 : index
    %6 = vector.load %arg3[%c0_5, %c0_6] : memref<1x64xf32, #tpu.memory_space<vmem>>, vector<1x64xf32>
    %7 = vector.broadcast %6 : vector<1x64xf32> to vector<32x64xf32>
    %8 = arith.addf %5, %7 : vector<32x64xf32>
    %c0_7 = arith.constant 0 : index
    %c0_8 = arith.constant 0 : index
    %9 = vector.load %arg4[%c0_7, %c0_8] : memref<32x64xf32, #tpu.memory_space<vmem>>, vector<32x64xf32>
    tpu.vector_store %arg4[%c0_7, %c0_8], %8 {strides = array<i32>} : memref<32x64xf32, #tpu.memory_space<vmem>>, vector<32x64xf32>,
    return
  }
}

module attributes {stable_mosaic.version = 11 : i64} {
  func.func @_gemm_bn_act_kernel(%arg0: memref<32x576xf32, #tpu.memory_space<vmem>>, %arg1: memref<576x64xf32, #tpu.memory_space<vmem>>, %arg2: memref<1x64xf32, #tpu.memory_space<vmem>>, %arg3: memref<1x64xf32, #tpu.memory_space<vmem>>, %arg4: memref<32x64xf32, #tpu.memory_space<vmem>>) attributes {dimension_semantics = [], scalar_prefetch = 0 : i64, scratch_operands = 0 : i64, tpu.core_type = #tpu.core_type<tc>} {
    %c0 = arith.constant 0 : index
    %c0_0 = arith.constant 0 : index
    %0 = vector.load %arg0[%c0, %c0_0] : memref<32x576xf32, #tpu.memory_space<vmem>>, vector<32x576xf32>
    %c0_1 = arith.constant 0 : index
    %c0_2 = arith.constant 0 : index
    %1 = vector.load %arg1[%c0_1, %c0_2] : memref<576x64xf32, #tpu.memory_space<vmem>>, vector<576x64xf32>
    %cst = arith.constant dense<0.000000e+00> : vector<32x64xf32>
    %2 = tpu.matmul %0, %1, %cst {dimension_numbers = #tpu.dot_dimension_numbers<[1], [0], [0], [1], [0, 0, 1, 1], [], []>} : vector<32x576xf32>, vector<576x64xf32>, vector<32x64xf32> -> vector<32x64xf32>
    %c0_3 = arith.constant 0 : index
    %c0_4 = arith.constant 0 : index
    %3 = vector.load %arg2[%c0_3, %c0_4] : memref<1x64xf32, #tpu.memory_space<vmem>>, vector<1x64xf32>
    %4 = vector.broadcast %3 : vector<1x64xf32> to vector<32x64xf32>
    %5 = arith.mulf %2, %4 : vector<32x64xf32>
    %c0_5 = arith.constant 0 : index
    %c0_6 = arith.constant 0 : index
    %6 = vector.load %arg3[%c0_5, %c0_6] : memref<1x64xf32, #tpu.memory_space<vmem>>, vector<1x64xf32>
    %7 = vector.broadcast %6 : vector<1x64xf32> to vector<32x64xf32>
    %8 = arith.addf %5, %7 : vector<32x64xf32>
    %cst_7 = arith.constant 0.000000e+00 : f32
    %cst_8 = arith.constant 2.000000e+01 : f32
    %9 = vector.broadcast %cst_7 : f32 to vector<32x64xf32>
    %10 = arith.maximumf %9, %8 : vector<32x64xf32>
    %11 = vector.broadcast %cst_8 : f32 to vector<32x64xf32>
    %12 = arith.minimumf %11, %10 : vector<32x64xf32>
    %c0_9 = arith.constant 0 : index
    %c0_10 = arith.constant 0 : index
    %13 = vector.load %arg4[%c0_9, %c0_10] : memref<32x64xf32, #tpu.memory_space<vmem>>, vector<32x64xf32>
    tpu.vector_store %arg4[%c0_9, %c0_10], %12 {strides = array<i32>} : memref<32x64xf32, #tpu.memory_space<vmem>>, vector<32x64xf32>,
    return
  }
}

module attributes {stable_mosaic.version = 11 : i64} {
  func.func @_gemm_bn_act_kernel(%arg0: memref<8x576xf32, #tpu.memory_space<vmem>>, %arg1: memref<576x128xf32, #tpu.memory_space<vmem>>, %arg2: memref<1x128xf32, #tpu.memory_space<vmem>>, %arg3: memref<1x128xf32, #tpu.memory_space<vmem>>, %arg4: memref<8x128xf32, #tpu.memory_space<vmem>>) attributes {dimension_semantics = [], scalar_prefetch = 0 : i64, scratch_operands = 0 : i64, tpu.core_type = #tpu.core_type<tc>} {
    %c0 = arith.constant 0 : index
    %c0_0 = arith.constant 0 : index
    %0 = vector.load %arg0[%c0, %c0_0] : memref<8x576xf32, #tpu.memory_space<vmem>>, vector<8x576xf32>
    %c0_1 = arith.constant 0 : index
    %c0_2 = arith.constant 0 : index
    %1 = vector.load %arg1[%c0_1, %c0_2] : memref<576x128xf32, #tpu.memory_space<vmem>>, vector<576x128xf32>
    %cst = arith.constant dense<0.000000e+00> : vector<8x128xf32>
    %2 = tpu.matmul %0, %1, %cst {dimension_numbers = #tpu.dot_dimension_numbers<[1], [0], [0], [1], [0, 0, 1, 1], [], []>} : vector<8x576xf32>, vector<576x128xf32>, vector<8x128xf32> -> vector<8x128xf32>
    %c0_3 = arith.constant 0 : index
    %c0_4 = arith.constant 0 : index
    %3 = vector.load %arg2[%c0_3, %c0_4] : memref<1x128xf32, #tpu.memory_space<vmem>>, vector<1x128xf32>
    %4 = vector.broadcast %3 : vector<1x128xf32> to vector<8x128xf32>
    %5 = arith.mulf %2, %4 : vector<8x128xf32>
    %c0_5 = arith.constant 0 : index
    %c0_6 = arith.constant 0 : index
    %6 = vector.load %arg3[%c0_5, %c0_6] : memref<1x128xf32, #tpu.memory_space<vmem>>, vector<1x128xf32>
    %7 = vector.broadcast %6 : vector<1x128xf32> to vector<8x128xf32>
    %8 = arith.addf %5, %7 : vector<8x128xf32>
    %cst_7 = arith.constant 0.000000e+00 : f32
    %cst_8 = arith.constant 2.000000e+01 : f32
    %9 = vector.broadcast %cst_7 : f32 to vector<8x128xf32>
    %10 = arith.maximumf %9, %8 : vector<8x128xf32>
    %11 = vector.broadcast %cst_8 : f32 to vector<8x128xf32>
    %12 = arith.minimumf %11, %10 : vector<8x128xf32>
    %c0_9 = arith.constant 0 : index
    %c0_10 = arith.constant 0 : index
    %13 = vector.load %arg4[%c0_9, %c0_10] : memref<8x128xf32, #tpu.memory_space<vmem>>, vector<8x128xf32>
    tpu.vector_store %arg4[%c0_9, %c0_10], %12 {strides = array<i32>} : memref<8x128xf32, #tpu.memory_space<vmem>>, vector<8x128xf32>,
    return
  }
}

module attributes {stable_mosaic.version = 11 : i64} {
  func.func @_gemm_bn_act_kernel(%arg0: memref<8x64xf32, #tpu.memory_space<vmem>>, %arg1: memref<64x128xf32, #tpu.memory_space<vmem>>, %arg2: memref<1x128xf32, #tpu.memory_space<vmem>>, %arg3: memref<1x128xf32, #tpu.memory_space<vmem>>, %arg4: memref<8x128xf32, #tpu.memory_space<vmem>>) attributes {dimension_semantics = [], scalar_prefetch = 0 : i64, scratch_operands = 0 : i64, tpu.core_type = #tpu.core_type<tc>} {
    %c0 = arith.constant 0 : index
    %c0_0 = arith.constant 0 : index
    %0 = vector.load %arg0[%c0, %c0_0] : memref<8x64xf32, #tpu.memory_space<vmem>>, vector<8x64xf32>
    %c0_1 = arith.constant 0 : index
    %c0_2 = arith.constant 0 : index
    %1 = vector.load %arg1[%c0_1, %c0_2] : memref<64x128xf32, #tpu.memory_space<vmem>>, vector<64x128xf32>
    %cst = arith.constant dense<0.000000e+00> : vector<8x128xf32>
    %2 = tpu.matmul %0, %1, %cst {dimension_numbers = #tpu.dot_dimension_numbers<[1], [0], [0], [1], [0, 0, 1, 1], [], []>} : vector<8x64xf32>, vector<64x128xf32>, vector<8x128xf32> -> vector<8x128xf32>
    %c0_3 = arith.constant 0 : index
    %c0_4 = arith.constant 0 : index
    %3 = vector.load %arg2[%c0_3, %c0_4] : memref<1x128xf32, #tpu.memory_space<vmem>>, vector<1x128xf32>
    %4 = vector.broadcast %3 : vector<1x128xf32> to vector<8x128xf32>
    %5 = arith.mulf %2, %4 : vector<8x128xf32>
    %c0_5 = arith.constant 0 : index
    %c0_6 = arith.constant 0 : index
    %6 = vector.load %arg3[%c0_5, %c0_6] : memref<1x128xf32, #tpu.memory_space<vmem>>, vector<1x128xf32>
    %7 = vector.broadcast %6 : vector<1x128xf32> to vector<8x128xf32>
    %8 = arith.addf %5, %7 : vector<8x128xf32>
    %c0_7 = arith.constant 0 : index
    %c0_8 = arith.constant 0 : index
    %9 = vector.load %arg4[%c0_7, %c0_8] : memref<8x128xf32, #tpu.memory_space<vmem>>, vector<8x128xf32>
    tpu.vector_store %arg4[%c0_7, %c0_8], %8 {strides = array<i32>} : memref<8x128xf32, #tpu.memory_space<vmem>>, vector<8x128xf32>,
    return
  }
}

module attributes {stable_mosaic.version = 11 : i64} {
  func.func @_gemm_bn_act_kernel(%arg0: memref<8x1152xf32, #tpu.memory_space<vmem>>, %arg1: memref<1152x128xf32, #tpu.memory_space<vmem>>, %arg2: memref<1x128xf32, #tpu.memory_space<vmem>>, %arg3: memref<1x128xf32, #tpu.memory_space<vmem>>, %arg4: memref<8x128xf32, #tpu.memory_space<vmem>>) attributes {dimension_semantics = [], scalar_prefetch = 0 : i64, scratch_operands = 0 : i64, tpu.core_type = #tpu.core_type<tc>} {
    %c0 = arith.constant 0 : index
    %c0_0 = arith.constant 0 : index
    %0 = vector.load %arg0[%c0, %c0_0] : memref<8x1152xf32, #tpu.memory_space<vmem>>, vector<8x1152xf32>
    %c0_1 = arith.constant 0 : index
    %c0_2 = arith.constant 0 : index
    %1 = vector.load %arg1[%c0_1, %c0_2] : memref<1152x128xf32, #tpu.memory_space<vmem>>, vector<1152x128xf32>
    %cst = arith.constant dense<0.000000e+00> : vector<8x128xf32>
    %2 = tpu.matmul %0, %1, %cst {dimension_numbers = #tpu.dot_dimension_numbers<[1], [0], [0], [1], [0, 0, 1, 1], [], []>} : vector<8x1152xf32>, vector<1152x128xf32>, vector<8x128xf32> -> vector<8x128xf32>
    %c0_3 = arith.constant 0 : index
    %c0_4 = arith.constant 0 : index
    %3 = vector.load %arg2[%c0_3, %c0_4] : memref<1x128xf32, #tpu.memory_space<vmem>>, vector<1x128xf32>
    %4 = vector.broadcast %3 : vector<1x128xf32> to vector<8x128xf32>
    %5 = arith.mulf %2, %4 : vector<8x128xf32>
    %c0_5 = arith.constant 0 : index
    %c0_6 = arith.constant 0 : index
    %6 = vector.load %arg3[%c0_5, %c0_6] : memref<1x128xf32, #tpu.memory_space<vmem>>, vector<1x128xf32>
    %7 = vector.broadcast %6 : vector<1x128xf32> to vector<8x128xf32>
    %8 = arith.addf %5, %7 : vector<8x128xf32>
    %cst_7 = arith.constant 0.000000e+00 : f32
    %cst_8 = arith.constant 2.000000e+01 : f32
    %9 = vector.broadcast %cst_7 : f32 to vector<8x128xf32>
    %10 = arith.maximumf %9, %8 : vector<8x128xf32>
    %11 = vector.broadcast %cst_8 : f32 to vector<8x128xf32>
    %12 = arith.minimumf %11, %10 : vector<8x128xf32>
    %c0_9 = arith.constant 0 : index
    %c0_10 = arith.constant 0 : index
    %13 = vector.load %arg4[%c0_9, %c0_10] : memref<8x128xf32, #tpu.memory_space<vmem>>, vector<8x128xf32>
    tpu.vector_store %arg4[%c0_9, %c0_10], %12 {strides = array<i32>} : memref<8x128xf32, #tpu.memory_space<vmem>>, vector<8x128xf32>,
    return
  }
}

module attributes {stable_mosaic.version = 11 : i64} {
  func.func @_gemm_bn_add_act_kernel(%arg0: memref<8x1152xf32, #tpu.memory_space<vmem>>, %arg1: memref<1152x128xf32, #tpu.memory_space<vmem>>, %arg2: memref<1x128xf32, #tpu.memory_space<vmem>>, %arg3: memref<1x128xf32, #tpu.memory_space<vmem>>, %arg4: memref<8x128xf32, #tpu.memory_space<vmem>>, %arg5: memref<8x128xf32, #tpu.memory_space<vmem>>) attributes {dimension_semantics = [], scalar_prefetch = 0 : i64, scratch_operands = 0 : i64, tpu.core_type = #tpu.core_type<tc>} {
    %c0 = arith.constant 0 : index
    %c0_0 = arith.constant 0 : index
    %0 = vector.load %arg0[%c0, %c0_0] : memref<8x1152xf32, #tpu.memory_space<vmem>>, vector<8x1152xf32>
    %c0_1 = arith.constant 0 : index
    %c0_2 = arith.constant 0 : index
    %1 = vector.load %arg1[%c0_1, %c0_2] : memref<1152x128xf32, #tpu.memory_space<vmem>>, vector<1152x128xf32>
    %cst = arith.constant dense<0.000000e+00> : vector<8x128xf32>
    %2 = tpu.matmul %0, %1, %cst {dimension_numbers = #tpu.dot_dimension_numbers<[1], [0], [0], [1], [0, 0, 1, 1], [], []>} : vector<8x1152xf32>, vector<1152x128xf32>, vector<8x128xf32> -> vector<8x128xf32>
    %c0_3 = arith.constant 0 : index
    %c0_4 = arith.constant 0 : index
    %3 = vector.load %arg2[%c0_3, %c0_4] : memref<1x128xf32, #tpu.memory_space<vmem>>, vector<1x128xf32>
    %4 = vector.broadcast %3 : vector<1x128xf32> to vector<8x128xf32>
    %5 = arith.mulf %2, %4 : vector<8x128xf32>
    %c0_5 = arith.constant 0 : index
    %c0_6 = arith.constant 0 : index
    %6 = vector.load %arg3[%c0_5, %c0_6] : memref<1x128xf32, #tpu.memory_space<vmem>>, vector<1x128xf32>
    %7 = vector.broadcast %6 : vector<1x128xf32> to vector<8x128xf32>
    %8 = arith.addf %5, %7 : vector<8x128xf32>
    %c0_7 = arith.constant 0 : index
    %c0_8 = arith.constant 0 : index
    %9 = vector.load %arg4[%c0_7, %c0_8] : memref<8x128xf32, #tpu.memory_space<vmem>>, vector<8x128xf32>
    %10 = arith.addf %8, %9 : vector<8x128xf32>
    %cst_9 = arith.constant 0.000000e+00 : f32
    %cst_10 = arith.constant 2.000000e+01 : f32
    %11 = vector.broadcast %cst_9 : f32 to vector<8x128xf32>
    %12 = arith.maximumf %11, %10 : vector<8x128xf32>
    %13 = vector.broadcast %cst_10 : f32 to vector<8x128xf32>
    %14 = arith.minimumf %13, %12 : vector<8x128xf32>
    %c0_11 = arith.constant 0 : index
    %c0_12 = arith.constant 0 : index
    %15 = vector.load %arg5[%c0_11, %c0_12] : memref<8x128xf32, #tpu.memory_space<vmem>>, vector<8x128xf32>
    tpu.vector_store %arg5[%c0_11, %c0_12], %14 {strides = array<i32>} : memref<8x128xf32, #tpu.memory_space<vmem>>, vector<8x128xf32>,
    return
  }
}

module attributes {stable_mosaic.version = 11 : i64} {
  func.func @_head_kernel(%arg0: memref<8x128xf32, #tpu.memory_space<vmem>>, %arg1: memref<2x8xf32, #tpu.memory_space<vmem>>, %arg2: memref<128x64xf32, #tpu.memory_space<vmem>>, %arg3: memref<1x64xf32, #tpu.memory_space<vmem>>, %arg4: memref<2x64xf32, #tpu.memory_space<vmem>>) attributes {dimension_semantics = [], scalar_prefetch = 0 : i64, scratch_operands = 0 : i64, tpu.core_type = #tpu.core_type<tc>} {
    %c0 = arith.constant 0 : index
    %c0_0 = arith.constant 0 : index
    %0 = vector.load %arg1[%c0, %c0_0] : memref<2x8xf32, #tpu.memory_space<vmem>>, vector<2x8xf32>
    %c0_1 = arith.constant 0 : index
    %c0_2 = arith.constant 0 : index
    %1 = vector.load %arg0[%c0_1, %c0_2] : memref<8x128xf32, #tpu.memory_space<vmem>>, vector<8x128xf32>
    %cst = arith.constant dense<0.000000e+00> : vector<2x128xf32>
    %2 = tpu.matmul %0, %1, %cst {dimension_numbers = #tpu.dot_dimension_numbers<[1], [0], [0], [1], [0, 0, 1, 1], [], []>} : vector<2x8xf32>, vector<8x128xf32>, vector<2x128xf32> -> vector<2x128xf32>
    %c0_3 = arith.constant 0 : index
    %c0_4 = arith.constant 0 : index
    %3 = vector.load %arg2[%c0_3, %c0_4] : memref<128x64xf32, #tpu.memory_space<vmem>>, vector<128x64xf32>
    %cst_5 = arith.constant dense<0.000000e+00> : vector<2x64xf32>
    %4 = tpu.matmul %2, %3, %cst_5 {dimension_numbers = #tpu.dot_dimension_numbers<[1], [0], [0], [1], [0, 0, 1, 1], [], []>} : vector<2x128xf32>, vector<128x64xf32>, vector<2x64xf32> -> vector<2x64xf32>
    %c0_6 = arith.constant 0 : index
    %c0_7 = arith.constant 0 : index
    %5 = vector.load %arg3[%c0_6, %c0_7] : memref<1x64xf32, #tpu.memory_space<vmem>>, vector<1x64xf32>
    %6 = vector.broadcast %5 : vector<1x64xf32> to vector<2x64xf32>
    %7 = arith.addf %4, %6 : vector<2x64xf32>
    %8 = arith.mulf %7, %7 : vector<2x64xf32>
    %cst_8 = arith.constant dense<0.000000e+00> : vector<2xf32>
    %9 = vector.multi_reduction <add>, %8, %cst_8 [1] : vector<2x64xf32> to vector<2xf32>
    %10 = vector.shape_cast %9 : vector<2xf32> to vector<2x1xf32>
    %cst_9 = arith.constant 1.000000e-10 : f32
    %11 = vector.broadcast %cst_9 : f32 to vector<2x1xf32>
    %12 = arith.addf %10, %11 : vector<2x1xf32>
    %13 = math.rsqrt %12 : vector<2x1xf32>
    %14 = vector.broadcast %13 : vector<2x1xf32> to vector<2x64xf32>
    %15 = arith.mulf %7, %14 : vector<2x64xf32>
    %cst_10 = arith.constant 1.000000e+00 : f32
    %16 = vector.broadcast %cst_10 : f32 to vector<2x64xf32>
    %17 = arith.mulf %16, %15 : vector<2x64xf32>
    %c0_11 = arith.constant 0 : index
    %c0_12 = arith.constant 0 : index
    %18 = vector.load %arg4[%c0_11, %c0_12] : memref<2x64xf32, #tpu.memory_space<vmem>>, vector<2x64xf32>
    tpu.vector_store %arg4[%c0_11, %c0_12], %17 {strides = array<i32>} : memref<2x64xf32, #tpu.memory_space<vmem>>, vector<2x64xf32>,
    return
  }
}

</mosaic_0001>

<llo_original>
// kernel: _lambda_.37
$region0: #{_lambda_.37}
  #allocation0 [shape = 'u32[]', space=smem, size = 0x4, offset = 0x4, fixed_abs, tag = 'smem constant byte address 0x4 - core index']
  #allocation1 [shape = 'u32[144,128]{1,0:T(1,128)}', space=vmem, size = 0x12000, scoped, tag = 'internal scratch']
  %s0 = inlined_call_operand.vmem [shape: f32[512,49], index: 0, kind: input, shape index: {}]
  %s1 = inlined_call_operand.vmem [shape: f32[49,16], index: 1, kind: input, shape index: {}]
  %s2 = inlined_call_operand.vmem [shape: f32[1,16], index: 2, kind: input, shape index: {}]
  %s3 = inlined_call_operand.vmem [shape: f32[1,16], index: 3, kind: input, shape index: {}]
  %s4 = inlined_call_operand.vmem [shape: f32[512,16], index: 4, kind: output, shape index: {}]
  %s5 = sld [smem:[#allocation0]]
  $region26: #{_lambda_.37} parent=0
    _
  %s7 = ssub.s32 1, %s5
  %s8 = scalar_select 0, %s7, %s5
  // Predicated region
  $region2: #{_lambda_.37} parent=0 // pred_check
    _
  $region3: #{_lambda_.37} parent=0 // pred_check_branch
    %10 = sbr.rel (0) target = $region5
  $region4: #{_lambda_.37} parent=0 // pred_region
    _
  $region5: #{_lambda_.37} parent=0 // pred_fallthru
    _
  // Predicated region
  $region6: #{_lambda_.37} parent=0 // pred_check
    _
  $region7: #{_lambda_.37} parent=0 // pred_check_branch
    %12 = sbr.rel (0) target = $region9
  $region8: #{_lambda_.37} parent=0 // pred_region
    _
  $region9: #{_lambda_.37} parent=0 // pred_fallthru
    _
  // Predicated region
  $region10: #{_lambda_.37} parent=0 // pred_check
    _
  $region11: #{_lambda_.37} parent=0 // pred_check_branch
    %14 = sbr.rel (0) target = $region13
  $region12: #{_lambda_.37} parent=0 // pred_region
    _
  $region13: #{_lambda_.37} parent=0 // pred_fallthru
    _
  // Predicated region
  $region14: #{_lambda_.37} parent=0 // pred_check
    _
  $region15: #{_lambda_.37} parent=0 // pred_check_branch
    %16 = sbr.rel (0) target = $region17
  $region16: #{_lambda_.37} parent=0 // pred_region
    _
  $region17: #{_lambda_.37} parent=0 // pred_fallthru
    _
  %v17 = vld [vmem:[%s0] sm:$0xff]
  %v18 = vld [vmem:[%s0 + $0x8] sm:$0xff]
  %v19 = vld [vmem:[%s0 + $0x10] sm:$0xff]
  %v20 = vld [vmem:[%s0 + $0x18] sm:$0xff]
  %v21 = vld [vmem:[%s0 + $0x20] sm:$0xff]
  %v22 = vld [vmem:[%s0 + $0x28] sm:$0xff]
  %v23 = vld [vmem:[%s0 + $0x30] sm:$0xff]
  %v24 = vld [vmem:[%s0 + $0x38] sm:$0xff]
  %v25 = vld [vmem:[%s0 + $0x40] sm:$0xff]
  %v26 = vld [vmem:[%s0 + $0x48] sm:$0xff]
  %v27 = vld [vmem:[%s0 + $0x50] sm:$0xff]
  %v28 = vld [vmem:[%s0 + $0x58] sm:$0xff]
  %v29 = vld [vmem:[%s0 + $0x60] sm:$0xff]
  %v30 = vld [vmem:[%s0 + $0x68] sm:$0xff]
  %v31 = vld [vmem:[%s0 + $0x70] sm:$0xff]
  %v32 = vld [vmem:[%s0 + $0x78] sm:$0xff]
  %v33 = vld [vmem:[%s0 + $0x80] sm:$0xff]
  %v34 = vld [vmem:[%s0 + $0x88] sm:$0xff]
  %v35 = vld [vmem:[%s0 + $0x90] sm:$0xff]
  %v36 = vld [vmem:[%s0 + $0x98] sm:$0xff]
  %v37 = vld [vmem:[%s0 + $0xa0] sm:$0xff]
  %v38 = vld [vmem:[%s0 + $0xa8] sm:$0xff]
  %v39 = vld [vmem:[%s0 + $0xb0] sm:$0xff]
  %v40 = vld [vmem:[%s0 + $0xb8] sm:$0xff]
  %v41 = vld [vmem:[%s0 + $0xc0] sm:$0xff]
  %v42 = vld [vmem:[%s0 + $0xc8] sm:$0xff]
  %v43 = vld [vmem:[%s0 + $0xd0] sm:$0xff]
  %v44 = vld [vmem:[%s0 + $0xd8] sm:$0xff]
  %v45 = vld [vmem:[%s0 + $0xe0] sm:$0xff]
  %v46 = vld [vmem:[%s0 + $0xe8] sm:$0xff]
  %v47 = vld [vmem:[%s0 + $0xf0] sm:$0xff]
  %v48 = vld [vmem:[%s0 + $0xf8] sm:$0xff]
  %v49 = vld [vmem:[%s0 + $0x100] sm:$0xff]
  %v50 = vld [vmem:[%s0 + $0x108] sm:$0xff]
  %v51 = vld [vmem:[%s0 + $0x110] sm:$0xff]
  %v52 = vld [vmem:[%s0 + $0x118] sm:$0xff]
  %v53 = vld [vmem:[%s0 + $0x120] sm:$0xff]
  %v54 = vld [vmem:[%s0 + $0x128] sm:$0xff]
  %v55 = vld [vmem:[%s0 + $0x130] sm:$0xff]
  %v56 = vld [vmem:[%s0 + $0x138] sm:$0xff]
  %v57 = vld [vmem:[%s0 + $0x140] sm:$0xff]
  %v58 = vld [vmem:[%s0 + $0x148] sm:$0xff]
  %v59 = vld [vmem:[%s0 + $0x150] sm:$0xff]
  %v60 = vld [vmem:[%s0 + $0x158] sm:$0xff]
  %v61 = vld [vmem:[%s0 + $0x160] sm:$0xff]
  %v62 = vld [vmem:[%s0 + $0x168] sm:$0xff]
  %v63 = vld [vmem:[%s0 + $0x170] sm:$0xff]
  %v64 = vld [vmem:[%s0 + $0x178] sm:$0xff]
  %v65 = vld [vmem:[%s0 + $0x180] sm:$0xff]
  %v66 = vld [vmem:[%s0 + $0x188] sm:$0xff]
  %v67 = vld [vmem:[%s0 + $0x190] sm:$0xff]
  %v68 = vld [vmem:[%s0 + $0x198] sm:$0xff]
  %v69 = vld [vmem:[%s0 + $0x1a0] sm:$0xff]
  %v70 = vld [vmem:[%s0 + $0x1a8] sm:$0xff]
  %v71 = vld [vmem:[%s0 + $0x1b0] sm:$0xff]
  %v72 = vld [vmem:[%s0 + $0x1b8] sm:$0xff]
  %v73 = vld [vmem:[%s0 + $0x1c0] sm:$0xff]
  %v74 = vld [vmem:[%s0 + $0x1c8] sm:$0xff]
  %v75 = vld [vmem:[%s0 + $0x1d0] sm:$0xff]
  %v76 = vld [vmem:[%s0 + $0x1d8] sm:$0xff]
  %v77 = vld [vmem:[%s0 + $0x1e0] sm:$0xff]
  %v78 = vld [vmem:[%s0 + $0x1e8] sm:$0xff]
  %v79 = vld [vmem:[%s0 + $0x1f0] sm:$0xff]
  %v80 = vld [vmem:[%s0 + $0x1f8] sm:$0xff]
  %v81 = vld [vmem:[%s1] sm:$0xff]
  %v82 = vld [vmem:[%s1 + $0x8] sm:$0xff]
  %v83 = vld [vmem:[%s1 + $0x10] sm:$0xff]
  %v84 = vld [vmem:[%s1 + $0x18] sm:$0xff]
  %v85 = vld [vmem:[%s1 + $0x20] sm:$0xff]
  %v86 = vld [vmem:[%s1 + $0x28] sm:$0xff]
  %v87 = vld [vmem:[%s1 + $0x30] sm:$0x1]
  %vm88 = vcmask 400384
  %v90 = vsel %vm88, %v17, 0
  %v93 = vsel %vm88, %v18, 0
  %v96 = vsel %vm88, %v19, 0
  %v99 = vsel %vm88, %v20, 0
  %v102 = vsel %vm88, %v21, 0
  %v105 = vsel %vm88, %v22, 0
  %v108 = vsel %vm88, %v23, 0
  %v111 = vsel %vm88, %v24, 0
  %v114 = vsel %vm88, %v25, 0
  %v117 = vsel %vm88, %v26, 0
  %v120 = vsel %vm88, %v27, 0
  %v123 = vsel %vm88, %v28, 0
  %v126 = vsel %vm88, %v29, 0
  %v129 = vsel %vm88, %v30, 0
  %v132 = vsel %vm88, %v31, 0
  %v135 = vsel %vm88, %v32, 0
  %v138 = vsel %vm88, %v33, 0
  %v141 = vsel %vm88, %v34, 0
  %v144 = vsel %vm88, %v35, 0
  %v147 = vsel %vm88, %v36, 0
  %v150 = vsel %vm88, %v37, 0
  %v153 = vsel %vm88, %v38, 0
  %v156 = vsel %vm88, %v39, 0
  %v159 = vsel %vm88, %v40, 0
  %v162 = vsel %vm88, %v41, 0
  %v165 = vsel %vm88, %v42, 0
  %v168 = vsel %vm88, %v43, 0
  %v171 = vsel %vm88, %v44, 0
  %v174 = vsel %vm88, %v45, 0
  %v177 = vsel %vm88, %v46, 0
  %v180 = vsel %vm88, %v47, 0
  %v183 = vsel %vm88, %v48, 0
  %v186 = vsel %vm88, %v49, 0
  %v189 = vsel %vm88, %v50, 0
  %v192 = vsel %vm88, %v51, 0
  %v195 = vsel %vm88, %v52, 0
  %v198 = vsel %vm88, %v53, 0
  %v201 = vsel %vm88, %v54, 0
  %v204 = vsel %vm88, %v55, 0
  %v207 = vsel %vm88, %v56, 0
  %v210 = vsel %vm88, %v57, 0
  %v213 = vsel %vm88, %v58, 0
  %v216 = vsel %vm88, %v59, 0
  %v219 = vsel %vm88, %v60, 0
  %v222 = vsel %vm88, %v61, 0
  %v225 = vsel %vm88, %v62, 0
  %v228 = vsel %vm88, %v63, 0
  %v231 = vsel %vm88, %v64, 0
  %v234 = vsel %vm88, %v65, 0
  %v237 = vsel %vm88, %v66, 0
  %v240 = vsel %vm88, %v67, 0
  %v243 = vsel %vm88, %v68, 0
  %v246 = vsel %vm88, %v69, 0
  %v249 = vsel %vm88, %v70, 0
  %v252 = vsel %vm88, %v71, 0
  %v255 = vsel %vm88, %v72, 0
  %v258 = vsel %vm88, %v73, 0
  %v261 = vsel %vm88, %v74, 0
  %v264 = vsel %vm88, %v75, 0
  %v267 = vsel %vm88, %v76, 0
  %v270 = vsel %vm88, %v77, 0
  %v273 = vsel %vm88, %v78, 0
  %v276 = vsel %vm88, %v79, 0
  %v279 = vsel %vm88, %v80, 0
  %vm281 = vcmask 1040384
  %v283 = vsel %vm281, %v87, 0
  %285 = vmatprep.subr.mxu0 0.0
  %286 = vmatpush1.msra.mxu0 0.0
  %287 = vmatprep.subr.mxu0 0.0
  %288 = vmatpush1.msra.mxu0 0.0
  %289 = vmatprep.subr.mxu0 0.0
  %290 = vmatpush1.msra.mxu0 0.0
  %291 = vmatprep.subr.mxu0 0.0
  %292 = vmatpush1.msra.mxu0 0.0
  %293 = vmatprep.subr.mxu0 0.0
  %294 = vmatpush1.msra.mxu0 0.0
  %295 = vmatprep.subr.mxu0 0.0
  %296 = vmatpush1.msra.mxu0 0.0
  %297 = vmatprep.subr.mxu0 0.0
  %298 = vmatpush1.msra.mxu0 0.0
  %299 = vmatprep.subr.mxu0 0.0
  %300 = vmatpush1.msra.mxu0 0.0
  %301 = vmatprep.subr.mxu0 0.0
  %302 = vmatpush1.msra.mxu0 0.0
  %303 = vmatprep.subr.mxu0 0.0
  %304 = vmatpush1.msra.mxu0 %v283
  %305 = vmatprep.subr.mxu0 0.0
  %306 = vmatpush1.msra.mxu0 %v86
  %307 = vmatprep.subr.mxu0 0.0
  %308 = vmatpush1.msra.mxu0 %v85
  %309 = vmatprep.subr.mxu0 0.0
  %310 = vmatpush1.msra.mxu0 %v84
  %311 = vmatprep.subr.mxu0 0.0
  %312 = vmatpush1.msra.mxu0 %v83
  %313 = vmatprep.subr.mxu0 0.0
  %314 = vmatpush1.msra.mxu0 %v82
  %315 = vmatprep.subr.mxu0 0.0
  %316 = vmatpush1.msra.mxu0 %v81
  %317 = vmatprep.subr.mxu0 0.0
  %318 = vmatpush2.msra.mxu0 0.0
  %319 = vmatprep.subr.mxu0 0.0
  %320 = vmatpush2.msra.mxu0 0.0
  %321 = vmatprep.subr.mxu0 0.0
  %322 = vmatpush2.msra.mxu0 0.0
  %323 = vmatprep.subr.mxu0 0.0
  %324 = vmatpush2.msra.mxu0 0.0
  %325 = vmatprep.subr.mxu0 0.0
  %326 = vmatpush2.msra.mxu0 0.0
  %327 = vmatprep.subr.mxu0 0.0
  %328 = vmatpush2.msra.mxu0 0.0
  %329 = vmatprep.subr.mxu0 0.0
  %330 = vmatpush2.msra.mxu0 0.0
  %331 = vmatprep.subr.mxu0 0.0
  %332 = vmatpush2.msra.mxu0 0.0
  %333 = vmatprep.subr.mxu0 0.0
  %334 = vmatpush2.msra.mxu0 0.0
  %335 = vmatprep.subr.mxu0 0.0
  %336 = vmatpush2.msra.mxu0 0.0
  %337 = vmatprep.subr.mxu0 0.0
  %338 = vmatpush2.msra.mxu0 0.0
  %339 = vmatprep.subr.mxu0 0.0
  %340 = vmatpush2.msra.mxu0 0.0
  %341 = vmatprep.subr.mxu0 0.0
  %342 = vmatpush2.msra.mxu0 0.0
  %343 = vmatprep.subr.mxu0 0.0
  %344 = vmatpush2.msra.mxu0 0.0
  %345 = vmatprep.subr.mxu0 0.0
  %346 = vmatpush2.msra.mxu0 0.0
  %347 = vmatprep.subr.mxu0 0.0
  %348 = vmatpush2.msra.mxu0 0.0
  %349 = vmatprep.mubr.f32.mxu0 0.0
  %350 = vmatmul.mubr.f32.gmra.mxu0 %v90
  %v351 = vpop.f32.mrf.mxu0
  %v352 = vadd.f32 0.0, %v351
  %v353 = vpop.f32.mrf.mxu0
  %354 = vmatprep.mubr.f32.mxu0 0.0
  %355 = vmatmul.mubr.f32.gmra.mxu0 %v93
  %v356 = vpop.f32.mrf.mxu0
  %v357 = vadd.f32 0.0, %v356
  %v358 = vpop.f32.mrf.mxu0
  %359 = vmatprep.mubr.f32.mxu0 0.0
  %360 = vmatmul.mubr.f32.gmra.mxu0 %v96
  %v361 = vpop.f32.mrf.mxu0
  %v362 = vadd.f32 0.0, %v361
  %v363 = vpop.f32.mrf.mxu0
  %364 = vmatprep.mubr.f32.mxu0 0.0
  %365 = vmatmul.mubr.f32.gmra.mxu0 %v99
  %v366 = vpop.f32.mrf.mxu0
  %v367 = vadd.f32 0.0, %v366
  %v368 = vpop.f32.mrf.mxu0
  %369 = vmatprep.mubr.f32.mxu0 0.0
  %370 = vmatmul.mubr.f32.gmra.mxu0 %v102
  %v371 = vpop.f32.mrf.mxu0
  %v372 = vadd.f32 0.0, %v371
  %v373 = vpop.f32.mrf.mxu0
  %374 = vmatprep.mubr.f32.mxu0 0.0
  %375 = vmatmul.mubr.f32.gmra.mxu0 %v105
  %v376 = vpop.f32.mrf.mxu0
  %v377 = vadd.f32 0.0, %v376
  %v378 = vpop.f32.mrf.mxu0
  %379 = vmatprep.mubr.f32.mxu0 0.0
  %380 = vmatmul.mubr.f32.gmra.mxu0 %v108
  %v381 = vpop.f32.mrf.mxu0
  %v382 = vadd.f32 0.0, %v381
  %v383 = vpop.f32.mrf.mxu0
  %384 = vmatprep.mubr.f32.mxu0 0.0
  %385 = vmatmul.mubr.f32.gmra.mxu0 %v111
  %v386 = vpop.f32.mrf.mxu0
  %v387 = vadd.f32 0.0, %v386
  %v388 = vpop.f32.mrf.mxu0
  %389 = vmatprep.mubr.f32.mxu0 0.0
  %390 = vmatmul.mubr.f32.gmra.mxu0 %v114
  %v391 = vpop.f32.mrf.mxu0
  %v392 = vadd.f32 0.0, %v391
  %v393 = vpop.f32.mrf.mxu0
  %394 = vmatprep.mubr.f32.mxu0 0.0
  %395 = vmatmul.mubr.f32.gmra.mxu0 %v117
  %v396 = vpop.f32.mrf.mxu0
  %v397 = vadd.f32 0.0, %v396
  %v398 = vpop.f32.mrf.mxu0
  %399 = vmatprep.mubr.f32.mxu0 0.0
  %400 = vmatmul.mubr.f32.gmra.mxu0 %v120
  %v401 = vpop.f32.mrf.mxu0
  %v402 = vadd.f32 0.0, %v401
  %v403 = vpop.f32.mrf.mxu0
  %404 = vmatprep.mubr.f32.mxu0 0.0
  %405 = vmatmul.mubr.f32.gmra.mxu0 %v123
  %v406 = vpop.f32.mrf.mxu0
  %v407 = vadd.f32 0.0, %v406
  %v408 = vpop.f32.mrf.mxu0
  %409 = vmatprep.mubr.f32.mxu0 0.0
  %410 = vmatmul.mubr.f32.gmra.mxu0 %v126
  %v411 = vpop.f32.mrf.mxu0
  %v412 = vadd.f32 0.0, %v411
  %v413 = vpop.f32.mrf.mxu0
  %414 = vmatprep.mubr.f32.mxu0 0.0
  %415 = vmatmul.mubr.f32.gmra.mxu0 %v129
  %v416 = vpop.f32.mrf.mxu0
  %v417 = vadd.f32 0.0, %v416
  %v418 = vpop.f32.mrf.mxu0
  %419 = vmatprep.mubr.f32.mxu0 0.0
  %420 = vmatmul.mubr.f32.gmra.mxu0 %v132
  %v421 = vpop.f32.mrf.mxu0
  %v422 = vadd.f32 0.0, %v421
  %v423 = vpop.f32.mrf.mxu0
  %424 = vmatprep.mubr.f32.mxu0 0.0
  %425 = vmatmul.mubr.f32.gmra.mxu0 %v135
  %v426 = vpop.f32.mrf.mxu0
  %v427 = vadd.f32 0.0, %v426
  %v428 = vpop.f32.mrf.mxu0
  %429 = vmatprep.mubr.f32.mxu0 0.0
  %430 = vmatmul.mubr.f32.gmra.mxu0 %v138
  %v431 = vpop.f32.mrf.mxu0
  %v432 = vadd.f32 0.0, %v431
  %v433 = vpop.f32.mrf.mxu0
  %434 = vmatprep.mubr.f32.mxu0 0.0
  %435 = vmatmul.mubr.f32.gmra.mxu0 %v141
  %v436 = vpop.f32.mrf.mxu0
  %v437 = vadd.f32 0.0, %v436
  %v438 = vpop.f32.mrf.mxu0
  %439 = vmatprep.mubr.f32.mxu0 0.0
  %440 = vmatmul.mubr.f32.gmra.mxu0 %v144
  %v441 = vpop.f32.mrf.mxu0
  %v442 = vadd.f32 0.0, %v441
  %v443 = vpop.f32.mrf.mxu0
  %444 = vmatprep.mubr.f32.mxu0 0.0
  %445 = vmatmul.mubr.f32.gmra.mxu0 %v147
  %v446 = vpop.f32.mrf.mxu0
  %v447 = vadd.f32 0.0, %v446
  %v448 = vpop.f32.mrf.mxu0
  %449 = vmatprep.mubr.f32.mxu0 0.0
  %450 = vmatmul.mubr.f32.gmra.mxu0 %v150
  %v451 = vpop.f32.mrf.mxu0
  %v452 = vadd.f32 0.0, %v451
  %v453 = vpop.f32.mrf.mxu0
  %454 = vmatprep.mubr.f32.mxu0 0.0
  %455 = vmatmul.mubr.f32.gmra.mxu0 %v153
  %v456 = vpop.f32.mrf.mxu0
  %v457 = vadd.f32 0.0, %v456
  %v458 = vpop.f32.mrf.mxu0
  %459 = vmatprep.mubr.f32.mxu0 0.0
  %460 = vmatmul.mubr.f32.gmra.mxu0 %v156
  %v461 = vpop.f32.mrf.mxu0
  %v462 = vadd.f32 0.0, %v461
  %v463 = vpop.f32.mrf.mxu0
  %464 = vmatprep.mubr.f32.mxu0 0.0
  %465 = vmatmul.mubr.f32.gmra.mxu0 %v159
  %v466 = vpop.f32.mrf.mxu0
  %v467 = vadd.f32 0.0, %v466
  %v468 = vpop.f32.mrf.mxu0
  %469 = vmatprep.mubr.f32.mxu0 0.0
  %470 = vmatmul.mubr.f32.gmra.mxu0 %v162
  %v471 = vpop.f32.mrf.mxu0
  %v472 = vadd.f32 0.0, %v471
  %v473 = vpop.f32.mrf.mxu0
  %474 = vmatprep.mubr.f32.mxu0 0.0
  %475 = vmatmul.mubr.f32.gmra.mxu0 %v165
  %v476 = vpop.f32.mrf.mxu0
  %v477 = vadd.f32 0.0, %v476
  %v478 = vpop.f32.mrf.mxu0
  %479 = vmatprep.mubr.f32.mxu0 0.0
  %480 = vmatmul.mubr.f32.gmra.mxu0 %v168
  %v481 = vpop.f32.mrf.mxu0
  %v482 = vadd.f32 0.0, %v481
  %v483 = vpop.f32.mrf.mxu0
  %484 = vmatprep.mubr.f32.mxu0 0.0
  %485 = vmatmul.mubr.f32.gmra.mxu0 %v171
  %v486 = vpop.f32.mrf.mxu0
  %v487 = vadd.f32 0.0, %v486
  %v488 = vpop.f32.mrf.mxu0
  %489 = vmatprep.mubr.f32.mxu0 0.0
  %490 = vmatmul.mubr.f32.gmra.mxu0 %v174
  %v491 = vpop.f32.mrf.mxu0
  %v492 = vadd.f32 0.0, %v491
  %v493 = vpop.f32.mrf.mxu0
  %494 = vmatprep.mubr.f32.mxu0 0.0
  %495 = vmatmul.mubr.f32.gmra.mxu0 %v177
  %v496 = vpop.f32.mrf.mxu0
  %v497 = vadd.f32 0.0, %v496
  %v498 = vpop.f32.mrf.mxu0
  %499 = vmatprep.mubr.f32.mxu0 0.0
  %500 = vmatmul.mubr.f32.gmra.mxu0 %v180
  %v501 = vpop.f32.mrf.mxu0
  %v502 = vadd.f32 0.0, %v501
  %v503 = vpop.f32.mrf.mxu0
  %504 = vmatprep.mubr.f32.mxu0 0.0
  %505 = vmatmul.mubr.f32.gmra.mxu0 %v183
  %v506 = vpop.f32.mrf.mxu0
  %v507 = vadd.f32 0.0, %v506
  %v508 = vpop.f32.mrf.mxu0
  %509 = vmatprep.mubr.f32.mxu0 0.0
  %510 = vmatmul.mubr.f32.gmra.mxu0 %v186
  %v511 = vpop.f32.mrf.mxu0
  %v512 = vadd.f32 0.0, %v511
  %v513 = vpop.f32.mrf.mxu0
  %514 = vmatprep.mubr.f32.mxu0 0.0
  %515 = vmatmul.mubr.f32.gmra.mxu0 %v189
  %v516 = vpop.f32.mrf.mxu0
  %v517 = vadd.f32 0.0, %v516
  %v518 = vpop.f32.mrf.mxu0
  %519 = vmatprep.mubr.f32.mxu0 0.0
  %520 = vmatmul.mubr.f32.gmra.mxu0 %v192
  %v521 = vpop.f32.mrf.mxu0
  %v522 = vadd.f32 0.0, %v521
  %v523 = vpop.f32.mrf.mxu0
  %524 = vmatprep.mubr.f32.mxu0 0.0
  %525 = vmatmul.mubr.f32.gmra.mxu0 %v195
  %v526 = vpop.f32.mrf.mxu0
  %v527 = vadd.f32 0.0, %v526
  %v528 = vpop.f32.mrf.mxu0
  %529 = vmatprep.mubr.f32.mxu0 0.0
  %530 = vmatmul.mubr.f32.gmra.mxu0 %v198
  %v531 = vpop.f32.mrf.mxu0
  %v532 = vadd.f32 0.0, %v531
  %v533 = vpop.f32.mrf.mxu0
  %534 = vmatprep.mubr.f32.mxu0 0.0
  %535 = vmatmul.mubr.f32.gmra.mxu0 %v201
  %v536 = vpop.f32.mrf.mxu0
  %v537 = vadd.f32 0.0, %v536
  %v538 = vpop.f32.mrf.mxu0
  %539 = vmatprep.mubr.f32.mxu0 0.0
  %540 = vmatmul.mubr.f32.gmra.mxu0 %v204
  %v541 = vpop.f32.mrf.mxu0
  %v542 = vadd.f32 0.0, %v541
  %v543 = vpop.f32.mrf.mxu0
  %544 = vmatprep.mubr.f32.mxu0 0.0
  %545 = vmatmul.mubr.f32.gmra.mxu0 %v207
  %v546 = vpop.f32.mrf.mxu0
  %v547 = vadd.f32 0.0, %v546
  %v548 = vpop.f32.mrf.mxu0
  %549 = vmatprep.mubr.f32.mxu0 0.0
  %550 = vmatmul.mubr.f32.gmra.mxu0 %v210
  %v551 = vpop.f32.mrf.mxu0
  %v552 = vadd.f32 0.0, %v551
  %v553 = vpop.f32.mrf.mxu0
  %554 = vmatprep.mubr.f32.mxu0 0.0
  %555 = vmatmul.mubr.f32.gmra.mxu0 %v213
  %v556 = vpop.f32.mrf.mxu0
  %v557 = vadd.f32 0.0, %v556
  %v558 = vpop.f32.mrf.mxu0
  %559 = vmatprep.mubr.f32.mxu0 0.0
  %560 = vmatmul.mubr.f32.gmra.mxu0 %v216
  %v561 = vpop.f32.mrf.mxu0
  %v562 = vadd.f32 0.0, %v561
  %v563 = vpop.f32.mrf.mxu0
  %564 = vmatprep.mubr.f32.mxu0 0.0
  %565 = vmatmul.mubr.f32.gmra.mxu0 %v219
  %v566 = vpop.f32.mrf.mxu0
  %v567 = vadd.f32 0.0, %v566
  %v568 = vpop.f32.mrf.mxu0
  %569 = vmatprep.mubr.f32.mxu0 0.0
  %570 = vmatmul.mubr.f32.gmra.mxu0 %v222
  %v571 = vpop.f32.mrf.mxu0
  %v572 = vadd.f32 0.0, %v571
  %v573 = vpop.f32.mrf.mxu0
  %574 = vmatprep.mubr.f32.mxu0 0.0
  %575 = vmatmul.mubr.f32.gmra.mxu0 %v225
  %v576 = vpop.f32.mrf.mxu0
  %v577 = vadd.f32 0.0, %v576
  %v578 = vpop.f32.mrf.mxu0
  %579 = vmatprep.mubr.f32.mxu0 0.0
  %580 = vmatmul.mubr.f32.gmra.mxu0 %v228
  %v581 = vpop.f32.mrf.mxu0
  %v582 = vadd.f32 0.0, %v581
  %v583 = vpop.f32.mrf.mxu0
  %584 = vmatprep.mubr.f32.mxu0 0.0
  %585 = vmatmul.mubr.f32.gmra.mxu0 %v231
  %v586 = vpop.f32.mrf.mxu0
  %v587 = vadd.f32 0.0, %v586
  %v588 = vpop.f32.mrf.mxu0
  %589 = vmatprep.mubr.f32.mxu0 0.0
  %590 = vmatmul.mubr.f32.gmra.mxu0 %v234
  %v591 = vpop.f32.mrf.mxu0
  %v592 = vadd.f32 0.0, %v591
  %v593 = vpop.f32.mrf.mxu0
  %594 = vmatprep.mubr.f32.mxu0 0.0
  %595 = vmatmul.mubr.f32.gmra.mxu0 %v237
  %v596 = vpop.f32.mrf.mxu0
  %v597 = vadd.f32 0.0, %v596
  %v598 = vpop.f32.mrf.mxu0
  %599 = vmatprep.mubr.f32.mxu0 0.0
  %600 = vmatmul.mubr.f32.gmra.mxu0 %v240
  %v601 = vpop.f32.mrf.mxu0
  %v602 = vadd.f32 0.0, %v601
  %v603 = vpop.f32.mrf.mxu0
  %604 = vmatprep.mubr.f32.mxu0 0.0
  %605 = vmatmul.mubr.f32.gmra.mxu0 %v243
  %v606 = vpop.f32.mrf.mxu0
  %v607 = vadd.f32 0.0, %v606
  %v608 = vpop.f32.mrf.mxu0
  %609 = vmatprep.mubr.f32.mxu0 0.0
  %610 = vmatmul.mubr.f32.gmra.mxu0 %v246
  %v611 = vpop.f32.mrf.mxu0
  %v612 = vadd.f32 0.0, %v611
  %v613 = vpop.f32.mrf.mxu0
  %614 = vmatprep.mubr.f32.mxu0 0.0
  %615 = vmatmul.mubr.f32.gmra.mxu0 %v249
  %v616 = vpop.f32.mrf.mxu0
  %v617 = vadd.f32 0.0, %v616
  %v618 = vpop.f32.mrf.mxu0
  %619 = vmatprep.mubr.f32.mxu0 0.0
  %620 = vmatmul.mubr.f32.gmra.mxu0 %v252
  %v621 = vpop.f32.mrf.mxu0
  %v622 = vadd.f32 0.0, %v621
  %v623 = vpop.f32.mrf.mxu0
  %624 = vmatprep.mubr.f32.mxu0 0.0
  %625 = vmatmul.mubr.f32.gmra.mxu0 %v255
  %v626 = vpop.f32.mrf.mxu0
  %v627 = vadd.f32 0.0, %v626
  %v628 = vpop.f32.mrf.mxu0
  %629 = vmatprep.mubr.f32.mxu0 0.0
  %630 = vmatmul.mubr.f32.gmra.mxu0 %v258
  %v631 = vpop.f32.mrf.mxu0
  %v632 = vadd.f32 0.0, %v631
  %v633 = vpop.f32.mrf.mxu0
  %634 = vmatprep.mubr.f32.mxu0 0.0
  %635 = vmatmul.mubr.f32.gmra.mxu0 %v261
  %v636 = vpop.f32.mrf.mxu0
  %v637 = vadd.f32 0.0, %v636
  %v638 = vpop.f32.mrf.mxu0
  %639 = vmatprep.mubr.f32.mxu0 0.0
  %640 = vmatmul.mubr.f32.gmra.mxu0 %v264
  %v641 = vpop.f32.mrf.mxu0
  %v642 = vadd.f32 0.0, %v641
  %v643 = vpop.f32.mrf.mxu0
  %644 = vmatprep.mubr.f32.mxu0 0.0
  %645 = vmatmul.mubr.f32.gmra.mxu0 %v267
  %v646 = vpop.f32.mrf.mxu0
  %v647 = vadd.f32 0.0, %v646
  %v648 = vpop.f32.mrf.mxu0
  %649 = vmatprep.mubr.f32.mxu0 0.0
  %650 = vmatmul.mubr.f32.gmra.mxu0 %v270
  %v651 = vpop.f32.mrf.mxu0
  %v652 = vadd.f32 0.0, %v651
  %v653 = vpop.f32.mrf.mxu0
  %654 = vmatprep.mubr.f32.mxu0 0.0
  %655 = vmatmul.mubr.f32.gmra.mxu0 %v273
  %v656 = vpop.f32.mrf.mxu0
  %v657 = vadd.f32 0.0, %v656
  %v658 = vpop.f32.mrf.mxu0
  %659 = vmatprep.mubr.f32.mxu0 0.0
  %660 = vmatmul.mubr.f32.gmra.mxu0 %v276
  %v661 = vpop.f32.mrf.mxu0
  %v662 = vadd.f32 0.0, %v661
  %v663 = vpop.f32.mrf.mxu0
  %664 = vmatprep.mubr.f32.mxu0 0.0
  %665 = vmatmul.mubr.f32.gmra.mxu0 %v279
  %v666 = vpop.f32.mrf.mxu0
  %v667 = vadd.f32 0.0, %v666
  %v668 = vpop.f32.mrf.mxu0
  %669 = vdwg.mxu0
  %v670 = vld [vmem:[%s2] sm:$0x1]
  %v672 = vlaneseq
  %v673 = vshrl.u32 %v672, 7
  %v674 = vsub.s32 0, %v673
  %v675 = vrot.slane %v670, %v674
  %v677 = vmul.f32 %v352, %v675
  %v678 = vmul.f32 %v357, %v675
  %v679 = vmul.f32 %v362, %v675
  %v680 = vmul.f32 %v367, %v675
  %v681 = vmul.f32 %v372, %v675
  %v682 = vmul.f32 %v377, %v675
  %v683 = vmul.f32 %v382, %v675
  %v684 = vmul.f32 %v387, %v675
  %v685 = vmul.f32 %v392, %v675
  %v686 = vmul.f32 %v397, %v675
  %v687 = vmul.f32 %v402, %v675
  %v688 = vmul.f32 %v407, %v675
  %v689 = vmul.f32 %v412, %v675
  %v690 = vmul.f32 %v417, %v675
  %v691 = vmul.f32 %v422, %v675
  %v692 = vmul.f32 %v427, %v675
  %v693 = vmul.f32 %v432, %v675
  %v694 = vmul.f32 %v437, %v675
  %v695 = vmul.f32 %v442, %v675
  %v696 = vmul.f32 %v447, %v675
  %v697 = vmul.f32 %v452, %v675
  %v698 = vmul.f32 %v457, %v675
  %v699 = vmul.f32 %v462, %v675
  %v700 = vmul.f32 %v467, %v675
  %v701 = vmul.f32 %v472, %v675
  %v702 = vmul.f32 %v477, %v675
  %v703 = vmul.f32 %v482, %v675
  %v704 = vmul.f32 %v487, %v675
  %v705 = vmul.f32 %v492, %v675
  %v706 = vmul.f32 %v497, %v675
  %v707 = vmul.f32 %v502, %v675
  %v708 = vmul.f32 %v507, %v675
  %v709 = vmul.f32 %v512, %v675
  %v710 = vmul.f32 %v517, %v675
  %v711 = vmul.f32 %v522, %v675
  %v712 = vmul.f32 %v527, %v675
  %v713 = vmul.f32 %v532, %v675
  %v714 = vmul.f32 %v537, %v675
  %v715 = vmul.f32 %v542, %v675
  %v716 = vmul.f32 %v547, %v675
  %v717 = vmul.f32 %v552, %v675
  %v718 = vmul.f32 %v557, %v675
  %v719 = vmul.f32 %v562, %v675
  %v720 = vmul.f32 %v567, %v675
  %v721 = vmul.f32 %v572, %v675
  %v722 = vmul.f32 %v577, %v675
  %v723 = vmul.f32 %v582, %v675
  %v724 = vmul.f32 %v587, %v675
  %v725 = vmul.f32 %v592, %v675
  %v726 = vmul.f32 %v597, %v675
  %v727 = vmul.f32 %v602, %v675
  %v728 = vmul.f32 %v607, %v675
  %v729 = vmul.f32 %v612, %v675
  %v730 = vmul.f32 %v617, %v675
  %v731 = vmul.f32 %v622, %v675
  %v732 = vmul.f32 %v627, %v675
  %v733 = vmul.f32 %v632, %v675
  %v734 = vmul.f32 %v637, %v675
  %v735 = vmul.f32 %v642, %v675
  %v736 = vmul.f32 %v647, %v675
  %v737 = vmul.f32 %v652, %v675
  %v738 = vmul.f32 %v657, %v675
  %v739 = vmul.f32 %v662, %v675
  %v740 = vmul.f32 %v667, %v675
  %v741 = vld [vmem:[%s3] sm:$0x1]
  %v743 = vlaneseq
  %v744 = vshrl.u32 %v743, 7
  %v745 = vsub.s32 0, %v744
  %v746 = vrot.slane %v741, %v745
  %v748 = vadd.f32 %v677, %v746
  %v749 = vadd.f32 %v678, %v746
  %v750 = vadd.f32 %v679, %v746
  %v751 = vadd.f32 %v680, %v746
  %v752 = vadd.f32 %v681, %v746
  %v753 = vadd.f32 %v682, %v746
  %v754 = vadd.f32 %v683, %v746
  %v755 = vadd.f32 %v684, %v746
  %v756 = vadd.f32 %v685, %v746
  %v757 = vadd.f32 %v686, %v746
  %v758 = vadd.f32 %v687, %v746
  %v759 = vadd.f32 %v688, %v746
  %v760 = vadd.f32 %v689, %v746
  %v761 = vadd.f32 %v690, %v746
  %v762 = vadd.f32 %v691, %v746
  %v763 = vadd.f32 %v692, %v746
  %v764 = vadd.f32 %v693, %v746
  %v765 = vadd.f32 %v694, %v746
  %v766 = vadd.f32 %v695, %v746
  %v767 = vadd.f32 %v696, %v746
  %v768 = vadd.f32 %v697, %v746
  %v769 = vadd.f32 %v698, %v746
  %v770 = vadd.f32 %v699, %v746
  %v771 = vadd.f32 %v700, %v746
  %v772 = vadd.f32 %v701, %v746
  %v773 = vadd.f32 %v702, %v746
  %v774 = vadd.f32 %v703, %v746
  %v775 = vadd.f32 %v704, %v746
  %v776 = vadd.f32 %v705, %v746
  %v777 = vadd.f32 %v706, %v746
  %v778 = vadd.f32 %v707, %v746
  %v779 = vadd.f32 %v708, %v746
  %v780 = vadd.f32 %v709, %v746
  %v781 = vadd.f32 %v710, %v746
  %v782 = vadd.f32 %v711, %v746
  %v783 = vadd.f32 %v712, %v746
  %v784 = vadd.f32 %v713, %v746
  %v785 = vadd.f32 %v714, %v746
  %v786 = vadd.f32 %v715, %v746
  %v787 = vadd.f32 %v716, %v746
  %v788 = vadd.f32 %v717, %v746
  %v789 = vadd.f32 %v718, %v746
  %v790 = vadd.f32 %v719, %v746
  %v791 = vadd.f32 %v720, %v746
  %v792 = vadd.f32 %v721, %v746
  %v793 = vadd.f32 %v722, %v746
  %v794 = vadd.f32 %v723, %v746
  %v795 = vadd.f32 %v724, %v746
  %v796 = vadd.f32 %v725, %v746
  %v797 = vadd.f32 %v726, %v746
  %v798 = vadd.f32 %v727, %v746
  %v799 = vadd.f32 %v728, %v746
  %v800 = vadd.f32 %v729, %v746
  %v801 = vadd.f32 %v730, %v746
  %v802 = vadd.f32 %v731, %v746
  %v803 = vadd.f32 %v732, %v746
  %v804 = vadd.f32 %v733, %v746
  %v805 = vadd.f32 %v734, %v746
  %v806 = vadd.f32 %v735, %v746
  %v807 = vadd.f32 %v736, %v746
  %v808 = vadd.f32 %v737, %v746
  %v809 = vadd.f32 %v738, %v746
  %v810 = vadd.f32 %v739, %v746
  %v811 = vadd.f32 %v740, %v746
  %v812 = vmax.f32 %v748, 0.0
  %v813 = vmax.f32 %v749, 0.0
  %v814 = vmax.f32 %v750, 0.0
  %v815 = vmax.f32 %v751, 0.0
  %v816 = vmax.f32 %v752, 0.0
  %v817 = vmax.f32 %v753, 0.0
  %v818 = vmax.f32 %v754, 0.0
  %v819 = vmax.f32 %v755, 0.0
  %v820 = vmax.f32 %v756, 0.0
  %v821 = vmax.f32 %v757, 0.0
  %v822 = vmax.f32 %v758, 0.0
  %v823 = vmax.f32 %v759, 0.0
  %v824 = vmax.f32 %v760, 0.0
  %v825 = vmax.f32 %v761, 0.0
  %v826 = vmax.f32 %v762, 0.0
  %v827 = vmax.f32 %v763, 0.0
  %v828 = vmax.f32 %v764, 0.0
  %v829 = vmax.f32 %v765, 0.0
  %v830 = vmax.f32 %v766, 0.0
  %v831 = vmax.f32 %v767, 0.0
  %v832 = vmax.f32 %v768, 0.0
  %v833 = vmax.f32 %v769, 0.0
  %v834 = vmax.f32 %v770, 0.0
  %v835 = vmax.f32 %v771, 0.0
  %v836 = vmax.f32 %v772, 0.0
  %v837 = vmax.f32 %v773, 0.0
  %v838 = vmax.f32 %v774, 0.0
  %v839 = vmax.f32 %v775, 0.0
  %v840 = vmax.f32 %v776, 0.0
  %v841 = vmax.f32 %v777, 0.0
  %v842 = vmax.f32 %v778, 0.0
  %v843 = vmax.f32 %v779, 0.0
  %v844 = vmax.f32 %v780, 0.0
  %v845 = vmax.f32 %v781, 0.0
  %v846 = vmax.f32 %v782, 0.0
  %v847 = vmax.f32 %v783, 0.0
  %v848 = vmax.f32 %v784, 0.0
  %v849 = vmax.f32 %v785, 0.0
  %v850 = vmax.f32 %v786, 0.0
  %v851 = vmax.f32 %v787, 0.0
  %v852 = vmax.f32 %v788, 0.0
  %v853 = vmax.f32 %v789, 0.0
  %v854 = vmax.f32 %v790, 0.0
  %v855 = vmax.f32 %v791, 0.0
  %v856 = vmax.f32 %v792, 0.0
  %v857 = vmax.f32 %v793, 0.0
  %v858 = vmax.f32 %v794, 0.0
  %v859 = vmax.f32 %v795, 0.0
  %v860 = vmax.f32 %v796, 0.0
  %v861 = vmax.f32 %v797, 0.0
  %v862 = vmax.f32 %v798, 0.0
  %v863 = vmax.f32 %v799, 0.0
  %v864 = vmax.f32 %v800, 0.0
  %v865 = vmax.f32 %v801, 0.0
  %v866 = vmax.f32 %v802, 0.0
  %v867 = vmax.f32 %v803, 0.0
  %v868 = vmax.f32 %v804, 0.0
  %v869 = vmax.f32 %v805, 0.0
  %v870 = vmax.f32 %v806, 0.0
  %v871 = vmax.f32 %v807, 0.0
  %v872 = vmax.f32 %v808, 0.0
  %v873 = vmax.f32 %v809, 0.0
  %v874 = vmax.f32 %v810, 0.0
  %v875 = vmax.f32 %v811, 0.0
  %vm876 = vcmask 130048
  %877 = vst.msk [vmem:[%s4] sm:$0xff] %vm876, %v812
  %878 = vst.msk [vmem:[%s4 + $0x8] sm:$0xff] %vm876, %v813
  %879 = vst.msk [vmem:[%s4 + $0x10] sm:$0xff] %vm876, %v814
  %880 = vst.msk [vmem:[%s4 + $0x18] sm:$0xff] %vm876, %v815
  %881 = vst.msk [vmem:[%s4 + $0x20] sm:$0xff] %vm876, %v816
  %882 = vst.msk [vmem:[%s4 + $0x28] sm:$0xff] %vm876, %v817
  %883 = vst.msk [vmem:[%s4 + $0x30] sm:$0xff] %vm876, %v818
  %884 = vst.msk [vmem:[%s4 + $0x38] sm:$0xff] %vm876, %v819
  %885 = vst.msk [vmem:[%s4 + $0x40] sm:$0xff] %vm876, %v820
  %886 = vst.msk [vmem:[%s4 + $0x48] sm:$0xff] %vm876, %v821
  %887 = vst.msk [vmem:[%s4 + $0x50] sm:$0xff] %vm876, %v822
  %888 = vst.msk [vmem:[%s4 + $0x58] sm:$0xff] %vm876, %v823
  %889 = vst.msk [vmem:[%s4 + $0x60] sm:$0xff] %vm876, %v824
  %890 = vst.msk [vmem:[%s4 + $0x68] sm:$0xff] %vm876, %v825
  %891 = vst.msk [vmem:[%s4 + $0x70] sm:$0xff] %vm876, %v826
  %892 = vst.msk [vmem:[%s4 + $0x78] sm:$0xff] %vm876, %v827
  %893 = vst.msk [vmem:[%s4 + $0x80] sm:$0xff] %vm876, %v828
  %894 = vst.msk [vmem:[%s4 + $0x88] sm:$0xff] %vm876, %v829
  %895 = vst.msk [vmem:[%s4 + $0x90] sm:$0xff] %vm876, %v830
  %896 = vst.msk [vmem:[%s4 + $0x98] sm:$0xff] %vm876, %v831
  %897 = vst.msk [vmem:[%s4 + $0xa0] sm:$0xff] %vm876, %v832
  %898 = vst.msk [vmem:[%s4 + $0xa8] sm:$0xff] %vm876, %v833
  %899 = vst.msk [vmem:[%s4 + $0xb0] sm:$0xff] %vm876, %v834
  %900 = vst.msk [vmem:[%s4 + $0xb8] sm:$0xff] %vm876, %v835
  %901 = vst.msk [vmem:[%s4 + $0xc0] sm:$0xff] %vm876, %v836
  %902 = vst.msk [vmem:[%s4 + $0xc8] sm:$0xff] %vm876, %v837
  %903 = vst.msk [vmem:[%s4 + $0xd0] sm:$0xff] %vm876, %v838
  %904 = vst.msk [vmem:[%s4 + $0xd8] sm:$0xff] %vm876, %v839
  %905 = vst.msk [vmem:[%s4 + $0xe0] sm:$0xff] %vm876, %v840
  %906 = vst.msk [vmem:[%s4 + $0xe8] sm:$0xff] %vm876, %v841
  %907 = vst.msk [vmem:[%s4 + $0xf0] sm:$0xff] %vm876, %v842
  %908 = vst.msk [vmem:[%s4 + $0xf8] sm:$0xff] %vm876, %v843
  %909 = vst.msk [vmem:[%s4 + $0x100] sm:$0xff] %vm876, %v844
  %910 = vst.msk [vmem:[%s4 + $0x108] sm:$0xff] %vm876, %v845
  %911 = vst.msk [vmem:[%s4 + $0x110] sm:$0xff] %vm876, %v846
  %912 = vst.msk [vmem:[%s4 + $0x118] sm:$0xff] %vm876, %v847
  %913 = vst.msk [vmem:[%s4 + $0x120] sm:$0xff] %vm876, %v848
  %914 = vst.msk [vmem:[%s4 + $0x128] sm:$0xff] %vm876, %v849
  %915 = vst.msk [vmem:[%s4 + $0x130] sm:$0xff] %vm876, %v850
  %916 = vst.msk [vmem:[%s4 + $0x138] sm:$0xff] %vm876, %v851
  %917 = vst.msk [vmem:[%s4 + $0x140] sm:$0xff] %vm876, %v852
  %918 = vst.msk [vmem:[%s4 + $0x148] sm:$0xff] %vm876, %v853
  %919 = vst.msk [vmem:[%s4 + $0x150] sm:$0xff] %vm876, %v854
  %920 = vst.msk [vmem:[%s4 + $0x158] sm:$0xff] %vm876, %v855
  %921 = vst.msk [vmem:[%s4 + $0x160] sm:$0xff] %vm876, %v856
  %922 = vst.msk [vmem:[%s4 + $0x168] sm:$0xff] %vm876, %v857
  %923 = vst.msk [vmem:[%s4 + $0x170] sm:$0xff] %vm876, %v858
  %924 = vst.msk [vmem:[%s4 + $0x178] sm:$0xff] %vm876, %v859
  %925 = vst.msk [vmem:[%s4 + $0x180] sm:$0xff] %vm876, %v860
  %926 = vst.msk [vmem:[%s4 + $0x188] sm:$0xff] %vm876, %v861
  %927 = vst.msk [vmem:[%s4 + $0x190] sm:$0xff] %vm876, %v862
  %928 = vst.msk [vmem:[%s4 + $0x198] sm:$0xff] %vm876, %v863
  %929 = vst.msk [vmem:[%s4 + $0x1a0] sm:$0xff] %vm876, %v864
  %930 = vst.msk [vmem:[%s4 + $0x1a8] sm:$0xff] %vm876, %v865
  %931 = vst.msk [vmem:[%s4 + $0x1b0] sm:$0xff] %vm876, %v866
  %932 = vst.msk [vmem:[%s4 + $0x1b8] sm:$0xff] %vm876, %v867
  %933 = vst.msk [vmem:[%s4 + $0x1c0] sm:$0xff] %vm876, %v868
  %934 = vst.msk [vmem:[%s4 + $0x1c8] sm:$0xff] %vm876, %v869
  %935 = vst.msk [vmem:[%s4 + $0x1d0] sm:$0xff] %vm876, %v870
  %936 = vst.msk [vmem:[%s4 + $0x1d8] sm:$0xff] %vm876, %v871
  %937 = vst.msk [vmem:[%s4 + $0x1e0] sm:$0xff] %vm876, %v872
  %938 = vst.msk [vmem:[%s4 + $0x1e8] sm:$0xff] %vm876, %v873
  %939 = vst.msk [vmem:[%s4 + $0x1f0] sm:$0xff] %vm876, %v874
  %940 = vst.msk [vmem:[%s4 + $0x1f8] sm:$0xff] %vm876, %v875
  // Predicated region
  $region18: #{_lambda_.37} parent=0 // pred_check
    _
  $region19: #{_lambda_.37} parent=0 // pred_check_branch
    %942 = sbr.rel (0) target = $region21
  $region20: #{_lambda_.37} parent=0 // pred_region
    _
  $region21: #{_lambda_.37} parent=0 // pred_fallthru
    _
  // Predicated region
  $region22: #{_lambda_.37} parent=0 // pred_check
    _
  $region23: #{_lambda_.37} parent=0 // pred_check_branch
    %944 = sbr.rel (0) target = $region25
  $region24: #{_lambda_.37} parent=0 // pred_region
    _
  $region25: #{_lambda_.37} parent=0 // pred_fallthru
    _

// kernel: _lambda_.38
$region0: #{_lambda_.38}
  #allocation0 [shape = 'u32[]', space=smem, size = 0x4, offset = 0x4, fixed_abs, tag = 'smem constant byte address 0x4 - core index']
  #allocation1 [shape = 'u32[144,128]{1,0:T(1,128)}', space=vmem, size = 0x12000, scoped, tag = 'internal scratch']
  %s0 = inlined_call_operand.vmem [shape: f32[512,144], index: 0, kind: input, shape index: {}]
  %s1 = inlined_call_operand.vmem [shape: f32[144,16], index: 1, kind: input, shape index: {}]
  %s2 = inlined_call_operand.vmem [shape: f32[1,16], index: 2, kind: input, shape index: {}]
  %s3 = inlined_call_operand.vmem [shape: f32[1,16], index: 3, kind: input, shape index: {}]
  %s4 = inlined_call_operand.vmem [shape: f32[512,16], index: 4, kind: output, shape index: {}]
  %s5 = sld [smem:[#allocation0]]
  $region26: #{_lambda_.38} parent=0
    _
  %s7 = ssub.s32 1, %s5
  %s8 = scalar_select 0, %s7, %s5
  // Predicated region
  $region2: #{_lambda_.38} parent=0 // pred_check
    _
  $region3: #{_lambda_.38} parent=0 // pred_check_branch
    %10 = sbr.rel (0) target = $region5
  $region4: #{_lambda_.38} parent=0 // pred_region
    _
  $region5: #{_lambda_.38} parent=0 // pred_fallthru
    _
  // Predicated region
  $region6: #{_lambda_.38} parent=0 // pred_check
    _
  $region7: #{_lambda_.38} parent=0 // pred_check_branch
    %12 = sbr.rel (0) target = $region9
  $region8: #{_lambda_.38} parent=0 // pred_region
    _
  $region9: #{_lambda_.38} parent=0 // pred_fallthru
    _
  // Predicated region
  $region10: #{_lambda_.38} parent=0 // pred_check
    _
  $region11: #{_lambda_.38} parent=0 // pred_check_branch
    %14 = sbr.rel (0) target = $region13
  $region12: #{_lambda_.38} parent=0 // pred_region
    _
  $region13: #{_lambda_.38} parent=0 // pred_fallthru
    _
  // Predicated region
  $region14: #{_lambda_.38} parent=0 // pred_check
    _
  $region15: #{_lambda_.38} parent=0 // pred_check_branch
    %16 = sbr.rel (0) target = $region17
  $region16: #{_lambda_.38} parent=0 // pred_region
    _
  $region17: #{_lambda_.38} parent=0 // pred_fallthru
    _
  %v17 = vld [vmem:[%s0] sm:$0xff]
  %v18 = vld [vmem:[%s0 + $0x8] sm:$0xff]
  %v19 = vld [vmem:[%s0 + $0x10] sm:$0xff]
  %v20 = vld [vmem:[%s0 + $0x18] sm:$0xff]
  %v21 = vld [vmem:[%s0 + $0x20] sm:$0xff]
  %v22 = vld [vmem:[%s0 + $0x28] sm:$0xff]
  %v23 = vld [vmem:[%s0 + $0x30] sm:$0xff]
  %v24 = vld [vmem:[%s0 + $0x38] sm:$0xff]
  %v25 = vld [vmem:[%s0 + $0x40] sm:$0xff]
  %v26 = vld [vmem:[%s0 + $0x48] sm:$0xff]
  %v27 = vld [vmem:[%s0 + $0x50] sm:$0xff]
  %v28 = vld [vmem:[%s0 + $0x58] sm:$0xff]
  %v29 = vld [vmem:[%s0 + $0x60] sm:$0xff]
  %v30 = vld [vmem:[%s0 + $0x68] sm:$0xff]
  %v31 = vld [vmem:[%s0 + $0x70] sm:$0xff]
  %v32 = vld [vmem:[%s0 + $0x78] sm:$0xff]
  %v33 = vld [vmem:[%s0 + $0x80] sm:$0xff]
  %v34 = vld [vmem:[%s0 + $0x88] sm:$0xff]
  %v35 = vld [vmem:[%s0 + $0x90] sm:$0xff]
  %v36 = vld [vmem:[%s0 + $0x98] sm:$0xff]
  %v37 = vld [vmem:[%s0 + $0xa0] sm:$0xff]
  %v38 = vld [vmem:[%s0 + $0xa8] sm:$0xff]
  %v39 = vld [vmem:[%s0 + $0xb0] sm:$0xff]
  %v40 = vld [vmem:[%s0 + $0xb8] sm:$0xff]
  %v41 = vld [vmem:[%s0 + $0xc0] sm:$0xff]
  %v42 = vld [vmem:[%s0 + $0xc8] sm:$0xff]
  %v43 = vld [vmem:[%s0 + $0xd0] sm:$0xff]
  %v44 = vld [vmem:[%s0 + $0xd8] sm:$0xff]
  %v45 = vld [vmem:[%s0 + $0xe0] sm:$0xff]
  %v46 = vld [vmem:[%s0 + $0xe8] sm:$0xff]
  %v47 = vld [vmem:[%s0 + $0xf0] sm:$0xff]
  %v48 = vld [vmem:[%s0 + $0xf8] sm:$0xff]
  %v49 = vld [vmem:[%s0 + $0x100] sm:$0xff]
  %v50 = vld [vmem:[%s0 + $0x108] sm:$0xff]
  %v51 = vld [vmem:[%s0 + $0x110] sm:$0xff]
  %v52 = vld [vmem:[%s0 + $0x118] sm:$0xff]
  %v53 = vld [vmem:[%s0 + $0x120] sm:$0xff]
  %v54 = vld [vmem:[%s0 + $0x128] sm:$0xff]
  %v55 = vld [vmem:[%s0 + $0x130] sm:$0xff]
  %v56 = vld [vmem:[%s0 + $0x138] sm:$0xff]
  %v57 = vld [vmem:[%s0 + $0x140] sm:$0xff]
  %v58 = vld [vmem:[%s0 + $0x148] sm:$0xff]
  %v59 = vld [vmem:[%s0 + $0x150] sm:$0xff]
  %v60 = vld [vmem:[%s0 + $0x158] sm:$0xff]
  %v61 = vld [vmem:[%s0 + $0x160] sm:$0xff]
  %v62 = vld [vmem:[%s0 + $0x168] sm:$0xff]
  %v63 = vld [vmem:[%s0 + $0x170] sm:$0xff]
  %v64 = vld [vmem:[%s0 + $0x178] sm:$0xff]
  %v65 = vld [vmem:[%s0 + $0x180] sm:$0xff]
  %v66 = vld [vmem:[%s0 + $0x188] sm:$0xff]
  %v67 = vld [vmem:[%s0 + $0x190] sm:$0xff]
  %v68 = vld [vmem:[%s0 + $0x198] sm:$0xff]
  %v69 = vld [vmem:[%s0 + $0x1a0] sm:$0xff]
  %v70 = vld [vmem:[%s0 + $0x1a8] sm:$0xff]
  %v71 = vld [vmem:[%s0 + $0x1b0] sm:$0xff]
  %v72 = vld [vmem:[%s0 + $0x1b8] sm:$0xff]
  %v73 = vld [vmem:[%s0 + $0x1c0] sm:$0xff]
  %v74 = vld [vmem:[%s0 + $0x1c8] sm:$0xff]
  %v75 = vld [vmem:[%s0 + $0x1d0] sm:$0xff]
  %v76 = vld [vmem:[%s0 + $0x1d8] sm:$0xff]
  %v77 = vld [vmem:[%s0 + $0x1e0] sm:$0xff]
  %v78 = vld [vmem:[%s0 + $0x1e8] sm:$0xff]
  %v79 = vld [vmem:[%s0 + $0x1f0] sm:$0xff]
  %v80 = vld [vmem:[%s0 + $0x1f8] sm:$0xff]
  %v81 = vld [vmem:[%s0 + $0x200] sm:$0xff]
  %v82 = vld [vmem:[%s0 + $0x208] sm:$0xff]
  %v83 = vld [vmem:[%s0 + $0x210] sm:$0xff]
  %v84 = vld [vmem:[%s0 + $0x218] sm:$0xff]
  %v85 = vld [vmem:[%s0 + $0x220] sm:$0xff]
  %v86 = vld [vmem:[%s0 + $0x228] sm:$0xff]
  %v87 = vld [vmem:[%s0 + $0x230] sm:$0xff]
  %v88 = vld [vmem:[%s0 + $0x238] sm:$0xff]
  %v89 = vld [vmem:[%s0 + $0x240] sm:$0xff]
  %v90 = vld [vmem:[%s0 + $0x248] sm:$0xff]
  %v91 = vld [vmem:[%s0 + $0x250] sm:$0xff]
  %v92 = vld [vmem:[%s0 + $0x258] sm:$0xff]
  %v93 = vld [vmem:[%s0 + $0x260] sm:$0xff]
  %v94 = vld [vmem:[%s0 + $0x268] sm:$0xff]
  %v95 = vld [vmem:[%s0 + $0x270] sm:$0xff]
  %v96 = vld [vmem:[%s0 + $0x278] sm:$0xff]
  %v97 = vld [vmem:[%s0 + $0x280] sm:$0xff]
  %v98 = vld [vmem:[%s0 + $0x288] sm:$0xff]
  %v99 = vld [vmem:[%s0 + $0x290] sm:$0xff]
  %v100 = vld [vmem:[%s0 + $0x298] sm:$0xff]
  %v101 = vld [vmem:[%s0 + $0x2a0] sm:$0xff]
  %v102 = vld [vmem:[%s0 + $0x2a8] sm:$0xff]
  %v103 = vld [vmem:[%s0 + $0x2b0] sm:$0xff]
  %v104 = vld [vmem:[%s0 + $0x2b8] sm:$0xff]
  %v105 = vld [vmem:[%s0 + $0x2c0] sm:$0xff]
  %v106 = vld [vmem:[%s0 + $0x2c8] sm:$0xff]
  %v107 = vld [vmem:[%s0 + $0x2d0] sm:$0xff]
  %v108 = vld [vmem:[%s0 + $0x2d8] sm:$0xff]
  %v109 = vld [vmem:[%s0 + $0x2e0] sm:$0xff]
  %v110 = vld [vmem:[%s0 + $0x2e8] sm:$0xff]
  %v111 = vld [vmem:[%s0 + $0x2f0] sm:$0xff]
  %v112 = vld [vmem:[%s0 + $0x2f8] sm:$0xff]
  %v113 = vld [vmem:[%s0 + $0x300] sm:$0xff]
  %v114 = vld [vmem:[%s0 + $0x308] sm:$0xff]
  %v115 = vld [vmem:[%s0 + $0x310] sm:$0xff]
  %v116 = vld [vmem:[%s0 + $0x318] sm:$0xff]
  %v117 = vld [vmem:[%s0 + $0x320] sm:$0xff]
  %v118 = vld [vmem:[%s0 + $0x328] sm:$0xff]
  %v119 = vld [vmem:[%s0 + $0x330] sm:$0xff]
  %v120 = vld [vmem:[%s0 + $0x338] sm:$0xff]
  %v121 = vld [vmem:[%s0 + $0x340] sm:$0xff]
  %v122 = vld [vmem:[%s0 + $0x348] sm:$0xff]
  %v123 = vld [vmem:[%s0 + $0x350] sm:$0xff]
  %v124 = vld [vmem:[%s0 + $0x358] sm:$0xff]
  %v125 = vld [vmem:[%s0 + $0x360] sm:$0xff]
  %v126 = vld [vmem:[%s0 + $0x368] sm:$0xff]
  %v127 = vld [vmem:[%s0 + $0x370] sm:$0xff]
  %v128 = vld [vmem:[%s0 + $0x378] sm:$0xff]
  %v129 = vld [vmem:[%s0 + $0x380] sm:$0xff]
  %v130 = vld [vmem:[%s0 + $0x388] sm:$0xff]
  %v131 = vld [vmem:[%s0 + $0x390] sm:$0xff]
  %v132 = vld [vmem:[%s0 + $0x398] sm:$0xff]
  %v133 = vld [vmem:[%s0 + $0x3a0] sm:$0xff]
  %v134 = vld [vmem:[%s0 + $0x3a8] sm:$0xff]
  %v135 = vld [vmem:[%s0 + $0x3b0] sm:$0xff]
  %v136 = vld [vmem:[%s0 + $0x3b8] sm:$0xff]
  %v137 = vld [vmem:[%s0 + $0x3c0] sm:$0xff]
  %v138 = vld [vmem:[%s0 + $0x3c8] sm:$0xff]
  %v139 = vld [vmem:[%s0 + $0x3d0] sm:$0xff]
  %v140 = vld [vmem:[%s0 + $0x3d8] sm:$0xff]
  %v141 = vld [vmem:[%s0 + $0x3e0] sm:$0xff]
  %v142 = vld [vmem:[%s0 + $0x3e8] sm:$0xff]
  %v143 = vld [vmem:[%s0 + $0x3f0] sm:$0xff]
  %v144 = vld [vmem:[%s0 + $0x3f8] sm:$0xff]
  %v145 = vld [vmem:[%s1] sm:$0xff]
  %v146 = vld [vmem:[%s1 + $0x8] sm:$0xff]
  %v147 = vld [vmem:[%s1 + $0x10] sm:$0xff]
  %v148 = vld [vmem:[%s1 + $0x18] sm:$0xff]
  %v149 = vld [vmem:[%s1 + $0x20] sm:$0xff]
  %v150 = vld [vmem:[%s1 + $0x28] sm:$0xff]
  %v151 = vld [vmem:[%s1 + $0x30] sm:$0xff]
  %v152 = vld [vmem:[%s1 + $0x38] sm:$0xff]
  %v153 = vld [vmem:[%s1 + $0x40] sm:$0xff]
  %v154 = vld [vmem:[%s1 + $0x48] sm:$0xff]
  %v155 = vld [vmem:[%s1 + $0x50] sm:$0xff]
  %v156 = vld [vmem:[%s1 + $0x58] sm:$0xff]
  %v157 = vld [vmem:[%s1 + $0x60] sm:$0xff]
  %v158 = vld [vmem:[%s1 + $0x68] sm:$0xff]
  %v159 = vld [vmem:[%s1 + $0x70] sm:$0xff]
  %v160 = vld [vmem:[%s1 + $0x78] sm:$0xff]
  %v161 = vld [vmem:[%s1 + $0x80] sm:$0xff]
  %v162 = vld [vmem:[%s1 + $0x88] sm:$0xff]
  %vm163 = vcmask 130048
  %v165 = vsel %vm163, %v18, 0
  %v168 = vsel %vm163, %v20, 0
  %v171 = vsel %vm163, %v22, 0
  %v174 = vsel %vm163, %v24, 0
  %v177 = vsel %vm163, %v26, 0
  %v180 = vsel %vm163, %v28, 0
  %v183 = vsel %vm163, %v30, 0
  %v186 = vsel %vm163, %v32, 0
  %v189 = vsel %vm163, %v34, 0
  %v192 = vsel %vm163, %v36, 0
  %v195 = vsel %vm163, %v38, 0
  %v198 = vsel %vm163, %v40, 0
  %v201 = vsel %vm163, %v42, 0
  %v204 = vsel %vm163, %v44, 0
  %v207 = vsel %vm163, %v46, 0
  %v210 = vsel %vm163, %v48, 0
  %v213 = vsel %vm163, %v50, 0
  %v216 = vsel %vm163, %v52, 0
  %v219 = vsel %vm163, %v54, 0
  %v222 = vsel %vm163, %v56, 0
  %v225 = vsel %vm163, %v58, 0
  %v228 = vsel %vm163, %v60, 0
  %v231 = vsel %vm163, %v62, 0
  %v234 = vsel %vm163, %v64, 0
  %v237 = vsel %vm163, %v66, 0
  %v240 = vsel %vm163, %v68, 0
  %v243 = vsel %vm163, %v70, 0
  %v246 = vsel %vm163, %v72, 0
  %v249 = vsel %vm163, %v74, 0
  %v252 = vsel %vm163, %v76, 0
  %v255 = vsel %vm163, %v78, 0
  %v258 = vsel %vm163, %v80, 0
  %v261 = vsel %vm163, %v82, 0
  %v264 = vsel %vm163, %v84, 0
  %v267 = vsel %vm163, %v86, 0
  %v270 = vsel %vm163, %v88, 0
  %v273 = vsel %vm163, %v90, 0
  %v276 = vsel %vm163, %v92, 0
  %v279 = vsel %vm163, %v94, 0
  %v282 = vsel %vm163, %v96, 0
  %v285 = vsel %vm163, %v98, 0
  %v288 = vsel %vm163, %v100, 0
  %v291 = vsel %vm163, %v102, 0
  %v294 = vsel %vm163, %v104, 0
  %v297 = vsel %vm163, %v106, 0
  %v300 = vsel %vm163, %v108, 0
  %v303 = vsel %vm163, %v110, 0
  %v306 = vsel %vm163, %v112, 0
  %v309 = vsel %vm163, %v114, 0
  %v312 = vsel %vm163, %v116, 0
  %v315 = vsel %vm163, %v118, 0
  %v318 = vsel %vm163, %v120, 0
  %v321 = vsel %vm163, %v122, 0
  %v324 = vsel %vm163, %v124, 0
  %v327 = vsel %vm163, %v126, 0
  %v330 = vsel %vm163, %v128, 0
  %v333 = vsel %vm163, %v130, 0
  %v336 = vsel %vm163, %v132, 0
  %v339 = vsel %vm163, %v134, 0
  %v342 = vsel %vm163, %v136, 0
  %v345 = vsel %vm163, %v138, 0
  %v348 = vsel %vm163, %v140, 0
  %v351 = vsel %vm163, %v142, 0
  %v354 = vsel %vm163, %v144, 0
  %356 = vmatprep.subr.mxu0 0.0
  %357 = vmatpush1.msra.mxu0 %v160
  %358 = vmatprep.subr.mxu0 0.0
  %359 = vmatpush1.msra.mxu0 %v159
  %360 = vmatprep.subr.mxu0 0.0
  %361 = vmatpush1.msra.mxu0 %v158
  %362 = vmatprep.subr.mxu0 0.0
  %363 = vmatpush1.msra.mxu0 %v157
  %364 = vmatprep.subr.mxu0 0.0
  %365 = vmatpush1.msra.mxu0 %v156
  %366 = vmatprep.subr.mxu0 0.0
  %367 = vmatpush1.msra.mxu0 %v155
  %368 = vmatprep.subr.mxu0 0.0
  %369 = vmatpush1.msra.mxu0 %v154
  %370 = vmatprep.subr.mxu0 0.0
  %371 = vmatpush1.msra.mxu0 %v153
  %372 = vmatprep.subr.mxu0 0.0
  %373 = vmatpush1.msra.mxu0 %v152
  %374 = vmatprep.subr.mxu0 0.0
  %375 = vmatpush1.msra.mxu0 %v151
  %376 = vmatprep.subr.mxu0 0.0
  %377 = vmatpush1.msra.mxu0 %v150
  %378 = vmatprep.subr.mxu0 0.0
  %379 = vmatpush1.msra.mxu0 %v149
  %380 = vmatprep.subr.mxu0 0.0
  %381 = vmatpush1.msra.mxu0 %v148
  %382 = vmatprep.subr.mxu0 0.0
  %383 = vmatpush1.msra.mxu0 %v147
  %384 = vmatprep.subr.mxu0 0.0
  %385 = vmatpush1.msra.mxu0 %v146
  %386 = vmatprep.subr.mxu0 0.0
  %387 = vmatpush1.msra.mxu0 %v145
  %388 = vmatprep.subr.mxu0 0.0
  %389 = vmatpush2.msra.mxu0 0.0
  %390 = vmatprep.subr.mxu0 0.0
  %391 = vmatpush2.msra.mxu0 0.0
  %392 = vmatprep.subr.mxu0 0.0
  %393 = vmatpush2.msra.mxu0 0.0
  %394 = vmatprep.subr.mxu0 0.0
  %395 = vmatpush2.msra.mxu0 0.0
  %396 = vmatprep.subr.mxu0 0.0
  %397 = vmatpush2.msra.mxu0 0.0
  %398 = vmatprep.subr.mxu0 0.0
  %399 = vmatpush2.msra.mxu0 0.0
  %400 = vmatprep.subr.mxu0 0.0
  %401 = vmatpush2.msra.mxu0 0.0
  %402 = vmatprep.subr.mxu0 0.0
  %403 = vmatpush2.msra.mxu0 0.0
  %404 = vmatprep.subr.mxu0 0.0
  %405 = vmatpush2.msra.mxu0 0.0
  %406 = vmatprep.subr.mxu0 0.0
  %407 = vmatpush2.msra.mxu0 0.0
  %408 = vmatprep.subr.mxu0 0.0
  %409 = vmatpush2.msra.mxu0 0.0
  %410 = vmatprep.subr.mxu0 0.0
  %411 = vmatpush2.msra.mxu0 0.0
  %412 = vmatprep.subr.mxu0 0.0
  %413 = vmatpush2.msra.mxu0 0.0
  %414 = vmatprep.subr.mxu0 0.0
  %415 = vmatpush2.msra.mxu0 0.0
  %416 = vmatprep.subr.mxu0 0.0
  %417 = vmatpush2.msra.mxu0 %v162
  %418 = vmatprep.subr.mxu0 0.0
  %419 = vmatpush2.msra.mxu0 %v161
  %420 = vmatprep.mubr.f32.mxu0 %v165
  %421 = vmatmul.mubr.f32.gmra.mxu0 %v17
  %v422 = vpop.f32.mrf.mxu0
  %v423 = vadd.f32 0.0, %v422
  %v424 = vpop.f32.mrf.mxu0
  %425 = vmatprep.mubr.f32.mxu0 %v168
  %426 = vmatmul.mubr.f32.gmra.mxu0 %v19
  %v427 = vpop.f32.mrf.mxu0
  %v428 = vadd.f32 0.0, %v427
  %v429 = vpop.f32.mrf.mxu0
  %430 = vmatprep.mubr.f32.mxu0 %v171
  %431 = vmatmul.mubr.f32.gmra.mxu0 %v21
  %v432 = vpop.f32.mrf.mxu0
  %v433 = vadd.f32 0.0, %v432
  %v434 = vpop.f32.mrf.mxu0
  %435 = vmatprep.mubr.f32.mxu0 %v174
  %436 = vmatmul.mubr.f32.gmra.mxu0 %v23
  %v437 = vpop.f32.mrf.mxu0
  %v438 = vadd.f32 0.0, %v437
  %v439 = vpop.f32.mrf.mxu0
  %440 = vmatprep.mubr.f32.mxu0 %v177
  %441 = vmatmul.mubr.f32.gmra.mxu0 %v25
  %v442 = vpop.f32.mrf.mxu0
  %v443 = vadd.f32 0.0, %v442
  %v444 = vpop.f32.mrf.mxu0
  %445 = vmatprep.mubr.f32.mxu0 %v180
  %446 = vmatmul.mubr.f32.gmra.mxu0 %v27
  %v447 = vpop.f32.mrf.mxu0
  %v448 = vadd.f32 0.0, %v447
  %v449 = vpop.f32.mrf.mxu0
  %450 = vmatprep.mubr.f32.mxu0 %v183
  %451 = vmatmul.mubr.f32.gmra.mxu0 %v29
  %v452 = vpop.f32.mrf.mxu0
  %v453 = vadd.f32 0.0, %v452
  %v454 = vpop.f32.mrf.mxu0
  %455 = vmatprep.mubr.f32.mxu0 %v186
  %456 = vmatmul.mubr.f32.gmra.mxu0 %v31
  %v457 = vpop.f32.mrf.mxu0
  %v458 = vadd.f32 0.0, %v457
  %v459 = vpop.f32.mrf.mxu0
  %460 = vmatprep.mubr.f32.mxu0 %v189
  %461 = vmatmul.mubr.f32.gmra.mxu0 %v33
  %v462 = vpop.f32.mrf.mxu0
  %v463 = vadd.f32 0.0, %v462
  %v464 = vpop.f32.mrf.mxu0
  %465 = vmatprep.mubr.f32.mxu0 %v192
  %466 = vmatmul.mubr.f32.gmra.mxu0 %v35
  %v467 = vpop.f32.mrf.mxu0
  %v468 = vadd.f32 0.0, %v467
  %v469 = vpop.f32.mrf.mxu0
  %470 = vmatprep.mubr.f32.mxu0 %v195
  %471 = vmatmul.mubr.f32.gmra.mxu0 %v37
  %v472 = vpop.f32.mrf.mxu0
  %v473 = vadd.f32 0.0, %v472
  %v474 = vpop.f32.mrf.mxu0
  %475 = vmatprep.mubr.f32.mxu0 %v198
  %476 = vmatmul.mubr.f32.gmra.mxu0 %v39
  %v477 = vpop.f32.mrf.mxu0
  %v478 = vadd.f32 0.0, %v477
  %v479 = vpop.f32.mrf.mxu0
  %480 = vmatprep.mubr.f32.mxu0 %v201
  %481 = vmatmul.mubr.f32.gmra.mxu0 %v41
  %v482 = vpop.f32.mrf.mxu0
  %v483 = vadd.f32 0.0, %v482
  %v484 = vpop.f32.mrf.mxu0
  %485 = vmatprep.mubr.f32.mxu0 %v204
  %486 = vmatmul.mubr.f32.gmra.mxu0 %v43
  %v487 = vpop.f32.mrf.mxu0
  %v488 = vadd.f32 0.0, %v487
  %v489 = vpop.f32.mrf.mxu0
  %490 = vmatprep.mubr.f32.mxu0 %v207
  %491 = vmatmul.mubr.f32.gmra.mxu0 %v45
  %v492 = vpop.f32.mrf.mxu0
  %v493 = vadd.f32 0.0, %v492
  %v494 = vpop.f32.mrf.mxu0
  %495 = vmatprep.mubr.f32.mxu0 %v210
  %496 = vmatmul.mubr.f32.gmra.mxu0 %v47
  %v497 = vpop.f32.mrf.mxu0
  %v498 = vadd.f32 0.0, %v497
  %v499 = vpop.f32.mrf.mxu0
  %500 = vmatprep.mubr.f32.mxu0 %v213
  %501 = vmatmul.mubr.f32.gmra.mxu0 %v49
  %v502 = vpop.f32.mrf.mxu0
  %v503 = vadd.f32 0.0, %v502
  %v504 = vpop.f32.mrf.mxu0
  %505 = vmatprep.mubr.f32.mxu0 %v216
  %506 = vmatmul.mubr.f32.gmra.mxu0 %v51
  %v507 = vpop.f32.mrf.mxu0
  %v508 = vadd.f32 0.0, %v507
  %v509 = vpop.f32.mrf.mxu0
  %510 = vmatprep.mubr.f32.mxu0 %v219
  %511 = vmatmul.mubr.f32.gmra.mxu0 %v53
  %v512 = vpop.f32.mrf.mxu0
  %v513 = vadd.f32 0.0, %v512
  %v514 = vpop.f32.mrf.mxu0
  %515 = vmatprep.mubr.f32.mxu0 %v222
  %516 = vmatmul.mubr.f32.gmra.mxu0 %v55
  %v517 = vpop.f32.mrf.mxu0
  %v518 = vadd.f32 0.0, %v517
  %v519 = vpop.f32.mrf.mxu0
  %520 = vmatprep.mubr.f32.mxu0 %v225
  %521 = vmatmul.mubr.f32.gmra.mxu0 %v57
  %v522 = vpop.f32.mrf.mxu0
  %v523 = vadd.f32 0.0, %v522
  %v524 = vpop.f32.mrf.mxu0
  %525 = vmatprep.mubr.f32.mxu0 %v228
  %526 = vmatmul.mubr.f32.gmra.mxu0 %v59
  %v527 = vpop.f32.mrf.mxu0
  %v528 = vadd.f32 0.0, %v527
  %v529 = vpop.f32.mrf.mxu0
  %530 = vmatprep.mubr.f32.mxu0 %v231
  %531 = vmatmul.mubr.f32.gmra.mxu0 %v61
  %v532 = vpop.f32.mrf.mxu0
  %v533 = vadd.f32 0.0, %v532
  %v534 = vpop.f32.mrf.mxu0
  %535 = vmatprep.mubr.f32.mxu0 %v234
  %536 = vmatmul.mubr.f32.gmra.mxu0 %v63
  %v537 = vpop.f32.mrf.mxu0
  %v538 = vadd.f32 0.0, %v537
  %v539 = vpop.f32.mrf.mxu0
  %540 = vmatprep.mubr.f32.mxu0 %v237
  %541 = vmatmul.mubr.f32.gmra.mxu0 %v65
  %v542 = vpop.f32.mrf.mxu0
  %v543 = vadd.f32 0.0, %v542
  %v544 = vpop.f32.mrf.mxu0
  %545 = vmatprep.mubr.f32.mxu0 %v240
  %546 = vmatmul.mubr.f32.gmra.mxu0 %v67
  %v547 = vpop.f32.mrf.mxu0
  %v548 = vadd.f32 0.0, %v547
  %v549 = vpop.f32.mrf.mxu0
  %550 = vmatprep.mubr.f32.mxu0 %v243
  %551 = vmatmul.mubr.f32.gmra.mxu0 %v69
  %v552 = vpop.f32.mrf.mxu0
  %v553 = vadd.f32 0.0, %v552
  %v554 = vpop.f32.mrf.mxu0
  %555 = vmatprep.mubr.f32.mxu0 %v246
  %556 = vmatmul.mubr.f32.gmra.mxu0 %v71
  %v557 = vpop.f32.mrf.mxu0
  %v558 = vadd.f32 0.0, %v557
  %v559 = vpop.f32.mrf.mxu0
  %560 = vmatprep.mubr.f32.mxu0 %v249
  %561 = vmatmul.mubr.f32.gmra.mxu0 %v73
  %v562 = vpop.f32.mrf.mxu0
  %v563 = vadd.f32 0.0, %v562
  %v564 = vpop.f32.mrf.mxu0
  %565 = vmatprep.mubr.f32.mxu0 %v252
  %566 = vmatmul.mubr.f32.gmra.mxu0 %v75
  %v567 = vpop.f32.mrf.mxu0
  %v568 = vadd.f32 0.0, %v567
  %v569 = vpop.f32.mrf.mxu0
  %570 = vmatprep.mubr.f32.mxu0 %v255
  %571 = vmatmul.mubr.f32.gmra.mxu0 %v77
  %v572 = vpop.f32.mrf.mxu0
  %v573 = vadd.f32 0.0, %v572
  %v574 = vpop.f32.mrf.mxu0
  %575 = vmatprep.mubr.f32.mxu0 %v258
  %576 = vmatmul.mubr.f32.gmra.mxu0 %v79
  %v577 = vpop.f32.mrf.mxu0
  %v578 = vadd.f32 0.0, %v577
  %v579 = vpop.f32.mrf.mxu0
  %580 = vmatprep.mubr.f32.mxu0 %v261
  %581 = vmatmul.mubr.f32.gmra.mxu0 %v81
  %v582 = vpop.f32.mrf.mxu0
  %v583 = vadd.f32 0.0, %v582
  %v584 = vpop.f32.mrf.mxu0
  %585 = vmatprep.mubr.f32.mxu0 %v264
  %586 = vmatmul.mubr.f32.gmra.mxu0 %v83
  %v587 = vpop.f32.mrf.mxu0
  %v588 = vadd.f32 0.0, %v587
  %v589 = vpop.f32.mrf.mxu0
  %590 = vmatprep.mubr.f32.mxu0 %v267
  %591 = vmatmul.mubr.f32.gmra.mxu0 %v85
  %v592 = vpop.f32.mrf.mxu0
  %v593 = vadd.f32 0.0, %v592
  %v594 = vpop.f32.mrf.mxu0
  %595 = vmatprep.mubr.f32.mxu0 %v270
  %596 = vmatmul.mubr.f32.gmra.mxu0 %v87
  %v597 = vpop.f32.mrf.mxu0
  %v598 = vadd.f32 0.0, %v597
  %v599 = vpop.f32.mrf.mxu0
  %600 = vmatprep.mubr.f32.mxu0 %v273
  %601 = vmatmul.mubr.f32.gmra.mxu0 %v89
  %v602 = vpop.f32.mrf.mxu0
  %v603 = vadd.f32 0.0, %v602
  %v604 = vpop.f32.mrf.mxu0
  %605 = vmatprep.mubr.f32.mxu0 %v276
  %606 = vmatmul.mubr.f32.gmra.mxu0 %v91
  %v607 = vpop.f32.mrf.mxu0
  %v608 = vadd.f32 0.0, %v607
  %v609 = vpop.f32.mrf.mxu0
  %610 = vmatprep.mubr.f32.mxu0 %v279
  %611 = vmatmul.mubr.f32.gmra.mxu0 %v93
  %v612 = vpop.f32.mrf.mxu0
  %v613 = vadd.f32 0.0, %v612
  %v614 = vpop.f32.mrf.mxu0
  %615 = vmatprep.mubr.f32.mxu0 %v282
  %616 = vmatmul.mubr.f32.gmra.mxu0 %v95
  %v617 = vpop.f32.mrf.mxu0
  %v618 = vadd.f32 0.0, %v617
  %v619 = vpop.f32.mrf.mxu0
  %620 = vmatprep.mubr.f32.mxu0 %v285
  %621 = vmatmul.mubr.f32.gmra.mxu0 %v97
  %v622 = vpop.f32.mrf.mxu0
  %v623 = vadd.f32 0.0, %v622
  %v624 = vpop.f32.mrf.mxu0
  %625 = vmatprep.mubr.f32.mxu0 %v288
  %626 = vmatmul.mubr.f32.gmra.mxu0 %v99
  %v627 = vpop.f32.mrf.mxu0
  %v628 = vadd.f32 0.0, %v627
  %v629 = vpop.f32.mrf.mxu0
  %630 = vmatprep.mubr.f32.mxu0 %v291
  %631 = vmatmul.mubr.f32.gmra.mxu0 %v101
  %v632 = vpop.f32.mrf.mxu0
  %v633 = vadd.f32 0.0, %v632
  %v634 = vpop.f32.mrf.mxu0
  %635 = vmatprep.mubr.f32.mxu0 %v294
  %636 = vmatmul.mubr.f32.gmra.mxu0 %v103
  %v637 = vpop.f32.mrf.mxu0
  %v638 = vadd.f32 0.0, %v637
  %v639 = vpop.f32.mrf.mxu0
  %640 = vmatprep.mubr.f32.mxu0 %v297
  %641 = vmatmul.mubr.f32.gmra.mxu0 %v105
  %v642 = vpop.f32.mrf.mxu0
  %v643 = vadd.f32 0.0, %v642
  %v644 = vpop.f32.mrf.mxu0
  %645 = vmatprep.mubr.f32.mxu0 %v300
  %646 = vmatmul.mubr.f32.gmra.mxu0 %v107
  %v647 = vpop.f32.mrf.mxu0
  %v648 = vadd.f32 0.0, %v647
  %v649 = vpop.f32.mrf.mxu0
  %650 = vmatprep.mubr.f32.mxu0 %v303
  %651 = vmatmul.mubr.f32.gmra.mxu0 %v109
  %v652 = vpop.f32.mrf.mxu0
  %v653 = vadd.f32 0.0, %v652
  %v654 = vpop.f32.mrf.mxu0
  %655 = vmatprep.mubr.f32.mxu0 %v306
  %656 = vmatmul.mubr.f32.gmra.mxu0 %v111
  %v657 = vpop.f32.mrf.mxu0
  %v658 = vadd.f32 0.0, %v657
  %v659 = vpop.f32.mrf.mxu0
  %660 = vmatprep.mubr.f32.mxu0 %v309
  %661 = vmatmul.mubr.f32.gmra.mxu0 %v113
  %v662 = vpop.f32.mrf.mxu0
  %v663 = vadd.f32 0.0, %v662
  %v664 = vpop.f32.mrf.mxu0
  %665 = vmatprep.mubr.f32.mxu0 %v312
  %666 = vmatmul.mubr.f32.gmra.mxu0 %v115
  %v667 = vpop.f32.mrf.mxu0
  %v668 = vadd.f32 0.0, %v667
  %v669 = vpop.f32.mrf.mxu0
  %670 = vmatprep.mubr.f32.mxu0 %v315
  %671 = vmatmul.mubr.f32.gmra.mxu0 %v117
  %v672 = vpop.f32.mrf.mxu0
  %v673 = vadd.f32 0.0, %v672
  %v674 = vpop.f32.mrf.mxu0
  %675 = vmatprep.mubr.f32.mxu0 %v318
  %676 = vmatmul.mubr.f32.gmra.mxu0 %v119
  %v677 = vpop.f32.mrf.mxu0
  %v678 = vadd.f32 0.0, %v677
  %v679 = vpop.f32.mrf.mxu0
  %680 = vmatprep.mubr.f32.mxu0 %v321
  %681 = vmatmul.mubr.f32.gmra.mxu0 %v121
  %v682 = vpop.f32.mrf.mxu0
  %v683 = vadd.f32 0.0, %v682
  %v684 = vpop.f32.mrf.mxu0
  %685 = vmatprep.mubr.f32.mxu0 %v324
  %686 = vmatmul.mubr.f32.gmra.mxu0 %v123
  %v687 = vpop.f32.mrf.mxu0
  %v688 = vadd.f32 0.0, %v687
  %v689 = vpop.f32.mrf.mxu0
  %690 = vmatprep.mubr.f32.mxu0 %v327
  %691 = vmatmul.mubr.f32.gmra.mxu0 %v125
  %v692 = vpop.f32.mrf.mxu0
  %v693 = vadd.f32 0.0, %v692
  %v694 = vpop.f32.mrf.mxu0
  %695 = vmatprep.mubr.f32.mxu0 %v330
  %696 = vmatmul.mubr.f32.gmra.mxu0 %v127
  %v697 = vpop.f32.mrf.mxu0
  %v698 = vadd.f32 0.0, %v697
  %v699 = vpop.f32.mrf.mxu0
  %700 = vmatprep.mubr.f32.mxu0 %v333
  %701 = vmatmul.mubr.f32.gmra.mxu0 %v129
  %v702 = vpop.f32.mrf.mxu0
  %v703 = vadd.f32 0.0, %v702
  %v704 = vpop.f32.mrf.mxu0
  %705 = vmatprep.mubr.f32.mxu0 %v336
  %706 = vmatmul.mubr.f32.gmra.mxu0 %v131
  %v707 = vpop.f32.mrf.mxu0
  %v708 = vadd.f32 0.0, %v707
  %v709 = vpop.f32.mrf.mxu0
  %710 = vmatprep.mubr.f32.mxu0 %v339
  %711 = vmatmul.mubr.f32.gmra.mxu0 %v133
  %v712 = vpop.f32.mrf.mxu0
  %v713 = vadd.f32 0.0, %v712
  %v714 = vpop.f32.mrf.mxu0
  %715 = vmatprep.mubr.f32.mxu0 %v342
  %716 = vmatmul.mubr.f32.gmra.mxu0 %v135
  %v717 = vpop.f32.mrf.mxu0
  %v718 = vadd.f32 0.0, %v717
  %v719 = vpop.f32.mrf.mxu0
  %720 = vmatprep.mubr.f32.mxu0 %v345
  %721 = vmatmul.mubr.f32.gmra.mxu0 %v137
  %v722 = vpop.f32.mrf.mxu0
  %v723 = vadd.f32 0.0, %v722
  %v724 = vpop.f32.mrf.mxu0
  %725 = vmatprep.mubr.f32.mxu0 %v348
  %726 = vmatmul.mubr.f32.gmra.mxu0 %v139
  %v727 = vpop.f32.mrf.mxu0
  %v728 = vadd.f32 0.0, %v727
  %v729 = vpop.f32.mrf.mxu0
  %730 = vmatprep.mubr.f32.mxu0 %v351
  %731 = vmatmul.mubr.f32.gmra.mxu0 %v141
  %v732 = vpop.f32.mrf.mxu0
  %v733 = vadd.f32 0.0, %v732
  %v734 = vpop.f32.mrf.mxu0
  %735 = vmatprep.mubr.f32.mxu0 %v354
  %736 = vmatmul.mubr.f32.gmra.mxu0 %v143
  %v737 = vpop.f32.mrf.mxu0
  %v738 = vadd.f32 0.0, %v737
  %v739 = vpop.f32.mrf.mxu0
  %740 = vdwg.mxu0
  %v741 = vld [vmem:[%s2] sm:$0x1]
  %v743 = vlaneseq
  %v744 = vshrl.u32 %v743, 7
  %v745 = vsub.s32 0, %v744
  %v746 = vrot.slane %v741, %v745
  %v748 = vmul.f32 %v423, %v746
  %v749 = vmul.f32 %v428, %v746
  %v750 = vmul.f32 %v433, %v746
  %v751 = vmul.f32 %v438, %v746
  %v752 = vmul.f32 %v443, %v746
  %v753 = vmul.f32 %v448, %v746
  %v754 = vmul.f32 %v453, %v746
  %v755 = vmul.f32 %v458, %v746
  %v756 = vmul.f32 %v463, %v746
  %v757 = vmul.f32 %v468, %v746
  %v758 = vmul.f32 %v473, %v746
  %v759 = vmul.f32 %v478, %v746
  %v760 = vmul.f32 %v483, %v746
  %v761 = vmul.f32 %v488, %v746
  %v762 = vmul.f32 %v493, %v746
  %v763 = vmul.f32 %v498, %v746
  %v764 = vmul.f32 %v503, %v746
  %v765 = vmul.f32 %v508, %v746
  %v766 = vmul.f32 %v513, %v746
  %v767 = vmul.f32 %v518, %v746
  %v768 = vmul.f32 %v523, %v746
  %v769 = vmul.f32 %v528, %v746
  %v770 = vmul.f32 %v533, %v746
  %v771 = vmul.f32 %v538, %v746
  %v772 = vmul.f32 %v543, %v746
  %v773 = vmul.f32 %v548, %v746
  %v774 = vmul.f32 %v553, %v746
  %v775 = vmul.f32 %v558, %v746
  %v776 = vmul.f32 %v563, %v746
  %v777 = vmul.f32 %v568, %v746
  %v778 = vmul.f32 %v573, %v746
  %v779 = vmul.f32 %v578, %v746
  %v780 = vmul.f32 %v583, %v746
  %v781 = vmul.f32 %v588, %v746
  %v782 = vmul.f32 %v593, %v746
  %v783 = vmul.f32 %v598, %v746
  %v784 = vmul.f32 %v603, %v746
  %v785 = vmul.f32 %v608, %v746
  %v786 = vmul.f32 %v613, %v746
  %v787 = vmul.f32 %v618, %v746
  %v788 = vmul.f32 %v623, %v746
  %v789 = vmul.f32 %v628, %v746
  %v790 = vmul.f32 %v633, %v746
  %v791 = vmul.f32 %v638, %v746
  %v792 = vmul.f32 %v643, %v746
  %v793 = vmul.f32 %v648, %v746
  %v794 = vmul.f32 %v653, %v746
  %v795 = vmul.f32 %v658, %v746
  %v796 = vmul.f32 %v663, %v746
  %v797 = vmul.f32 %v668, %v746
  %v798 = vmul.f32 %v673, %v746
  %v799 = vmul.f32 %v678, %v746
  %v800 = vmul.f32 %v683, %v746
  %v801 = vmul.f32 %v688, %v746
  %v802 = vmul.f32 %v693, %v746
  %v803 = vmul.f32 %v698, %v746
  %v804 = vmul.f32 %v703, %v746
  %v805 = vmul.f32 %v708, %v746
  %v806 = vmul.f32 %v713, %v746
  %v807 = vmul.f32 %v718, %v746
  %v808 = vmul.f32 %v723, %v746
  %v809 = vmul.f32 %v728, %v746
  %v810 = vmul.f32 %v733, %v746
  %v811 = vmul.f32 %v738, %v746
  %v812 = vld [vmem:[%s3] sm:$0x1]
  %v814 = vlaneseq
  %v815 = vshrl.u32 %v814, 7
  %v816 = vsub.s32 0, %v815
  %v817 = vrot.slane %v812, %v816
  %v819 = vadd.f32 %v748, %v817
  %v820 = vadd.f32 %v749, %v817
  %v821 = vadd.f32 %v750, %v817
  %v822 = vadd.f32 %v751, %v817
  %v823 = vadd.f32 %v752, %v817
  %v824 = vadd.f32 %v753, %v817
  %v825 = vadd.f32 %v754, %v817
  %v826 = vadd.f32 %v755, %v817
  %v827 = vadd.f32 %v756, %v817
  %v828 = vadd.f32 %v757, %v817
  %v829 = vadd.f32 %v758, %v817
  %v830 = vadd.f32 %v759, %v817
  %v831 = vadd.f32 %v760, %v817
  %v832 = vadd.f32 %v761, %v817
  %v833 = vadd.f32 %v762, %v817
  %v834 = vadd.f32 %v763, %v817
  %v835 = vadd.f32 %v764, %v817
  %v836 = vadd.f32 %v765, %v817
  %v837 = vadd.f32 %v766, %v817
  %v838 = vadd.f32 %v767, %v817
  %v839 = vadd.f32 %v768, %v817
  %v840 = vadd.f32 %v769, %v817
  %v841 = vadd.f32 %v770, %v817
  %v842 = vadd.f32 %v771, %v817
  %v843 = vadd.f32 %v772, %v817
  %v844 = vadd.f32 %v773, %v817
  %v845 = vadd.f32 %v774, %v817
  %v846 = vadd.f32 %v775, %v817
  %v847 = vadd.f32 %v776, %v817
  %v848 = vadd.f32 %v777, %v817
  %v849 = vadd.f32 %v778, %v817
  %v850 = vadd.f32 %v779, %v817
  %v851 = vadd.f32 %v780, %v817
  %v852 = vadd.f32 %v781, %v817
  %v853 = vadd.f32 %v782, %v817
  %v854 = vadd.f32 %v783, %v817
  %v855 = vadd.f32 %v784, %v817
  %v856 = vadd.f32 %v785, %v817
  %v857 = vadd.f32 %v786, %v817
  %v858 = vadd.f32 %v787, %v817
  %v859 = vadd.f32 %v788, %v817
  %v860 = vadd.f32 %v789, %v817
  %v861 = vadd.f32 %v790, %v817
  %v862 = vadd.f32 %v791, %v817
  %v863 = vadd.f32 %v792, %v817
  %v864 = vadd.f32 %v793, %v817
  %v865 = vadd.f32 %v794, %v817
  %v866 = vadd.f32 %v795, %v817
  %v867 = vadd.f32 %v796, %v817
  %v868 = vadd.f32 %v797, %v817
  %v869 = vadd.f32 %v798, %v817
  %v870 = vadd.f32 %v799, %v817
  %v871 = vadd.f32 %v800, %v817
  %v872 = vadd.f32 %v801, %v817
  %v873 = vadd.f32 %v802, %v817
  %v874 = vadd.f32 %v803, %v817
  %v875 = vadd.f32 %v804, %v817
  %v876 = vadd.f32 %v805, %v817
  %v877 = vadd.f32 %v806, %v817
  %v878 = vadd.f32 %v807, %v817
  %v879 = vadd.f32 %v808, %v817
  %v880 = vadd.f32 %v809, %v817
  %v881 = vadd.f32 %v810, %v817
  %v882 = vadd.f32 %v811, %v817
  %v883 = vmax.f32 %v819, 0.0
  %v884 = vmax.f32 %v820, 0.0
  %v885 = vmax.f32 %v821, 0.0
  %v886 = vmax.f32 %v822, 0.0
  %v887 = vmax.f32 %v823, 0.0
  %v888 = vmax.f32 %v824, 0.0
  %v889 = vmax.f32 %v825, 0.0
  %v890 = vmax.f32 %v826, 0.0
  %v891 = vmax.f32 %v827, 0.0
  %v892 = vmax.f32 %v828, 0.0
  %v893 = vmax.f32 %v829, 0.0
  %v894 = vmax.f32 %v830, 0.0
  %v895 = vmax.f32 %v831, 0.0
  %v896 = vmax.f32 %v832, 0.0
  %v897 = vmax.f32 %v833, 0.0
  %v898 = vmax.f32 %v834, 0.0
  %v899 = vmax.f32 %v835, 0.0
  %v900 = vmax.f32 %v836, 0.0
  %v901 = vmax.f32 %v837, 0.0
  %v902 = vmax.f32 %v838, 0.0
  %v903 = vmax.f32 %v839, 0.0
  %v904 = vmax.f32 %v840, 0.0
  %v905 = vmax.f32 %v841, 0.0
  %v906 = vmax.f32 %v842, 0.0
  %v907 = vmax.f32 %v843, 0.0
  %v908 = vmax.f32 %v844, 0.0
  %v909 = vmax.f32 %v845, 0.0
  %v910 = vmax.f32 %v846, 0.0
  %v911 = vmax.f32 %v847, 0.0
  %v912 = vmax.f32 %v848, 0.0
  %v913 = vmax.f32 %v849, 0.0
  %v914 = vmax.f32 %v850, 0.0
  %v915 = vmax.f32 %v851, 0.0
  %v916 = vmax.f32 %v852, 0.0
  %v917 = vmax.f32 %v853, 0.0
  %v918 = vmax.f32 %v854, 0.0
  %v919 = vmax.f32 %v855, 0.0
  %v920 = vmax.f32 %v856, 0.0
  %v921 = vmax.f32 %v857, 0.0
  %v922 = vmax.f32 %v858, 0.0
  %v923 = vmax.f32 %v859, 0.0
  %v924 = vmax.f32 %v860, 0.0
  %v925 = vmax.f32 %v861, 0.0
  %v926 = vmax.f32 %v862, 0.0
  %v927 = vmax.f32 %v863, 0.0
  %v928 = vmax.f32 %v864, 0.0
  %v929 = vmax.f32 %v865, 0.0
  %v930 = vmax.f32 %v866, 0.0
  %v931 = vmax.f32 %v867, 0.0
  %v932 = vmax.f32 %v868, 0.0
  %v933 = vmax.f32 %v869, 0.0
  %v934 = vmax.f32 %v870, 0.0
  %v935 = vmax.f32 %v871, 0.0
  %v936 = vmax.f32 %v872, 0.0
  %v937 = vmax.f32 %v873, 0.0
  %v938 = vmax.f32 %v874, 0.0
  %v939 = vmax.f32 %v875, 0.0
  %v940 = vmax.f32 %v876, 0.0
  %v941 = vmax.f32 %v877, 0.0
  %v942 = vmax.f32 %v878, 0.0
  %v943 = vmax.f32 %v879, 0.0
  %v944 = vmax.f32 %v880, 0.0
  %v945 = vmax.f32 %v881, 0.0
  %v946 = vmax.f32 %v882, 0.0
  %v947 = vmin.f32 %v883, 20.0
  %v948 = vmin.f32 %v884, 20.0
  %v949 = vmin.f32 %v885, 20.0
  %v950 = vmin.f32 %v886, 20.0
  %v951 = vmin.f32 %v887, 20.0
  %v952 = vmin.f32 %v888, 20.0
  %v953 = vmin.f32 %v889, 20.0
  %v954 = vmin.f32 %v890, 20.0
  %v955 = vmin.f32 %v891, 20.0
  %v956 = vmin.f32 %v892, 20.0
  %v957 = vmin.f32 %v893, 20.0
  %v958 = vmin.f32 %v894, 20.0
  %v959 = vmin.f32 %v895, 20.0
  %v960 = vmin.f32 %v896, 20.0
  %v961 = vmin.f32 %v897, 20.0
  %v962 = vmin.f32 %v898, 20.0
  %v963 = vmin.f32 %v899, 20.0
  %v964 = vmin.f32 %v900, 20.0
  %v965 = vmin.f32 %v901, 20.0
  %v966 = vmin.f32 %v902, 20.0
  %v967 = vmin.f32 %v903, 20.0
  %v968 = vmin.f32 %v904, 20.0
  %v969 = vmin.f32 %v905, 20.0
  %v970 = vmin.f32 %v906, 20.0
  %v971 = vmin.f32 %v907, 20.0
  %v972 = vmin.f32 %v908, 20.0
  %v973 = vmin.f32 %v909, 20.0
  %v974 = vmin.f32 %v910, 20.0
  %v975 = vmin.f32 %v911, 20.0
  %v976 = vmin.f32 %v912, 20.0
  %v977 = vmin.f32 %v913, 20.0
  %v978 = vmin.f32 %v914, 20.0
  %v979 = vmin.f32 %v915, 20.0
  %v980 = vmin.f32 %v916, 20.0
  %v981 = vmin.f32 %v917, 20.0
  %v982 = vmin.f32 %v918, 20.0
  %v983 = vmin.f32 %v919, 20.0
  %v984 = vmin.f32 %v920, 20.0
  %v985 = vmin.f32 %v921, 20.0
  %v986 = vmin.f32 %v922, 20.0
  %v987 = vmin.f32 %v923, 20.0
  %v988 = vmin.f32 %v924, 20.0
  %v989 = vmin.f32 %v925, 20.0
  %v990 = vmin.f32 %v926, 20.0
  %v991 = vmin.f32 %v927, 20.0
  %v992 = vmin.f32 %v928, 20.0
  %v993 = vmin.f32 %v929, 20.0
  %v994 = vmin.f32 %v930, 20.0
  %v995 = vmin.f32 %v931, 20.0
  %v996 = vmin.f32 %v932, 20.0
  %v997 = vmin.f32 %v933, 20.0
  %v998 = vmin.f32 %v934, 20.0
  %v999 = vmin.f32 %v935, 20.0
  %v1000 = vmin.f32 %v936, 20.0
  %v1001 = vmin.f32 %v937, 20.0
  %v1002 = vmin.f32 %v938, 20.0
  %v1003 = vmin.f32 %v939, 20.0
  %v1004 = vmin.f32 %v940, 20.0
  %v1005 = vmin.f32 %v941, 20.0
  %v1006 = vmin.f32 %v942, 20.0
  %v1007 = vmin.f32 %v943, 20.0
  %v1008 = vmin.f32 %v944, 20.0
  %v1009 = vmin.f32 %v945, 20.0
  %v1010 = vmin.f32 %v946, 20.0
  %1011 = vst.msk [vmem:[%s4] sm:$0xff] %vm163, %v947
  %1012 = vst.msk [vmem:[%s4 + $0x8] sm:$0xff] %vm163, %v948
  %1013 = vst.msk [vmem:[%s4 + $0x10] sm:$0xff] %vm163, %v949
  %1014 = vst.msk [vmem:[%s4 + $0x18] sm:$0xff] %vm163, %v950
  %1015 = vst.msk [vmem:[%s4 + $0x20] sm:$0xff] %vm163, %v951
  %1016 = vst.msk [vmem:[%s4 + $0x28] sm:$0xff] %vm163, %v952
  %1017 = vst.msk [vmem:[%s4 + $0x30] sm:$0xff] %vm163, %v953
  %1018 = vst.msk [vmem:[%s4 + $0x38] sm:$0xff] %vm163, %v954
  %1019 = vst.msk [vmem:[%s4 + $0x40] sm:$0xff] %vm163, %v955
  %1020 = vst.msk [vmem:[%s4 + $0x48] sm:$0xff] %vm163, %v956
  %1021 = vst.msk [vmem:[%s4 + $0x50] sm:$0xff] %vm163, %v957
  %1022 = vst.msk [vmem:[%s4 + $0x58] sm:$0xff] %vm163, %v958
  %1023 = vst.msk [vmem:[%s4 + $0x60] sm:$0xff] %vm163, %v959
  %1024 = vst.msk [vmem:[%s4 + $0x68] sm:$0xff] %vm163, %v960
  %1025 = vst.msk [vmem:[%s4 + $0x70] sm:$0xff] %vm163, %v961
  %1026 = vst.msk [vmem:[%s4 + $0x78] sm:$0xff] %vm163, %v962
  %1027 = vst.msk [vmem:[%s4 + $0x80] sm:$0xff] %vm163, %v963
  %1028 = vst.msk [vmem:[%s4 + $0x88] sm:$0xff] %vm163, %v964
  %1029 = vst.msk [vmem:[%s4 + $0x90] sm:$0xff] %vm163, %v965
  %1030 = vst.msk [vmem:[%s4 + $0x98] sm:$0xff] %vm163, %v966
  %1031 = vst.msk [vmem:[%s4 + $0xa0] sm:$0xff] %vm163, %v967
  %1032 = vst.msk [vmem:[%s4 + $0xa8] sm:$0xff] %vm163, %v968
  %1033 = vst.msk [vmem:[%s4 + $0xb0] sm:$0xff] %vm163, %v969
  %1034 = vst.msk [vmem:[%s4 + $0xb8] sm:$0xff] %vm163, %v970
  %1035 = vst.msk [vmem:[%s4 + $0xc0] sm:$0xff] %vm163, %v971
  %1036 = vst.msk [vmem:[%s4 + $0xc8] sm:$0xff] %vm163, %v972
  %1037 = vst.msk [vmem:[%s4 + $0xd0] sm:$0xff] %vm163, %v973
  %1038 = vst.msk [vmem:[%s4 + $0xd8] sm:$0xff] %vm163, %v974
  %1039 = vst.msk [vmem:[%s4 + $0xe0] sm:$0xff] %vm163, %v975
  %1040 = vst.msk [vmem:[%s4 + $0xe8] sm:$0xff] %vm163, %v976
  %1041 = vst.msk [vmem:[%s4 + $0xf0] sm:$0xff] %vm163, %v977
  %1042 = vst.msk [vmem:[%s4 + $0xf8] sm:$0xff] %vm163, %v978
  %1043 = vst.msk [vmem:[%s4 + $0x100] sm:$0xff] %vm163, %v979
  %1044 = vst.msk [vmem:[%s4 + $0x108] sm:$0xff] %vm163, %v980
  %1045 = vst.msk [vmem:[%s4 + $0x110] sm:$0xff] %vm163, %v981
  %1046 = vst.msk [vmem:[%s4 + $0x118] sm:$0xff] %vm163, %v982
  %1047 = vst.msk [vmem:[%s4 + $0x120] sm:$0xff] %vm163, %v983
  %1048 = vst.msk [vmem:[%s4 + $0x128] sm:$0xff] %vm163, %v984
  %1049 = vst.msk [vmem:[%s4 + $0x130] sm:$0xff] %vm163, %v985
  %1050 = vst.msk [vmem:[%s4 + $0x138] sm:$0xff] %vm163, %v986
  %1051 = vst.msk [vmem:[%s4 + $0x140] sm:$0xff] %vm163, %v987
  %1052 = vst.msk [vmem:[%s4 + $0x148] sm:$0xff] %vm163, %v988
  %1053 = vst.msk [vmem:[%s4 + $0x150] sm:$0xff] %vm163, %v989
  %1054 = vst.msk [vmem:[%s4 + $0x158] sm:$0xff] %vm163, %v990
  %1055 = vst.msk [vmem:[%s4 + $0x160] sm:$0xff] %vm163, %v991
  %1056 = vst.msk [vmem:[%s4 + $0x168] sm:$0xff] %vm163, %v992
  %1057 = vst.msk [vmem:[%s4 + $0x170] sm:$0xff] %vm163, %v993
  %1058 = vst.msk [vmem:[%s4 + $0x178] sm:$0xff] %vm163, %v994
  %1059 = vst.msk [vmem:[%s4 + $0x180] sm:$0xff] %vm163, %v995
  %1060 = vst.msk [vmem:[%s4 + $0x188] sm:$0xff] %vm163, %v996
  %1061 = vst.msk [vmem:[%s4 + $0x190] sm:$0xff] %vm163, %v997
  %1062 = vst.msk [vmem:[%s4 + $0x198] sm:$0xff] %vm163, %v998
  %1063 = vst.msk [vmem:[%s4 + $0x1a0] sm:$0xff] %vm163, %v999
  %1064 = vst.msk [vmem:[%s4 + $0x1a8] sm:$0xff] %vm163, %v1000
  %1065 = vst.msk [vmem:[%s4 + $0x1b0] sm:$0xff] %vm163, %v1001
  %1066 = vst.msk [vmem:[%s4 + $0x1b8] sm:$0xff] %vm163, %v1002
  %1067 = vst.msk [vmem:[%s4 + $0x1c0] sm:$0xff] %vm163, %v1003
  %1068 = vst.msk [vmem:[%s4 + $0x1c8] sm:$0xff] %vm163, %v1004
  %1069 = vst.msk [vmem:[%s4 + $0x1d0] sm:$0xff] %vm163, %v1005
  %1070 = vst.msk [vmem:[%s4 + $0x1d8] sm:$0xff] %vm163, %v1006
  %1071 = vst.msk [vmem:[%s4 + $0x1e0] sm:$0xff] %vm163, %v1007
  %1072 = vst.msk [vmem:[%s4 + $0x1e8] sm:$0xff] %vm163, %v1008
  %1073 = vst.msk [vmem:[%s4 + $0x1f0] sm:$0xff] %vm163, %v1009
  %1074 = vst.msk [vmem:[%s4 + $0x1f8] sm:$0xff] %vm163, %v1010
  // Predicated region
  $region18: #{_lambda_.38} parent=0 // pred_check
    _
  $region19: #{_lambda_.38} parent=0 // pred_check_branch
    %1076 = sbr.rel (0) target = $region21
  $region20: #{_lambda_.38} parent=0 // pred_region
    _
  $region21: #{_lambda_.38} parent=0 // pred_fallthru
    _
  // Predicated region
  $region22: #{_lambda_.38} parent=0 // pred_check
    _
  $region23: #{_lambda_.38} parent=0 // pred_check_branch
    %1078 = sbr.rel (0) target = $region25
  $region24: #{_lambda_.38} parent=0 // pred_region
    _
  $region25: #{_lambda_.38} parent=0 // pred_fallthru
    _

// kernel: _lambda_.39
$region0: #{_lambda_.39}
  #allocation0 [shape = 'u32[]', space=smem, size = 0x4, offset = 0x4, fixed_abs, tag = 'smem constant byte address 0x4 - core index']
  #allocation1 [shape = 'u32[144,128]{1,0:T(1,128)}', space=vmem, size = 0x12000, scoped, tag = 'internal scratch']
  %s0 = inlined_call_operand.vmem [shape: f32[512,144], index: 0, kind: input, shape index: {}]
  %s1 = inlined_call_operand.vmem [shape: f32[144,16], index: 1, kind: input, shape index: {}]
  %s2 = inlined_call_operand.vmem [shape: f32[1,16], index: 2, kind: input, shape index: {}]
  %s3 = inlined_call_operand.vmem [shape: f32[1,16], index: 3, kind: input, shape index: {}]
  %s4 = inlined_call_operand.vmem [shape: f32[512,16], index: 4, kind: input, shape index: {}]
  %s5 = inlined_call_operand.vmem [shape: f32[512,16], index: 5, kind: output, shape index: {}]
  %s6 = sld [smem:[#allocation0]]
  $region30: #{_lambda_.39} parent=0
    _
  %s8 = ssub.s32 1, %s6
  %s9 = scalar_select 0, %s8, %s6
  // Predicated region
  $region2: #{_lambda_.39} parent=0 // pred_check
    _
  $region3: #{_lambda_.39} parent=0 // pred_check_branch
    %11 = sbr.rel (0) target = $region5
  $region4: #{_lambda_.39} parent=0 // pred_region
    _
  $region5: #{_lambda_.39} parent=0 // pred_fallthru
    _
  // Predicated region
  $region6: #{_lambda_.39} parent=0 // pred_check
    _
  $region7: #{_lambda_.39} parent=0 // pred_check_branch
    %13 = sbr.rel (0) target = $region9
  $region8: #{_lambda_.39} parent=0 // pred_region
    _
  $region9: #{_lambda_.39} parent=0 // pred_fallthru
    _
  // Predicated region
  $region10: #{_lambda_.39} parent=0 // pred_check
    _
  $region11: #{_lambda_.39} parent=0 // pred_check_branch
    %15 = sbr.rel (0) target = $region13
  $region12: #{_lambda_.39} parent=0 // pred_region
    _
  $region13: #{_lambda_.39} parent=0 // pred_fallthru
    _
  // Predicated region
  $region14: #{_lambda_.39} parent=0 // pred_check
    _
  $region15: #{_lambda_.39} parent=0 // pred_check_branch
    %17 = sbr.rel (0) target = $region17
  $region16: #{_lambda_.39} parent=0 // pred_region
    _
  $region17: #{_lambda_.39} parent=0 // pred_fallthru
    _
  // Predicated region
  $region18: #{_lambda_.39} parent=0 // pred_check
    _
  $region19: #{_lambda_.39} parent=0 // pred_check_branch
    %19 = sbr.rel (0) target = $region21
  $region20: #{_lambda_.39} parent=0 // pred_region
    _
  $region21: #{_lambda_.39} parent=0 // pred_fallthru
    _
  %v20 = vld [vmem:[%s0] sm:$0xff]
  %v21 = vld [vmem:[%s0 + $0x8] sm:$0xff]
  %v22 = vld [vmem:[%s0 + $0x10] sm:$0xff]
  %v23 = vld [vmem:[%s0 + $0x18] sm:$0xff]
  %v24 = vld [vmem:[%s0 + $0x20] sm:$0xff]
  %v25 = vld [vmem:[%s0 + $0x28] sm:$0xff]
  %v26 = vld [vmem:[%s0 + $0x30] sm:$0xff]
  %v27 = vld [vmem:[%s0 + $0x38] sm:$0xff]
  %v28 = vld [vmem:[%s0 + $0x40] sm:$0xff]
  %v29 = vld [vmem:[%s0 + $0x48] sm:$0xff]
  %v30 = vld [vmem:[%s0 + $0x50] sm:$0xff]
  %v31 = vld [vmem:[%s0 + $0x58] sm:$0xff]
  %v32 = vld [vmem:[%s0 + $0x60] sm:$0xff]
  %v33 = vld [vmem:[%s0 + $0x68] sm:$0xff]
  %v34 = vld [vmem:[%s0 + $0x70] sm:$0xff]
  %v35 = vld [vmem:[%s0 + $0x78] sm:$0xff]
  %v36 = vld [vmem:[%s0 + $0x80] sm:$0xff]
  %v37 = vld [vmem:[%s0 + $0x88] sm:$0xff]
  %v38 = vld [vmem:[%s0 + $0x90] sm:$0xff]
  %v39 = vld [vmem:[%s0 + $0x98] sm:$0xff]
  %v40 = vld [vmem:[%s0 + $0xa0] sm:$0xff]
  %v41 = vld [vmem:[%s0 + $0xa8] sm:$0xff]
  %v42 = vld [vmem:[%s0 + $0xb0] sm:$0xff]
  %v43 = vld [vmem:[%s0 + $0xb8] sm:$0xff]
  %v44 = vld [vmem:[%s0 + $0xc0] sm:$0xff]
  %v45 = vld [vmem:[%s0 + $0xc8] sm:$0xff]
  %v46 = vld [vmem:[%s0 + $0xd0] sm:$0xff]
  %v47 = vld [vmem:[%s0 + $0xd8] sm:$0xff]
  %v48 = vld [vmem:[%s0 + $0xe0] sm:$0xff]
  %v49 = vld [vmem:[%s0 + $0xe8] sm:$0xff]
  %v50 = vld [vmem:[%s0 + $0xf0] sm:$0xff]
  %v51 = vld [vmem:[%s0 + $0xf8] sm:$0xff]
  %v52 = vld [vmem:[%s0 + $0x100] sm:$0xff]
  %v53 = vld [vmem:[%s0 + $0x108] sm:$0xff]
  %v54 = vld [vmem:[%s0 + $0x110] sm:$0xff]
  %v55 = vld [vmem:[%s0 + $0x118] sm:$0xff]
  %v56 = vld [vmem:[%s0 + $0x120] sm:$0xff]
  %v57 = vld [vmem:[%s0 + $0x128] sm:$0xff]
  %v58 = vld [vmem:[%s0 + $0x130] sm:$0xff]
  %v59 = vld [vmem:[%s0 + $0x138] sm:$0xff]
  %v60 = vld [vmem:[%s0 + $0x140] sm:$0xff]
  %v61 = vld [vmem:[%s0 + $0x148] sm:$0xff]
  %v62 = vld [vmem:[%s0 + $0x150] sm:$0xff]
  %v63 = vld [vmem:[%s0 + $0x158] sm:$0xff]
  %v64 = vld [vmem:[%s0 + $0x160] sm:$0xff]
  %v65 = vld [vmem:[%s0 + $0x168] sm:$0xff]
  %v66 = vld [vmem:[%s0 + $0x170] sm:$0xff]
  %v67 = vld [vmem:[%s0 + $0x178] sm:$0xff]
  %v68 = vld [vmem:[%s0 + $0x180] sm:$0xff]
  %v69 = vld [vmem:[%s0 + $0x188] sm:$0xff]
  %v70 = vld [vmem:[%s0 + $0x190] sm:$0xff]
  %v71 = vld [vmem:[%s0 + $0x198] sm:$0xff]
  %v72 = vld [vmem:[%s0 + $0x1a0] sm:$0xff]
  %v73 = vld [vmem:[%s0 + $0x1a8] sm:$0xff]
  %v74 = vld [vmem:[%s0 + $0x1b0] sm:$0xff]
  %v75 = vld [vmem:[%s0 + $0x1b8] sm:$0xff]
  %v76 = vld [vmem:[%s0 + $0x1c0] sm:$0xff]
  %v77 = vld [vmem:[%s0 + $0x1c8] sm:$0xff]
  %v78 = vld [vmem:[%s0 + $0x1d0] sm:$0xff]
  %v79 = vld [vmem:[%s0 + $0x1d8] sm:$0xff]
  %v80 = vld [vmem:[%s0 + $0x1e0] sm:$0xff]
  %v81 = vld [vmem:[%s0 + $0x1e8] sm:$0xff]
  %v82 = vld [vmem:[%s0 + $0x1f0] sm:$0xff]
  %v83 = vld [vmem:[%s0 + $0x1f8] sm:$0xff]
  %v84 = vld [vmem:[%s0 + $0x200] sm:$0xff]
  %v85 = vld [vmem:[%s0 + $0x208] sm:$0xff]
  %v86 = vld [vmem:[%s0 + $0x210] sm:$0xff]
  %v87 = vld [vmem:[%s0 + $0x218] sm:$0xff]
  %v88 = vld [vmem:[%s0 + $0x220] sm:$0xff]
  %v89 = vld [vmem:[%s0 + $0x228] sm:$0xff]
  %v90 = vld [vmem:[%s0 + $0x230] sm:$0xff]
  %v91 = vld [vmem:[%s0 + $0x238] sm:$0xff]
  %v92 = vld [vmem:[%s0 + $0x240] sm:$0xff]
  %v93 = vld [vmem:[%s0 + $0x248] sm:$0xff]
  %v94 = vld [vmem:[%s0 + $0x250] sm:$0xff]
  %v95 = vld [vmem:[%s0 + $0x258] sm:$0xff]
  %v96 = vld [vmem:[%s0 + $0x260] sm:$0xff]
  %v97 = vld [vmem:[%s0 + $0x268] sm:$0xff]
  %v98 = vld [vmem:[%s0 + $0x270] sm:$0xff]
  %v99 = vld [vmem:[%s0 + $0x278] sm:$0xff]
  %v100 = vld [vmem:[%s0 + $0x280] sm:$0xff]
  %v101 = vld [vmem:[%s0 + $0x288] sm:$0xff]
  %v102 = vld [vmem:[%s0 + $0x290] sm:$0xff]
  %v103 = vld [vmem:[%s0 + $0x298] sm:$0xff]
  %v104 = vld [vmem:[%s0 + $0x2a0] sm:$0xff]
  %v105 = vld [vmem:[%s0 + $0x2a8] sm:$0xff]
  %v106 = vld [vmem:[%s0 + $0x2b0] sm:$0xff]
  %v107 = vld [vmem:[%s0 + $0x2b8] sm:$0xff]
  %v108 = vld [vmem:[%s0 + $0x2c0] sm:$0xff]
  %v109 = vld [vmem:[%s0 + $0x2c8] sm:$0xff]
  %v110 = vld [vmem:[%s0 + $0x2d0] sm:$0xff]
  %v111 = vld [vmem:[%s0 + $0x2d8] sm:$0xff]
  %v112 = vld [vmem:[%s0 + $0x2e0] sm:$0xff]
  %v113 = vld [vmem:[%s0 + $0x2e8] sm:$0xff]
  %v114 = vld [vmem:[%s0 + $0x2f0] sm:$0xff]
  %v115 = vld [vmem:[%s0 + $0x2f8] sm:$0xff]
  %v116 = vld [vmem:[%s0 + $0x300] sm:$0xff]
  %v117 = vld [vmem:[%s0 + $0x308] sm:$0xff]
  %v118 = vld [vmem:[%s0 + $0x310] sm:$0xff]
  %v119 = vld [vmem:[%s0 + $0x318] sm:$0xff]
  %v120 = vld [vmem:[%s0 + $0x320] sm:$0xff]
  %v121 = vld [vmem:[%s0 + $0x328] sm:$0xff]
  %v122 = vld [vmem:[%s0 + $0x330] sm:$0xff]
  %v123 = vld [vmem:[%s0 + $0x338] sm:$0xff]
  %v124 = vld [vmem:[%s0 + $0x340] sm:$0xff]
  %v125 = vld [vmem:[%s0 + $0x348] sm:$0xff]
  %v126 = vld [vmem:[%s0 + $0x350] sm:$0xff]
  %v127 = vld [vmem:[%s0 + $0x358] sm:$0xff]
  %v128 = vld [vmem:[%s0 + $0x360] sm:$0xff]
  %v129 = vld [vmem:[%s0 + $0x368] sm:$0xff]
  %v130 = vld [vmem:[%s0 + $0x370] sm:$0xff]
  %v131 = vld [vmem:[%s0 + $0x378] sm:$0xff]
  %v132 = vld [vmem:[%s0 + $0x380] sm:$0xff]
  %v133 = vld [vmem:[%s0 + $0x388] sm:$0xff]
  %v134 = vld [vmem:[%s0 + $0x390] sm:$0xff]
  %v135 = vld [vmem:[%s0 + $0x398] sm:$0xff]
  %v136 = vld [vmem:[%s0 + $0x3a0] sm:$0xff]
  %v137 = vld [vmem:[%s0 + $0x3a8] sm:$0xff]
  %v138 = vld [vmem:[%s0 + $0x3b0] sm:$0xff]
  %v139 = vld [vmem:[%s0 + $0x3b8] sm:$0xff]
  %v140 = vld [vmem:[%s0 + $0x3c0] sm:$0xff]
  %v141 = vld [vmem:[%s0 + $0x3c8] sm:$0xff]
  %v142 = vld [vmem:[%s0 + $0x3d0] sm:$0xff]
  %v143 = vld [vmem:[%s0 + $0x3d8] sm:$0xff]
  %v144 = vld [vmem:[%s0 + $0x3e0] sm:$0xff]
  %v145 = vld [vmem:[%s0 + $0x3e8] sm:$0xff]
  %v146 = vld [vmem:[%s0 + $0x3f0] sm:$0xff]
  %v147 = vld [vmem:[%s0 + $0x3f8] sm:$0xff]
  %v148 = vld [vmem:[%s1] sm:$0xff]
  %v149 = vld [vmem:[%s1 + $0x8] sm:$0xff]
  %v150 = vld [vmem:[%s1 + $0x10] sm:$0xff]
  %v151 = vld [vmem:[%s1 + $0x18] sm:$0xff]
  %v152 = vld [vmem:[%s1 + $0x20] sm:$0xff]
  %v153 = vld [vmem:[%s1 + $0x28] sm:$0xff]
  %v154 = vld [vmem:[%s1 + $0x30] sm:$0xff]
  %v155 = vld [vmem:[%s1 + $0x38] sm:$0xff]
  %v156 = vld [vmem:[%s1 + $0x40] sm:$0xff]
  %v157 = vld [vmem:[%s1 + $0x48] sm:$0xff]
  %v158 = vld [vmem:[%s1 + $0x50] sm:$0xff]
  %v159 = vld [vmem:[%s1 + $0x58] sm:$0xff]
  %v160 = vld [vmem:[%s1 + $0x60] sm:$0xff]
  %v161 = vld [vmem:[%s1 + $0x68] sm:$0xff]
  %v162 = vld [vmem:[%s1 + $0x70] sm:$0xff]
  %v163 = vld [vmem:[%s1 + $0x78] sm:$0xff]
  %v164 = vld [vmem:[%s1 + $0x80] sm:$0xff]
  %v165 = vld [vmem:[%s1 + $0x88] sm:$0xff]
  %vm166 = vcmask 130048
  %v168 = vsel %vm166, %v21, 0
  %v171 = vsel %vm166, %v23, 0
  %v174 = vsel %vm166, %v25, 0
  %v177 = vsel %vm166, %v27, 0
  %v180 = vsel %vm166, %v29, 0
  %v183 = vsel %vm166, %v31, 0
  %v186 = vsel %vm166, %v33, 0
  %v189 = vsel %vm166, %v35, 0
  %v192 = vsel %vm166, %v37, 0
  %v195 = vsel %vm166, %v39, 0
  %v198 = vsel %vm166, %v41, 0
  %v201 = vsel %vm166, %v43, 0
  %v204 = vsel %vm166, %v45, 0
  %v207 = vsel %vm166, %v47, 0
  %v210 = vsel %vm166, %v49, 0
  %v213 = vsel %vm166, %v51, 0
  %v216 = vsel %vm166, %v53, 0
  %v219 = vsel %vm166, %v55, 0
  %v222 = vsel %vm166, %v57, 0
  %v225 = vsel %vm166, %v59, 0
  %v228 = vsel %vm166, %v61, 0
  %v231 = vsel %vm166, %v63, 0
  %v234 = vsel %vm166, %v65, 0
  %v237 = vsel %vm166, %v67, 0
  %v240 = vsel %vm166, %v69, 0
  %v243 = vsel %vm166, %v71, 0
  %v246 = vsel %vm166, %v73, 0
  %v249 = vsel %vm166, %v75, 0
  %v252 = vsel %vm166, %v77, 0
  %v255 = vsel %vm166, %v79, 0
  %v258 = vsel %vm166, %v81, 0
  %v261 = vsel %vm166, %v83, 0
  %v264 = vsel %vm166, %v85, 0
  %v267 = vsel %vm166, %v87, 0
  %v270 = vsel %vm166, %v89, 0
  %v273 = vsel %vm166, %v91, 0
  %v276 = vsel %vm166, %v93, 0
  %v279 = vsel %vm166, %v95, 0
  %v282 = vsel %vm166, %v97, 0
  %v285 = vsel %vm166, %v99, 0
  %v288 = vsel %vm166, %v101, 0
  %v291 = vsel %vm166, %v103, 0
  %v294 = vsel %vm166, %v105, 0
  %v297 = vsel %vm166, %v107, 0
  %v300 = vsel %vm166, %v109, 0
  %v303 = vsel %vm166, %v111, 0
  %v306 = vsel %vm166, %v113, 0
  %v309 = vsel %vm166, %v115, 0
  %v312 = vsel %vm166, %v117, 0
  %v315 = vsel %vm166, %v119, 0
  %v318 = vsel %vm166, %v121, 0
  %v321 = vsel %vm166, %v123, 0
  %v324 = vsel %vm166, %v125, 0
  %v327 = vsel %vm166, %v127, 0
  %v330 = vsel %vm166, %v129, 0
  %v333 = vsel %vm166, %v131, 0
  %v336 = vsel %vm166, %v133, 0
  %v339 = vsel %vm166, %v135, 0
  %v342 = vsel %vm166, %v137, 0
  %v345 = vsel %vm166, %v139, 0
  %v348 = vsel %vm166, %v141, 0
  %v351 = vsel %vm166, %v143, 0
  %v354 = vsel %vm166, %v145, 0
  %v357 = vsel %vm166, %v147, 0
  %359 = vmatprep.subr.mxu0 0.0
  %360 = vmatpush1.msra.mxu0 %v163
  %361 = vmatprep.subr.mxu0 0.0
  %362 = vmatpush1.msra.mxu0 %v162
  %363 = vmatprep.subr.mxu0 0.0
  %364 = vmatpush1.msra.mxu0 %v161
  %365 = vmatprep.subr.mxu0 0.0
  %366 = vmatpush1.msra.mxu0 %v160
  %367 = vmatprep.subr.mxu0 0.0
  %368 = vmatpush1.msra.mxu0 %v159
  %369 = vmatprep.subr.mxu0 0.0
  %370 = vmatpush1.msra.mxu0 %v158
  %371 = vmatprep.subr.mxu0 0.0
  %372 = vmatpush1.msra.mxu0 %v157
  %373 = vmatprep.subr.mxu0 0.0
  %374 = vmatpush1.msra.mxu0 %v156
  %375 = vmatprep.subr.mxu0 0.0
  %376 = vmatpush1.msra.mxu0 %v155
  %377 = vmatprep.subr.mxu0 0.0
  %378 = vmatpush1.msra.mxu0 %v154
  %379 = vmatprep.subr.mxu0 0.0
  %380 = vmatpush1.msra.mxu0 %v153
  %381 = vmatprep.subr.mxu0 0.0
  %382 = vmatpush1.msra.mxu0 %v152
  %383 = vmatprep.subr.mxu0 0.0
  %384 = vmatpush1.msra.mxu0 %v151
  %385 = vmatprep.subr.mxu0 0.0
  %386 = vmatpush1.msra.mxu0 %v150
  %387 = vmatprep.subr.mxu0 0.0
  %388 = vmatpush1.msra.mxu0 %v149
  %389 = vmatprep.subr.mxu0 0.0
  %390 = vmatpush1.msra.mxu0 %v148
  %391 = vmatprep.subr.mxu0 0.0
  %392 = vmatpush2.msra.mxu0 0.0
  %393 = vmatprep.subr.mxu0 0.0
  %394 = vmatpush2.msra.mxu0 0.0
  %395 = vmatprep.subr.mxu0 0.0
  %396 = vmatpush2.msra.mxu0 0.0
  %397 = vmatprep.subr.mxu0 0.0
  %398 = vmatpush2.msra.mxu0 0.0
  %399 = vmatprep.subr.mxu0 0.0
  %400 = vmatpush2.msra.mxu0 0.0
  %401 = vmatprep.subr.mxu0 0.0
  %402 = vmatpush2.msra.mxu0 0.0
  %403 = vmatprep.subr.mxu0 0.0
  %404 = vmatpush2.msra.mxu0 0.0
  %405 = vmatprep.subr.mxu0 0.0
  %406 = vmatpush2.msra.mxu0 0.0
  %407 = vmatprep.subr.mxu0 0.0
  %408 = vmatpush2.msra.mxu0 0.0
  %409 = vmatprep.subr.mxu0 0.0
  %410 = vmatpush2.msra.mxu0 0.0
  %411 = vmatprep.subr.mxu0 0.0
  %412 = vmatpush2.msra.mxu0 0.0
  %413 = vmatprep.subr.mxu0 0.0
  %414 = vmatpush2.msra.mxu0 0.0
  %415 = vmatprep.subr.mxu0 0.0
  %416 = vmatpush2.msra.mxu0 0.0
  %417 = vmatprep.subr.mxu0 0.0
  %418 = vmatpush2.msra.mxu0 0.0
  %419 = vmatprep.subr.mxu0 0.0
  %420 = vmatpush2.msra.mxu0 %v165
  %421 = vmatprep.subr.mxu0 0.0
  %422 = vmatpush2.msra.mxu0 %v164
  %423 = vmatprep.mubr.f32.mxu0 %v168
  %424 = vmatmul.mubr.f32.gmra.mxu0 %v20
  %v425 = vpop.f32.mrf.mxu0
  %v426 = vadd.f32 0.0, %v425
  %v427 = vpop.f32.mrf.mxu0
  %428 = vmatprep.mubr.f32.mxu0 %v171
  %429 = vmatmul.mubr.f32.gmra.mxu0 %v22
  %v430 = vpop.f32.mrf.mxu0
  %v431 = vadd.f32 0.0, %v430
  %v432 = vpop.f32.mrf.mxu0
  %433 = vmatprep.mubr.f32.mxu0 %v174
  %434 = vmatmul.mubr.f32.gmra.mxu0 %v24
  %v435 = vpop.f32.mrf.mxu0
  %v436 = vadd.f32 0.0, %v435
  %v437 = vpop.f32.mrf.mxu0
  %438 = vmatprep.mubr.f32.mxu0 %v177
  %439 = vmatmul.mubr.f32.gmra.mxu0 %v26
  %v440 = vpop.f32.mrf.mxu0
  %v441 = vadd.f32 0.0, %v440
  %v442 = vpop.f32.mrf.mxu0
  %443 = vmatprep.mubr.f32.mxu0 %v180
  %444 = vmatmul.mubr.f32.gmra.mxu0 %v28
  %v445 = vpop.f32.mrf.mxu0
  %v446 = vadd.f32 0.0, %v445
  %v447 = vpop.f32.mrf.mxu0
  %448 = vmatprep.mubr.f32.mxu0 %v183
  %449 = vmatmul.mubr.f32.gmra.mxu0 %v30
  %v450 = vpop.f32.mrf.mxu0
  %v451 = vadd.f32 0.0, %v450
  %v452 = vpop.f32.mrf.mxu0
  %453 = vmatprep.mubr.f32.mxu0 %v186
  %454 = vmatmul.mubr.f32.gmra.mxu0 %v32
  %v455 = vpop.f32.mrf.mxu0
  %v456 = vadd.f32 0.0, %v455
  %v457 = vpop.f32.mrf.mxu0
  %458 = vmatprep.mubr.f32.mxu0 %v189
  %459 = vmatmul.mubr.f32.gmra.mxu0 %v34
  %v460 = vpop.f32.mrf.mxu0
  %v461 = vadd.f32 0.0, %v460
  %v462 = vpop.f32.mrf.mxu0
  %463 = vmatprep.mubr.f32.mxu0 %v192
  %464 = vmatmul.mubr.f32.gmra.mxu0 %v36
  %v465 = vpop.f32.mrf.mxu0
  %v466 = vadd.f32 0.0, %v465
  %v467 = vpop.f32.mrf.mxu0
  %468 = vmatprep.mubr.f32.mxu0 %v195
  %469 = vmatmul.mubr.f32.gmra.mxu0 %v38
  %v470 = vpop.f32.mrf.mxu0
  %v471 = vadd.f32 0.0, %v470
  %v472 = vpop.f32.mrf.mxu0
  %473 = vmatprep.mubr.f32.mxu0 %v198
  %474 = vmatmul.mubr.f32.gmra.mxu0 %v40
  %v475 = vpop.f32.mrf.mxu0
  %v476 = vadd.f32 0.0, %v475
  %v477 = vpop.f32.mrf.mxu0
  %478 = vmatprep.mubr.f32.mxu0 %v201
  %479 = vmatmul.mubr.f32.gmra.mxu0 %v42
  %v480 = vpop.f32.mrf.mxu0
  %v481 = vadd.f32 0.0, %v480
  %v482 = vpop.f32.mrf.mxu0
  %483 = vmatprep.mubr.f32.mxu0 %v204
  %484 = vmatmul.mubr.f32.gmra.mxu0 %v44
  %v485 = vpop.f32.mrf.mxu0
  %v486 = vadd.f32 0.0, %v485
  %v487 = vpop.f32.mrf.mxu0
  %488 = vmatprep.mubr.f32.mxu0 %v207
  %489 = vmatmul.mubr.f32.gmra.mxu0 %v46
  %v490 = vpop.f32.mrf.mxu0
  %v491 = vadd.f32 0.0, %v490
  %v492 = vpop.f32.mrf.mxu0
  %493 = vmatprep.mubr.f32.mxu0 %v210
  %494 = vmatmul.mubr.f32.gmra.mxu0 %v48
  %v495 = vpop.f32.mrf.mxu0
  %v496 = vadd.f32 0.0, %v495
  %v497 = vpop.f32.mrf.mxu0
  %498 = vmatprep.mubr.f32.mxu0 %v213
  %499 = vmatmul.mubr.f32.gmra.mxu0 %v50
  %v500 = vpop.f32.mrf.mxu0
  %v501 = vadd.f32 0.0, %v500
  %v502 = vpop.f32.mrf.mxu0
  %503 = vmatprep.mubr.f32.mxu0 %v216
  %504 = vmatmul.mubr.f32.gmra.mxu0 %v52
  %v505 = vpop.f32.mrf.mxu0
  %v506 = vadd.f32 0.0, %v505
  %v507 = vpop.f32.mrf.mxu0
  %508 = vmatprep.mubr.f32.mxu0 %v219
  %509 = vmatmul.mubr.f32.gmra.mxu0 %v54
  %v510 = vpop.f32.mrf.mxu0
  %v511 = vadd.f32 0.0, %v510
  %v512 = vpop.f32.mrf.mxu0
  %513 = vmatprep.mubr.f32.mxu0 %v222
  %514 = vmatmul.mubr.f32.gmra.mxu0 %v56
  %v515 = vpop.f32.mrf.mxu0
  %v516 = vadd.f32 0.0, %v515
  %v517 = vpop.f32.mrf.mxu0
  %518 = vmatprep.mubr.f32.mxu0 %v225
  %519 = vmatmul.mubr.f32.gmra.mxu0 %v58
  %v520 = vpop.f32.mrf.mxu0
  %v521 = vadd.f32 0.0, %v520
  %v522 = vpop.f32.mrf.mxu0
  %523 = vmatprep.mubr.f32.mxu0 %v228
  %524 = vmatmul.mubr.f32.gmra.mxu0 %v60
  %v525 = vpop.f32.mrf.mxu0
  %v526 = vadd.f32 0.0, %v525
  %v527 = vpop.f32.mrf.mxu0
  %528 = vmatprep.mubr.f32.mxu0 %v231
  %529 = vmatmul.mubr.f32.gmra.mxu0 %v62
  %v530 = vpop.f32.mrf.mxu0
  %v531 = vadd.f32 0.0, %v530
  %v532 = vpop.f32.mrf.mxu0
  %533 = vmatprep.mubr.f32.mxu0 %v234
  %534 = vmatmul.mubr.f32.gmra.mxu0 %v64
  %v535 = vpop.f32.mrf.mxu0
  %v536 = vadd.f32 0.0, %v535
  %v537 = vpop.f32.mrf.mxu0
  %538 = vmatprep.mubr.f32.mxu0 %v237
  %539 = vmatmul.mubr.f32.gmra.mxu0 %v66
  %v540 = vpop.f32.mrf.mxu0
  %v541 = vadd.f32 0.0, %v540
  %v542 = vpop.f32.mrf.mxu0
  %543 = vmatprep.mubr.f32.mxu0 %v240
  %544 = vmatmul.mubr.f32.gmra.mxu0 %v68
  %v545 = vpop.f32.mrf.mxu0
  %v546 = vadd.f32 0.0, %v545
  %v547 = vpop.f32.mrf.mxu0
  %548 = vmatprep.mubr.f32.mxu0 %v243
  %549 = vmatmul.mubr.f32.gmra.mxu0 %v70
  %v550 = vpop.f32.mrf.mxu0
  %v551 = vadd.f32 0.0, %v550
  %v552 = vpop.f32.mrf.mxu0
  %553 = vmatprep.mubr.f32.mxu0 %v246
  %554 = vmatmul.mubr.f32.gmra.mxu0 %v72
  %v555 = vpop.f32.mrf.mxu0
  %v556 = vadd.f32 0.0, %v555
  %v557 = vpop.f32.mrf.mxu0
  %558 = vmatprep.mubr.f32.mxu0 %v249
  %559 = vmatmul.mubr.f32.gmra.mxu0 %v74
  %v560 = vpop.f32.mrf.mxu0
  %v561 = vadd.f32 0.0, %v560
  %v562 = vpop.f32.mrf.mxu0
  %563 = vmatprep.mubr.f32.mxu0 %v252
  %564 = vmatmul.mubr.f32.gmra.mxu0 %v76
  %v565 = vpop.f32.mrf.mxu0
  %v566 = vadd.f32 0.0, %v565
  %v567 = vpop.f32.mrf.mxu0
  %568 = vmatprep.mubr.f32.mxu0 %v255
  %569 = vmatmul.mubr.f32.gmra.mxu0 %v78
  %v570 = vpop.f32.mrf.mxu0
  %v571 = vadd.f32 0.0, %v570
  %v572 = vpop.f32.mrf.mxu0
  %573 = vmatprep.mubr.f32.mxu0 %v258
  %574 = vmatmul.mubr.f32.gmra.mxu0 %v80
  %v575 = vpop.f32.mrf.mxu0
  %v576 = vadd.f32 0.0, %v575
  %v577 = vpop.f32.mrf.mxu0
  %578 = vmatprep.mubr.f32.mxu0 %v261
  %579 = vmatmul.mubr.f32.gmra.mxu0 %v82
  %v580 = vpop.f32.mrf.mxu0
  %v581 = vadd.f32 0.0, %v580
  %v582 = vpop.f32.mrf.mxu0
  %583 = vmatprep.mubr.f32.mxu0 %v264
  %584 = vmatmul.mubr.f32.gmra.mxu0 %v84
  %v585 = vpop.f32.mrf.mxu0
  %v586 = vadd.f32 0.0, %v585
  %v587 = vpop.f32.mrf.mxu0
  %588 = vmatprep.mubr.f32.mxu0 %v267
  %589 = vmatmul.mubr.f32.gmra.mxu0 %v86
  %v590 = vpop.f32.mrf.mxu0
  %v591 = vadd.f32 0.0, %v590
  %v592 = vpop.f32.mrf.mxu0
  %593 = vmatprep.mubr.f32.mxu0 %v270
  %594 = vmatmul.mubr.f32.gmra.mxu0 %v88
  %v595 = vpop.f32.mrf.mxu0
  %v596 = vadd.f32 0.0, %v595
  %v597 = vpop.f32.mrf.mxu0
  %598 = vmatprep.mubr.f32.mxu0 %v273
  %599 = vmatmul.mubr.f32.gmra.mxu0 %v90
  %v600 = vpop.f32.mrf.mxu0
  %v601 = vadd.f32 0.0, %v600
  %v602 = vpop.f32.mrf.mxu0
  %603 = vmatprep.mubr.f32.mxu0 %v276
  %604 = vmatmul.mubr.f32.gmra.mxu0 %v92
  %v605 = vpop.f32.mrf.mxu0
  %v606 = vadd.f32 0.0, %v605
  %v607 = vpop.f32.mrf.mxu0
  %608 = vmatprep.mubr.f32.mxu0 %v279
  %609 = vmatmul.mubr.f32.gmra.mxu0 %v94
  %v610 = vpop.f32.mrf.mxu0
  %v611 = vadd.f32 0.0, %v610
  %v612 = vpop.f32.mrf.mxu0
  %613 = vmatprep.mubr.f32.mxu0 %v282
  %614 = vmatmul.mubr.f32.gmra.mxu0 %v96
  %v615 = vpop.f32.mrf.mxu0
  %v616 = vadd.f32 0.0, %v615
  %v617 = vpop.f32.mrf.mxu0
  %618 = vmatprep.mubr.f32.mxu0 %v285
  %619 = vmatmul.mubr.f32.gmra.mxu0 %v98
  %v620 = vpop.f32.mrf.mxu0
  %v621 = vadd.f32 0.0, %v620
  %v622 = vpop.f32.mrf.mxu0
  %623 = vmatprep.mubr.f32.mxu0 %v288
  %624 = vmatmul.mubr.f32.gmra.mxu0 %v100
  %v625 = vpop.f32.mrf.mxu0
  %v626 = vadd.f32 0.0, %v625
  %v627 = vpop.f32.mrf.mxu0
  %628 = vmatprep.mubr.f32.mxu0 %v291
  %629 = vmatmul.mubr.f32.gmra.mxu0 %v102
  %v630 = vpop.f32.mrf.mxu0
  %v631 = vadd.f32 0.0, %v630
  %v632 = vpop.f32.mrf.mxu0
  %633 = vmatprep.mubr.f32.mxu0 %v294
  %634 = vmatmul.mubr.f32.gmra.mxu0 %v104
  %v635 = vpop.f32.mrf.mxu0
  %v636 = vadd.f32 0.0, %v635
  %v637 = vpop.f32.mrf.mxu0
  %638 = vmatprep.mubr.f32.mxu0 %v297
  %639 = vmatmul.mubr.f32.gmra.mxu0 %v106
  %v640 = vpop.f32.mrf.mxu0
  %v641 = vadd.f32 0.0, %v640
  %v642 = vpop.f32.mrf.mxu0
  %643 = vmatprep.mubr.f32.mxu0 %v300
  %644 = vmatmul.mubr.f32.gmra.mxu0 %v108
  %v645 = vpop.f32.mrf.mxu0
  %v646 = vadd.f32 0.0, %v645
  %v647 = vpop.f32.mrf.mxu0
  %648 = vmatprep.mubr.f32.mxu0 %v303
  %649 = vmatmul.mubr.f32.gmra.mxu0 %v110
  %v650 = vpop.f32.mrf.mxu0
  %v651 = vadd.f32 0.0, %v650
  %v652 = vpop.f32.mrf.mxu0
  %653 = vmatprep.mubr.f32.mxu0 %v306
  %654 = vmatmul.mubr.f32.gmra.mxu0 %v112
  %v655 = vpop.f32.mrf.mxu0
  %v656 = vadd.f32 0.0, %v655
  %v657 = vpop.f32.mrf.mxu0
  %658 = vmatprep.mubr.f32.mxu0 %v309
  %659 = vmatmul.mubr.f32.gmra.mxu0 %v114
  %v660 = vpop.f32.mrf.mxu0
  %v661 = vadd.f32 0.0, %v660
  %v662 = vpop.f32.mrf.mxu0
  %663 = vmatprep.mubr.f32.mxu0 %v312
  %664 = vmatmul.mubr.f32.gmra.mxu0 %v116
  %v665 = vpop.f32.mrf.mxu0
  %v666 = vadd.f32 0.0, %v665
  %v667 = vpop.f32.mrf.mxu0
  %668 = vmatprep.mubr.f32.mxu0 %v315
  %669 = vmatmul.mubr.f32.gmra.mxu0 %v118
  %v670 = vpop.f32.mrf.mxu0
  %v671 = vadd.f32 0.0, %v670
  %v672 = vpop.f32.mrf.mxu0
  %673 = vmatprep.mubr.f32.mxu0 %v318
  %674 = vmatmul.mubr.f32.gmra.mxu0 %v120
  %v675 = vpop.f32.mrf.mxu0
  %v676 = vadd.f32 0.0, %v675
  %v677 = vpop.f32.mrf.mxu0
  %678 = vmatprep.mubr.f32.mxu0 %v321
  %679 = vmatmul.mubr.f32.gmra.mxu0 %v122
  %v680 = vpop.f32.mrf.mxu0
  %v681 = vadd.f32 0.0, %v680
  %v682 = vpop.f32.mrf.mxu0
  %683 = vmatprep.mubr.f32.mxu0 %v324
  %684 = vmatmul.mubr.f32.gmra.mxu0 %v124
  %v685 = vpop.f32.mrf.mxu0
  %v686 = vadd.f32 0.0, %v685
  %v687 = vpop.f32.mrf.mxu0
  %688 = vmatprep.mubr.f32.mxu0 %v327
  %689 = vmatmul.mubr.f32.gmra.mxu0 %v126
  %v690 = vpop.f32.mrf.mxu0
  %v691 = vadd.f32 0.0, %v690
  %v692 = vpop.f32.mrf.mxu0
  %693 = vmatprep.mubr.f32.mxu0 %v330
  %694 = vmatmul.mubr.f32.gmra.mxu0 %v128
  %v695 = vpop.f32.mrf.mxu0
  %v696 = vadd.f32 0.0, %v695
  %v697 = vpop.f32.mrf.mxu0
  %698 = vmatprep.mubr.f32.mxu0 %v333
  %699 = vmatmul.mubr.f32.gmra.mxu0 %v130
  %v700 = vpop.f32.mrf.mxu0
  %v701 = vadd.f32 0.0, %v700
  %v702 = vpop.f32.mrf.mxu0
  %703 = vmatprep.mubr.f32.mxu0 %v336
  %704 = vmatmul.mubr.f32.gmra.mxu0 %v132
  %v705 = vpop.f32.mrf.mxu0
  %v706 = vadd.f32 0.0, %v705
  %v707 = vpop.f32.mrf.mxu0
  %708 = vmatprep.mubr.f32.mxu0 %v339
  %709 = vmatmul.mubr.f32.gmra.mxu0 %v134
  %v710 = vpop.f32.mrf.mxu0
  %v711 = vadd.f32 0.0, %v710
  %v712 = vpop.f32.mrf.mxu0
  %713 = vmatprep.mubr.f32.mxu0 %v342
  %714 = vmatmul.mubr.f32.gmra.mxu0 %v136
  %v715 = vpop.f32.mrf.mxu0
  %v716 = vadd.f32 0.0, %v715
  %v717 = vpop.f32.mrf.mxu0
  %718 = vmatprep.mubr.f32.mxu0 %v345
  %719 = vmatmul.mubr.f32.gmra.mxu0 %v138
  %v720 = vpop.f32.mrf.mxu0
  %v721 = vadd.f32 0.0, %v720
  %v722 = vpop.f32.mrf.mxu0
  %723 = vmatprep.mubr.f32.mxu0 %v348
  %724 = vmatmul.mubr.f32.gmra.mxu0 %v140
  %v725 = vpop.f32.mrf.mxu0
  %v726 = vadd.f32 0.0, %v725
  %v727 = vpop.f32.mrf.mxu0
  %728 = vmatprep.mubr.f32.mxu0 %v351
  %729 = vmatmul.mubr.f32.gmra.mxu0 %v142
  %v730 = vpop.f32.mrf.mxu0
  %v731 = vadd.f32 0.0, %v730
  %v732 = vpop.f32.mrf.mxu0
  %733 = vmatprep.mubr.f32.mxu0 %v354
  %734 = vmatmul.mubr.f32.gmra.mxu0 %v144
  %v735 = vpop.f32.mrf.mxu0
  %v736 = vadd.f32 0.0, %v735
  %v737 = vpop.f32.mrf.mxu0
  %738 = vmatprep.mubr.f32.mxu0 %v357
  %739 = vmatmul.mubr.f32.gmra.mxu0 %v146
  %v740 = vpop.f32.mrf.mxu0
  %v741 = vadd.f32 0.0, %v740
  %v742 = vpop.f32.mrf.mxu0
  %743 = vdwg.mxu0
  %v744 = vld [vmem:[%s2] sm:$0x1]
  %v746 = vlaneseq
  %v747 = vshrl.u32 %v746, 7
  %v748 = vsub.s32 0, %v747
  %v749 = vrot.slane %v744, %v748
  %v751 = vmul.f32 %v426, %v749
  %v752 = vmul.f32 %v431, %v749
  %v753 = vmul.f32 %v436, %v749
  %v754 = vmul.f32 %v441, %v749
  %v755 = vmul.f32 %v446, %v749
  %v756 = vmul.f32 %v451, %v749
  %v757 = vmul.f32 %v456, %v749
  %v758 = vmul.f32 %v461, %v749
  %v759 = vmul.f32 %v466, %v749
  %v760 = vmul.f32 %v471, %v749
  %v761 = vmul.f32 %v476, %v749
  %v762 = vmul.f32 %v481, %v749
  %v763 = vmul.f32 %v486, %v749
  %v764 = vmul.f32 %v491, %v749
  %v765 = vmul.f32 %v496, %v749
  %v766 = vmul.f32 %v501, %v749
  %v767 = vmul.f32 %v506, %v749
  %v768 = vmul.f32 %v511, %v749
  %v769 = vmul.f32 %v516, %v749
  %v770 = vmul.f32 %v521, %v749
  %v771 = vmul.f32 %v526, %v749
  %v772 = vmul.f32 %v531, %v749
  %v773 = vmul.f32 %v536, %v749
  %v774 = vmul.f32 %v541, %v749
  %v775 = vmul.f32 %v546, %v749
  %v776 = vmul.f32 %v551, %v749
  %v777 = vmul.f32 %v556, %v749
  %v778 = vmul.f32 %v561, %v749
  %v779 = vmul.f32 %v566, %v749
  %v780 = vmul.f32 %v571, %v749
  %v781 = vmul.f32 %v576, %v749
  %v782 = vmul.f32 %v581, %v749
  %v783 = vmul.f32 %v586, %v749
  %v784 = vmul.f32 %v591, %v749
  %v785 = vmul.f32 %v596, %v749
  %v786 = vmul.f32 %v601, %v749
  %v787 = vmul.f32 %v606, %v749
  %v788 = vmul.f32 %v611, %v749
  %v789 = vmul.f32 %v616, %v749
  %v790 = vmul.f32 %v621, %v749
  %v791 = vmul.f32 %v626, %v749
  %v792 = vmul.f32 %v631, %v749
  %v793 = vmul.f32 %v636, %v749
  %v794 = vmul.f32 %v641, %v749
  %v795 = vmul.f32 %v646, %v749
  %v796 = vmul.f32 %v651, %v749
  %v797 = vmul.f32 %v656, %v749
  %v798 = vmul.f32 %v661, %v749
  %v799 = vmul.f32 %v666, %v749
  %v800 = vmul.f32 %v671, %v749
  %v801 = vmul.f32 %v676, %v749
  %v802 = vmul.f32 %v681, %v749
  %v803 = vmul.f32 %v686, %v749
  %v804 = vmul.f32 %v691, %v749
  %v805 = vmul.f32 %v696, %v749
  %v806 = vmul.f32 %v701, %v749
  %v807 = vmul.f32 %v706, %v749
  %v808 = vmul.f32 %v711, %v749
  %v809 = vmul.f32 %v716, %v749
  %v810 = vmul.f32 %v721, %v749
  %v811 = vmul.f32 %v726, %v749
  %v812 = vmul.f32 %v731, %v749
  %v813 = vmul.f32 %v736, %v749
  %v814 = vmul.f32 %v741, %v749
  %v815 = vld [vmem:[%s3] sm:$0x1]
  %v817 = vlaneseq
  %v818 = vshrl.u32 %v817, 7
  %v819 = vsub.s32 0, %v818
  %v820 = vrot.slane %v815, %v819
  %v822 = vadd.f32 %v751, %v820
  %v823 = vadd.f32 %v752, %v820
  %v824 = vadd.f32 %v753, %v820
  %v825 = vadd.f32 %v754, %v820
  %v826 = vadd.f32 %v755, %v820
  %v827 = vadd.f32 %v756, %v820
  %v828 = vadd.f32 %v757, %v820
  %v829 = vadd.f32 %v758, %v820
  %v830 = vadd.f32 %v759, %v820
  %v831 = vadd.f32 %v760, %v820
  %v832 = vadd.f32 %v761, %v820
  %v833 = vadd.f32 %v762, %v820
  %v834 = vadd.f32 %v763, %v820
  %v835 = vadd.f32 %v764, %v820
  %v836 = vadd.f32 %v765, %v820
  %v837 = vadd.f32 %v766, %v820
  %v838 = vadd.f32 %v767, %v820
  %v839 = vadd.f32 %v768, %v820
  %v840 = vadd.f32 %v769, %v820
  %v841 = vadd.f32 %v770, %v820
  %v842 = vadd.f32 %v771, %v820
  %v843 = vadd.f32 %v772, %v820
  %v844 = vadd.f32 %v773, %v820
  %v845 = vadd.f32 %v774, %v820
  %v846 = vadd.f32 %v775, %v820
  %v847 = vadd.f32 %v776, %v820
  %v848 = vadd.f32 %v777, %v820
  %v849 = vadd.f32 %v778, %v820
  %v850 = vadd.f32 %v779, %v820
  %v851 = vadd.f32 %v780, %v820
  %v852 = vadd.f32 %v781, %v820
  %v853 = vadd.f32 %v782, %v820
  %v854 = vadd.f32 %v783, %v820
  %v855 = vadd.f32 %v784, %v820
  %v856 = vadd.f32 %v785, %v820
  %v857 = vadd.f32 %v786, %v820
  %v858 = vadd.f32 %v787, %v820
  %v859 = vadd.f32 %v788, %v820
  %v860 = vadd.f32 %v789, %v820
  %v861 = vadd.f32 %v790, %v820
  %v862 = vadd.f32 %v791, %v820
  %v863 = vadd.f32 %v792, %v820
  %v864 = vadd.f32 %v793, %v820
  %v865 = vadd.f32 %v794, %v820
  %v866 = vadd.f32 %v795, %v820
  %v867 = vadd.f32 %v796, %v820
  %v868 = vadd.f32 %v797, %v820
  %v869 = vadd.f32 %v798, %v820
  %v870 = vadd.f32 %v799, %v820
  %v871 = vadd.f32 %v800, %v820
  %v872 = vadd.f32 %v801, %v820
  %v873 = vadd.f32 %v802, %v820
  %v874 = vadd.f32 %v803, %v820
  %v875 = vadd.f32 %v804, %v820
  %v876 = vadd.f32 %v805, %v820
  %v877 = vadd.f32 %v806, %v820
  %v878 = vadd.f32 %v807, %v820
  %v879 = vadd.f32 %v808, %v820
  %v880 = vadd.f32 %v809, %v820
  %v881 = vadd.f32 %v810, %v820
  %v882 = vadd.f32 %v811, %v820
  %v883 = vadd.f32 %v812, %v820
  %v884 = vadd.f32 %v813, %v820
  %v885 = vadd.f32 %v814, %v820
  %v886 = vld [vmem:[%s4] sm:$0xff]
  %v887 = vld [vmem:[%s4 + $0x8] sm:$0xff]
  %v888 = vld [vmem:[%s4 + $0x10] sm:$0xff]
  %v889 = vld [vmem:[%s4 + $0x18] sm:$0xff]
  %v890 = vld [vmem:[%s4 + $0x20] sm:$0xff]
  %v891 = vld [vmem:[%s4 + $0x28] sm:$0xff]
  %v892 = vld [vmem:[%s4 + $0x30] sm:$0xff]
  %v893 = vld [vmem:[%s4 + $0x38] sm:$0xff]
  %v894 = vld [vmem:[%s4 + $0x40] sm:$0xff]
  %v895 = vld [vmem:[%s4 + $0x48] sm:$0xff]
  %v896 = vld [vmem:[%s4 + $0x50] sm:$0xff]
  %v897 = vld [vmem:[%s4 + $0x58] sm:$0xff]
  %v898 = vld [vmem:[%s4 + $0x60] sm:$0xff]
  %v899 = vld [vmem:[%s4 + $0x68] sm:$0xff]
  %v900 = vld [vmem:[%s4 + $0x70] sm:$0xff]
  %v901 = vld [vmem:[%s4 + $0x78] sm:$0xff]
  %v902 = vld [vmem:[%s4 + $0x80] sm:$0xff]
  %v903 = vld [vmem:[%s4 + $0x88] sm:$0xff]
  %v904 = vld [vmem:[%s4 + $0x90] sm:$0xff]
  %v905 = vld [vmem:[%s4 + $0x98] sm:$0xff]
  %v906 = vld [vmem:[%s4 + $0xa0] sm:$0xff]
  %v907 = vld [vmem:[%s4 + $0xa8] sm:$0xff]
  %v908 = vld [vmem:[%s4 + $0xb0] sm:$0xff]
  %v909 = vld [vmem:[%s4 + $0xb8] sm:$0xff]
  %v910 = vld [vmem:[%s4 + $0xc0] sm:$0xff]
  %v911 = vld [vmem:[%s4 + $0xc8] sm:$0xff]
  %v912 = vld [vmem:[%s4 + $0xd0] sm:$0xff]
  %v913 = vld [vmem:[%s4 + $0xd8] sm:$0xff]
  %v914 = vld [vmem:[%s4 + $0xe0] sm:$0xff]
  %v915 = vld [vmem:[%s4 + $0xe8] sm:$0xff]
  %v916 = vld [vmem:[%s4 + $0xf0] sm:$0xff]
  %v917 = vld [vmem:[%s4 + $0xf8] sm:$0xff]
  %v918 = vld [vmem:[%s4 + $0x100] sm:$0xff]
  %v919 = vld [vmem:[%s4 + $0x108] sm:$0xff]
  %v920 = vld [vmem:[%s4 + $0x110] sm:$0xff]
  %v921 = vld [vmem:[%s4 + $0x118] sm:$0xff]
  %v922 = vld [vmem:[%s4 + $0x120] sm:$0xff]
  %v923 = vld [vmem:[%s4 + $0x128] sm:$0xff]
  %v924 = vld [vmem:[%s4 + $0x130] sm:$0xff]
  %v925 = vld [vmem:[%s4 + $0x138] sm:$0xff]
  %v926 = vld [vmem:[%s4 + $0x140] sm:$0xff]
  %v927 = vld [vmem:[%s4 + $0x148] sm:$0xff]
  %v928 = vld [vmem:[%s4 + $0x150] sm:$0xff]
  %v929 = vld [vmem:[%s4 + $0x158] sm:$0xff]
  %v930 = vld [vmem:[%s4 + $0x160] sm:$0xff]
  %v931 = vld [vmem:[%s4 + $0x168] sm:$0xff]
  %v932 = vld [vmem:[%s4 + $0x170] sm:$0xff]
  %v933 = vld [vmem:[%s4 + $0x178] sm:$0xff]
  %v934 = vld [vmem:[%s4 + $0x180] sm:$0xff]
  %v935 = vld [vmem:[%s4 + $0x188] sm:$0xff]
  %v936 = vld [vmem:[%s4 + $0x190] sm:$0xff]
  %v937 = vld [vmem:[%s4 + $0x198] sm:$0xff]
  %v938 = vld [vmem:[%s4 + $0x1a0] sm:$0xff]
  %v939 = vld [vmem:[%s4 + $0x1a8] sm:$0xff]
  %v940 = vld [vmem:[%s4 + $0x1b0] sm:$0xff]
  %v941 = vld [vmem:[%s4 + $0x1b8] sm:$0xff]
  %v942 = vld [vmem:[%s4 + $0x1c0] sm:$0xff]
  %v943 = vld [vmem:[%s4 + $0x1c8] sm:$0xff]
  %v944 = vld [vmem:[%s4 + $0x1d0] sm:$0xff]
  %v945 = vld [vmem:[%s4 + $0x1d8] sm:$0xff]
  %v946 = vld [vmem:[%s4 + $0x1e0] sm:$0xff]
  %v947 = vld [vmem:[%s4 + $0x1e8] sm:$0xff]
  %v948 = vld [vmem:[%s4 + $0x1f0] sm:$0xff]
  %v949 = vld [vmem:[%s4 + $0x1f8] sm:$0xff]
  %v950 = vadd.f32 %v822, %v886
  %v951 = vadd.f32 %v823, %v887
  %v952 = vadd.f32 %v824, %v888
  %v953 = vadd.f32 %v825, %v889
  %v954 = vadd.f32 %v826, %v890
  %v955 = vadd.f32 %v827, %v891
  %v956 = vadd.f32 %v828, %v892
  %v957 = vadd.f32 %v829, %v893
  %v958 = vadd.f32 %v830, %v894
  %v959 = vadd.f32 %v831, %v895
  %v960 = vadd.f32 %v832, %v896
  %v961 = vadd.f32 %v833, %v897
  %v962 = vadd.f32 %v834, %v898
  %v963 = vadd.f32 %v835, %v899
  %v964 = vadd.f32 %v836, %v900
  %v965 = vadd.f32 %v837, %v901
  %v966 = vadd.f32 %v838, %v902
  %v967 = vadd.f32 %v839, %v903
  %v968 = vadd.f32 %v840, %v904
  %v969 = vadd.f32 %v841, %v905
  %v970 = vadd.f32 %v842, %v906
  %v971 = vadd.f32 %v843, %v907
  %v972 = vadd.f32 %v844, %v908
  %v973 = vadd.f32 %v845, %v909
  %v974 = vadd.f32 %v846, %v910
  %v975 = vadd.f32 %v847, %v911
  %v976 = vadd.f32 %v848, %v912
  %v977 = vadd.f32 %v849, %v913
  %v978 = vadd.f32 %v850, %v914
  %v979 = vadd.f32 %v851, %v915
  %v980 = vadd.f32 %v852, %v916
  %v981 = vadd.f32 %v853, %v917
  %v982 = vadd.f32 %v854, %v918
  %v983 = vadd.f32 %v855, %v919
  %v984 = vadd.f32 %v856, %v920
  %v985 = vadd.f32 %v857, %v921
  %v986 = vadd.f32 %v858, %v922
  %v987 = vadd.f32 %v859, %v923
  %v988 = vadd.f32 %v860, %v924
  %v989 = vadd.f32 %v861, %v925
  %v990 = vadd.f32 %v862, %v926
  %v991 = vadd.f32 %v863, %v927
  %v992 = vadd.f32 %v864, %v928
  %v993 = vadd.f32 %v865, %v929
  %v994 = vadd.f32 %v866, %v930
  %v995 = vadd.f32 %v867, %v931
  %v996 = vadd.f32 %v868, %v932
  %v997 = vadd.f32 %v869, %v933
  %v998 = vadd.f32 %v870, %v934
  %v999 = vadd.f32 %v871, %v935
  %v1000 = vadd.f32 %v872, %v936
  %v1001 = vadd.f32 %v873, %v937
  %v1002 = vadd.f32 %v874, %v938
  %v1003 = vadd.f32 %v875, %v939
  %v1004 = vadd.f32 %v876, %v940
  %v1005 = vadd.f32 %v877, %v941
  %v1006 = vadd.f32 %v878, %v942
  %v1007 = vadd.f32 %v879, %v943
  %v1008 = vadd.f32 %v880, %v944
  %v1009 = vadd.f32 %v881, %v945
  %v1010 = vadd.f32 %v882, %v946
  %v1011 = vadd.f32 %v883, %v947
  %v1012 = vadd.f32 %v884, %v948
  %v1013 = vadd.f32 %v885, %v949
  %v1014 = vmax.f32 %v950, 0.0
  %v1015 = vmax.f32 %v951, 0.0
  %v1016 = vmax.f32 %v952, 0.0
  %v1017 = vmax.f32 %v953, 0.0
  %v1018 = vmax.f32 %v954, 0.0
  %v1019 = vmax.f32 %v955, 0.0
  %v1020 = vmax.f32 %v956, 0.0
  %v1021 = vmax.f32 %v957, 0.0
  %v1022 = vmax.f32 %v958, 0.0
  %v1023 = vmax.f32 %v959, 0.0
  %v1024 = vmax.f32 %v960, 0.0
  %v1025 = vmax.f32 %v961, 0.0
  %v1026 = vmax.f32 %v962, 0.0
  %v1027 = vmax.f32 %v963, 0.0
  %v1028 = vmax.f32 %v964, 0.0
  %v1029 = vmax.f32 %v965, 0.0
  %v1030 = vmax.f32 %v966, 0.0
  %v1031 = vmax.f32 %v967, 0.0
  %v1032 = vmax.f32 %v968, 0.0
  %v1033 = vmax.f32 %v969, 0.0
  %v1034 = vmax.f32 %v970, 0.0
  %v1035 = vmax.f32 %v971, 0.0
  %v1036 = vmax.f32 %v972, 0.0
  %v1037 = vmax.f32 %v973, 0.0
  %v1038 = vmax.f32 %v974, 0.0
  %v1039 = vmax.f32 %v975, 0.0
  %v1040 = vmax.f32 %v976, 0.0
  %v1041 = vmax.f32 %v977, 0.0
  %v1042 = vmax.f32 %v978, 0.0
  %v1043 = vmax.f32 %v979, 0.0
  %v1044 = vmax.f32 %v980, 0.0
  %v1045 = vmax.f32 %v981, 0.0
  %v1046 = vmax.f32 %v982, 0.0
  %v1047 = vmax.f32 %v983, 0.0
  %v1048 = vmax.f32 %v984, 0.0
  %v1049 = vmax.f32 %v985, 0.0
  %v1050 = vmax.f32 %v986, 0.0
  %v1051 = vmax.f32 %v987, 0.0
  %v1052 = vmax.f32 %v988, 0.0
  %v1053 = vmax.f32 %v989, 0.0
  %v1054 = vmax.f32 %v990, 0.0
  %v1055 = vmax.f32 %v991, 0.0
  %v1056 = vmax.f32 %v992, 0.0
  %v1057 = vmax.f32 %v993, 0.0
  %v1058 = vmax.f32 %v994, 0.0
  %v1059 = vmax.f32 %v995, 0.0
  %v1060 = vmax.f32 %v996, 0.0
  %v1061 = vmax.f32 %v997, 0.0
  %v1062 = vmax.f32 %v998, 0.0
  %v1063 = vmax.f32 %v999, 0.0
  %v1064 = vmax.f32 %v1000, 0.0
  %v1065 = vmax.f32 %v1001, 0.0
  %v1066 = vmax.f32 %v1002, 0.0
  %v1067 = vmax.f32 %v1003, 0.0
  %v1068 = vmax.f32 %v1004, 0.0
  %v1069 = vmax.f32 %v1005, 0.0
  %v1070 = vmax.f32 %v1006, 0.0
  %v1071 = vmax.f32 %v1007, 0.0
  %v1072 = vmax.f32 %v1008, 0.0
  %v1073 = vmax.f32 %v1009, 0.0
  %v1074 = vmax.f32 %v1010, 0.0
  %v1075 = vmax.f32 %v1011, 0.0
  %v1076 = vmax.f32 %v1012, 0.0
  %v1077 = vmax.f32 %v1013, 0.0
  %v1078 = vmin.f32 %v1014, 20.0
  %v1079 = vmin.f32 %v1015, 20.0
  %v1080 = vmin.f32 %v1016, 20.0
  %v1081 = vmin.f32 %v1017, 20.0
  %v1082 = vmin.f32 %v1018, 20.0
  %v1083 = vmin.f32 %v1019, 20.0
  %v1084 = vmin.f32 %v1020, 20.0
  %v1085 = vmin.f32 %v1021, 20.0
  %v1086 = vmin.f32 %v1022, 20.0
  %v1087 = vmin.f32 %v1023, 20.0
  %v1088 = vmin.f32 %v1024, 20.0
  %v1089 = vmin.f32 %v1025, 20.0
  %v1090 = vmin.f32 %v1026, 20.0
  %v1091 = vmin.f32 %v1027, 20.0
  %v1092 = vmin.f32 %v1028, 20.0
  %v1093 = vmin.f32 %v1029, 20.0
  %v1094 = vmin.f32 %v1030, 20.0
  %v1095 = vmin.f32 %v1031, 20.0
  %v1096 = vmin.f32 %v1032, 20.0
  %v1097 = vmin.f32 %v1033, 20.0
  %v1098 = vmin.f32 %v1034, 20.0
  %v1099 = vmin.f32 %v1035, 20.0
  %v1100 = vmin.f32 %v1036, 20.0
  %v1101 = vmin.f32 %v1037, 20.0
  %v1102 = vmin.f32 %v1038, 20.0
  %v1103 = vmin.f32 %v1039, 20.0
  %v1104 = vmin.f32 %v1040, 20.0
  %v1105 = vmin.f32 %v1041, 20.0
  %v1106 = vmin.f32 %v1042, 20.0
  %v1107 = vmin.f32 %v1043, 20.0
  %v1108 = vmin.f32 %v1044, 20.0
  %v1109 = vmin.f32 %v1045, 20.0
  %v1110 = vmin.f32 %v1046, 20.0
  %v1111 = vmin.f32 %v1047, 20.0
  %v1112 = vmin.f32 %v1048, 20.0
  %v1113 = vmin.f32 %v1049, 20.0
  %v1114 = vmin.f32 %v1050, 20.0
  %v1115 = vmin.f32 %v1051, 20.0
  %v1116 = vmin.f32 %v1052, 20.0
  %v1117 = vmin.f32 %v1053, 20.0
  %v1118 = vmin.f32 %v1054, 20.0
  %v1119 = vmin.f32 %v1055, 20.0
  %v1120 = vmin.f32 %v1056, 20.0
  %v1121 = vmin.f32 %v1057, 20.0
  %v1122 = vmin.f32 %v1058, 20.0
  %v1123 = vmin.f32 %v1059, 20.0
  %v1124 = vmin.f32 %v1060, 20.0
  %v1125 = vmin.f32 %v1061, 20.0
  %v1126 = vmin.f32 %v1062, 20.0
  %v1127 = vmin.f32 %v1063, 20.0
  %v1128 = vmin.f32 %v1064, 20.0
  %v1129 = vmin.f32 %v1065, 20.0
  %v1130 = vmin.f32 %v1066, 20.0
  %v1131 = vmin.f32 %v1067, 20.0
  %v1132 = vmin.f32 %v1068, 20.0
  %v1133 = vmin.f32 %v1069, 20.0
  %v1134 = vmin.f32 %v1070, 20.0
  %v1135 = vmin.f32 %v1071, 20.0
  %v1136 = vmin.f32 %v1072, 20.0
  %v1137 = vmin.f32 %v1073, 20.0
  %v1138 = vmin.f32 %v1074, 20.0
  %v1139 = vmin.f32 %v1075, 20.0
  %v1140 = vmin.f32 %v1076, 20.0
  %v1141 = vmin.f32 %v1077, 20.0
  %1142 = vst.msk [vmem:[%s5] sm:$0xff] %vm166, %v1078
  %1143 = vst.msk [vmem:[%s5 + $0x8] sm:$0xff] %vm166, %v1079
  %1144 = vst.msk [vmem:[%s5 + $0x10] sm:$0xff] %vm166, %v1080
  %1145 = vst.msk [vmem:[%s5 + $0x18] sm:$0xff] %vm166, %v1081
  %1146 = vst.msk [vmem:[%s5 + $0x20] sm:$0xff] %vm166, %v1082
  %1147 = vst.msk [vmem:[%s5 + $0x28] sm:$0xff] %vm166, %v1083
  %1148 = vst.msk [vmem:[%s5 + $0x30] sm:$0xff] %vm166, %v1084
  %1149 = vst.msk [vmem:[%s5 + $0x38] sm:$0xff] %vm166, %v1085
  %1150 = vst.msk [vmem:[%s5 + $0x40] sm:$0xff] %vm166, %v1086
  %1151 = vst.msk [vmem:[%s5 + $0x48] sm:$0xff] %vm166, %v1087
  %1152 = vst.msk [vmem:[%s5 + $0x50] sm:$0xff] %vm166, %v1088
  %1153 = vst.msk [vmem:[%s5 + $0x58] sm:$0xff] %vm166, %v1089
  %1154 = vst.msk [vmem:[%s5 + $0x60] sm:$0xff] %vm166, %v1090
  %1155 = vst.msk [vmem:[%s5 + $0x68] sm:$0xff] %vm166, %v1091
  %1156 = vst.msk [vmem:[%s5 + $0x70] sm:$0xff] %vm166, %v1092
  %1157 = vst.msk [vmem:[%s5 + $0x78] sm:$0xff] %vm166, %v1093
  %1158 = vst.msk [vmem:[%s5 + $0x80] sm:$0xff] %vm166, %v1094
  %1159 = vst.msk [vmem:[%s5 + $0x88] sm:$0xff] %vm166, %v1095
  %1160 = vst.msk [vmem:[%s5 + $0x90] sm:$0xff] %vm166, %v1096
  %1161 = vst.msk [vmem:[%s5 + $0x98] sm:$0xff] %vm166, %v1097
  %1162 = vst.msk [vmem:[%s5 + $0xa0] sm:$0xff] %vm166, %v1098
  %1163 = vst.msk [vmem:[%s5 + $0xa8] sm:$0xff] %vm166, %v1099
  %1164 = vst.msk [vmem:[%s5 + $0xb0] sm:$0xff] %vm166, %v1100
  %1165 = vst.msk [vmem:[%s5 + $0xb8] sm:$0xff] %vm166, %v1101
  %1166 = vst.msk [vmem:[%s5 + $0xc0] sm:$0xff] %vm166, %v1102
  %1167 = vst.msk [vmem:[%s5 + $0xc8] sm:$0xff] %vm166, %v1103
  %1168 = vst.msk [vmem:[%s5 + $0xd0] sm:$0xff] %vm166, %v1104
  %1169 = vst.msk [vmem:[%s5 + $0xd8] sm:$0xff] %vm166, %v1105
  %1170 = vst.msk [vmem:[%s5 + $0xe0] sm:$0xff] %vm166, %v1106
  %1171 = vst.msk [vmem:[%s5 + $0xe8] sm:$0xff] %vm166, %v1107
  %1172 = vst.msk [vmem:[%s5 + $0xf0] sm:$0xff] %vm166, %v1108
  %1173 = vst.msk [vmem:[%s5 + $0xf8] sm:$0xff] %vm166, %v1109
  %1174 = vst.msk [vmem:[%s5 + $0x100] sm:$0xff] %vm166, %v1110
  %1175 = vst.msk [vmem:[%s5 + $0x108] sm:$0xff] %vm166, %v1111
  %1176 = vst.msk [vmem:[%s5 + $0x110] sm:$0xff] %vm166, %v1112
  %1177 = vst.msk [vmem:[%s5 + $0x118] sm:$0xff] %vm166, %v1113
  %1178 = vst.msk [vmem:[%s5 + $0x120] sm:$0xff] %vm166, %v1114
  %1179 = vst.msk [vmem:[%s5 + $0x128] sm:$0xff] %vm166, %v1115
  %1180 = vst.msk [vmem:[%s5 + $0x130] sm:$0xff] %vm166, %v1116
  %1181 = vst.msk [vmem:[%s5 + $0x138] sm:$0xff] %vm166, %v1117
  %1182 = vst.msk [vmem:[%s5 + $0x140] sm:$0xff] %vm166, %v1118
  %1183 = vst.msk [vmem:[%s5 + $0x148] sm:$0xff] %vm166, %v1119
  %1184 = vst.msk [vmem:[%s5 + $0x150] sm:$0xff] %vm166, %v1120
  %1185 = vst.msk [vmem:[%s5 + $0x158] sm:$0xff] %vm166, %v1121
  %1186 = vst.msk [vmem:[%s5 + $0x160] sm:$0xff] %vm166, %v1122
  %1187 = vst.msk [vmem:[%s5 + $0x168] sm:$0xff] %vm166, %v1123
  %1188 = vst.msk [vmem:[%s5 + $0x170] sm:$0xff] %vm166, %v1124
  %1189 = vst.msk [vmem:[%s5 + $0x178] sm:$0xff] %vm166, %v1125
  %1190 = vst.msk [vmem:[%s5 + $0x180] sm:$0xff] %vm166, %v1126
  %1191 = vst.msk [vmem:[%s5 + $0x188] sm:$0xff] %vm166, %v1127
  %1192 = vst.msk [vmem:[%s5 + $0x190] sm:$0xff] %vm166, %v1128
  %1193 = vst.msk [vmem:[%s5 + $0x198] sm:$0xff] %vm166, %v1129
  %1194 = vst.msk [vmem:[%s5 + $0x1a0] sm:$0xff] %vm166, %v1130
  %1195 = vst.msk [vmem:[%s5 + $0x1a8] sm:$0xff] %vm166, %v1131
  %1196 = vst.msk [vmem:[%s5 + $0x1b0] sm:$0xff] %vm166, %v1132
  %1197 = vst.msk [vmem:[%s5 + $0x1b8] sm:$0xff] %vm166, %v1133
  %1198 = vst.msk [vmem:[%s5 + $0x1c0] sm:$0xff] %vm166, %v1134
  %1199 = vst.msk [vmem:[%s5 + $0x1c8] sm:$0xff] %vm166, %v1135
  %1200 = vst.msk [vmem:[%s5 + $0x1d0] sm:$0xff] %vm166, %v1136
  %1201 = vst.msk [vmem:[%s5 + $0x1d8] sm:$0xff] %vm166, %v1137
  %1202 = vst.msk [vmem:[%s5 + $0x1e0] sm:$0xff] %vm166, %v1138
  %1203 = vst.msk [vmem:[%s5 + $0x1e8] sm:$0xff] %vm166, %v1139
  %1204 = vst.msk [vmem:[%s5 + $0x1f0] sm:$0xff] %vm166, %v1140
  %1205 = vst.msk [vmem:[%s5 + $0x1f8] sm:$0xff] %vm166, %v1141
  // Predicated region
  $region22: #{_lambda_.39} parent=0 // pred_check
    _
  $region23: #{_lambda_.39} parent=0 // pred_check_branch
    %1207 = sbr.rel (0) target = $region25
  $region24: #{_lambda_.39} parent=0 // pred_region
    _
  $region25: #{_lambda_.39} parent=0 // pred_fallthru
    _
  // Predicated region
  $region26: #{_lambda_.39} parent=0 // pred_check
    _
  $region27: #{_lambda_.39} parent=0 // pred_check_branch
    %1209 = sbr.rel (0) target = $region29
  $region28: #{_lambda_.39} parent=0 // pred_region
    _
  $region29: #{_lambda_.39} parent=0 // pred_fallthru
    _

// kernel: _lambda_.44
$region0: #{_lambda_.44}
  #allocation0 [shape = 'u32[]', space=smem, size = 0x4, offset = 0x4, fixed_abs, tag = 'smem constant byte address 0x4 - core index']
  #allocation1 [shape = 'u32[144,128]{1,0:T(1,128)}', space=vmem, size = 0x12000, scoped, tag = 'internal scratch']
  %s0 = inlined_call_operand.vmem [shape: f32[128,144], index: 0, kind: input, shape index: {}]
  %s1 = inlined_call_operand.vmem [shape: f32[144,32], index: 1, kind: input, shape index: {}]
  %s2 = inlined_call_operand.vmem [shape: f32[1,32], index: 2, kind: input, shape index: {}]
  %s3 = inlined_call_operand.vmem [shape: f32[1,32], index: 3, kind: input, shape index: {}]
  %s4 = inlined_call_operand.vmem [shape: f32[128,32], index: 4, kind: output, shape index: {}]
  %s5 = sld [smem:[#allocation0]]
  $region26: #{_lambda_.44} parent=0
    _
  %s7 = ssub.s32 1, %s5
  %s8 = scalar_select 0, %s7, %s5
  // Predicated region
  $region2: #{_lambda_.44} parent=0 // pred_check
    _
  $region3: #{_lambda_.44} parent=0 // pred_check_branch
    %10 = sbr.rel (0) target = $region5
  $region4: #{_lambda_.44} parent=0 // pred_region
    _
  $region5: #{_lambda_.44} parent=0 // pred_fallthru
    _
  // Predicated region
  $region6: #{_lambda_.44} parent=0 // pred_check
    _
  $region7: #{_lambda_.44} parent=0 // pred_check_branch
    %12 = sbr.rel (0) target = $region9
  $region8: #{_lambda_.44} parent=0 // pred_region
    _
  $region9: #{_lambda_.44} parent=0 // pred_fallthru
    _
  // Predicated region
  $region10: #{_lambda_.44} parent=0 // pred_check
    _
  $region11: #{_lambda_.44} parent=0 // pred_check_branch
    %14 = sbr.rel (0) target = $region13
  $region12: #{_lambda_.44} parent=0 // pred_region
    _
  $region13: #{_lambda_.44} parent=0 // pred_fallthru
    _
  // Predicated region
  $region14: #{_lambda_.44} parent=0 // pred_check
    _
  $region15: #{_lambda_.44} parent=0 // pred_check_branch
    %16 = sbr.rel (0) target = $region17
  $region16: #{_lambda_.44} parent=0 // pred_region
    _
  $region17: #{_lambda_.44} parent=0 // pred_fallthru
    _
  %v17 = vld [vmem:[%s0] sm:$0xff]
  %v18 = vld [vmem:[%s0 + $0x8] sm:$0xff]
  %v19 = vld [vmem:[%s0 + $0x10] sm:$0xff]
  %v20 = vld [vmem:[%s0 + $0x18] sm:$0xff]
  %v21 = vld [vmem:[%s0 + $0x20] sm:$0xff]
  %v22 = vld [vmem:[%s0 + $0x28] sm:$0xff]
  %v23 = vld [vmem:[%s0 + $0x30] sm:$0xff]
  %v24 = vld [vmem:[%s0 + $0x38] sm:$0xff]
  %v25 = vld [vmem:[%s0 + $0x40] sm:$0xff]
  %v26 = vld [vmem:[%s0 + $0x48] sm:$0xff]
  %v27 = vld [vmem:[%s0 + $0x50] sm:$0xff]
  %v28 = vld [vmem:[%s0 + $0x58] sm:$0xff]
  %v29 = vld [vmem:[%s0 + $0x60] sm:$0xff]
  %v30 = vld [vmem:[%s0 + $0x68] sm:$0xff]
  %v31 = vld [vmem:[%s0 + $0x70] sm:$0xff]
  %v32 = vld [vmem:[%s0 + $0x78] sm:$0xff]
  %v33 = vld [vmem:[%s0 + $0x80] sm:$0xff]
  %v34 = vld [vmem:[%s0 + $0x88] sm:$0xff]
  %v35 = vld [vmem:[%s0 + $0x90] sm:$0xff]
  %v36 = vld [vmem:[%s0 + $0x98] sm:$0xff]
  %v37 = vld [vmem:[%s0 + $0xa0] sm:$0xff]
  %v38 = vld [vmem:[%s0 + $0xa8] sm:$0xff]
  %v39 = vld [vmem:[%s0 + $0xb0] sm:$0xff]
  %v40 = vld [vmem:[%s0 + $0xb8] sm:$0xff]
  %v41 = vld [vmem:[%s0 + $0xc0] sm:$0xff]
  %v42 = vld [vmem:[%s0 + $0xc8] sm:$0xff]
  %v43 = vld [vmem:[%s0 + $0xd0] sm:$0xff]
  %v44 = vld [vmem:[%s0 + $0xd8] sm:$0xff]
  %v45 = vld [vmem:[%s0 + $0xe0] sm:$0xff]
  %v46 = vld [vmem:[%s0 + $0xe8] sm:$0xff]
  %v47 = vld [vmem:[%s0 + $0xf0] sm:$0xff]
  %v48 = vld [vmem:[%s0 + $0xf8] sm:$0xff]
  %v49 = vld [vmem:[%s1] sm:$0xff]
  %v50 = vld [vmem:[%s1 + $0x8] sm:$0xff]
  %v51 = vld [vmem:[%s1 + $0x10] sm:$0xff]
  %v52 = vld [vmem:[%s1 + $0x18] sm:$0xff]
  %v53 = vld [vmem:[%s1 + $0x20] sm:$0xff]
  %v54 = vld [vmem:[%s1 + $0x28] sm:$0xff]
  %v55 = vld [vmem:[%s1 + $0x30] sm:$0xff]
  %v56 = vld [vmem:[%s1 + $0x38] sm:$0xff]
  %v57 = vld [vmem:[%s1 + $0x40] sm:$0xff]
  %v58 = vld [vmem:[%s1 + $0x48] sm:$0xff]
  %v59 = vld [vmem:[%s1 + $0x50] sm:$0xff]
  %v60 = vld [vmem:[%s1 + $0x58] sm:$0xff]
  %v61 = vld [vmem:[%s1 + $0x60] sm:$0xff]
  %v62 = vld [vmem:[%s1 + $0x68] sm:$0xff]
  %v63 = vld [vmem:[%s1 + $0x70] sm:$0xff]
  %v64 = vld [vmem:[%s1 + $0x78] sm:$0xff]
  %v65 = vld [vmem:[%s1 + $0x80] sm:$0xff]
  %v66 = vld [vmem:[%s1 + $0x88] sm:$0xff]
  %vm67 = vcmask 130048
  %v69 = vsel %vm67, %v18, 0
  %v72 = vsel %vm67, %v20, 0
  %v75 = vsel %vm67, %v22, 0
  %v78 = vsel %vm67, %v24, 0
  %v81 = vsel %vm67, %v26, 0
  %v84 = vsel %vm67, %v28, 0
  %v87 = vsel %vm67, %v30, 0
  %v90 = vsel %vm67, %v32, 0
  %v93 = vsel %vm67, %v34, 0
  %v96 = vsel %vm67, %v36, 0
  %v99 = vsel %vm67, %v38, 0
  %v102 = vsel %vm67, %v40, 0
  %v105 = vsel %vm67, %v42, 0
  %v108 = vsel %vm67, %v44, 0
  %v111 = vsel %vm67, %v46, 0
  %v114 = vsel %vm67, %v48, 0
  %116 = vmatprep.subr.mxu0 0.0
  %117 = vmatpush1.msra.mxu0 %v64
  %118 = vmatprep.subr.mxu0 0.0
  %119 = vmatpush1.msra.mxu0 %v63
  %120 = vmatprep.subr.mxu0 0.0
  %121 = vmatpush1.msra.mxu0 %v62
  %122 = vmatprep.subr.mxu0 0.0
  %123 = vmatpush1.msra.mxu0 %v61
  %124 = vmatprep.subr.mxu0 0.0
  %125 = vmatpush1.msra.mxu0 %v60
  %126 = vmatprep.subr.mxu0 0.0
  %127 = vmatpush1.msra.mxu0 %v59
  %128 = vmatprep.subr.mxu0 0.0
  %129 = vmatpush1.msra.mxu0 %v58
  %130 = vmatprep.subr.mxu0 0.0
  %131 = vmatpush1.msra.mxu0 %v57
  %132 = vmatprep.subr.mxu0 0.0
  %133 = vmatpush1.msra.mxu0 %v56
  %134 = vmatprep.subr.mxu0 0.0
  %135 = vmatpush1.msra.mxu0 %v55
  %136 = vmatprep.subr.mxu0 0.0
  %137 = vmatpush1.msra.mxu0 %v54
  %138 = vmatprep.subr.mxu0 0.0
  %139 = vmatpush1.msra.mxu0 %v53
  %140 = vmatprep.subr.mxu0 0.0
  %141 = vmatpush1.msra.mxu0 %v52
  %142 = vmatprep.subr.mxu0 0.0
  %143 = vmatpush1.msra.mxu0 %v51
  %144 = vmatprep.subr.mxu0 0.0
  %145 = vmatpush1.msra.mxu0 %v50
  %146 = vmatprep.subr.mxu0 0.0
  %147 = vmatpush1.msra.mxu0 %v49
  %148 = vmatprep.subr.mxu0 0.0
  %149 = vmatpush2.msra.mxu0 0.0
  %150 = vmatprep.subr.mxu0 0.0
  %151 = vmatpush2.msra.mxu0 0.0
  %152 = vmatprep.subr.mxu0 0.0
  %153 = vmatpush2.msra.mxu0 0.0
  %154 = vmatprep.subr.mxu0 0.0
  %155 = vmatpush2.msra.mxu0 0.0
  %156 = vmatprep.subr.mxu0 0.0
  %157 = vmatpush2.msra.mxu0 0.0
  %158 = vmatprep.subr.mxu0 0.0
  %159 = vmatpush2.msra.mxu0 0.0
  %160 = vmatprep.subr.mxu0 0.0
  %161 = vmatpush2.msra.mxu0 0.0
  %162 = vmatprep.subr.mxu0 0.0
  %163 = vmatpush2.msra.mxu0 0.0
  %164 = vmatprep.subr.mxu0 0.0
  %165 = vmatpush2.msra.mxu0 0.0
  %166 = vmatprep.subr.mxu0 0.0
  %167 = vmatpush2.msra.mxu0 0.0
  %168 = vmatprep.subr.mxu0 0.0
  %169 = vmatpush2.msra.mxu0 0.0
  %170 = vmatprep.subr.mxu0 0.0
  %171 = vmatpush2.msra.mxu0 0.0
  %172 = vmatprep.subr.mxu0 0.0
  %173 = vmatpush2.msra.mxu0 0.0
  %174 = vmatprep.subr.mxu0 0.0
  %175 = vmatpush2.msra.mxu0 0.0
  %176 = vmatprep.subr.mxu0 0.0
  %177 = vmatpush2.msra.mxu0 %v66
  %178 = vmatprep.subr.mxu0 0.0
  %179 = vmatpush2.msra.mxu0 %v65
  %180 = vmatprep.mubr.f32.mxu0 %v69
  %181 = vmatmul.mubr.f32.gmra.mxu0 %v17
  %v182 = vpop.f32.mrf.mxu0
  %v183 = vadd.f32 0.0, %v182
  %v184 = vpop.f32.mrf.mxu0
  %185 = vmatprep.mubr.f32.mxu0 %v72
  %186 = vmatmul.mubr.f32.gmra.mxu0 %v19
  %v187 = vpop.f32.mrf.mxu0
  %v188 = vadd.f32 0.0, %v187
  %v189 = vpop.f32.mrf.mxu0
  %190 = vmatprep.mubr.f32.mxu0 %v75
  %191 = vmatmul.mubr.f32.gmra.mxu0 %v21
  %v192 = vpop.f32.mrf.mxu0
  %v193 = vadd.f32 0.0, %v192
  %v194 = vpop.f32.mrf.mxu0
  %195 = vmatprep.mubr.f32.mxu0 %v78
  %196 = vmatmul.mubr.f32.gmra.mxu0 %v23
  %v197 = vpop.f32.mrf.mxu0
  %v198 = vadd.f32 0.0, %v197
  %v199 = vpop.f32.mrf.mxu0
  %200 = vmatprep.mubr.f32.mxu0 %v81
  %201 = vmatmul.mubr.f32.gmra.mxu0 %v25
  %v202 = vpop.f32.mrf.mxu0
  %v203 = vadd.f32 0.0, %v202
  %v204 = vpop.f32.mrf.mxu0
  %205 = vmatprep.mubr.f32.mxu0 %v84
  %206 = vmatmul.mubr.f32.gmra.mxu0 %v27
  %v207 = vpop.f32.mrf.mxu0
  %v208 = vadd.f32 0.0, %v207
  %v209 = vpop.f32.mrf.mxu0
  %210 = vmatprep.mubr.f32.mxu0 %v87
  %211 = vmatmul.mubr.f32.gmra.mxu0 %v29
  %v212 = vpop.f32.mrf.mxu0
  %v213 = vadd.f32 0.0, %v212
  %v214 = vpop.f32.mrf.mxu0
  %215 = vmatprep.mubr.f32.mxu0 %v90
  %216 = vmatmul.mubr.f32.gmra.mxu0 %v31
  %v217 = vpop.f32.mrf.mxu0
  %v218 = vadd.f32 0.0, %v217
  %v219 = vpop.f32.mrf.mxu0
  %220 = vmatprep.mubr.f32.mxu0 %v93
  %221 = vmatmul.mubr.f32.gmra.mxu0 %v33
  %v222 = vpop.f32.mrf.mxu0
  %v223 = vadd.f32 0.0, %v222
  %v224 = vpop.f32.mrf.mxu0
  %225 = vmatprep.mubr.f32.mxu0 %v96
  %226 = vmatmul.mubr.f32.gmra.mxu0 %v35
  %v227 = vpop.f32.mrf.mxu0
  %v228 = vadd.f32 0.0, %v227
  %v229 = vpop.f32.mrf.mxu0
  %230 = vmatprep.mubr.f32.mxu0 %v99
  %231 = vmatmul.mubr.f32.gmra.mxu0 %v37
  %v232 = vpop.f32.mrf.mxu0
  %v233 = vadd.f32 0.0, %v232
  %v234 = vpop.f32.mrf.mxu0
  %235 = vmatprep.mubr.f32.mxu0 %v102
  %236 = vmatmul.mubr.f32.gmra.mxu0 %v39
  %v237 = vpop.f32.mrf.mxu0
  %v238 = vadd.f32 0.0, %v237
  %v239 = vpop.f32.mrf.mxu0
  %240 = vmatprep.mubr.f32.mxu0 %v105
  %241 = vmatmul.mubr.f32.gmra.mxu0 %v41
  %v242 = vpop.f32.mrf.mxu0
  %v243 = vadd.f32 0.0, %v242
  %v244 = vpop.f32.mrf.mxu0
  %245 = vmatprep.mubr.f32.mxu0 %v108
  %246 = vmatmul.mubr.f32.gmra.mxu0 %v43
  %v247 = vpop.f32.mrf.mxu0
  %v248 = vadd.f32 0.0, %v247
  %v249 = vpop.f32.mrf.mxu0
  %250 = vmatprep.mubr.f32.mxu0 %v111
  %251 = vmatmul.mubr.f32.gmra.mxu0 %v45
  %v252 = vpop.f32.mrf.mxu0
  %v253 = vadd.f32 0.0, %v252
  %v254 = vpop.f32.mrf.mxu0
  %255 = vmatprep.mubr.f32.mxu0 %v114
  %256 = vmatmul.mubr.f32.gmra.mxu0 %v47
  %v257 = vpop.f32.mrf.mxu0
  %v258 = vadd.f32 0.0, %v257
  %v259 = vpop.f32.mrf.mxu0
  %260 = vdwg.mxu0
  %v261 = vld [vmem:[%s2] sm:$0x1]
  %v263 = vlaneseq
  %v264 = vshrl.u32 %v263, 7
  %v265 = vsub.s32 0, %v264
  %v266 = vrot.slane %v261, %v265
  %v268 = vmul.f32 %v183, %v266
  %v269 = vmul.f32 %v188, %v266
  %v270 = vmul.f32 %v193, %v266
  %v271 = vmul.f32 %v198, %v266
  %v272 = vmul.f32 %v203, %v266
  %v273 = vmul.f32 %v208, %v266
  %v274 = vmul.f32 %v213, %v266
  %v275 = vmul.f32 %v218, %v266
  %v276 = vmul.f32 %v223, %v266
  %v277 = vmul.f32 %v228, %v266
  %v278 = vmul.f32 %v233, %v266
  %v279 = vmul.f32 %v238, %v266
  %v280 = vmul.f32 %v243, %v266
  %v281 = vmul.f32 %v248, %v266
  %v282 = vmul.f32 %v253, %v266
  %v283 = vmul.f32 %v258, %v266
  %v284 = vld [vmem:[%s3] sm:$0x1]
  %v286 = vlaneseq
  %v287 = vshrl.u32 %v286, 7
  %v288 = vsub.s32 0, %v287
  %v289 = vrot.slane %v284, %v288
  %v291 = vadd.f32 %v268, %v289
  %v292 = vadd.f32 %v269, %v289
  %v293 = vadd.f32 %v270, %v289
  %v294 = vadd.f32 %v271, %v289
  %v295 = vadd.f32 %v272, %v289
  %v296 = vadd.f32 %v273, %v289
  %v297 = vadd.f32 %v274, %v289
  %v298 = vadd.f32 %v275, %v289
  %v299 = vadd.f32 %v276, %v289
  %v300 = vadd.f32 %v277, %v289
  %v301 = vadd.f32 %v278, %v289
  %v302 = vadd.f32 %v279, %v289
  %v303 = vadd.f32 %v280, %v289
  %v304 = vadd.f32 %v281, %v289
  %v305 = vadd.f32 %v282, %v289
  %v306 = vadd.f32 %v283, %v289
  %v307 = vmax.f32 %v291, 0.0
  %v308 = vmax.f32 %v292, 0.0
  %v309 = vmax.f32 %v293, 0.0
  %v310 = vmax.f32 %v294, 0.0
  %v311 = vmax.f32 %v295, 0.0
  %v312 = vmax.f32 %v296, 0.0
  %v313 = vmax.f32 %v297, 0.0
  %v314 = vmax.f32 %v298, 0.0
  %v315 = vmax.f32 %v299, 0.0
  %v316 = vmax.f32 %v300, 0.0
  %v317 = vmax.f32 %v301, 0.0
  %v318 = vmax.f32 %v302, 0.0
  %v319 = vmax.f32 %v303, 0.0
  %v320 = vmax.f32 %v304, 0.0
  %v321 = vmax.f32 %v305, 0.0
  %v322 = vmax.f32 %v306, 0.0
  %v323 = vmin.f32 %v307, 20.0
  %v324 = vmin.f32 %v308, 20.0
  %v325 = vmin.f32 %v309, 20.0
  %v326 = vmin.f32 %v310, 20.0
  %v327 = vmin.f32 %v311, 20.0
  %v328 = vmin.f32 %v312, 20.0
  %v329 = vmin.f32 %v313, 20.0
  %v330 = vmin.f32 %v314, 20.0
  %v331 = vmin.f32 %v315, 20.0
  %v332 = vmin.f32 %v316, 20.0
  %v333 = vmin.f32 %v317, 20.0
  %v334 = vmin.f32 %v318, 20.0
  %v335 = vmin.f32 %v319, 20.0
  %v336 = vmin.f32 %v320, 20.0
  %v337 = vmin.f32 %v321, 20.0
  %v338 = vmin.f32 %v322, 20.0
  %vm339 = vcmask 261120
  %340 = vst.msk [vmem:[%s4] sm:$0xff] %vm339, %v323
  %341 = vst.msk [vmem:[%s4 + $0x8] sm:$0xff] %vm339, %v324
  %342 = vst.msk [vmem:[%s4 + $0x10] sm:$0xff] %vm339, %v325
  %343 = vst.msk [vmem:[%s4 + $0x18] sm:$0xff] %vm339, %v326
  %344 = vst.msk [vmem:[%s4 + $0x20] sm:$0xff] %vm339, %v327
  %345 = vst.msk [vmem:[%s4 + $0x28] sm:$0xff] %vm339, %v328
  %346 = vst.msk [vmem:[%s4 + $0x30] sm:$0xff] %vm339, %v329
  %347 = vst.msk [vmem:[%s4 + $0x38] sm:$0xff] %vm339, %v330
  %348 = vst.msk [vmem:[%s4 + $0x40] sm:$0xff] %vm339, %v331
  %349 = vst.msk [vmem:[%s4 + $0x48] sm:$0xff] %vm339, %v332
  %350 = vst.msk [vmem:[%s4 + $0x50] sm:$0xff] %vm339, %v333
  %351 = vst.msk [vmem:[%s4 + $0x58] sm:$0xff] %vm339, %v334
  %352 = vst.msk [vmem:[%s4 + $0x60] sm:$0xff] %vm339, %v335
  %353 = vst.msk [vmem:[%s4 + $0x68] sm:$0xff] %vm339, %v336
  %354 = vst.msk [vmem:[%s4 + $0x70] sm:$0xff] %vm339, %v337
  %355 = vst.msk [vmem:[%s4 + $0x78] sm:$0xff] %vm339, %v338
  // Predicated region
  $region18: #{_lambda_.44} parent=0 // pred_check
    _
  $region19: #{_lambda_.44} parent=0 // pred_check_branch
    %357 = sbr.rel (0) target = $region21
  $region20: #{_lambda_.44} parent=0 // pred_region
    _
  $region21: #{_lambda_.44} parent=0 // pred_fallthru
    _
  // Predicated region
  $region22: #{_lambda_.44} parent=0 // pred_check
    _
  $region23: #{_lambda_.44} parent=0 // pred_check_branch
    %359 = sbr.rel (0) target = $region25
  $region24: #{_lambda_.44} parent=0 // pred_region
    _
  $region25: #{_lambda_.44} parent=0 // pred_fallthru
    _

// kernel: _lambda_.45
$region0: #{_lambda_.45}
  #allocation0 [shape = 'u32[]', space=smem, size = 0x4, offset = 0x4, fixed_abs, tag = 'smem constant byte address 0x4 - core index']
  #allocation1 [shape = 'u32[144,128]{1,0:T(1,128)}', space=vmem, size = 0x12000, scoped, tag = 'internal scratch']
  %s0 = inlined_call_operand.vmem [shape: f32[128,16], index: 0, kind: input, shape index: {}]
  %s1 = inlined_call_operand.vmem [shape: f32[16,32], index: 1, kind: input, shape index: {}]
  %s2 = inlined_call_operand.vmem [shape: f32[1,32], index: 2, kind: input, shape index: {}]
  %s3 = inlined_call_operand.vmem [shape: f32[1,32], index: 3, kind: input, shape index: {}]
  %s4 = inlined_call_operand.vmem [shape: f32[128,32], index: 4, kind: output, shape index: {}]
  %s5 = sld [smem:[#allocation0]]
  $region26: #{_lambda_.45} parent=0
    _
  %s7 = ssub.s32 1, %s5
  %s8 = scalar_select 0, %s7, %s5
  // Predicated region
  $region2: #{_lambda_.45} parent=0 // pred_check
    _
  $region3: #{_lambda_.45} parent=0 // pred_check_branch
    %10 = sbr.rel (0) target = $region5
  $region4: #{_lambda_.45} parent=0 // pred_region
    _
  $region5: #{_lambda_.45} parent=0 // pred_fallthru
    _
  // Predicated region
  $region6: #{_lambda_.45} parent=0 // pred_check
    _
  $region7: #{_lambda_.45} parent=0 // pred_check_branch
    %12 = sbr.rel (0) target = $region9
  $region8: #{_lambda_.45} parent=0 // pred_region
    _
  $region9: #{_lambda_.45} parent=0 // pred_fallthru
    _
  // Predicated region
  $region10: #{_lambda_.45} parent=0 // pred_check
    _
  $region11: #{_lambda_.45} parent=0 // pred_check_branch
    %14 = sbr.rel (0) target = $region13
  $region12: #{_lambda_.45} parent=0 // pred_region
    _
  $region13: #{_lambda_.45} parent=0 // pred_fallthru
    _
  // Predicated region
  $region14: #{_lambda_.45} parent=0 // pred_check
    _
  $region15: #{_lambda_.45} parent=0 // pred_check_branch
    %16 = sbr.rel (0) target = $region17
  $region16: #{_lambda_.45} parent=0 // pred_region
    _
  $region17: #{_lambda_.45} parent=0 // pred_fallthru
    _
  %v17 = vld [vmem:[%s0] sm:$0xff]
  %v18 = vld [vmem:[%s0 + $0x8] sm:$0xff]
  %v19 = vld [vmem:[%s0 + $0x10] sm:$0xff]
  %v20 = vld [vmem:[%s0 + $0x18] sm:$0xff]
  %v21 = vld [vmem:[%s0 + $0x20] sm:$0xff]
  %v22 = vld [vmem:[%s0 + $0x28] sm:$0xff]
  %v23 = vld [vmem:[%s0 + $0x30] sm:$0xff]
  %v24 = vld [vmem:[%s0 + $0x38] sm:$0xff]
  %v25 = vld [vmem:[%s0 + $0x40] sm:$0xff]
  %v26 = vld [vmem:[%s0 + $0x48] sm:$0xff]
  %v27 = vld [vmem:[%s0 + $0x50] sm:$0xff]
  %v28 = vld [vmem:[%s0 + $0x58] sm:$0xff]
  %v29 = vld [vmem:[%s0 + $0x60] sm:$0xff]
  %v30 = vld [vmem:[%s0 + $0x68] sm:$0xff]
  %v31 = vld [vmem:[%s0 + $0x70] sm:$0xff]
  %v32 = vld [vmem:[%s0 + $0x78] sm:$0xff]
  %v33 = vld [vmem:[%s1] sm:$0xff]
  %v34 = vld [vmem:[%s1 + $0x8] sm:$0xff]
  %vm35 = vcmask 130048
  %v37 = vsel %vm35, %v17, 0
  %v40 = vsel %vm35, %v18, 0
  %v43 = vsel %vm35, %v19, 0
  %v46 = vsel %vm35, %v20, 0
  %v49 = vsel %vm35, %v21, 0
  %v52 = vsel %vm35, %v22, 0
  %v55 = vsel %vm35, %v23, 0
  %v58 = vsel %vm35, %v24, 0
  %v61 = vsel %vm35, %v25, 0
  %v64 = vsel %vm35, %v26, 0
  %v67 = vsel %vm35, %v27, 0
  %v70 = vsel %vm35, %v28, 0
  %v73 = vsel %vm35, %v29, 0
  %v76 = vsel %vm35, %v30, 0
  %v79 = vsel %vm35, %v31, 0
  %v82 = vsel %vm35, %v32, 0
  %84 = vmatprep.subr.mxu0 0.0
  %85 = vmatpush1.msra.mxu0 0.0
  %86 = vmatprep.subr.mxu0 0.0
  %87 = vmatpush1.msra.mxu0 0.0
  %88 = vmatprep.subr.mxu0 0.0
  %89 = vmatpush1.msra.mxu0 0.0
  %90 = vmatprep.subr.mxu0 0.0
  %91 = vmatpush1.msra.mxu0 0.0
  %92 = vmatprep.subr.mxu0 0.0
  %93 = vmatpush1.msra.mxu0 0.0
  %94 = vmatprep.subr.mxu0 0.0
  %95 = vmatpush1.msra.mxu0 0.0
  %96 = vmatprep.subr.mxu0 0.0
  %97 = vmatpush1.msra.mxu0 0.0
  %98 = vmatprep.subr.mxu0 0.0
  %99 = vmatpush1.msra.mxu0 0.0
  %100 = vmatprep.subr.mxu0 0.0
  %101 = vmatpush1.msra.mxu0 0.0
  %102 = vmatprep.subr.mxu0 0.0
  %103 = vmatpush1.msra.mxu0 0.0
  %104 = vmatprep.subr.mxu0 0.0
  %105 = vmatpush1.msra.mxu0 0.0
  %106 = vmatprep.subr.mxu0 0.0
  %107 = vmatpush1.msra.mxu0 0.0
  %108 = vmatprep.subr.mxu0 0.0
  %109 = vmatpush1.msra.mxu0 0.0
  %110 = vmatprep.subr.mxu0 0.0
  %111 = vmatpush1.msra.mxu0 0.0
  %112 = vmatprep.subr.mxu0 0.0
  %113 = vmatpush1.msra.mxu0 %v34
  %114 = vmatprep.subr.mxu0 0.0
  %115 = vmatpush1.msra.mxu0 %v33
  %116 = vmatprep.subr.mxu0 0.0
  %117 = vmatpush2.msra.mxu0 0.0
  %118 = vmatprep.subr.mxu0 0.0
  %119 = vmatpush2.msra.mxu0 0.0
  %120 = vmatprep.subr.mxu0 0.0
  %121 = vmatpush2.msra.mxu0 0.0
  %122 = vmatprep.subr.mxu0 0.0
  %123 = vmatpush2.msra.mxu0 0.0
  %124 = vmatprep.subr.mxu0 0.0
  %125 = vmatpush2.msra.mxu0 0.0
  %126 = vmatprep.subr.mxu0 0.0
  %127 = vmatpush2.msra.mxu0 0.0
  %128 = vmatprep.subr.mxu0 0.0
  %129 = vmatpush2.msra.mxu0 0.0
  %130 = vmatprep.subr.mxu0 0.0
  %131 = vmatpush2.msra.mxu0 0.0
  %132 = vmatprep.subr.mxu0 0.0
  %133 = vmatpush2.msra.mxu0 0.0
  %134 = vmatprep.subr.mxu0 0.0
  %135 = vmatpush2.msra.mxu0 0.0
  %136 = vmatprep.subr.mxu0 0.0
  %137 = vmatpush2.msra.mxu0 0.0
  %138 = vmatprep.subr.mxu0 0.0
  %139 = vmatpush2.msra.mxu0 0.0
  %140 = vmatprep.subr.mxu0 0.0
  %141 = vmatpush2.msra.mxu0 0.0
  %142 = vmatprep.subr.mxu0 0.0
  %143 = vmatpush2.msra.mxu0 0.0
  %144 = vmatprep.subr.mxu0 0.0
  %145 = vmatpush2.msra.mxu0 0.0
  %146 = vmatprep.subr.mxu0 0.0
  %147 = vmatpush2.msra.mxu0 0.0
  %148 = vmatprep.mubr.f32.mxu0 0.0
  %149 = vmatmul.mubr.f32.gmra.mxu0 %v37
  %v150 = vpop.f32.mrf.mxu0
  %v151 = vadd.f32 0.0, %v150
  %v152 = vpop.f32.mrf.mxu0
  %153 = vmatprep.mubr.f32.mxu0 0.0
  %154 = vmatmul.mubr.f32.gmra.mxu0 %v40
  %v155 = vpop.f32.mrf.mxu0
  %v156 = vadd.f32 0.0, %v155
  %v157 = vpop.f32.mrf.mxu0
  %158 = vmatprep.mubr.f32.mxu0 0.0
  %159 = vmatmul.mubr.f32.gmra.mxu0 %v43
  %v160 = vpop.f32.mrf.mxu0
  %v161 = vadd.f32 0.0, %v160
  %v162 = vpop.f32.mrf.mxu0
  %163 = vmatprep.mubr.f32.mxu0 0.0
  %164 = vmatmul.mubr.f32.gmra.mxu0 %v46
  %v165 = vpop.f32.mrf.mxu0
  %v166 = vadd.f32 0.0, %v165
  %v167 = vpop.f32.mrf.mxu0
  %168 = vmatprep.mubr.f32.mxu0 0.0
  %169 = vmatmul.mubr.f32.gmra.mxu0 %v49
  %v170 = vpop.f32.mrf.mxu0
  %v171 = vadd.f32 0.0, %v170
  %v172 = vpop.f32.mrf.mxu0
  %173 = vmatprep.mubr.f32.mxu0 0.0
  %174 = vmatmul.mubr.f32.gmra.mxu0 %v52
  %v175 = vpop.f32.mrf.mxu0
  %v176 = vadd.f32 0.0, %v175
  %v177 = vpop.f32.mrf.mxu0
  %178 = vmatprep.mubr.f32.mxu0 0.0
  %179 = vmatmul.mubr.f32.gmra.mxu0 %v55
  %v180 = vpop.f32.mrf.mxu0
  %v181 = vadd.f32 0.0, %v180
  %v182 = vpop.f32.mrf.mxu0
  %183 = vmatprep.mubr.f32.mxu0 0.0
  %184 = vmatmul.mubr.f32.gmra.mxu0 %v58
  %v185 = vpop.f32.mrf.mxu0
  %v186 = vadd.f32 0.0, %v185
  %v187 = vpop.f32.mrf.mxu0
  %188 = vmatprep.mubr.f32.mxu0 0.0
  %189 = vmatmul.mubr.f32.gmra.mxu0 %v61
  %v190 = vpop.f32.mrf.mxu0
  %v191 = vadd.f32 0.0, %v190
  %v192 = vpop.f32.mrf.mxu0
  %193 = vmatprep.mubr.f32.mxu0 0.0
  %194 = vmatmul.mubr.f32.gmra.mxu0 %v64
  %v195 = vpop.f32.mrf.mxu0
  %v196 = vadd.f32 0.0, %v195
  %v197 = vpop.f32.mrf.mxu0
  %198 = vmatprep.mubr.f32.mxu0 0.0
  %199 = vmatmul.mubr.f32.gmra.mxu0 %v67
  %v200 = vpop.f32.mrf.mxu0
  %v201 = vadd.f32 0.0, %v200
  %v202 = vpop.f32.mrf.mxu0
  %203 = vmatprep.mubr.f32.mxu0 0.0
  %204 = vmatmul.mubr.f32.gmra.mxu0 %v70
  %v205 = vpop.f32.mrf.mxu0
  %v206 = vadd.f32 0.0, %v205
  %v207 = vpop.f32.mrf.mxu0
  %208 = vmatprep.mubr.f32.mxu0 0.0
  %209 = vmatmul.mubr.f32.gmra.mxu0 %v73
  %v210 = vpop.f32.mrf.mxu0
  %v211 = vadd.f32 0.0, %v210
  %v212 = vpop.f32.mrf.mxu0
  %213 = vmatprep.mubr.f32.mxu0 0.0
  %214 = vmatmul.mubr.f32.gmra.mxu0 %v76
  %v215 = vpop.f32.mrf.mxu0
  %v216 = vadd.f32 0.0, %v215
  %v217 = vpop.f32.mrf.mxu0
  %218 = vmatprep.mubr.f32.mxu0 0.0
  %219 = vmatmul.mubr.f32.gmra.mxu0 %v79
  %v220 = vpop.f32.mrf.mxu0
  %v221 = vadd.f32 0.0, %v220
  %v222 = vpop.f32.mrf.mxu0
  %223 = vmatprep.mubr.f32.mxu0 0.0
  %224 = vmatmul.mubr.f32.gmra.mxu0 %v82
  %v225 = vpop.f32.mrf.mxu0
  %v226 = vadd.f32 0.0, %v225
  %v227 = vpop.f32.mrf.mxu0
  %228 = vdwg.mxu0
  %v229 = vld [vmem:[%s2] sm:$0x1]
  %v231 = vlaneseq
  %v232 = vshrl.u32 %v231, 7
  %v233 = vsub.s32 0, %v232
  %v234 = vrot.slane %v229, %v233
  %v236 = vmul.f32 %v151, %v234
  %v237 = vmul.f32 %v156, %v234
  %v238 = vmul.f32 %v161, %v234
  %v239 = vmul.f32 %v166, %v234
  %v240 = vmul.f32 %v171, %v234
  %v241 = vmul.f32 %v176, %v234
  %v242 = vmul.f32 %v181, %v234
  %v243 = vmul.f32 %v186, %v234
  %v244 = vmul.f32 %v191, %v234
  %v245 = vmul.f32 %v196, %v234
  %v246 = vmul.f32 %v201, %v234
  %v247 = vmul.f32 %v206, %v234
  %v248 = vmul.f32 %v211, %v234
  %v249 = vmul.f32 %v216, %v234
  %v250 = vmul.f32 %v221, %v234
  %v251 = vmul.f32 %v226, %v234
  %v252 = vld [vmem:[%s3] sm:$0x1]
  %v254 = vlaneseq
  %v255 = vshrl.u32 %v254, 7
  %v256 = vsub.s32 0, %v255
  %v257 = vrot.slane %v252, %v256
  %v259 = vadd.f32 %v236, %v257
  %v260 = vadd.f32 %v237, %v257
  %v261 = vadd.f32 %v238, %v257
  %v262 = vadd.f32 %v239, %v257
  %v263 = vadd.f32 %v240, %v257
  %v264 = vadd.f32 %v241, %v257
  %v265 = vadd.f32 %v242, %v257
  %v266 = vadd.f32 %v243, %v257
  %v267 = vadd.f32 %v244, %v257
  %v268 = vadd.f32 %v245, %v257
  %v269 = vadd.f32 %v246, %v257
  %v270 = vadd.f32 %v247, %v257
  %v271 = vadd.f32 %v248, %v257
  %v272 = vadd.f32 %v249, %v257
  %v273 = vadd.f32 %v250, %v257
  %v274 = vadd.f32 %v251, %v257
  %vm275 = vcmask 261120
  %276 = vst.msk [vmem:[%s4] sm:$0xff] %vm275, %v259
  %277 = vst.msk [vmem:[%s4 + $0x8] sm:$0xff] %vm275, %v260
  %278 = vst.msk [vmem:[%s4 + $0x10] sm:$0xff] %vm275, %v261
  %279 = vst.msk [vmem:[%s4 + $0x18] sm:$0xff] %vm275, %v262
  %280 = vst.msk [vmem:[%s4 + $0x20] sm:$0xff] %vm275, %v263
  %281 = vst.msk [vmem:[%s4 + $0x28] sm:$0xff] %vm275, %v264
  %282 = vst.msk [vmem:[%s4 + $0x30] sm:$0xff] %vm275, %v265
  %283 = vst.msk [vmem:[%s4 + $0x38] sm:$0xff] %vm275, %v266
  %284 = vst.msk [vmem:[%s4 + $0x40] sm:$0xff] %vm275, %v267
  %285 = vst.msk [vmem:[%s4 + $0x48] sm:$0xff] %vm275, %v268
  %286 = vst.msk [vmem:[%s4 + $0x50] sm:$0xff] %vm275, %v269
  %287 = vst.msk [vmem:[%s4 + $0x58] sm:$0xff] %vm275, %v270
  %288 = vst.msk [vmem:[%s4 + $0x60] sm:$0xff] %vm275, %v271
  %289 = vst.msk [vmem:[%s4 + $0x68] sm:$0xff] %vm275, %v272
  %290 = vst.msk [vmem:[%s4 + $0x70] sm:$0xff] %vm275, %v273
  %291 = vst.msk [vmem:[%s4 + $0x78] sm:$0xff] %vm275, %v274
  // Predicated region
  $region18: #{_lambda_.45} parent=0 // pred_check
    _
  $region19: #{_lambda_.45} parent=0 // pred_check_branch
    %293 = sbr.rel (0) target = $region21
  $region20: #{_lambda_.45} parent=0 // pred_region
    _
  $region21: #{_lambda_.45} parent=0 // pred_fallthru
    _
  // Predicated region
  $region22: #{_lambda_.45} parent=0 // pred_check
    _
  $region23: #{_lambda_.45} parent=0 // pred_check_branch
    %295 = sbr.rel (0) target = $region25
  $region24: #{_lambda_.45} parent=0 // pred_region
    _
  $region25: #{_lambda_.45} parent=0 // pred_fallthru
    _

// kernel: _lambda_.46
$region0: #{_lambda_.46}
  #allocation0 [shape = 'u32[]', space=smem, size = 0x4, offset = 0x4, fixed_abs, tag = 'smem constant byte address 0x4 - core index']
  #allocation1 [shape = 'u32[144,128]{1,0:T(1,128)}', space=vmem, size = 0x12000, scoped, tag = 'internal scratch']
  %s0 = inlined_call_operand.vmem [shape: f32[128,288], index: 0, kind: input, shape index: {}]
  %s1 = inlined_call_operand.vmem [shape: f32[288,32], index: 1, kind: input, shape index: {}]
  %s2 = inlined_call_operand.vmem [shape: f32[1,32], index: 2, kind: input, shape index: {}]
  %s3 = inlined_call_operand.vmem [shape: f32[1,32], index: 3, kind: input, shape index: {}]
  %s4 = inlined_call_operand.vmem [shape: f32[128,32], index: 4, kind: input, shape index: {}]
  %s5 = inlined_call_operand.vmem [shape: f32[128,32], index: 5, kind: output, shape index: {}]
  %s6 = sld [smem:[#allocation0]]
  $region30: #{_lambda_.46} parent=0
    _
  %s8 = ssub.s32 1, %s6
  %s9 = scalar_select 0, %s8, %s6
  // Predicated region
  $region2: #{_lambda_.46} parent=0 // pred_check
    _
  $region3: #{_lambda_.46} parent=0 // pred_check_branch
    %11 = sbr.rel (0) target = $region5
  $region4: #{_lambda_.46} parent=0 // pred_region
    _
  $region5: #{_lambda_.46} parent=0 // pred_fallthru
    _
  // Predicated region
  $region6: #{_lambda_.46} parent=0 // pred_check
    _
  $region7: #{_lambda_.46} parent=0 // pred_check_branch
    %13 = sbr.rel (0) target = $region9
  $region8: #{_lambda_.46} parent=0 // pred_region
    _
  $region9: #{_lambda_.46} parent=0 // pred_fallthru
    _
  // Predicated region
  $region10: #{_lambda_.46} parent=0 // pred_check
    _
  $region11: #{_lambda_.46} parent=0 // pred_check_branch
    %15 = sbr.rel (0) target = $region13
  $region12: #{_lambda_.46} parent=0 // pred_region
    _
  $region13: #{_lambda_.46} parent=0 // pred_fallthru
    _
  // Predicated region
  $region14: #{_lambda_.46} parent=0 // pred_check
    _
  $region15: #{_lambda_.46} parent=0 // pred_check_branch
    %17 = sbr.rel (0) target = $region17
  $region16: #{_lambda_.46} parent=0 // pred_region
    _
  $region17: #{_lambda_.46} parent=0 // pred_fallthru
    _
  // Predicated region
  $region18: #{_lambda_.46} parent=0 // pred_check
    _
  $region19: #{_lambda_.46} parent=0 // pred_check_branch
    %19 = sbr.rel (0) target = $region21
  $region20: #{_lambda_.46} parent=0 // pred_region
    _
  $region21: #{_lambda_.46} parent=0 // pred_fallthru
    _
  %v20 = vld [vmem:[%s0] sm:$0xff]
  %v21 = vld [vmem:[%s0 + $0x8] sm:$0xff]
  %v22 = vld [vmem:[%s0 + $0x10] sm:$0xff]
  %v23 = vld [vmem:[%s0 + $0x18] sm:$0xff]
  %v24 = vld [vmem:[%s0 + $0x20] sm:$0xff]
  %v25 = vld [vmem:[%s0 + $0x28] sm:$0xff]
  %v26 = vld [vmem:[%s0 + $0x30] sm:$0xff]
  %v27 = vld [vmem:[%s0 + $0x38] sm:$0xff]
  %v28 = vld [vmem:[%s0 + $0x40] sm:$0xff]
  %v29 = vld [vmem:[%s0 + $0x48] sm:$0xff]
  %v30 = vld [vmem:[%s0 + $0x50] sm:$0xff]
  %v31 = vld [vmem:[%s0 + $0x58] sm:$0xff]
  %v32 = vld [vmem:[%s0 + $0x60] sm:$0xff]
  %v33 = vld [vmem:[%s0 + $0x68] sm:$0xff]
  %v34 = vld [vmem:[%s0 + $0x70] sm:$0xff]
  %v35 = vld [vmem:[%s0 + $0x78] sm:$0xff]
  %v36 = vld [vmem:[%s0 + $0x80] sm:$0xff]
  %v37 = vld [vmem:[%s0 + $0x88] sm:$0xff]
  %v38 = vld [vmem:[%s0 + $0x90] sm:$0xff]
  %v39 = vld [vmem:[%s0 + $0x98] sm:$0xff]
  %v40 = vld [vmem:[%s0 + $0xa0] sm:$0xff]
  %v41 = vld [vmem:[%s0 + $0xa8] sm:$0xff]
  %v42 = vld [vmem:[%s0 + $0xb0] sm:$0xff]
  %v43 = vld [vmem:[%s0 + $0xb8] sm:$0xff]
  %v44 = vld [vmem:[%s0 + $0xc0] sm:$0xff]
  %v45 = vld [vmem:[%s0 + $0xc8] sm:$0xff]
  %v46 = vld [vmem:[%s0 + $0xd0] sm:$0xff]
  %v47 = vld [vmem:[%s0 + $0xd8] sm:$0xff]
  %v48 = vld [vmem:[%s0 + $0xe0] sm:$0xff]
  %v49 = vld [vmem:[%s0 + $0xe8] sm:$0xff]
  %v50 = vld [vmem:[%s0 + $0xf0] sm:$0xff]
  %v51 = vld [vmem:[%s0 + $0xf8] sm:$0xff]
  %v52 = vld [vmem:[%s0 + $0x100] sm:$0xff]
  %v53 = vld [vmem:[%s0 + $0x108] sm:$0xff]
  %v54 = vld [vmem:[%s0 + $0x110] sm:$0xff]
  %v55 = vld [vmem:[%s0 + $0x118] sm:$0xff]
  %v56 = vld [vmem:[%s0 + $0x120] sm:$0xff]
  %v57 = vld [vmem:[%s0 + $0x128] sm:$0xff]
  %v58 = vld [vmem:[%s0 + $0x130] sm:$0xff]
  %v59 = vld [vmem:[%s0 + $0x138] sm:$0xff]
  %v60 = vld [vmem:[%s0 + $0x140] sm:$0xff]
  %v61 = vld [vmem:[%s0 + $0x148] sm:$0xff]
  %v62 = vld [vmem:[%s0 + $0x150] sm:$0xff]
  %v63 = vld [vmem:[%s0 + $0x158] sm:$0xff]
  %v64 = vld [vmem:[%s0 + $0x160] sm:$0xff]
  %v65 = vld [vmem:[%s0 + $0x168] sm:$0xff]
  %v66 = vld [vmem:[%s0 + $0x170] sm:$0xff]
  %v67 = vld [vmem:[%s0 + $0x178] sm:$0xff]
  %v68 = vld [vmem:[%s1] sm:$0xff]
  %v69 = vld [vmem:[%s1 + $0x8] sm:$0xff]
  %v70 = vld [vmem:[%s1 + $0x10] sm:$0xff]
  %v71 = vld [vmem:[%s1 + $0x18] sm:$0xff]
  %v72 = vld [vmem:[%s1 + $0x20] sm:$0xff]
  %v73 = vld [vmem:[%s1 + $0x28] sm:$0xff]
  %v74 = vld [vmem:[%s1 + $0x30] sm:$0xff]
  %v75 = vld [vmem:[%s1 + $0x38] sm:$0xff]
  %v76 = vld [vmem:[%s1 + $0x40] sm:$0xff]
  %v77 = vld [vmem:[%s1 + $0x48] sm:$0xff]
  %v78 = vld [vmem:[%s1 + $0x50] sm:$0xff]
  %v79 = vld [vmem:[%s1 + $0x58] sm:$0xff]
  %v80 = vld [vmem:[%s1 + $0x60] sm:$0xff]
  %v81 = vld [vmem:[%s1 + $0x68] sm:$0xff]
  %v82 = vld [vmem:[%s1 + $0x70] sm:$0xff]
  %v83 = vld [vmem:[%s1 + $0x78] sm:$0xff]
  %v84 = vld [vmem:[%s1 + $0x80] sm:$0xff]
  %v85 = vld [vmem:[%s1 + $0x88] sm:$0xff]
  %v86 = vld [vmem:[%s1 + $0x90] sm:$0xff]
  %v87 = vld [vmem:[%s1 + $0x98] sm:$0xff]
  %v88 = vld [vmem:[%s1 + $0xa0] sm:$0xff]
  %v89 = vld [vmem:[%s1 + $0xa8] sm:$0xff]
  %v90 = vld [vmem:[%s1 + $0xb0] sm:$0xff]
  %v91 = vld [vmem:[%s1 + $0xb8] sm:$0xff]
  %v92 = vld [vmem:[%s1 + $0xc0] sm:$0xff]
  %v93 = vld [vmem:[%s1 + $0xc8] sm:$0xff]
  %v94 = vld [vmem:[%s1 + $0xd0] sm:$0xff]
  %v95 = vld [vmem:[%s1 + $0xd8] sm:$0xff]
  %v96 = vld [vmem:[%s1 + $0xe0] sm:$0xff]
  %v97 = vld [vmem:[%s1 + $0xe8] sm:$0xff]
  %v98 = vld [vmem:[%s1 + $0xf0] sm:$0xff]
  %v99 = vld [vmem:[%s1 + $0xf8] sm:$0xff]
  %v100 = vld [vmem:[%s1 + $0x100] sm:$0xff]
  %v101 = vld [vmem:[%s1 + $0x108] sm:$0xff]
  %v102 = vld [vmem:[%s1 + $0x110] sm:$0xff]
  %v103 = vld [vmem:[%s1 + $0x118] sm:$0xff]
  %vm104 = vcmask 261120
  %v106 = vsel %vm104, %v22, 0
  %v109 = vsel %vm104, %v25, 0
  %v112 = vsel %vm104, %v28, 0
  %v115 = vsel %vm104, %v31, 0
  %v118 = vsel %vm104, %v34, 0
  %v121 = vsel %vm104, %v37, 0
  %v124 = vsel %vm104, %v40, 0
  %v127 = vsel %vm104, %v43, 0
  %v130 = vsel %vm104, %v46, 0
  %v133 = vsel %vm104, %v49, 0
  %v136 = vsel %vm104, %v52, 0
  %v139 = vsel %vm104, %v55, 0
  %v142 = vsel %vm104, %v58, 0
  %v145 = vsel %vm104, %v61, 0
  %v148 = vsel %vm104, %v64, 0
  %v151 = vsel %vm104, %v67, 0
  %153 = vmatprep.subr.mxu0 0.0
  %154 = vmatpush1.msra.mxu0 %v83
  %155 = vmatprep.subr.mxu0 0.0
  %156 = vmatpush1.msra.mxu0 %v82
  %157 = vmatprep.subr.mxu0 0.0
  %158 = vmatpush1.msra.mxu0 %v81
  %159 = vmatprep.subr.mxu0 0.0
  %160 = vmatpush1.msra.mxu0 %v80
  %161 = vmatprep.subr.mxu0 0.0
  %162 = vmatpush1.msra.mxu0 %v79
  %163 = vmatprep.subr.mxu0 0.0
  %164 = vmatpush1.msra.mxu0 %v78
  %165 = vmatprep.subr.mxu0 0.0
  %166 = vmatpush1.msra.mxu0 %v77
  %167 = vmatprep.subr.mxu0 0.0
  %168 = vmatpush1.msra.mxu0 %v76
  %169 = vmatprep.subr.mxu0 0.0
  %170 = vmatpush1.msra.mxu0 %v75
  %171 = vmatprep.subr.mxu0 0.0
  %172 = vmatpush1.msra.mxu0 %v74
  %173 = vmatprep.subr.mxu0 0.0
  %174 = vmatpush1.msra.mxu0 %v73
  %175 = vmatprep.subr.mxu0 0.0
  %176 = vmatpush1.msra.mxu0 %v72
  %177 = vmatprep.subr.mxu0 0.0
  %178 = vmatpush1.msra.mxu0 %v71
  %179 = vmatprep.subr.mxu0 0.0
  %180 = vmatpush1.msra.mxu0 %v70
  %181 = vmatprep.subr.mxu0 0.0
  %182 = vmatpush1.msra.mxu0 %v69
  %183 = vmatprep.subr.mxu0 0.0
  %184 = vmatpush1.msra.mxu0 %v68
  %185 = vmatprep.subr.mxu0 0.0
  %186 = vmatpush2.msra.mxu0 %v99
  %187 = vmatprep.subr.mxu0 0.0
  %188 = vmatpush2.msra.mxu0 %v98
  %189 = vmatprep.subr.mxu0 0.0
  %190 = vmatpush2.msra.mxu0 %v97
  %191 = vmatprep.subr.mxu0 0.0
  %192 = vmatpush2.msra.mxu0 %v96
  %193 = vmatprep.subr.mxu0 0.0
  %194 = vmatpush2.msra.mxu0 %v95
  %195 = vmatprep.subr.mxu0 0.0
  %196 = vmatpush2.msra.mxu0 %v94
  %197 = vmatprep.subr.mxu0 0.0
  %198 = vmatpush2.msra.mxu0 %v93
  %199 = vmatprep.subr.mxu0 0.0
  %200 = vmatpush2.msra.mxu0 %v92
  %201 = vmatprep.subr.mxu0 0.0
  %202 = vmatpush2.msra.mxu0 %v91
  %203 = vmatprep.subr.mxu0 0.0
  %204 = vmatpush2.msra.mxu0 %v90
  %205 = vmatprep.subr.mxu0 0.0
  %206 = vmatpush2.msra.mxu0 %v89
  %207 = vmatprep.subr.mxu0 0.0
  %208 = vmatpush2.msra.mxu0 %v88
  %209 = vmatprep.subr.mxu0 0.0
  %210 = vmatpush2.msra.mxu0 %v87
  %211 = vmatprep.subr.mxu0 0.0
  %212 = vmatpush2.msra.mxu0 %v86
  %213 = vmatprep.subr.mxu0 0.0
  %214 = vmatpush2.msra.mxu0 %v85
  %215 = vmatprep.subr.mxu0 0.0
  %216 = vmatpush2.msra.mxu0 %v84
  %217 = vmatprep.mubr.f32.mxu0 %v21
  %218 = vmatmul.mubr.f32.gmra.mxu0 %v20
  %v219 = vpop.f32.mrf.mxu0
  %v220 = vadd.f32 0.0, %v219
  %v221 = vpop.f32.mrf.mxu0
  %222 = vmatprep.mubr.f32.mxu0 %v24
  %223 = vmatmul.mubr.f32.gmra.mxu0 %v23
  %v224 = vpop.f32.mrf.mxu0
  %v225 = vadd.f32 0.0, %v224
  %v226 = vpop.f32.mrf.mxu0
  %227 = vmatprep.mubr.f32.mxu0 %v27
  %228 = vmatmul.mubr.f32.gmra.mxu0 %v26
  %v229 = vpop.f32.mrf.mxu0
  %v230 = vadd.f32 0.0, %v229
  %v231 = vpop.f32.mrf.mxu0
  %232 = vmatprep.mubr.f32.mxu0 %v30
  %233 = vmatmul.mubr.f32.gmra.mxu0 %v29
  %v234 = vpop.f32.mrf.mxu0
  %v235 = vadd.f32 0.0, %v234
  %v236 = vpop.f32.mrf.mxu0
  %237 = vmatprep.mubr.f32.mxu0 %v33
  %238 = vmatmul.mubr.f32.gmra.mxu0 %v32
  %v239 = vpop.f32.mrf.mxu0
  %v240 = vadd.f32 0.0, %v239
  %v241 = vpop.f32.mrf.mxu0
  %242 = vmatprep.mubr.f32.mxu0 %v36
  %243 = vmatmul.mubr.f32.gmra.mxu0 %v35
  %v244 = vpop.f32.mrf.mxu0
  %v245 = vadd.f32 0.0, %v244
  %v246 = vpop.f32.mrf.mxu0
  %247 = vmatprep.mubr.f32.mxu0 %v39
  %248 = vmatmul.mubr.f32.gmra.mxu0 %v38
  %v249 = vpop.f32.mrf.mxu0
  %v250 = vadd.f32 0.0, %v249
  %v251 = vpop.f32.mrf.mxu0
  %252 = vmatprep.mubr.f32.mxu0 %v42
  %253 = vmatmul.mubr.f32.gmra.mxu0 %v41
  %v254 = vpop.f32.mrf.mxu0
  %v255 = vadd.f32 0.0, %v254
  %v256 = vpop.f32.mrf.mxu0
  %257 = vmatprep.mubr.f32.mxu0 %v45
  %258 = vmatmul.mubr.f32.gmra.mxu0 %v44
  %v259 = vpop.f32.mrf.mxu0
  %v260 = vadd.f32 0.0, %v259
  %v261 = vpop.f32.mrf.mxu0
  %262 = vmatprep.mubr.f32.mxu0 %v48
  %263 = vmatmul.mubr.f32.gmra.mxu0 %v47
  %v264 = vpop.f32.mrf.mxu0
  %v265 = vadd.f32 0.0, %v264
  %v266 = vpop.f32.mrf.mxu0
  %267 = vmatprep.mubr.f32.mxu0 %v51
  %268 = vmatmul.mubr.f32.gmra.mxu0 %v50
  %v269 = vpop.f32.mrf.mxu0
  %v270 = vadd.f32 0.0, %v269
  %v271 = vpop.f32.mrf.mxu0
  %272 = vmatprep.mubr.f32.mxu0 %v54
  %273 = vmatmul.mubr.f32.gmra.mxu0 %v53
  %v274 = vpop.f32.mrf.mxu0
  %v275 = vadd.f32 0.0, %v274
  %v276 = vpop.f32.mrf.mxu0
  %277 = vmatprep.mubr.f32.mxu0 %v57
  %278 = vmatmul.mubr.f32.gmra.mxu0 %v56
  %v279 = vpop.f32.mrf.mxu0
  %v280 = vadd.f32 0.0, %v279
  %v281 = vpop.f32.mrf.mxu0
  %282 = vmatprep.mubr.f32.mxu0 %v60
  %283 = vmatmul.mubr.f32.gmra.mxu0 %v59
  %v284 = vpop.f32.mrf.mxu0
  %v285 = vadd.f32 0.0, %v284
  %v286 = vpop.f32.mrf.mxu0
  %287 = vmatprep.mubr.f32.mxu0 %v63
  %288 = vmatmul.mubr.f32.gmra.mxu0 %v62
  %v289 = vpop.f32.mrf.mxu0
  %v290 = vadd.f32 0.0, %v289
  %v291 = vpop.f32.mrf.mxu0
  %292 = vmatprep.mubr.f32.mxu0 %v66
  %293 = vmatmul.mubr.f32.gmra.mxu0 %v65
  %v294 = vpop.f32.mrf.mxu0
  %v295 = vadd.f32 0.0, %v294
  %v296 = vpop.f32.mrf.mxu0
  %297 = vdwg.mxu0
  %298 = vmatprep.subr.mxu0 0.0
  %299 = vmatpush1.msra.mxu0 0.0
  %300 = vmatprep.subr.mxu0 0.0
  %301 = vmatpush1.msra.mxu0 0.0
  %302 = vmatprep.subr.mxu0 0.0
  %303 = vmatpush1.msra.mxu0 0.0
  %304 = vmatprep.subr.mxu0 0.0
  %305 = vmatpush1.msra.mxu0 0.0
  %306 = vmatprep.subr.mxu0 0.0
  %307 = vmatpush1.msra.mxu0 0.0
  %308 = vmatprep.subr.mxu0 0.0
  %309 = vmatpush1.msra.mxu0 0.0
  %310 = vmatprep.subr.mxu0 0.0
  %311 = vmatpush1.msra.mxu0 0.0
  %312 = vmatprep.subr.mxu0 0.0
  %313 = vmatpush1.msra.mxu0 0.0
  %314 = vmatprep.subr.mxu0 0.0
  %315 = vmatpush1.msra.mxu0 0.0
  %316 = vmatprep.subr.mxu0 0.0
  %317 = vmatpush1.msra.mxu0 0.0
  %318 = vmatprep.subr.mxu0 0.0
  %319 = vmatpush1.msra.mxu0 0.0
  %320 = vmatprep.subr.mxu0 0.0
  %321 = vmatpush1.msra.mxu0 0.0
  %322 = vmatprep.subr.mxu0 0.0
  %323 = vmatpush1.msra.mxu0 %v103
  %324 = vmatprep.subr.mxu0 0.0
  %325 = vmatpush1.msra.mxu0 %v102
  %326 = vmatprep.subr.mxu0 0.0
  %327 = vmatpush1.msra.mxu0 %v101
  %328 = vmatprep.subr.mxu0 0.0
  %329 = vmatpush1.msra.mxu0 %v100
  %330 = vmatprep.subr.mxu0 0.0
  %331 = vmatpush2.msra.mxu0 0.0
  %332 = vmatprep.subr.mxu0 0.0
  %333 = vmatpush2.msra.mxu0 0.0
  %334 = vmatprep.subr.mxu0 0.0
  %335 = vmatpush2.msra.mxu0 0.0
  %336 = vmatprep.subr.mxu0 0.0
  %337 = vmatpush2.msra.mxu0 0.0
  %338 = vmatprep.subr.mxu0 0.0
  %339 = vmatpush2.msra.mxu0 0.0
  %340 = vmatprep.subr.mxu0 0.0
  %341 = vmatpush2.msra.mxu0 0.0
  %342 = vmatprep.subr.mxu0 0.0
  %343 = vmatpush2.msra.mxu0 0.0
  %344 = vmatprep.subr.mxu0 0.0
  %345 = vmatpush2.msra.mxu0 0.0
  %346 = vmatprep.subr.mxu0 0.0
  %347 = vmatpush2.msra.mxu0 0.0
  %348 = vmatprep.subr.mxu0 0.0
  %349 = vmatpush2.msra.mxu0 0.0
  %350 = vmatprep.subr.mxu0 0.0
  %351 = vmatpush2.msra.mxu0 0.0
  %352 = vmatprep.subr.mxu0 0.0
  %353 = vmatpush2.msra.mxu0 0.0
  %354 = vmatprep.subr.mxu0 0.0
  %355 = vmatpush2.msra.mxu0 0.0
  %356 = vmatprep.subr.mxu0 0.0
  %357 = vmatpush2.msra.mxu0 0.0
  %358 = vmatprep.subr.mxu0 0.0
  %359 = vmatpush2.msra.mxu0 0.0
  %360 = vmatprep.subr.mxu0 0.0
  %361 = vmatpush2.msra.mxu0 0.0
  %362 = vmatprep.mubr.f32.mxu0 0.0
  %363 = vmatmul.mubr.f32.gmra.mxu0 %v106
  %v364 = vpop.f32.mrf.mxu0
  %v365 = vadd.f32 %v220, %v364
  %v366 = vpop.f32.mrf.mxu0
  %367 = vmatprep.mubr.f32.mxu0 0.0
  %368 = vmatmul.mubr.f32.gmra.mxu0 %v109
  %v369 = vpop.f32.mrf.mxu0
  %v370 = vadd.f32 %v225, %v369
  %v371 = vpop.f32.mrf.mxu0
  %372 = vmatprep.mubr.f32.mxu0 0.0
  %373 = vmatmul.mubr.f32.gmra.mxu0 %v112
  %v374 = vpop.f32.mrf.mxu0
  %v375 = vadd.f32 %v230, %v374
  %v376 = vpop.f32.mrf.mxu0
  %377 = vmatprep.mubr.f32.mxu0 0.0
  %378 = vmatmul.mubr.f32.gmra.mxu0 %v115
  %v379 = vpop.f32.mrf.mxu0
  %v380 = vadd.f32 %v235, %v379
  %v381 = vpop.f32.mrf.mxu0
  %382 = vmatprep.mubr.f32.mxu0 0.0
  %383 = vmatmul.mubr.f32.gmra.mxu0 %v118
  %v384 = vpop.f32.mrf.mxu0
  %v385 = vadd.f32 %v240, %v384
  %v386 = vpop.f32.mrf.mxu0
  %387 = vmatprep.mubr.f32.mxu0 0.0
  %388 = vmatmul.mubr.f32.gmra.mxu0 %v121
  %v389 = vpop.f32.mrf.mxu0
  %v390 = vadd.f32 %v245, %v389
  %v391 = vpop.f32.mrf.mxu0
  %392 = vmatprep.mubr.f32.mxu0 0.0
  %393 = vmatmul.mubr.f32.gmra.mxu0 %v124
  %v394 = vpop.f32.mrf.mxu0
  %v395 = vadd.f32 %v250, %v394
  %v396 = vpop.f32.mrf.mxu0
  %397 = vmatprep.mubr.f32.mxu0 0.0
  %398 = vmatmul.mubr.f32.gmra.mxu0 %v127
  %v399 = vpop.f32.mrf.mxu0
  %v400 = vadd.f32 %v255, %v399
  %v401 = vpop.f32.mrf.mxu0
  %402 = vmatprep.mubr.f32.mxu0 0.0
  %403 = vmatmul.mubr.f32.gmra.mxu0 %v130
  %v404 = vpop.f32.mrf.mxu0
  %v405 = vadd.f32 %v260, %v404
  %v406 = vpop.f32.mrf.mxu0
  %407 = vmatprep.mubr.f32.mxu0 0.0
  %408 = vmatmul.mubr.f32.gmra.mxu0 %v133
  %v409 = vpop.f32.mrf.mxu0
  %v410 = vadd.f32 %v265, %v409
  %v411 = vpop.f32.mrf.mxu0
  %412 = vmatprep.mubr.f32.mxu0 0.0
  %413 = vmatmul.mubr.f32.gmra.mxu0 %v136
  %v414 = vpop.f32.mrf.mxu0
  %v415 = vadd.f32 %v270, %v414
  %v416 = vpop.f32.mrf.mxu0
  %417 = vmatprep.mubr.f32.mxu0 0.0
  %418 = vmatmul.mubr.f32.gmra.mxu0 %v139
  %v419 = vpop.f32.mrf.mxu0
  %v420 = vadd.f32 %v275, %v419
  %v421 = vpop.f32.mrf.mxu0
  %422 = vmatprep.mubr.f32.mxu0 0.0
  %423 = vmatmul.mubr.f32.gmra.mxu0 %v142
  %v424 = vpop.f32.mrf.mxu0
  %v425 = vadd.f32 %v280, %v424
  %v426 = vpop.f32.mrf.mxu0
  %427 = vmatprep.mubr.f32.mxu0 0.0
  %428 = vmatmul.mubr.f32.gmra.mxu0 %v145
  %v429 = vpop.f32.mrf.mxu0
  %v430 = vadd.f32 %v285, %v429
  %v431 = vpop.f32.mrf.mxu0
  %432 = vmatprep.mubr.f32.mxu0 0.0
  %433 = vmatmul.mubr.f32.gmra.mxu0 %v148
  %v434 = vpop.f32.mrf.mxu0
  %v435 = vadd.f32 %v290, %v434
  %v436 = vpop.f32.mrf.mxu0
  %437 = vmatprep.mubr.f32.mxu0 0.0
  %438 = vmatmul.mubr.f32.gmra.mxu0 %v151
  %v439 = vpop.f32.mrf.mxu0
  %v440 = vadd.f32 %v295, %v439
  %v441 = vpop.f32.mrf.mxu0
  %442 = vdwg.mxu0
  %v443 = vld [vmem:[%s2] sm:$0x1]
  %v445 = vlaneseq
  %v446 = vshrl.u32 %v445, 7
  %v447 = vsub.s32 0, %v446
  %v448 = vrot.slane %v443, %v447
  %v450 = vmul.f32 %v365, %v448
  %v451 = vmul.f32 %v370, %v448
  %v452 = vmul.f32 %v375, %v448
  %v453 = vmul.f32 %v380, %v448
  %v454 = vmul.f32 %v385, %v448
  %v455 = vmul.f32 %v390, %v448
  %v456 = vmul.f32 %v395, %v448
  %v457 = vmul.f32 %v400, %v448
  %v458 = vmul.f32 %v405, %v448
  %v459 = vmul.f32 %v410, %v448
  %v460 = vmul.f32 %v415, %v448
  %v461 = vmul.f32 %v420, %v448
  %v462 = vmul.f32 %v425, %v448
  %v463 = vmul.f32 %v430, %v448
  %v464 = vmul.f32 %v435, %v448
  %v465 = vmul.f32 %v440, %v448
  %v466 = vld [vmem:[%s3] sm:$0x1]
  %v468 = vlaneseq
  %v469 = vshrl.u32 %v468, 7
  %v470 = vsub.s32 0, %v469
  %v471 = vrot.slane %v466, %v470
  %v473 = vadd.f32 %v450, %v471
  %v474 = vadd.f32 %v451, %v471
  %v475 = vadd.f32 %v452, %v471
  %v476 = vadd.f32 %v453, %v471
  %v477 = vadd.f32 %v454, %v471
  %v478 = vadd.f32 %v455, %v471
  %v479 = vadd.f32 %v456, %v471
  %v480 = vadd.f32 %v457, %v471
  %v481 = vadd.f32 %v458, %v471
  %v482 = vadd.f32 %v459, %v471
  %v483 = vadd.f32 %v460, %v471
  %v484 = vadd.f32 %v461, %v471
  %v485 = vadd.f32 %v462, %v471
  %v486 = vadd.f32 %v463, %v471
  %v487 = vadd.f32 %v464, %v471
  %v488 = vadd.f32 %v465, %v471
  %v489 = vld [vmem:[%s4] sm:$0xff]
  %v490 = vld [vmem:[%s4 + $0x8] sm:$0xff]
  %v491 = vld [vmem:[%s4 + $0x10] sm:$0xff]
  %v492 = vld [vmem:[%s4 + $0x18] sm:$0xff]
  %v493 = vld [vmem:[%s4 + $0x20] sm:$0xff]
  %v494 = vld [vmem:[%s4 + $0x28] sm:$0xff]
  %v495 = vld [vmem:[%s4 + $0x30] sm:$0xff]
  %v496 = vld [vmem:[%s4 + $0x38] sm:$0xff]
  %v497 = vld [vmem:[%s4 + $0x40] sm:$0xff]
  %v498 = vld [vmem:[%s4 + $0x48] sm:$0xff]
  %v499 = vld [vmem:[%s4 + $0x50] sm:$0xff]
  %v500 = vld [vmem:[%s4 + $0x58] sm:$0xff]
  %v501 = vld [vmem:[%s4 + $0x60] sm:$0xff]
  %v502 = vld [vmem:[%s4 + $0x68] sm:$0xff]
  %v503 = vld [vmem:[%s4 + $0x70] sm:$0xff]
  %v504 = vld [vmem:[%s4 + $0x78] sm:$0xff]
  %v505 = vadd.f32 %v473, %v489
  %v506 = vadd.f32 %v474, %v490
  %v507 = vadd.f32 %v475, %v491
  %v508 = vadd.f32 %v476, %v492
  %v509 = vadd.f32 %v477, %v493
  %v510 = vadd.f32 %v478, %v494
  %v511 = vadd.f32 %v479, %v495
  %v512 = vadd.f32 %v480, %v496
  %v513 = vadd.f32 %v481, %v497
  %v514 = vadd.f32 %v482, %v498
  %v515 = vadd.f32 %v483, %v499
  %v516 = vadd.f32 %v484, %v500
  %v517 = vadd.f32 %v485, %v501
  %v518 = vadd.f32 %v486, %v502
  %v519 = vadd.f32 %v487, %v503
  %v520 = vadd.f32 %v488, %v504
  %v521 = vmax.f32 %v505, 0.0
  %v522 = vmax.f32 %v506, 0.0
  %v523 = vmax.f32 %v507, 0.0
  %v524 = vmax.f32 %v508, 0.0
  %v525 = vmax.f32 %v509, 0.0
  %v526 = vmax.f32 %v510, 0.0
  %v527 = vmax.f32 %v511, 0.0
  %v528 = vmax.f32 %v512, 0.0
  %v529 = vmax.f32 %v513, 0.0
  %v530 = vmax.f32 %v514, 0.0
  %v531 = vmax.f32 %v515, 0.0
  %v532 = vmax.f32 %v516, 0.0
  %v533 = vmax.f32 %v517, 0.0
  %v534 = vmax.f32 %v518, 0.0
  %v535 = vmax.f32 %v519, 0.0
  %v536 = vmax.f32 %v520, 0.0
  %v537 = vmin.f32 %v521, 20.0
  %v538 = vmin.f32 %v522, 20.0
  %v539 = vmin.f32 %v523, 20.0
  %v540 = vmin.f32 %v524, 20.0
  %v541 = vmin.f32 %v525, 20.0
  %v542 = vmin.f32 %v526, 20.0
  %v543 = vmin.f32 %v527, 20.0
  %v544 = vmin.f32 %v528, 20.0
  %v545 = vmin.f32 %v529, 20.0
  %v546 = vmin.f32 %v530, 20.0
  %v547 = vmin.f32 %v531, 20.0
  %v548 = vmin.f32 %v532, 20.0
  %v549 = vmin.f32 %v533, 20.0
  %v550 = vmin.f32 %v534, 20.0
  %v551 = vmin.f32 %v535, 20.0
  %v552 = vmin.f32 %v536, 20.0
  %553 = vst.msk [vmem:[%s5] sm:$0xff] %vm104, %v537
  %554 = vst.msk [vmem:[%s5 + $0x8] sm:$0xff] %vm104, %v538
  %555 = vst.msk [vmem:[%s5 + $0x10] sm:$0xff] %vm104, %v539
  %556 = vst.msk [vmem:[%s5 + $0x18] sm:$0xff] %vm104, %v540
  %557 = vst.msk [vmem:[%s5 + $0x20] sm:$0xff] %vm104, %v541
  %558 = vst.msk [vmem:[%s5 + $0x28] sm:$0xff] %vm104, %v542
  %559 = vst.msk [vmem:[%s5 + $0x30] sm:$0xff] %vm104, %v543
  %560 = vst.msk [vmem:[%s5 + $0x38] sm:$0xff] %vm104, %v544
  %561 = vst.msk [vmem:[%s5 + $0x40] sm:$0xff] %vm104, %v545
  %562 = vst.msk [vmem:[%s5 + $0x48] sm:$0xff] %vm104, %v546
  %563 = vst.msk [vmem:[%s5 + $0x50] sm:$0xff] %vm104, %v547
  %564 = vst.msk [vmem:[%s5 + $0x58] sm:$0xff] %vm104, %v548
  %565 = vst.msk [vmem:[%s5 + $0x60] sm:$0xff] %vm104, %v549
  %566 = vst.msk [vmem:[%s5 + $0x68] sm:$0xff] %vm104, %v550
  %567 = vst.msk [vmem:[%s5 + $0x70] sm:$0xff] %vm104, %v551
  %568 = vst.msk [vmem:[%s5 + $0x78] sm:$0xff] %vm104, %v552
  // Predicated region
  $region22: #{_lambda_.46} parent=0 // pred_check
    _
  $region23: #{_lambda_.46} parent=0 // pred_check_branch
    %570 = sbr.rel (0) target = $region25
  $region24: #{_lambda_.46} parent=0 // pred_region
    _
  $region25: #{_lambda_.46} parent=0 // pred_fallthru
    _
  // Predicated region
  $region26: #{_lambda_.46} parent=0 // pred_check
    _
  $region27: #{_lambda_.46} parent=0 // pred_check_branch
    %572 = sbr.rel (0) target = $region29
  $region28: #{_lambda_.46} parent=0 // pred_region
    _
  $region29: #{_lambda_.46} parent=0 // pred_fallthru
    _

// kernel: _lambda_.47
$region0: #{_lambda_.47}
  #allocation0 [shape = 'u32[]', space=smem, size = 0x4, offset = 0x4, fixed_abs, tag = 'smem constant byte address 0x4 - core index']
  #allocation1 [shape = 'u32[144,128]{1,0:T(1,128)}', space=vmem, size = 0x12000, scoped, tag = 'internal scratch']
  %s0 = inlined_call_operand.vmem [shape: f32[128,288], index: 0, kind: input, shape index: {}]
  %s1 = inlined_call_operand.vmem [shape: f32[288,32], index: 1, kind: input, shape index: {}]
  %s2 = inlined_call_operand.vmem [shape: f32[1,32], index: 2, kind: input, shape index: {}]
  %s3 = inlined_call_operand.vmem [shape: f32[1,32], index: 3, kind: input, shape index: {}]
  %s4 = inlined_call_operand.vmem [shape: f32[128,32], index: 4, kind: output, shape index: {}]
  %s5 = sld [smem:[#allocation0]]
  $region26: #{_lambda_.47} parent=0
    _
  %s7 = ssub.s32 1, %s5
  %s8 = scalar_select 0, %s7, %s5
  // Predicated region
  $region2: #{_lambda_.47} parent=0 // pred_check
    _
  $region3: #{_lambda_.47} parent=0 // pred_check_branch
    %10 = sbr.rel (0) target = $region5
  $region4: #{_lambda_.47} parent=0 // pred_region
    _
  $region5: #{_lambda_.47} parent=0 // pred_fallthru
    _
  // Predicated region
  $region6: #{_lambda_.47} parent=0 // pred_check
    _
  $region7: #{_lambda_.47} parent=0 // pred_check_branch
    %12 = sbr.rel (0) target = $region9
  $region8: #{_lambda_.47} parent=0 // pred_region
    _
  $region9: #{_lambda_.47} parent=0 // pred_fallthru
    _
  // Predicated region
  $region10: #{_lambda_.47} parent=0 // pred_check
    _
  $region11: #{_lambda_.47} parent=0 // pred_check_branch
    %14 = sbr.rel (0) target = $region13
  $region12: #{_lambda_.47} parent=0 // pred_region
    _
  $region13: #{_lambda_.47} parent=0 // pred_fallthru
    _
  // Predicated region
  $region14: #{_lambda_.47} parent=0 // pred_check
    _
  $region15: #{_lambda_.47} parent=0 // pred_check_branch
    %16 = sbr.rel (0) target = $region17
  $region16: #{_lambda_.47} parent=0 // pred_region
    _
  $region17: #{_lambda_.47} parent=0 // pred_fallthru
    _
  %v17 = vld [vmem:[%s0] sm:$0xff]
  %v18 = vld [vmem:[%s0 + $0x8] sm:$0xff]
  %v19 = vld [vmem:[%s0 + $0x10] sm:$0xff]
  %v20 = vld [vmem:[%s0 + $0x18] sm:$0xff]
  %v21 = vld [vmem:[%s0 + $0x20] sm:$0xff]
  %v22 = vld [vmem:[%s0 + $0x28] sm:$0xff]
  %v23 = vld [vmem:[%s0 + $0x30] sm:$0xff]
  %v24 = vld [vmem:[%s0 + $0x38] sm:$0xff]
  %v25 = vld [vmem:[%s0 + $0x40] sm:$0xff]
  %v26 = vld [vmem:[%s0 + $0x48] sm:$0xff]
  %v27 = vld [vmem:[%s0 + $0x50] sm:$0xff]
  %v28 = vld [vmem:[%s0 + $0x58] sm:$0xff]
  %v29 = vld [vmem:[%s0 + $0x60] sm:$0xff]
  %v30 = vld [vmem:[%s0 + $0x68] sm:$0xff]
  %v31 = vld [vmem:[%s0 + $0x70] sm:$0xff]
  %v32 = vld [vmem:[%s0 + $0x78] sm:$0xff]
  %v33 = vld [vmem:[%s0 + $0x80] sm:$0xff]
  %v34 = vld [vmem:[%s0 + $0x88] sm:$0xff]
  %v35 = vld [vmem:[%s0 + $0x90] sm:$0xff]
  %v36 = vld [vmem:[%s0 + $0x98] sm:$0xff]
  %v37 = vld [vmem:[%s0 + $0xa0] sm:$0xff]
  %v38 = vld [vmem:[%s0 + $0xa8] sm:$0xff]
  %v39 = vld [vmem:[%s0 + $0xb0] sm:$0xff]
  %v40 = vld [vmem:[%s0 + $0xb8] sm:$0xff]
  %v41 = vld [vmem:[%s0 + $0xc0] sm:$0xff]
  %v42 = vld [vmem:[%s0 + $0xc8] sm:$0xff]
  %v43 = vld [vmem:[%s0 + $0xd0] sm:$0xff]
  %v44 = vld [vmem:[%s0 + $0xd8] sm:$0xff]
  %v45 = vld [vmem:[%s0 + $0xe0] sm:$0xff]
  %v46 = vld [vmem:[%s0 + $0xe8] sm:$0xff]
  %v47 = vld [vmem:[%s0 + $0xf0] sm:$0xff]
  %v48 = vld [vmem:[%s0 + $0xf8] sm:$0xff]
  %v49 = vld [vmem:[%s0 + $0x100] sm:$0xff]
  %v50 = vld [vmem:[%s0 + $0x108] sm:$0xff]
  %v51 = vld [vmem:[%s0 + $0x110] sm:$0xff]
  %v52 = vld [vmem:[%s0 + $0x118] sm:$0xff]
  %v53 = vld [vmem:[%s0 + $0x120] sm:$0xff]
  %v54 = vld [vmem:[%s0 + $0x128] sm:$0xff]
  %v55 = vld [vmem:[%s0 + $0x130] sm:$0xff]
  %v56 = vld [vmem:[%s0 + $0x138] sm:$0xff]
  %v57 = vld [vmem:[%s0 + $0x140] sm:$0xff]
  %v58 = vld [vmem:[%s0 + $0x148] sm:$0xff]
  %v59 = vld [vmem:[%s0 + $0x150] sm:$0xff]
  %v60 = vld [vmem:[%s0 + $0x158] sm:$0xff]
  %v61 = vld [vmem:[%s0 + $0x160] sm:$0xff]
  %v62 = vld [vmem:[%s0 + $0x168] sm:$0xff]
  %v63 = vld [vmem:[%s0 + $0x170] sm:$0xff]
  %v64 = vld [vmem:[%s0 + $0x178] sm:$0xff]
  %v65 = vld [vmem:[%s1] sm:$0xff]
  %v66 = vld [vmem:[%s1 + $0x8] sm:$0xff]
  %v67 = vld [vmem:[%s1 + $0x10] sm:$0xff]
  %v68 = vld [vmem:[%s1 + $0x18] sm:$0xff]
  %v69 = vld [vmem:[%s1 + $0x20] sm:$0xff]
  %v70 = vld [vmem:[%s1 + $0x28] sm:$0xff]
  %v71 = vld [vmem:[%s1 + $0x30] sm:$0xff]
  %v72 = vld [vmem:[%s1 + $0x38] sm:$0xff]
  %v73 = vld [vmem:[%s1 + $0x40] sm:$0xff]
  %v74 = vld [vmem:[%s1 + $0x48] sm:$0xff]
  %v75 = vld [vmem:[%s1 + $0x50] sm:$0xff]
  %v76 = vld [vmem:[%s1 + $0x58] sm:$0xff]
  %v77 = vld [vmem:[%s1 + $0x60] sm:$0xff]
  %v78 = vld [vmem:[%s1 + $0x68] sm:$0xff]
  %v79 = vld [vmem:[%s1 + $0x70] sm:$0xff]
  %v80 = vld [vmem:[%s1 + $0x78] sm:$0xff]
  %v81 = vld [vmem:[%s1 + $0x80] sm:$0xff]
  %v82 = vld [vmem:[%s1 + $0x88] sm:$0xff]
  %v83 = vld [vmem:[%s1 + $0x90] sm:$0xff]
  %v84 = vld [vmem:[%s1 + $0x98] sm:$0xff]
  %v85 = vld [vmem:[%s1 + $0xa0] sm:$0xff]
  %v86 = vld [vmem:[%s1 + $0xa8] sm:$0xff]
  %v87 = vld [vmem:[%s1 + $0xb0] sm:$0xff]
  %v88 = vld [vmem:[%s1 + $0xb8] sm:$0xff]
  %v89 = vld [vmem:[%s1 + $0xc0] sm:$0xff]
  %v90 = vld [vmem:[%s1 + $0xc8] sm:$0xff]
  %v91 = vld [vmem:[%s1 + $0xd0] sm:$0xff]
  %v92 = vld [vmem:[%s1 + $0xd8] sm:$0xff]
  %v93 = vld [vmem:[%s1 + $0xe0] sm:$0xff]
  %v94 = vld [vmem:[%s1 + $0xe8] sm:$0xff]
  %v95 = vld [vmem:[%s1 + $0xf0] sm:$0xff]
  %v96 = vld [vmem:[%s1 + $0xf8] sm:$0xff]
  %v97 = vld [vmem:[%s1 + $0x100] sm:$0xff]
  %v98 = vld [vmem:[%s1 + $0x108] sm:$0xff]
  %v99 = vld [vmem:[%s1 + $0x110] sm:$0xff]
  %v100 = vld [vmem:[%s1 + $0x118] sm:$0xff]
  %vm101 = vcmask 261120
  %v103 = vsel %vm101, %v19, 0
  %v106 = vsel %vm101, %v22, 0
  %v109 = vsel %vm101, %v25, 0
  %v112 = vsel %vm101, %v28, 0
  %v115 = vsel %vm101, %v31, 0
  %v118 = vsel %vm101, %v34, 0
  %v121 = vsel %vm101, %v37, 0
  %v124 = vsel %vm101, %v40, 0
  %v127 = vsel %vm101, %v43, 0
  %v130 = vsel %vm101, %v46, 0
  %v133 = vsel %vm101, %v49, 0
  %v136 = vsel %vm101, %v52, 0
  %v139 = vsel %vm101, %v55, 0
  %v142 = vsel %vm101, %v58, 0
  %v145 = vsel %vm101, %v61, 0
  %v148 = vsel %vm101, %v64, 0
  %150 = vmatprep.subr.mxu0 0.0
  %151 = vmatpush1.msra.mxu0 %v80
  %152 = vmatprep.subr.mxu0 0.0
  %153 = vmatpush1.msra.mxu0 %v79
  %154 = vmatprep.subr.mxu0 0.0
  %155 = vmatpush1.msra.mxu0 %v78
  %156 = vmatprep.subr.mxu0 0.0
  %157 = vmatpush1.msra.mxu0 %v77
  %158 = vmatprep.subr.mxu0 0.0
  %159 = vmatpush1.msra.mxu0 %v76
  %160 = vmatprep.subr.mxu0 0.0
  %161 = vmatpush1.msra.mxu0 %v75
  %162 = vmatprep.subr.mxu0 0.0
  %163 = vmatpush1.msra.mxu0 %v74
  %164 = vmatprep.subr.mxu0 0.0
  %165 = vmatpush1.msra.mxu0 %v73
  %166 = vmatprep.subr.mxu0 0.0
  %167 = vmatpush1.msra.mxu0 %v72
  %168 = vmatprep.subr.mxu0 0.0
  %169 = vmatpush1.msra.mxu0 %v71
  %170 = vmatprep.subr.mxu0 0.0
  %171 = vmatpush1.msra.mxu0 %v70
  %172 = vmatprep.subr.mxu0 0.0
  %173 = vmatpush1.msra.mxu0 %v69
  %174 = vmatprep.subr.mxu0 0.0
  %175 = vmatpush1.msra.mxu0 %v68
  %176 = vmatprep.subr.mxu0 0.0
  %177 = vmatpush1.msra.mxu0 %v67
  %178 = vmatprep.subr.mxu0 0.0
  %179 = vmatpush1.msra.mxu0 %v66
  %180 = vmatprep.subr.mxu0 0.0
  %181 = vmatpush1.msra.mxu0 %v65
  %182 = vmatprep.subr.mxu0 0.0
  %183 = vmatpush2.msra.mxu0 %v96
  %184 = vmatprep.subr.mxu0 0.0
  %185 = vmatpush2.msra.mxu0 %v95
  %186 = vmatprep.subr.mxu0 0.0
  %187 = vmatpush2.msra.mxu0 %v94
  %188 = vmatprep.subr.mxu0 0.0
  %189 = vmatpush2.msra.mxu0 %v93
  %190 = vmatprep.subr.mxu0 0.0
  %191 = vmatpush2.msra.mxu0 %v92
  %192 = vmatprep.subr.mxu0 0.0
  %193 = vmatpush2.msra.mxu0 %v91
  %194 = vmatprep.subr.mxu0 0.0
  %195 = vmatpush2.msra.mxu0 %v90
  %196 = vmatprep.subr.mxu0 0.0
  %197 = vmatpush2.msra.mxu0 %v89
  %198 = vmatprep.subr.mxu0 0.0
  %199 = vmatpush2.msra.mxu0 %v88
  %200 = vmatprep.subr.mxu0 0.0
  %201 = vmatpush2.msra.mxu0 %v87
  %202 = vmatprep.subr.mxu0 0.0
  %203 = vmatpush2.msra.mxu0 %v86
  %204 = vmatprep.subr.mxu0 0.0
  %205 = vmatpush2.msra.mxu0 %v85
  %206 = vmatprep.subr.mxu0 0.0
  %207 = vmatpush2.msra.mxu0 %v84
  %208 = vmatprep.subr.mxu0 0.0
  %209 = vmatpush2.msra.mxu0 %v83
  %210 = vmatprep.subr.mxu0 0.0
  %211 = vmatpush2.msra.mxu0 %v82
  %212 = vmatprep.subr.mxu0 0.0
  %213 = vmatpush2.msra.mxu0 %v81
  %214 = vmatprep.mubr.f32.mxu0 %v18
  %215 = vmatmul.mubr.f32.gmra.mxu0 %v17
  %v216 = vpop.f32.mrf.mxu0
  %v217 = vadd.f32 0.0, %v216
  %v218 = vpop.f32.mrf.mxu0
  %219 = vmatprep.mubr.f32.mxu0 %v21
  %220 = vmatmul.mubr.f32.gmra.mxu0 %v20
  %v221 = vpop.f32.mrf.mxu0
  %v222 = vadd.f32 0.0, %v221
  %v223 = vpop.f32.mrf.mxu0
  %224 = vmatprep.mubr.f32.mxu0 %v24
  %225 = vmatmul.mubr.f32.gmra.mxu0 %v23
  %v226 = vpop.f32.mrf.mxu0
  %v227 = vadd.f32 0.0, %v226
  %v228 = vpop.f32.mrf.mxu0
  %229 = vmatprep.mubr.f32.mxu0 %v27
  %230 = vmatmul.mubr.f32.gmra.mxu0 %v26
  %v231 = vpop.f32.mrf.mxu0
  %v232 = vadd.f32 0.0, %v231
  %v233 = vpop.f32.mrf.mxu0
  %234 = vmatprep.mubr.f32.mxu0 %v30
  %235 = vmatmul.mubr.f32.gmra.mxu0 %v29
  %v236 = vpop.f32.mrf.mxu0
  %v237 = vadd.f32 0.0, %v236
  %v238 = vpop.f32.mrf.mxu0
  %239 = vmatprep.mubr.f32.mxu0 %v33
  %240 = vmatmul.mubr.f32.gmra.mxu0 %v32
  %v241 = vpop.f32.mrf.mxu0
  %v242 = vadd.f32 0.0, %v241
  %v243 = vpop.f32.mrf.mxu0
  %244 = vmatprep.mubr.f32.mxu0 %v36
  %245 = vmatmul.mubr.f32.gmra.mxu0 %v35
  %v246 = vpop.f32.mrf.mxu0
  %v247 = vadd.f32 0.0, %v246
  %v248 = vpop.f32.mrf.mxu0
  %249 = vmatprep.mubr.f32.mxu0 %v39
  %250 = vmatmul.mubr.f32.gmra.mxu0 %v38
  %v251 = vpop.f32.mrf.mxu0
  %v252 = vadd.f32 0.0, %v251
  %v253 = vpop.f32.mrf.mxu0
  %254 = vmatprep.mubr.f32.mxu0 %v42
  %255 = vmatmul.mubr.f32.gmra.mxu0 %v41
  %v256 = vpop.f32.mrf.mxu0
  %v257 = vadd.f32 0.0, %v256
  %v258 = vpop.f32.mrf.mxu0
  %259 = vmatprep.mubr.f32.mxu0 %v45
  %260 = vmatmul.mubr.f32.gmra.mxu0 %v44
  %v261 = vpop.f32.mrf.mxu0
  %v262 = vadd.f32 0.0, %v261
  %v263 = vpop.f32.mrf.mxu0
  %264 = vmatprep.mubr.f32.mxu0 %v48
  %265 = vmatmul.mubr.f32.gmra.mxu0 %v47
  %v266 = vpop.f32.mrf.mxu0
  %v267 = vadd.f32 0.0, %v266
  %v268 = vpop.f32.mrf.mxu0
  %269 = vmatprep.mubr.f32.mxu0 %v51
  %270 = vmatmul.mubr.f32.gmra.mxu0 %v50
  %v271 = vpop.f32.mrf.mxu0
  %v272 = vadd.f32 0.0, %v271
  %v273 = vpop.f32.mrf.mxu0
  %274 = vmatprep.mubr.f32.mxu0 %v54
  %275 = vmatmul.mubr.f32.gmra.mxu0 %v53
  %v276 = vpop.f32.mrf.mxu0
  %v277 = vadd.f32 0.0, %v276
  %v278 = vpop.f32.mrf.mxu0
  %279 = vmatprep.mubr.f32.mxu0 %v57
  %280 = vmatmul.mubr.f32.gmra.mxu0 %v56
  %v281 = vpop.f32.mrf.mxu0
  %v282 = vadd.f32 0.0, %v281
  %v283 = vpop.f32.mrf.mxu0
  %284 = vmatprep.mubr.f32.mxu0 %v60
  %285 = vmatmul.mubr.f32.gmra.mxu0 %v59
  %v286 = vpop.f32.mrf.mxu0
  %v287 = vadd.f32 0.0, %v286
  %v288 = vpop.f32.mrf.mxu0
  %289 = vmatprep.mubr.f32.mxu0 %v63
  %290 = vmatmul.mubr.f32.gmra.mxu0 %v62
  %v291 = vpop.f32.mrf.mxu0
  %v292 = vadd.f32 0.0, %v291
  %v293 = vpop.f32.mrf.mxu0
  %294 = vdwg.mxu0
  %295 = vmatprep.subr.mxu0 0.0
  %296 = vmatpush1.msra.mxu0 0.0
  %297 = vmatprep.subr.mxu0 0.0
  %298 = vmatpush1.msra.mxu0 0.0
  %299 = vmatprep.subr.mxu0 0.0
  %300 = vmatpush1.msra.mxu0 0.0
  %301 = vmatprep.subr.mxu0 0.0
  %302 = vmatpush1.msra.mxu0 0.0
  %303 = vmatprep.subr.mxu0 0.0
  %304 = vmatpush1.msra.mxu0 0.0
  %305 = vmatprep.subr.mxu0 0.0
  %306 = vmatpush1.msra.mxu0 0.0
  %307 = vmatprep.subr.mxu0 0.0
  %308 = vmatpush1.msra.mxu0 0.0
  %309 = vmatprep.subr.mxu0 0.0
  %310 = vmatpush1.msra.mxu0 0.0
  %311 = vmatprep.subr.mxu0 0.0
  %312 = vmatpush1.msra.mxu0 0.0
  %313 = vmatprep.subr.mxu0 0.0
  %314 = vmatpush1.msra.mxu0 0.0
  %315 = vmatprep.subr.mxu0 0.0
  %316 = vmatpush1.msra.mxu0 0.0
  %317 = vmatprep.subr.mxu0 0.0
  %318 = vmatpush1.msra.mxu0 0.0
  %319 = vmatprep.subr.mxu0 0.0
  %320 = vmatpush1.msra.mxu0 %v100
  %321 = vmatprep.subr.mxu0 0.0
  %322 = vmatpush1.msra.mxu0 %v99
  %323 = vmatprep.subr.mxu0 0.0
  %324 = vmatpush1.msra.mxu0 %v98
  %325 = vmatprep.subr.mxu0 0.0
  %326 = vmatpush1.msra.mxu0 %v97
  %327 = vmatprep.subr.mxu0 0.0
  %328 = vmatpush2.msra.mxu0 0.0
  %329 = vmatprep.subr.mxu0 0.0
  %330 = vmatpush2.msra.mxu0 0.0
  %331 = vmatprep.subr.mxu0 0.0
  %332 = vmatpush2.msra.mxu0 0.0
  %333 = vmatprep.subr.mxu0 0.0
  %334 = vmatpush2.msra.mxu0 0.0
  %335 = vmatprep.subr.mxu0 0.0
  %336 = vmatpush2.msra.mxu0 0.0
  %337 = vmatprep.subr.mxu0 0.0
  %338 = vmatpush2.msra.mxu0 0.0
  %339 = vmatprep.subr.mxu0 0.0
  %340 = vmatpush2.msra.mxu0 0.0
  %341 = vmatprep.subr.mxu0 0.0
  %342 = vmatpush2.msra.mxu0 0.0
  %343 = vmatprep.subr.mxu0 0.0
  %344 = vmatpush2.msra.mxu0 0.0
  %345 = vmatprep.subr.mxu0 0.0
  %346 = vmatpush2.msra.mxu0 0.0
  %347 = vmatprep.subr.mxu0 0.0
  %348 = vmatpush2.msra.mxu0 0.0
  %349 = vmatprep.subr.mxu0 0.0
  %350 = vmatpush2.msra.mxu0 0.0
  %351 = vmatprep.subr.mxu0 0.0
  %352 = vmatpush2.msra.mxu0 0.0
  %353 = vmatprep.subr.mxu0 0.0
  %354 = vmatpush2.msra.mxu0 0.0
  %355 = vmatprep.subr.mxu0 0.0
  %356 = vmatpush2.msra.mxu0 0.0
  %357 = vmatprep.subr.mxu0 0.0
  %358 = vmatpush2.msra.mxu0 0.0
  %359 = vmatprep.mubr.f32.mxu0 0.0
  %360 = vmatmul.mubr.f32.gmra.mxu0 %v103
  %v361 = vpop.f32.mrf.mxu0
  %v362 = vadd.f32 %v217, %v361
  %v363 = vpop.f32.mrf.mxu0
  %364 = vmatprep.mubr.f32.mxu0 0.0
  %365 = vmatmul.mubr.f32.gmra.mxu0 %v106
  %v366 = vpop.f32.mrf.mxu0
  %v367 = vadd.f32 %v222, %v366
  %v368 = vpop.f32.mrf.mxu0
  %369 = vmatprep.mubr.f32.mxu0 0.0
  %370 = vmatmul.mubr.f32.gmra.mxu0 %v109
  %v371 = vpop.f32.mrf.mxu0
  %v372 = vadd.f32 %v227, %v371
  %v373 = vpop.f32.mrf.mxu0
  %374 = vmatprep.mubr.f32.mxu0 0.0
  %375 = vmatmul.mubr.f32.gmra.mxu0 %v112
  %v376 = vpop.f32.mrf.mxu0
  %v377 = vadd.f32 %v232, %v376
  %v378 = vpop.f32.mrf.mxu0
  %379 = vmatprep.mubr.f32.mxu0 0.0
  %380 = vmatmul.mubr.f32.gmra.mxu0 %v115
  %v381 = vpop.f32.mrf.mxu0
  %v382 = vadd.f32 %v237, %v381
  %v383 = vpop.f32.mrf.mxu0
  %384 = vmatprep.mubr.f32.mxu0 0.0
  %385 = vmatmul.mubr.f32.gmra.mxu0 %v118
  %v386 = vpop.f32.mrf.mxu0
  %v387 = vadd.f32 %v242, %v386
  %v388 = vpop.f32.mrf.mxu0
  %389 = vmatprep.mubr.f32.mxu0 0.0
  %390 = vmatmul.mubr.f32.gmra.mxu0 %v121
  %v391 = vpop.f32.mrf.mxu0
  %v392 = vadd.f32 %v247, %v391
  %v393 = vpop.f32.mrf.mxu0
  %394 = vmatprep.mubr.f32.mxu0 0.0
  %395 = vmatmul.mubr.f32.gmra.mxu0 %v124
  %v396 = vpop.f32.mrf.mxu0
  %v397 = vadd.f32 %v252, %v396
  %v398 = vpop.f32.mrf.mxu0
  %399 = vmatprep.mubr.f32.mxu0 0.0
  %400 = vmatmul.mubr.f32.gmra.mxu0 %v127
  %v401 = vpop.f32.mrf.mxu0
  %v402 = vadd.f32 %v257, %v401
  %v403 = vpop.f32.mrf.mxu0
  %404 = vmatprep.mubr.f32.mxu0 0.0
  %405 = vmatmul.mubr.f32.gmra.mxu0 %v130
  %v406 = vpop.f32.mrf.mxu0
  %v407 = vadd.f32 %v262, %v406
  %v408 = vpop.f32.mrf.mxu0
  %409 = vmatprep.mubr.f32.mxu0 0.0
  %410 = vmatmul.mubr.f32.gmra.mxu0 %v133
  %v411 = vpop.f32.mrf.mxu0
  %v412 = vadd.f32 %v267, %v411
  %v413 = vpop.f32.mrf.mxu0
  %414 = vmatprep.mubr.f32.mxu0 0.0
  %415 = vmatmul.mubr.f32.gmra.mxu0 %v136
  %v416 = vpop.f32.mrf.mxu0
  %v417 = vadd.f32 %v272, %v416
  %v418 = vpop.f32.mrf.mxu0
  %419 = vmatprep.mubr.f32.mxu0 0.0
  %420 = vmatmul.mubr.f32.gmra.mxu0 %v139
  %v421 = vpop.f32.mrf.mxu0
  %v422 = vadd.f32 %v277, %v421
  %v423 = vpop.f32.mrf.mxu0
  %424 = vmatprep.mubr.f32.mxu0 0.0
  %425 = vmatmul.mubr.f32.gmra.mxu0 %v142
  %v426 = vpop.f32.mrf.mxu0
  %v427 = vadd.f32 %v282, %v426
  %v428 = vpop.f32.mrf.mxu0
  %429 = vmatprep.mubr.f32.mxu0 0.0
  %430 = vmatmul.mubr.f32.gmra.mxu0 %v145
  %v431 = vpop.f32.mrf.mxu0
  %v432 = vadd.f32 %v287, %v431
  %v433 = vpop.f32.mrf.mxu0
  %434 = vmatprep.mubr.f32.mxu0 0.0
  %435 = vmatmul.mubr.f32.gmra.mxu0 %v148
  %v436 = vpop.f32.mrf.mxu0
  %v437 = vadd.f32 %v292, %v436
  %v438 = vpop.f32.mrf.mxu0
  %439 = vdwg.mxu0
  %v440 = vld [vmem:[%s2] sm:$0x1]
  %v442 = vlaneseq
  %v443 = vshrl.u32 %v442, 7
  %v444 = vsub.s32 0, %v443
  %v445 = vrot.slane %v440, %v444
  %v447 = vmul.f32 %v362, %v445
  %v448 = vmul.f32 %v367, %v445
  %v449 = vmul.f32 %v372, %v445
  %v450 = vmul.f32 %v377, %v445
  %v451 = vmul.f32 %v382, %v445
  %v452 = vmul.f32 %v387, %v445
  %v453 = vmul.f32 %v392, %v445
  %v454 = vmul.f32 %v397, %v445
  %v455 = vmul.f32 %v402, %v445
  %v456 = vmul.f32 %v407, %v445
  %v457 = vmul.f32 %v412, %v445
  %v458 = vmul.f32 %v417, %v445
  %v459 = vmul.f32 %v422, %v445
  %v460 = vmul.f32 %v427, %v445
  %v461 = vmul.f32 %v432, %v445
  %v462 = vmul.f32 %v437, %v445
  %v463 = vld [vmem:[%s3] sm:$0x1]
  %v465 = vlaneseq
  %v466 = vshrl.u32 %v465, 7
  %v467 = vsub.s32 0, %v466
  %v468 = vrot.slane %v463, %v467
  %v470 = vadd.f32 %v447, %v468
  %v471 = vadd.f32 %v448, %v468
  %v472 = vadd.f32 %v449, %v468
  %v473 = vadd.f32 %v450, %v468
  %v474 = vadd.f32 %v451, %v468
  %v475 = vadd.f32 %v452, %v468
  %v476 = vadd.f32 %v453, %v468
  %v477 = vadd.f32 %v454, %v468
  %v478 = vadd.f32 %v455, %v468
  %v479 = vadd.f32 %v456, %v468
  %v480 = vadd.f32 %v457, %v468
  %v481 = vadd.f32 %v458, %v468
  %v482 = vadd.f32 %v459, %v468
  %v483 = vadd.f32 %v460, %v468
  %v484 = vadd.f32 %v461, %v468
  %v485 = vadd.f32 %v462, %v468
  %v486 = vmax.f32 %v470, 0.0
  %v487 = vmax.f32 %v471, 0.0
  %v488 = vmax.f32 %v472, 0.0
  %v489 = vmax.f32 %v473, 0.0
  %v490 = vmax.f32 %v474, 0.0
  %v491 = vmax.f32 %v475, 0.0
  %v492 = vmax.f32 %v476, 0.0
  %v493 = vmax.f32 %v477, 0.0
  %v494 = vmax.f32 %v478, 0.0
  %v495 = vmax.f32 %v479, 0.0
  %v496 = vmax.f32 %v480, 0.0
  %v497 = vmax.f32 %v481, 0.0
  %v498 = vmax.f32 %v482, 0.0
  %v499 = vmax.f32 %v483, 0.0
  %v500 = vmax.f32 %v484, 0.0
  %v501 = vmax.f32 %v485, 0.0
  %v502 = vmin.f32 %v486, 20.0
  %v503 = vmin.f32 %v487, 20.0
  %v504 = vmin.f32 %v488, 20.0
  %v505 = vmin.f32 %v489, 20.0
  %v506 = vmin.f32 %v490, 20.0
  %v507 = vmin.f32 %v491, 20.0
  %v508 = vmin.f32 %v492, 20.0
  %v509 = vmin.f32 %v493, 20.0
  %v510 = vmin.f32 %v494, 20.0
  %v511 = vmin.f32 %v495, 20.0
  %v512 = vmin.f32 %v496, 20.0
  %v513 = vmin.f32 %v497, 20.0
  %v514 = vmin.f32 %v498, 20.0
  %v515 = vmin.f32 %v499, 20.0
  %v516 = vmin.f32 %v500, 20.0
  %v517 = vmin.f32 %v501, 20.0
  %518 = vst.msk [vmem:[%s4] sm:$0xff] %vm101, %v502
  %519 = vst.msk [vmem:[%s4 + $0x8] sm:$0xff] %vm101, %v503
  %520 = vst.msk [vmem:[%s4 + $0x10] sm:$0xff] %vm101, %v504
  %521 = vst.msk [vmem:[%s4 + $0x18] sm:$0xff] %vm101, %v505
  %522 = vst.msk [vmem:[%s4 + $0x20] sm:$0xff] %vm101, %v506
  %523 = vst.msk [vmem:[%s4 + $0x28] sm:$0xff] %vm101, %v507
  %524 = vst.msk [vmem:[%s4 + $0x30] sm:$0xff] %vm101, %v508
  %525 = vst.msk [vmem:[%s4 + $0x38] sm:$0xff] %vm101, %v509
  %526 = vst.msk [vmem:[%s4 + $0x40] sm:$0xff] %vm101, %v510
  %527 = vst.msk [vmem:[%s4 + $0x48] sm:$0xff] %vm101, %v511
  %528 = vst.msk [vmem:[%s4 + $0x50] sm:$0xff] %vm101, %v512
  %529 = vst.msk [vmem:[%s4 + $0x58] sm:$0xff] %vm101, %v513
  %530 = vst.msk [vmem:[%s4 + $0x60] sm:$0xff] %vm101, %v514
  %531 = vst.msk [vmem:[%s4 + $0x68] sm:$0xff] %vm101, %v515
  %532 = vst.msk [vmem:[%s4 + $0x70] sm:$0xff] %vm101, %v516
  %533 = vst.msk [vmem:[%s4 + $0x78] sm:$0xff] %vm101, %v517
  // Predicated region
  $region18: #{_lambda_.47} parent=0 // pred_check
    _
  $region19: #{_lambda_.47} parent=0 // pred_check_branch
    %535 = sbr.rel (0) target = $region21
  $region20: #{_lambda_.47} parent=0 // pred_region
    _
  $region21: #{_lambda_.47} parent=0 // pred_fallthru
    _
  // Predicated region
  $region22: #{_lambda_.47} parent=0 // pred_check
    _
  $region23: #{_lambda_.47} parent=0 // pred_check_branch
    %537 = sbr.rel (0) target = $region25
  $region24: #{_lambda_.47} parent=0 // pred_region
    _
  $region25: #{_lambda_.47} parent=0 // pred_fallthru
    _

// kernel: _lambda_.53
$region0: #{_lambda_.53}
  #allocation0 [shape = 'u32[]', space=smem, size = 0x4, offset = 0x4, fixed_abs, tag = 'smem constant byte address 0x4 - core index']
  #allocation1 [shape = 'u32[144,128]{1,0:T(1,128)}', space=vmem, size = 0x12000, scoped, tag = 'internal scratch']
  %s0 = inlined_call_operand.vmem [shape: f32[32,288], index: 0, kind: input, shape index: {}]
  %s1 = inlined_call_operand.vmem [shape: f32[288,64], index: 1, kind: input, shape index: {}]
  %s2 = inlined_call_operand.vmem [shape: f32[1,64], index: 2, kind: input, shape index: {}]
  %s3 = inlined_call_operand.vmem [shape: f32[1,64], index: 3, kind: input, shape index: {}]
  %s4 = inlined_call_operand.vmem [shape: f32[32,64], index: 4, kind: output, shape index: {}]
  %s5 = sld [smem:[#allocation0]]
  $region26: #{_lambda_.53} parent=0
    _
  %s7 = ssub.s32 1, %s5
  %s8 = scalar_select 0, %s7, %s5
  // Predicated region
  $region2: #{_lambda_.53} parent=0 // pred_check
    _
  $region3: #{_lambda_.53} parent=0 // pred_check_branch
    %10 = sbr.rel (0) target = $region5
  $region4: #{_lambda_.53} parent=0 // pred_region
    _
  $region5: #{_lambda_.53} parent=0 // pred_fallthru
    _
  // Predicated region
  $region6: #{_lambda_.53} parent=0 // pred_check
    _
  $region7: #{_lambda_.53} parent=0 // pred_check_branch
    %12 = sbr.rel (0) target = $region9
  $region8: #{_lambda_.53} parent=0 // pred_region
    _
  $region9: #{_lambda_.53} parent=0 // pred_fallthru
    _
  // Predicated region
  $region10: #{_lambda_.53} parent=0 // pred_check
    _
  $region11: #{_lambda_.53} parent=0 // pred_check_branch
    %14 = sbr.rel (0) target = $region13
  $region12: #{_lambda_.53} parent=0 // pred_region
    _
  $region13: #{_lambda_.53} parent=0 // pred_fallthru
    _
  // Predicated region
  $region14: #{_lambda_.53} parent=0 // pred_check
    _
  $region15: #{_lambda_.53} parent=0 // pred_check_branch
    %16 = sbr.rel (0) target = $region17
  $region16: #{_lambda_.53} parent=0 // pred_region
    _
  $region17: #{_lambda_.53} parent=0 // pred_fallthru
    _
  %v17 = vld [vmem:[%s0] sm:$0xff]
  %v18 = vld [vmem:[%s0 + $0x8] sm:$0xff]
  %v19 = vld [vmem:[%s0 + $0x10] sm:$0xff]
  %v20 = vld [vmem:[%s0 + $0x18] sm:$0xff]
  %v21 = vld [vmem:[%s0 + $0x20] sm:$0xff]
  %v22 = vld [vmem:[%s0 + $0x28] sm:$0xff]
  %v23 = vld [vmem:[%s0 + $0x30] sm:$0xff]
  %v24 = vld [vmem:[%s0 + $0x38] sm:$0xff]
  %v25 = vld [vmem:[%s0 + $0x40] sm:$0xff]
  %v26 = vld [vmem:[%s0 + $0x48] sm:$0xff]
  %v27 = vld [vmem:[%s0 + $0x50] sm:$0xff]
  %v28 = vld [vmem:[%s0 + $0x58] sm:$0xff]
  %v29 = vld [vmem:[%s1] sm:$0xff]
  %v30 = vld [vmem:[%s1 + $0x8] sm:$0xff]
  %v31 = vld [vmem:[%s1 + $0x10] sm:$0xff]
  %v32 = vld [vmem:[%s1 + $0x18] sm:$0xff]
  %v33 = vld [vmem:[%s1 + $0x20] sm:$0xff]
  %v34 = vld [vmem:[%s1 + $0x28] sm:$0xff]
  %v35 = vld [vmem:[%s1 + $0x30] sm:$0xff]
  %v36 = vld [vmem:[%s1 + $0x38] sm:$0xff]
  %v37 = vld [vmem:[%s1 + $0x40] sm:$0xff]
  %v38 = vld [vmem:[%s1 + $0x48] sm:$0xff]
  %v39 = vld [vmem:[%s1 + $0x50] sm:$0xff]
  %v40 = vld [vmem:[%s1 + $0x58] sm:$0xff]
  %v41 = vld [vmem:[%s1 + $0x60] sm:$0xff]
  %v42 = vld [vmem:[%s1 + $0x68] sm:$0xff]
  %v43 = vld [vmem:[%s1 + $0x70] sm:$0xff]
  %v44 = vld [vmem:[%s1 + $0x78] sm:$0xff]
  %v45 = vld [vmem:[%s1 + $0x80] sm:$0xff]
  %v46 = vld [vmem:[%s1 + $0x88] sm:$0xff]
  %v47 = vld [vmem:[%s1 + $0x90] sm:$0xff]
  %v48 = vld [vmem:[%s1 + $0x98] sm:$0xff]
  %v49 = vld [vmem:[%s1 + $0xa0] sm:$0xff]
  %v50 = vld [vmem:[%s1 + $0xa8] sm:$0xff]
  %v51 = vld [vmem:[%s1 + $0xb0] sm:$0xff]
  %v52 = vld [vmem:[%s1 + $0xb8] sm:$0xff]
  %v53 = vld [vmem:[%s1 + $0xc0] sm:$0xff]
  %v54 = vld [vmem:[%s1 + $0xc8] sm:$0xff]
  %v55 = vld [vmem:[%s1 + $0xd0] sm:$0xff]
  %v56 = vld [vmem:[%s1 + $0xd8] sm:$0xff]
  %v57 = vld [vmem:[%s1 + $0xe0] sm:$0xff]
  %v58 = vld [vmem:[%s1 + $0xe8] sm:$0xff]
  %v59 = vld [vmem:[%s1 + $0xf0] sm:$0xff]
  %v60 = vld [vmem:[%s1 + $0xf8] sm:$0xff]
  %v61 = vld [vmem:[%s1 + $0x100] sm:$0xff]
  %v62 = vld [vmem:[%s1 + $0x108] sm:$0xff]
  %v63 = vld [vmem:[%s1 + $0x110] sm:$0xff]
  %v64 = vld [vmem:[%s1 + $0x118] sm:$0xff]
  %vm65 = vcmask 261120
  %v67 = vsel %vm65, %v19, 0
  %v70 = vsel %vm65, %v22, 0
  %v73 = vsel %vm65, %v25, 0
  %v76 = vsel %vm65, %v28, 0
  %78 = vmatprep.subr.mxu0 0.0
  %79 = vmatpush1.msra.mxu0 %v44
  %80 = vmatprep.subr.mxu0 0.0
  %81 = vmatpush1.msra.mxu0 %v43
  %82 = vmatprep.subr.mxu0 0.0
  %83 = vmatpush1.msra.mxu0 %v42
  %84 = vmatprep.subr.mxu0 0.0
  %85 = vmatpush1.msra.mxu0 %v41
  %86 = vmatprep.subr.mxu0 0.0
  %87 = vmatpush1.msra.mxu0 %v40
  %88 = vmatprep.subr.mxu0 0.0
  %89 = vmatpush1.msra.mxu0 %v39
  %90 = vmatprep.subr.mxu0 0.0
  %91 = vmatpush1.msra.mxu0 %v38
  %92 = vmatprep.subr.mxu0 0.0
  %93 = vmatpush1.msra.mxu0 %v37
  %94 = vmatprep.subr.mxu0 0.0
  %95 = vmatpush1.msra.mxu0 %v36
  %96 = vmatprep.subr.mxu0 0.0
  %97 = vmatpush1.msra.mxu0 %v35
  %98 = vmatprep.subr.mxu0 0.0
  %99 = vmatpush1.msra.mxu0 %v34
  %100 = vmatprep.subr.mxu0 0.0
  %101 = vmatpush1.msra.mxu0 %v33
  %102 = vmatprep.subr.mxu0 0.0
  %103 = vmatpush1.msra.mxu0 %v32
  %104 = vmatprep.subr.mxu0 0.0
  %105 = vmatpush1.msra.mxu0 %v31
  %106 = vmatprep.subr.mxu0 0.0
  %107 = vmatpush1.msra.mxu0 %v30
  %108 = vmatprep.subr.mxu0 0.0
  %109 = vmatpush1.msra.mxu0 %v29
  %110 = vmatprep.subr.mxu0 0.0
  %111 = vmatpush2.msra.mxu0 %v60
  %112 = vmatprep.subr.mxu0 0.0
  %113 = vmatpush2.msra.mxu0 %v59
  %114 = vmatprep.subr.mxu0 0.0
  %115 = vmatpush2.msra.mxu0 %v58
  %116 = vmatprep.subr.mxu0 0.0
  %117 = vmatpush2.msra.mxu0 %v57
  %118 = vmatprep.subr.mxu0 0.0
  %119 = vmatpush2.msra.mxu0 %v56
  %120 = vmatprep.subr.mxu0 0.0
  %121 = vmatpush2.msra.mxu0 %v55
  %122 = vmatprep.subr.mxu0 0.0
  %123 = vmatpush2.msra.mxu0 %v54
  %124 = vmatprep.subr.mxu0 0.0
  %125 = vmatpush2.msra.mxu0 %v53
  %126 = vmatprep.subr.mxu0 0.0
  %127 = vmatpush2.msra.mxu0 %v52
  %128 = vmatprep.subr.mxu0 0.0
  %129 = vmatpush2.msra.mxu0 %v51
  %130 = vmatprep.subr.mxu0 0.0
  %131 = vmatpush2.msra.mxu0 %v50
  %132 = vmatprep.subr.mxu0 0.0
  %133 = vmatpush2.msra.mxu0 %v49
  %134 = vmatprep.subr.mxu0 0.0
  %135 = vmatpush2.msra.mxu0 %v48
  %136 = vmatprep.subr.mxu0 0.0
  %137 = vmatpush2.msra.mxu0 %v47
  %138 = vmatprep.subr.mxu0 0.0
  %139 = vmatpush2.msra.mxu0 %v46
  %140 = vmatprep.subr.mxu0 0.0
  %141 = vmatpush2.msra.mxu0 %v45
  %142 = vmatprep.mubr.f32.mxu0 %v18
  %143 = vmatmul.mubr.f32.gmra.mxu0 %v17
  %v144 = vpop.f32.mrf.mxu0
  %v145 = vadd.f32 0.0, %v144
  %v146 = vpop.f32.mrf.mxu0
  %147 = vmatprep.mubr.f32.mxu0 %v21
  %148 = vmatmul.mubr.f32.gmra.mxu0 %v20
  %v149 = vpop.f32.mrf.mxu0
  %v150 = vadd.f32 0.0, %v149
  %v151 = vpop.f32.mrf.mxu0
  %152 = vmatprep.mubr.f32.mxu0 %v24
  %153 = vmatmul.mubr.f32.gmra.mxu0 %v23
  %v154 = vpop.f32.mrf.mxu0
  %v155 = vadd.f32 0.0, %v154
  %v156 = vpop.f32.mrf.mxu0
  %157 = vmatprep.mubr.f32.mxu0 %v27
  %158 = vmatmul.mubr.f32.gmra.mxu0 %v26
  %v159 = vpop.f32.mrf.mxu0
  %v160 = vadd.f32 0.0, %v159
  %v161 = vpop.f32.mrf.mxu0
  %162 = vdwg.mxu0
  %163 = vmatprep.subr.mxu0 0.0
  %164 = vmatpush1.msra.mxu0 0.0
  %165 = vmatprep.subr.mxu0 0.0
  %166 = vmatpush1.msra.mxu0 0.0
  %167 = vmatprep.subr.mxu0 0.0
  %168 = vmatpush1.msra.mxu0 0.0
  %169 = vmatprep.subr.mxu0 0.0
  %170 = vmatpush1.msra.mxu0 0.0
  %171 = vmatprep.subr.mxu0 0.0
  %172 = vmatpush1.msra.mxu0 0.0
  %173 = vmatprep.subr.mxu0 0.0
  %174 = vmatpush1.msra.mxu0 0.0
  %175 = vmatprep.subr.mxu0 0.0
  %176 = vmatpush1.msra.mxu0 0.0
  %177 = vmatprep.subr.mxu0 0.0
  %178 = vmatpush1.msra.mxu0 0.0
  %179 = vmatprep.subr.mxu0 0.0
  %180 = vmatpush1.msra.mxu0 0.0
  %181 = vmatprep.subr.mxu0 0.0
  %182 = vmatpush1.msra.mxu0 0.0
  %183 = vmatprep.subr.mxu0 0.0
  %184 = vmatpush1.msra.mxu0 0.0
  %185 = vmatprep.subr.mxu0 0.0
  %186 = vmatpush1.msra.mxu0 0.0
  %187 = vmatprep.subr.mxu0 0.0
  %188 = vmatpush1.msra.mxu0 %v64
  %189 = vmatprep.subr.mxu0 0.0
  %190 = vmatpush1.msra.mxu0 %v63
  %191 = vmatprep.subr.mxu0 0.0
  %192 = vmatpush1.msra.mxu0 %v62
  %193 = vmatprep.subr.mxu0 0.0
  %194 = vmatpush1.msra.mxu0 %v61
  %195 = vmatprep.subr.mxu0 0.0
  %196 = vmatpush2.msra.mxu0 0.0
  %197 = vmatprep.subr.mxu0 0.0
  %198 = vmatpush2.msra.mxu0 0.0
  %199 = vmatprep.subr.mxu0 0.0
  %200 = vmatpush2.msra.mxu0 0.0
  %201 = vmatprep.subr.mxu0 0.0
  %202 = vmatpush2.msra.mxu0 0.0
  %203 = vmatprep.subr.mxu0 0.0
  %204 = vmatpush2.msra.mxu0 0.0
  %205 = vmatprep.subr.mxu0 0.0
  %206 = vmatpush2.msra.mxu0 0.0
  %207 = vmatprep.subr.mxu0 0.0
  %208 = vmatpush2.msra.mxu0 0.0
  %209 = vmatprep.subr.mxu0 0.0
  %210 = vmatpush2.msra.mxu0 0.0
  %211 = vmatprep.subr.mxu0 0.0
  %212 = vmatpush2.msra.mxu0 0.0
  %213 = vmatprep.subr.mxu0 0.0
  %214 = vmatpush2.msra.mxu0 0.0
  %215 = vmatprep.subr.mxu0 0.0
  %216 = vmatpush2.msra.mxu0 0.0
  %217 = vmatprep.subr.mxu0 0.0
  %218 = vmatpush2.msra.mxu0 0.0
  %219 = vmatprep.subr.mxu0 0.0
  %220 = vmatpush2.msra.mxu0 0.0
  %221 = vmatprep.subr.mxu0 0.0
  %222 = vmatpush2.msra.mxu0 0.0
  %223 = vmatprep.subr.mxu0 0.0
  %224 = vmatpush2.msra.mxu0 0.0
  %225 = vmatprep.subr.mxu0 0.0
  %226 = vmatpush2.msra.mxu0 0.0
  %227 = vmatprep.mubr.f32.mxu0 0.0
  %228 = vmatmul.mubr.f32.gmra.mxu0 %v67
  %v229 = vpop.f32.mrf.mxu0
  %v230 = vadd.f32 %v145, %v229
  %v231 = vpop.f32.mrf.mxu0
  %232 = vmatprep.mubr.f32.mxu0 0.0
  %233 = vmatmul.mubr.f32.gmra.mxu0 %v70
  %v234 = vpop.f32.mrf.mxu0
  %v235 = vadd.f32 %v150, %v234
  %v236 = vpop.f32.mrf.mxu0
  %237 = vmatprep.mubr.f32.mxu0 0.0
  %238 = vmatmul.mubr.f32.gmra.mxu0 %v73
  %v239 = vpop.f32.mrf.mxu0
  %v240 = vadd.f32 %v155, %v239
  %v241 = vpop.f32.mrf.mxu0
  %242 = vmatprep.mubr.f32.mxu0 0.0
  %243 = vmatmul.mubr.f32.gmra.mxu0 %v76
  %v244 = vpop.f32.mrf.mxu0
  %v245 = vadd.f32 %v160, %v244
  %v246 = vpop.f32.mrf.mxu0
  %247 = vdwg.mxu0
  %v248 = vld [vmem:[%s2] sm:$0x1]
  %v250 = vlaneseq
  %v251 = vshrl.u32 %v250, 7
  %v252 = vsub.s32 0, %v251
  %v253 = vrot.slane %v248, %v252
  %v255 = vmul.f32 %v230, %v253
  %v256 = vmul.f32 %v235, %v253
  %v257 = vmul.f32 %v240, %v253
  %v258 = vmul.f32 %v245, %v253
  %v259 = vld [vmem:[%s3] sm:$0x1]
  %v261 = vlaneseq
  %v262 = vshrl.u32 %v261, 7
  %v263 = vsub.s32 0, %v262
  %v264 = vrot.slane %v259, %v263
  %v266 = vadd.f32 %v255, %v264
  %v267 = vadd.f32 %v256, %v264
  %v268 = vadd.f32 %v257, %v264
  %v269 = vadd.f32 %v258, %v264
  %v270 = vmax.f32 %v266, 0.0
  %v271 = vmax.f32 %v267, 0.0
  %v272 = vmax.f32 %v268, 0.0
  %v273 = vmax.f32 %v269, 0.0
  %v274 = vmin.f32 %v270, 20.0
  %v275 = vmin.f32 %v271, 20.0
  %v276 = vmin.f32 %v272, 20.0
  %v277 = vmin.f32 %v273, 20.0
  %vm278 = vcmask 523264
  %279 = vst.msk [vmem:[%s4] sm:$0xff] %vm278, %v274
  %280 = vst.msk [vmem:[%s4 + $0x8] sm:$0xff] %vm278, %v275
  %281 = vst.msk [vmem:[%s4 + $0x10] sm:$0xff] %vm278, %v276
  %282 = vst.msk [vmem:[%s4 + $0x18] sm:$0xff] %vm278, %v277
  // Predicated region
  $region18: #{_lambda_.53} parent=0 // pred_check
    _
  $region19: #{_lambda_.53} parent=0 // pred_check_branch
    %284 = sbr.rel (0) target = $region21
  $region20: #{_lambda_.53} parent=0 // pred_region
    _
  $region21: #{_lambda_.53} parent=0 // pred_fallthru
    _
  // Predicated region
  $region22: #{_lambda_.53} parent=0 // pred_check
    _
  $region23: #{_lambda_.53} parent=0 // pred_check_branch
    %286 = sbr.rel (0) target = $region25
  $region24: #{_lambda_.53} parent=0 // pred_region
    _
  $region25: #{_lambda_.53} parent=0 // pred_fallthru
    _

// kernel: _lambda_.54
$region0: #{_lambda_.54}
  #allocation0 [shape = 'u32[]', space=smem, size = 0x4, offset = 0x4, fixed_abs, tag = 'smem constant byte address 0x4 - core index']
  #allocation1 [shape = 'u32[144,128]{1,0:T(1,128)}', space=vmem, size = 0x12000, scoped, tag = 'internal scratch']
  %s0 = inlined_call_operand.vmem [shape: f32[32,32], index: 0, kind: input, shape index: {}]
  %s1 = inlined_call_operand.vmem [shape: f32[32,64], index: 1, kind: input, shape index: {}]
  %s2 = inlined_call_operand.vmem [shape: f32[1,64], index: 2, kind: input, shape index: {}]
  %s3 = inlined_call_operand.vmem [shape: f32[1,64], index: 3, kind: input, shape index: {}]
  %s4 = inlined_call_operand.vmem [shape: f32[32,64], index: 4, kind: output, shape index: {}]
  %s5 = sld [smem:[#allocation0]]
  $region26: #{_lambda_.54} parent=0
    _
  %s7 = ssub.s32 1, %s5
  %s8 = scalar_select 0, %s7, %s5
  // Predicated region
  $region2: #{_lambda_.54} parent=0 // pred_check
    _
  $region3: #{_lambda_.54} parent=0 // pred_check_branch
    %10 = sbr.rel (0) target = $region5
  $region4: #{_lambda_.54} parent=0 // pred_region
    _
  $region5: #{_lambda_.54} parent=0 // pred_fallthru
    _
  // Predicated region
  $region6: #{_lambda_.54} parent=0 // pred_check
    _
  $region7: #{_lambda_.54} parent=0 // pred_check_branch
    %12 = sbr.rel (0) target = $region9
  $region8: #{_lambda_.54} parent=0 // pred_region
    _
  $region9: #{_lambda_.54} parent=0 // pred_fallthru
    _
  // Predicated region
  $region10: #{_lambda_.54} parent=0 // pred_check
    _
  $region11: #{_lambda_.54} parent=0 // pred_check_branch
    %14 = sbr.rel (0) target = $region13
  $region12: #{_lambda_.54} parent=0 // pred_region
    _
  $region13: #{_lambda_.54} parent=0 // pred_fallthru
    _
  // Predicated region
  $region14: #{_lambda_.54} parent=0 // pred_check
    _
  $region15: #{_lambda_.54} parent=0 // pred_check_branch
    %16 = sbr.rel (0) target = $region17
  $region16: #{_lambda_.54} parent=0 // pred_region
    _
  $region17: #{_lambda_.54} parent=0 // pred_fallthru
    _
  %v17 = vld [vmem:[%s0] sm:$0xff]
  %v18 = vld [vmem:[%s0 + $0x8] sm:$0xff]
  %v19 = vld [vmem:[%s0 + $0x10] sm:$0xff]
  %v20 = vld [vmem:[%s0 + $0x18] sm:$0xff]
  %v21 = vld [vmem:[%s1] sm:$0xff]
  %v22 = vld [vmem:[%s1 + $0x8] sm:$0xff]
  %v23 = vld [vmem:[%s1 + $0x10] sm:$0xff]
  %v24 = vld [vmem:[%s1 + $0x18] sm:$0xff]
  %vm25 = vcmask 261120
  %v27 = vsel %vm25, %v17, 0
  %v30 = vsel %vm25, %v18, 0
  %v33 = vsel %vm25, %v19, 0
  %v36 = vsel %vm25, %v20, 0
  %38 = vmatprep.subr.mxu0 0.0
  %39 = vmatpush1.msra.mxu0 0.0
  %40 = vmatprep.subr.mxu0 0.0
  %41 = vmatpush1.msra.mxu0 0.0
  %42 = vmatprep.subr.mxu0 0.0
  %43 = vmatpush1.msra.mxu0 0.0
  %44 = vmatprep.subr.mxu0 0.0
  %45 = vmatpush1.msra.mxu0 0.0
  %46 = vmatprep.subr.mxu0 0.0
  %47 = vmatpush1.msra.mxu0 0.0
  %48 = vmatprep.subr.mxu0 0.0
  %49 = vmatpush1.msra.mxu0 0.0
  %50 = vmatprep.subr.mxu0 0.0
  %51 = vmatpush1.msra.mxu0 0.0
  %52 = vmatprep.subr.mxu0 0.0
  %53 = vmatpush1.msra.mxu0 0.0
  %54 = vmatprep.subr.mxu0 0.0
  %55 = vmatpush1.msra.mxu0 0.0
  %56 = vmatprep.subr.mxu0 0.0
  %57 = vmatpush1.msra.mxu0 0.0
  %58 = vmatprep.subr.mxu0 0.0
  %59 = vmatpush1.msra.mxu0 0.0
  %60 = vmatprep.subr.mxu0 0.0
  %61 = vmatpush1.msra.mxu0 0.0
  %62 = vmatprep.subr.mxu0 0.0
  %63 = vmatpush1.msra.mxu0 %v24
  %64 = vmatprep.subr.mxu0 0.0
  %65 = vmatpush1.msra.mxu0 %v23
  %66 = vmatprep.subr.mxu0 0.0
  %67 = vmatpush1.msra.mxu0 %v22
  %68 = vmatprep.subr.mxu0 0.0
  %69 = vmatpush1.msra.mxu0 %v21
  %70 = vmatprep.subr.mxu0 0.0
  %71 = vmatpush2.msra.mxu0 0.0
  %72 = vmatprep.subr.mxu0 0.0
  %73 = vmatpush2.msra.mxu0 0.0
  %74 = vmatprep.subr.mxu0 0.0
  %75 = vmatpush2.msra.mxu0 0.0
  %76 = vmatprep.subr.mxu0 0.0
  %77 = vmatpush2.msra.mxu0 0.0
  %78 = vmatprep.subr.mxu0 0.0
  %79 = vmatpush2.msra.mxu0 0.0
  %80 = vmatprep.subr.mxu0 0.0
  %81 = vmatpush2.msra.mxu0 0.0
  %82 = vmatprep.subr.mxu0 0.0
  %83 = vmatpush2.msra.mxu0 0.0
  %84 = vmatprep.subr.mxu0 0.0
  %85 = vmatpush2.msra.mxu0 0.0
  %86 = vmatprep.subr.mxu0 0.0
  %87 = vmatpush2.msra.mxu0 0.0
  %88 = vmatprep.subr.mxu0 0.0
  %89 = vmatpush2.msra.mxu0 0.0
  %90 = vmatprep.subr.mxu0 0.0
  %91 = vmatpush2.msra.mxu0 0.0
  %92 = vmatprep.subr.mxu0 0.0
  %93 = vmatpush2.msra.mxu0 0.0
  %94 = vmatprep.subr.mxu0 0.0
  %95 = vmatpush2.msra.mxu0 0.0
  %96 = vmatprep.subr.mxu0 0.0
  %97 = vmatpush2.msra.mxu0 0.0
  %98 = vmatprep.subr.mxu0 0.0
  %99 = vmatpush2.msra.mxu0 0.0
  %100 = vmatprep.subr.mxu0 0.0
  %101 = vmatpush2.msra.mxu0 0.0
  %102 = vmatprep.mubr.f32.mxu0 0.0
  %103 = vmatmul.mubr.f32.gmra.mxu0 %v27
  %v104 = vpop.f32.mrf.mxu0
  %v105 = vadd.f32 0.0, %v104
  %v106 = vpop.f32.mrf.mxu0
  %107 = vmatprep.mubr.f32.mxu0 0.0
  %108 = vmatmul.mubr.f32.gmra.mxu0 %v30
  %v109 = vpop.f32.mrf.mxu0
  %v110 = vadd.f32 0.0, %v109
  %v111 = vpop.f32.mrf.mxu0
  %112 = vmatprep.mubr.f32.mxu0 0.0
  %113 = vmatmul.mubr.f32.gmra.mxu0 %v33
  %v114 = vpop.f32.mrf.mxu0
  %v115 = vadd.f32 0.0, %v114
  %v116 = vpop.f32.mrf.mxu0
  %117 = vmatprep.mubr.f32.mxu0 0.0
  %118 = vmatmul.mubr.f32.gmra.mxu0 %v36
  %v119 = vpop.f32.mrf.mxu0
  %v120 = vadd.f32 0.0, %v119
  %v121 = vpop.f32.mrf.mxu0
  %122 = vdwg.mxu0
  %v123 = vld [vmem:[%s2] sm:$0x1]
  %v125 = vlaneseq
  %v126 = vshrl.u32 %v125, 7
  %v127 = vsub.s32 0, %v126
  %v128 = vrot.slane %v123, %v127
  %v130 = vmul.f32 %v105, %v128
  %v131 = vmul.f32 %v110, %v128
  %v132 = vmul.f32 %v115, %v128
  %v133 = vmul.f32 %v120, %v128
  %v134 = vld [vmem:[%s3] sm:$0x1]
  %v136 = vlaneseq
  %v137 = vshrl.u32 %v136, 7
  %v138 = vsub.s32 0, %v137
  %v139 = vrot.slane %v134, %v138
  %v141 = vadd.f32 %v130, %v139
  %v142 = vadd.f32 %v131, %v139
  %v143 = vadd.f32 %v132, %v139
  %v144 = vadd.f32 %v133, %v139
  %vm145 = vcmask 523264
  %146 = vst.msk [vmem:[%s4] sm:$0xff] %vm145, %v141
  %147 = vst.msk [vmem:[%s4 + $0x8] sm:$0xff] %vm145, %v142
  %148 = vst.msk [vmem:[%s4 + $0x10] sm:$0xff] %vm145, %v143
  %149 = vst.msk [vmem:[%s4 + $0x18] sm:$0xff] %vm145, %v144
  // Predicated region
  $region18: #{_lambda_.54} parent=0 // pred_check
    _
  $region19: #{_lambda_.54} parent=0 // pred_check_branch
    %151 = sbr.rel (0) target = $region21
  $region20: #{_lambda_.54} parent=0 // pred_region
    _
  $region21: #{_lambda_.54} parent=0 // pred_fallthru
    _
  // Predicated region
  $region22: #{_lambda_.54} parent=0 // pred_check
    _
  $region23: #{_lambda_.54} parent=0 // pred_check_branch
    %153 = sbr.rel (0) target = $region25
  $region24: #{_lambda_.54} parent=0 // pred_region
    _
  $region25: #{_lambda_.54} parent=0 // pred_fallthru
    _

// kernel: _lambda_.55
$region0: #{_lambda_.55}
  #allocation0 [shape = 'u32[]', space=smem, size = 0x4, offset = 0x4, fixed_abs, tag = 'smem constant byte address 0x4 - core index']
  #allocation1 [shape = 'u32[144,128]{1,0:T(1,128)}', space=vmem, size = 0x12000, scoped, tag = 'internal scratch']
  %s0 = inlined_call_operand.vmem [shape: f32[32,576], index: 0, kind: input, shape index: {}]
  %s1 = inlined_call_operand.vmem [shape: f32[576,64], index: 1, kind: input, shape index: {}]
  %s2 = inlined_call_operand.vmem [shape: f32[1,64], index: 2, kind: input, shape index: {}]
  %s3 = inlined_call_operand.vmem [shape: f32[1,64], index: 3, kind: input, shape index: {}]
  %s4 = inlined_call_operand.vmem [shape: f32[32,64], index: 4, kind: input, shape index: {}]
  %s5 = inlined_call_operand.vmem [shape: f32[32,64], index: 5, kind: output, shape index: {}]
  %s6 = sld [smem:[#allocation0]]
  $region30: #{_lambda_.55} parent=0
    _
  %s8 = ssub.s32 1, %s6
  %s9 = scalar_select 0, %s8, %s6
  // Predicated region
  $region2: #{_lambda_.55} parent=0 // pred_check
    _
  $region3: #{_lambda_.55} parent=0 // pred_check_branch
    %11 = sbr.rel (0) target = $region5
  $region4: #{_lambda_.55} parent=0 // pred_region
    _
  $region5: #{_lambda_.55} parent=0 // pred_fallthru
    _
  // Predicated region
  $region6: #{_lambda_.55} parent=0 // pred_check
    _
  $region7: #{_lambda_.55} parent=0 // pred_check_branch
    %13 = sbr.rel (0) target = $region9
  $region8: #{_lambda_.55} parent=0 // pred_region
    _
  $region9: #{_lambda_.55} parent=0 // pred_fallthru
    _
  // Predicated region
  $region10: #{_lambda_.55} parent=0 // pred_check
    _
  $region11: #{_lambda_.55} parent=0 // pred_check_branch
    %15 = sbr.rel (0) target = $region13
  $region12: #{_lambda_.55} parent=0 // pred_region
    _
  $region13: #{_lambda_.55} parent=0 // pred_fallthru
    _
  // Predicated region
  $region14: #{_lambda_.55} parent=0 // pred_check
    _
  $region15: #{_lambda_.55} parent=0 // pred_check_branch
    %17 = sbr.rel (0) target = $region17
  $region16: #{_lambda_.55} parent=0 // pred_region
    _
  $region17: #{_lambda_.55} parent=0 // pred_fallthru
    _
  // Predicated region
  $region18: #{_lambda_.55} parent=0 // pred_check
    _
  $region19: #{_lambda_.55} parent=0 // pred_check_branch
    %19 = sbr.rel (0) target = $region21
  $region20: #{_lambda_.55} parent=0 // pred_region
    _
  $region21: #{_lambda_.55} parent=0 // pred_fallthru
    _
  %v20 = vld [vmem:[%s0] sm:$0xff]
  %v21 = vld [vmem:[%s0 + $0x8] sm:$0xff]
  %v22 = vld [vmem:[%s0 + $0x10] sm:$0xff]
  %v23 = vld [vmem:[%s0 + $0x18] sm:$0xff]
  %v24 = vld [vmem:[%s0 + $0x20] sm:$0xff]
  %v25 = vld [vmem:[%s0 + $0x28] sm:$0xff]
  %v26 = vld [vmem:[%s0 + $0x30] sm:$0xff]
  %v27 = vld [vmem:[%s0 + $0x38] sm:$0xff]
  %v28 = vld [vmem:[%s0 + $0x40] sm:$0xff]
  %v29 = vld [vmem:[%s0 + $0x48] sm:$0xff]
  %v30 = vld [vmem:[%s0 + $0x50] sm:$0xff]
  %v31 = vld [vmem:[%s0 + $0x58] sm:$0xff]
  %v32 = vld [vmem:[%s0 + $0x60] sm:$0xff]
  %v33 = vld [vmem:[%s0 + $0x68] sm:$0xff]
  %v34 = vld [vmem:[%s0 + $0x70] sm:$0xff]
  %v35 = vld [vmem:[%s0 + $0x78] sm:$0xff]
  %v36 = vld [vmem:[%s0 + $0x80] sm:$0xff]
  %v37 = vld [vmem:[%s0 + $0x88] sm:$0xff]
  %v38 = vld [vmem:[%s0 + $0x90] sm:$0xff]
  %v39 = vld [vmem:[%s0 + $0x98] sm:$0xff]
  %v40 = vld [vmem:[%s1] sm:$0xff]
  %v41 = vld [vmem:[%s1 + $0x8] sm:$0xff]
  %v42 = vld [vmem:[%s1 + $0x10] sm:$0xff]
  %v43 = vld [vmem:[%s1 + $0x18] sm:$0xff]
  %v44 = vld [vmem:[%s1 + $0x20] sm:$0xff]
  %v45 = vld [vmem:[%s1 + $0x28] sm:$0xff]
  %v46 = vld [vmem:[%s1 + $0x30] sm:$0xff]
  %v47 = vld [vmem:[%s1 + $0x38] sm:$0xff]
  %v48 = vld [vmem:[%s1 + $0x40] sm:$0xff]
  %v49 = vld [vmem:[%s1 + $0x48] sm:$0xff]
  %v50 = vld [vmem:[%s1 + $0x50] sm:$0xff]
  %v51 = vld [vmem:[%s1 + $0x58] sm:$0xff]
  %v52 = vld [vmem:[%s1 + $0x60] sm:$0xff]
  %v53 = vld [vmem:[%s1 + $0x68] sm:$0xff]
  %v54 = vld [vmem:[%s1 + $0x70] sm:$0xff]
  %v55 = vld [vmem:[%s1 + $0x78] sm:$0xff]
  %v56 = vld [vmem:[%s1 + $0x80] sm:$0xff]
  %v57 = vld [vmem:[%s1 + $0x88] sm:$0xff]
  %v58 = vld [vmem:[%s1 + $0x90] sm:$0xff]
  %v59 = vld [vmem:[%s1 + $0x98] sm:$0xff]
  %v60 = vld [vmem:[%s1 + $0xa0] sm:$0xff]
  %v61 = vld [vmem:[%s1 + $0xa8] sm:$0xff]
  %v62 = vld [vmem:[%s1 + $0xb0] sm:$0xff]
  %v63 = vld [vmem:[%s1 + $0xb8] sm:$0xff]
  %v64 = vld [vmem:[%s1 + $0xc0] sm:$0xff]
  %v65 = vld [vmem:[%s1 + $0xc8] sm:$0xff]
  %v66 = vld [vmem:[%s1 + $0xd0] sm:$0xff]
  %v67 = vld [vmem:[%s1 + $0xd8] sm:$0xff]
  %v68 = vld [vmem:[%s1 + $0xe0] sm:$0xff]
  %v69 = vld [vmem:[%s1 + $0xe8] sm:$0xff]
  %v70 = vld [vmem:[%s1 + $0xf0] sm:$0xff]
  %v71 = vld [vmem:[%s1 + $0xf8] sm:$0xff]
  %v72 = vld [vmem:[%s1 + $0x100] sm:$0xff]
  %v73 = vld [vmem:[%s1 + $0x108] sm:$0xff]
  %v74 = vld [vmem:[%s1 + $0x110] sm:$0xff]
  %v75 = vld [vmem:[%s1 + $0x118] sm:$0xff]
  %v76 = vld [vmem:[%s1 + $0x120] sm:$0xff]
  %v77 = vld [vmem:[%s1 + $0x128] sm:$0xff]
  %v78 = vld [vmem:[%s1 + $0x130] sm:$0xff]
  %v79 = vld [vmem:[%s1 + $0x138] sm:$0xff]
  %v80 = vld [vmem:[%s1 + $0x140] sm:$0xff]
  %v81 = vld [vmem:[%s1 + $0x148] sm:$0xff]
  %v82 = vld [vmem:[%s1 + $0x150] sm:$0xff]
  %v83 = vld [vmem:[%s1 + $0x158] sm:$0xff]
  %v84 = vld [vmem:[%s1 + $0x160] sm:$0xff]
  %v85 = vld [vmem:[%s1 + $0x168] sm:$0xff]
  %v86 = vld [vmem:[%s1 + $0x170] sm:$0xff]
  %v87 = vld [vmem:[%s1 + $0x178] sm:$0xff]
  %v88 = vld [vmem:[%s1 + $0x180] sm:$0xff]
  %v89 = vld [vmem:[%s1 + $0x188] sm:$0xff]
  %v90 = vld [vmem:[%s1 + $0x190] sm:$0xff]
  %v91 = vld [vmem:[%s1 + $0x198] sm:$0xff]
  %v92 = vld [vmem:[%s1 + $0x1a0] sm:$0xff]
  %v93 = vld [vmem:[%s1 + $0x1a8] sm:$0xff]
  %v94 = vld [vmem:[%s1 + $0x1b0] sm:$0xff]
  %v95 = vld [vmem:[%s1 + $0x1b8] sm:$0xff]
  %v96 = vld [vmem:[%s1 + $0x1c0] sm:$0xff]
  %v97 = vld [vmem:[%s1 + $0x1c8] sm:$0xff]
  %v98 = vld [vmem:[%s1 + $0x1d0] sm:$0xff]
  %v99 = vld [vmem:[%s1 + $0x1d8] sm:$0xff]
  %v100 = vld [vmem:[%s1 + $0x1e0] sm:$0xff]
  %v101 = vld [vmem:[%s1 + $0x1e8] sm:$0xff]
  %v102 = vld [vmem:[%s1 + $0x1f0] sm:$0xff]
  %v103 = vld [vmem:[%s1 + $0x1f8] sm:$0xff]
  %v104 = vld [vmem:[%s1 + $0x200] sm:$0xff]
  %v105 = vld [vmem:[%s1 + $0x208] sm:$0xff]
  %v106 = vld [vmem:[%s1 + $0x210] sm:$0xff]
  %v107 = vld [vmem:[%s1 + $0x218] sm:$0xff]
  %v108 = vld [vmem:[%s1 + $0x220] sm:$0xff]
  %v109 = vld [vmem:[%s1 + $0x228] sm:$0xff]
  %v110 = vld [vmem:[%s1 + $0x230] sm:$0xff]
  %v111 = vld [vmem:[%s1 + $0x238] sm:$0xff]
  %vm112 = vcmask 523264
  %v114 = vsel %vm112, %v24, 0
  %v117 = vsel %vm112, %v29, 0
  %v120 = vsel %vm112, %v34, 0
  %v123 = vsel %vm112, %v39, 0
  %125 = vmatprep.subr.mxu0 0.0
  %126 = vmatpush1.msra.mxu0 %v55
  %127 = vmatprep.subr.mxu0 0.0
  %128 = vmatpush1.msra.mxu0 %v54
  %129 = vmatprep.subr.mxu0 0.0
  %130 = vmatpush1.msra.mxu0 %v53
  %131 = vmatprep.subr.mxu0 0.0
  %132 = vmatpush1.msra.mxu0 %v52
  %133 = vmatprep.subr.mxu0 0.0
  %134 = vmatpush1.msra.mxu0 %v51
  %135 = vmatprep.subr.mxu0 0.0
  %136 = vmatpush1.msra.mxu0 %v50
  %137 = vmatprep.subr.mxu0 0.0
  %138 = vmatpush1.msra.mxu0 %v49
  %139 = vmatprep.subr.mxu0 0.0
  %140 = vmatpush1.msra.mxu0 %v48
  %141 = vmatprep.subr.mxu0 0.0
  %142 = vmatpush1.msra.mxu0 %v47
  %143 = vmatprep.subr.mxu0 0.0
  %144 = vmatpush1.msra.mxu0 %v46
  %145 = vmatprep.subr.mxu0 0.0
  %146 = vmatpush1.msra.mxu0 %v45
  %147 = vmatprep.subr.mxu0 0.0
  %148 = vmatpush1.msra.mxu0 %v44
  %149 = vmatprep.subr.mxu0 0.0
  %150 = vmatpush1.msra.mxu0 %v43
  %151 = vmatprep.subr.mxu0 0.0
  %152 = vmatpush1.msra.mxu0 %v42
  %153 = vmatprep.subr.mxu0 0.0
  %154 = vmatpush1.msra.mxu0 %v41
  %155 = vmatprep.subr.mxu0 0.0
  %156 = vmatpush1.msra.mxu0 %v40
  %157 = vmatprep.subr.mxu0 0.0
  %158 = vmatpush2.msra.mxu0 %v71
  %159 = vmatprep.subr.mxu0 0.0
  %160 = vmatpush2.msra.mxu0 %v70
  %161 = vmatprep.subr.mxu0 0.0
  %162 = vmatpush2.msra.mxu0 %v69
  %163 = vmatprep.subr.mxu0 0.0
  %164 = vmatpush2.msra.mxu0 %v68
  %165 = vmatprep.subr.mxu0 0.0
  %166 = vmatpush2.msra.mxu0 %v67
  %167 = vmatprep.subr.mxu0 0.0
  %168 = vmatpush2.msra.mxu0 %v66
  %169 = vmatprep.subr.mxu0 0.0
  %170 = vmatpush2.msra.mxu0 %v65
  %171 = vmatprep.subr.mxu0 0.0
  %172 = vmatpush2.msra.mxu0 %v64
  %173 = vmatprep.subr.mxu0 0.0
  %174 = vmatpush2.msra.mxu0 %v63
  %175 = vmatprep.subr.mxu0 0.0
  %176 = vmatpush2.msra.mxu0 %v62
  %177 = vmatprep.subr.mxu0 0.0
  %178 = vmatpush2.msra.mxu0 %v61
  %179 = vmatprep.subr.mxu0 0.0
  %180 = vmatpush2.msra.mxu0 %v60
  %181 = vmatprep.subr.mxu0 0.0
  %182 = vmatpush2.msra.mxu0 %v59
  %183 = vmatprep.subr.mxu0 0.0
  %184 = vmatpush2.msra.mxu0 %v58
  %185 = vmatprep.subr.mxu0 0.0
  %186 = vmatpush2.msra.mxu0 %v57
  %187 = vmatprep.subr.mxu0 0.0
  %188 = vmatpush2.msra.mxu0 %v56
  %189 = vmatprep.mubr.f32.mxu0 %v21
  %190 = vmatmul.mubr.f32.gmra.mxu0 %v20
  %v191 = vpop.f32.mrf.mxu0
  %v192 = vadd.f32 0.0, %v191
  %v193 = vpop.f32.mrf.mxu0
  %194 = vmatprep.mubr.f32.mxu0 %v26
  %195 = vmatmul.mubr.f32.gmra.mxu0 %v25
  %v196 = vpop.f32.mrf.mxu0
  %v197 = vadd.f32 0.0, %v196
  %v198 = vpop.f32.mrf.mxu0
  %199 = vmatprep.mubr.f32.mxu0 %v31
  %200 = vmatmul.mubr.f32.gmra.mxu0 %v30
  %v201 = vpop.f32.mrf.mxu0
  %v202 = vadd.f32 0.0, %v201
  %v203 = vpop.f32.mrf.mxu0
  %204 = vmatprep.mubr.f32.mxu0 %v36
  %205 = vmatmul.mubr.f32.gmra.mxu0 %v35
  %v206 = vpop.f32.mrf.mxu0
  %v207 = vadd.f32 0.0, %v206
  %v208 = vpop.f32.mrf.mxu0
  %209 = vdwg.mxu0
  %210 = vmatprep.subr.mxu0 0.0
  %211 = vmatpush1.msra.mxu0 %v87
  %212 = vmatprep.subr.mxu0 0.0
  %213 = vmatpush1.msra.mxu0 %v86
  %214 = vmatprep.subr.mxu0 0.0
  %215 = vmatpush1.msra.mxu0 %v85
  %216 = vmatprep.subr.mxu0 0.0
  %217 = vmatpush1.msra.mxu0 %v84
  %218 = vmatprep.subr.mxu0 0.0
  %219 = vmatpush1.msra.mxu0 %v83
  %220 = vmatprep.subr.mxu0 0.0
  %221 = vmatpush1.msra.mxu0 %v82
  %222 = vmatprep.subr.mxu0 0.0
  %223 = vmatpush1.msra.mxu0 %v81
  %224 = vmatprep.subr.mxu0 0.0
  %225 = vmatpush1.msra.mxu0 %v80
  %226 = vmatprep.subr.mxu0 0.0
  %227 = vmatpush1.msra.mxu0 %v79
  %228 = vmatprep.subr.mxu0 0.0
  %229 = vmatpush1.msra.mxu0 %v78
  %230 = vmatprep.subr.mxu0 0.0
  %231 = vmatpush1.msra.mxu0 %v77
  %232 = vmatprep.subr.mxu0 0.0
  %233 = vmatpush1.msra.mxu0 %v76
  %234 = vmatprep.subr.mxu0 0.0
  %235 = vmatpush1.msra.mxu0 %v75
  %236 = vmatprep.subr.mxu0 0.0
  %237 = vmatpush1.msra.mxu0 %v74
  %238 = vmatprep.subr.mxu0 0.0
  %239 = vmatpush1.msra.mxu0 %v73
  %240 = vmatprep.subr.mxu0 0.0
  %241 = vmatpush1.msra.mxu0 %v72
  %242 = vmatprep.subr.mxu0 0.0
  %243 = vmatpush2.msra.mxu0 %v103
  %244 = vmatprep.subr.mxu0 0.0
  %245 = vmatpush2.msra.mxu0 %v102
  %246 = vmatprep.subr.mxu0 0.0
  %247 = vmatpush2.msra.mxu0 %v101
  %248 = vmatprep.subr.mxu0 0.0
  %249 = vmatpush2.msra.mxu0 %v100
  %250 = vmatprep.subr.mxu0 0.0
  %251 = vmatpush2.msra.mxu0 %v99
  %252 = vmatprep.subr.mxu0 0.0
  %253 = vmatpush2.msra.mxu0 %v98
  %254 = vmatprep.subr.mxu0 0.0
  %255 = vmatpush2.msra.mxu0 %v97
  %256 = vmatprep.subr.mxu0 0.0
  %257 = vmatpush2.msra.mxu0 %v96
  %258 = vmatprep.subr.mxu0 0.0
  %259 = vmatpush2.msra.mxu0 %v95
  %260 = vmatprep.subr.mxu0 0.0
  %261 = vmatpush2.msra.mxu0 %v94
  %262 = vmatprep.subr.mxu0 0.0
  %263 = vmatpush2.msra.mxu0 %v93
  %264 = vmatprep.subr.mxu0 0.0
  %265 = vmatpush2.msra.mxu0 %v92
  %266 = vmatprep.subr.mxu0 0.0
  %267 = vmatpush2.msra.mxu0 %v91
  %268 = vmatprep.subr.mxu0 0.0
  %269 = vmatpush2.msra.mxu0 %v90
  %270 = vmatprep.subr.mxu0 0.0
  %271 = vmatpush2.msra.mxu0 %v89
  %272 = vmatprep.subr.mxu0 0.0
  %273 = vmatpush2.msra.mxu0 %v88
  %274 = vmatprep.mubr.f32.mxu0 %v23
  %275 = vmatmul.mubr.f32.gmra.mxu0 %v22
  %v276 = vpop.f32.mrf.mxu0
  %v277 = vadd.f32 %v192, %v276
  %v278 = vpop.f32.mrf.mxu0
  %279 = vmatprep.mubr.f32.mxu0 %v28
  %280 = vmatmul.mubr.f32.gmra.mxu0 %v27
  %v281 = vpop.f32.mrf.mxu0
  %v282 = vadd.f32 %v197, %v281
  %v283 = vpop.f32.mrf.mxu0
  %284 = vmatprep.mubr.f32.mxu0 %v33
  %285 = vmatmul.mubr.f32.gmra.mxu0 %v32
  %v286 = vpop.f32.mrf.mxu0
  %v287 = vadd.f32 %v202, %v286
  %v288 = vpop.f32.mrf.mxu0
  %289 = vmatprep.mubr.f32.mxu0 %v38
  %290 = vmatmul.mubr.f32.gmra.mxu0 %v37
  %v291 = vpop.f32.mrf.mxu0
  %v292 = vadd.f32 %v207, %v291
  %v293 = vpop.f32.mrf.mxu0
  %294 = vdwg.mxu0
  %295 = vmatprep.subr.mxu0 0.0
  %296 = vmatpush1.msra.mxu0 0.0
  %297 = vmatprep.subr.mxu0 0.0
  %298 = vmatpush1.msra.mxu0 0.0
  %299 = vmatprep.subr.mxu0 0.0
  %300 = vmatpush1.msra.mxu0 0.0
  %301 = vmatprep.subr.mxu0 0.0
  %302 = vmatpush1.msra.mxu0 0.0
  %303 = vmatprep.subr.mxu0 0.0
  %304 = vmatpush1.msra.mxu0 0.0
  %305 = vmatprep.subr.mxu0 0.0
  %306 = vmatpush1.msra.mxu0 0.0
  %307 = vmatprep.subr.mxu0 0.0
  %308 = vmatpush1.msra.mxu0 0.0
  %309 = vmatprep.subr.mxu0 0.0
  %310 = vmatpush1.msra.mxu0 0.0
  %311 = vmatprep.subr.mxu0 0.0
  %312 = vmatpush1.msra.mxu0 %v111
  %313 = vmatprep.subr.mxu0 0.0
  %314 = vmatpush1.msra.mxu0 %v110
  %315 = vmatprep.subr.mxu0 0.0
  %316 = vmatpush1.msra.mxu0 %v109
  %317 = vmatprep.subr.mxu0 0.0
  %318 = vmatpush1.msra.mxu0 %v108
  %319 = vmatprep.subr.mxu0 0.0
  %320 = vmatpush1.msra.mxu0 %v107
  %321 = vmatprep.subr.mxu0 0.0
  %322 = vmatpush1.msra.mxu0 %v106
  %323 = vmatprep.subr.mxu0 0.0
  %324 = vmatpush1.msra.mxu0 %v105
  %325 = vmatprep.subr.mxu0 0.0
  %326 = vmatpush1.msra.mxu0 %v104
  %327 = vmatprep.subr.mxu0 0.0
  %328 = vmatpush2.msra.mxu0 0.0
  %329 = vmatprep.subr.mxu0 0.0
  %330 = vmatpush2.msra.mxu0 0.0
  %331 = vmatprep.subr.mxu0 0.0
  %332 = vmatpush2.msra.mxu0 0.0
  %333 = vmatprep.subr.mxu0 0.0
  %334 = vmatpush2.msra.mxu0 0.0
  %335 = vmatprep.subr.mxu0 0.0
  %336 = vmatpush2.msra.mxu0 0.0
  %337 = vmatprep.subr.mxu0 0.0
  %338 = vmatpush2.msra.mxu0 0.0
  %339 = vmatprep.subr.mxu0 0.0
  %340 = vmatpush2.msra.mxu0 0.0
  %341 = vmatprep.subr.mxu0 0.0
  %342 = vmatpush2.msra.mxu0 0.0
  %343 = vmatprep.subr.mxu0 0.0
  %344 = vmatpush2.msra.mxu0 0.0
  %345 = vmatprep.subr.mxu0 0.0
  %346 = vmatpush2.msra.mxu0 0.0
  %347 = vmatprep.subr.mxu0 0.0
  %348 = vmatpush2.msra.mxu0 0.0
  %349 = vmatprep.subr.mxu0 0.0
  %350 = vmatpush2.msra.mxu0 0.0
  %351 = vmatprep.subr.mxu0 0.0
  %352 = vmatpush2.msra.mxu0 0.0
  %353 = vmatprep.subr.mxu0 0.0
  %354 = vmatpush2.msra.mxu0 0.0
  %355 = vmatprep.subr.mxu0 0.0
  %356 = vmatpush2.msra.mxu0 0.0
  %357 = vmatprep.subr.mxu0 0.0
  %358 = vmatpush2.msra.mxu0 0.0
  %359 = vmatprep.mubr.f32.mxu0 0.0
  %360 = vmatmul.mubr.f32.gmra.mxu0 %v114
  %v361 = vpop.f32.mrf.mxu0
  %v362 = vadd.f32 %v277, %v361
  %v363 = vpop.f32.mrf.mxu0
  %364 = vmatprep.mubr.f32.mxu0 0.0
  %365 = vmatmul.mubr.f32.gmra.mxu0 %v117
  %v366 = vpop.f32.mrf.mxu0
  %v367 = vadd.f32 %v282, %v366
  %v368 = vpop.f32.mrf.mxu0
  %369 = vmatprep.mubr.f32.mxu0 0.0
  %370 = vmatmul.mubr.f32.gmra.mxu0 %v120
  %v371 = vpop.f32.mrf.mxu0
  %v372 = vadd.f32 %v287, %v371
  %v373 = vpop.f32.mrf.mxu0
  %374 = vmatprep.mubr.f32.mxu0 0.0
  %375 = vmatmul.mubr.f32.gmra.mxu0 %v123
  %v376 = vpop.f32.mrf.mxu0
  %v377 = vadd.f32 %v292, %v376
  %v378 = vpop.f32.mrf.mxu0
  %379 = vdwg.mxu0
  %v380 = vld [vmem:[%s2] sm:$0x1]
  %v382 = vlaneseq
  %v383 = vshrl.u32 %v382, 7
  %v384 = vsub.s32 0, %v383
  %v385 = vrot.slane %v380, %v384
  %v387 = vmul.f32 %v362, %v385
  %v388 = vmul.f32 %v367, %v385
  %v389 = vmul.f32 %v372, %v385
  %v390 = vmul.f32 %v377, %v385
  %v391 = vld [vmem:[%s3] sm:$0x1]
  %v393 = vlaneseq
  %v394 = vshrl.u32 %v393, 7
  %v395 = vsub.s32 0, %v394
  %v396 = vrot.slane %v391, %v395
  %v398 = vadd.f32 %v387, %v396
  %v399 = vadd.f32 %v388, %v396
  %v400 = vadd.f32 %v389, %v396
  %v401 = vadd.f32 %v390, %v396
  %v402 = vld [vmem:[%s4] sm:$0xff]
  %v403 = vld [vmem:[%s4 + $0x8] sm:$0xff]
  %v404 = vld [vmem:[%s4 + $0x10] sm:$0xff]
  %v405 = vld [vmem:[%s4 + $0x18] sm:$0xff]
  %v406 = vadd.f32 %v398, %v402
  %v407 = vadd.f32 %v399, %v403
  %v408 = vadd.f32 %v400, %v404
  %v409 = vadd.f32 %v401, %v405
  %v410 = vmax.f32 %v406, 0.0
  %v411 = vmax.f32 %v407, 0.0
  %v412 = vmax.f32 %v408, 0.0
  %v413 = vmax.f32 %v409, 0.0
  %v414 = vmin.f32 %v410, 20.0
  %v415 = vmin.f32 %v411, 20.0
  %v416 = vmin.f32 %v412, 20.0
  %v417 = vmin.f32 %v413, 20.0
  %418 = vst.msk [vmem:[%s5] sm:$0xff] %vm112, %v414
  %419 = vst.msk [vmem:[%s5 + $0x8] sm:$0xff] %vm112, %v415
  %420 = vst.msk [vmem:[%s5 + $0x10] sm:$0xff] %vm112, %v416
  %421 = vst.msk [vmem:[%s5 + $0x18] sm:$0xff] %vm112, %v417
  // Predicated region
  $region22: #{_lambda_.55} parent=0 // pred_check
    _
  $region23: #{_lambda_.55} parent=0 // pred_check_branch
    %423 = sbr.rel (0) target = $region25
  $region24: #{_lambda_.55} parent=0 // pred_region
    _
  $region25: #{_lambda_.55} parent=0 // pred_fallthru
    _
  // Predicated region
  $region26: #{_lambda_.55} parent=0 // pred_check
    _
  $region27: #{_lambda_.55} parent=0 // pred_check_branch
    %425 = sbr.rel (0) target = $region29
  $region28: #{_lambda_.55} parent=0 // pred_region
    _
  $region29: #{_lambda_.55} parent=0 // pred_fallthru
    _

// kernel: _lambda_.56
$region0: #{_lambda_.56}
  #allocation0 [shape = 'u32[]', space=smem, size = 0x4, offset = 0x4, fixed_abs, tag = 'smem constant byte address 0x4 - core index']
  #allocation1 [shape = 'u32[144,128]{1,0:T(1,128)}', space=vmem, size = 0x12000, scoped, tag = 'internal scratch']
  %s0 = inlined_call_operand.vmem [shape: f32[32,576], index: 0, kind: input, shape index: {}]
  %s1 = inlined_call_operand.vmem [shape: f32[576,64], index: 1, kind: input, shape index: {}]
  %s2 = inlined_call_operand.vmem [shape: f32[1,64], index: 2, kind: input, shape index: {}]
  %s3 = inlined_call_operand.vmem [shape: f32[1,64], index: 3, kind: input, shape index: {}]
  %s4 = inlined_call_operand.vmem [shape: f32[32,64], index: 4, kind: output, shape index: {}]
  %s5 = sld [smem:[#allocation0]]
  $region26: #{_lambda_.56} parent=0
    _
  %s7 = ssub.s32 1, %s5
  %s8 = scalar_select 0, %s7, %s5
  // Predicated region
  $region2: #{_lambda_.56} parent=0 // pred_check
    _
  $region3: #{_lambda_.56} parent=0 // pred_check_branch
    %10 = sbr.rel (0) target = $region5
  $region4: #{_lambda_.56} parent=0 // pred_region
    _
  $region5: #{_lambda_.56} parent=0 // pred_fallthru
    _
  // Predicated region
  $region6: #{_lambda_.56} parent=0 // pred_check
    _
  $region7: #{_lambda_.56} parent=0 // pred_check_branch
    %12 = sbr.rel (0) target = $region9
  $region8: #{_lambda_.56} parent=0 // pred_region
    _
  $region9: #{_lambda_.56} parent=0 // pred_fallthru
    _
  // Predicated region
  $region10: #{_lambda_.56} parent=0 // pred_check
    _
  $region11: #{_lambda_.56} parent=0 // pred_check_branch
    %14 = sbr.rel (0) target = $region13
  $region12: #{_lambda_.56} parent=0 // pred_region
    _
  $region13: #{_lambda_.56} parent=0 // pred_fallthru
    _
  // Predicated region
  $region14: #{_lambda_.56} parent=0 // pred_check
    _
  $region15: #{_lambda_.56} parent=0 // pred_check_branch
    %16 = sbr.rel (0) target = $region17
  $region16: #{_lambda_.56} parent=0 // pred_region
    _
  $region17: #{_lambda_.56} parent=0 // pred_fallthru
    _
  %v17 = vld [vmem:[%s0] sm:$0xff]
  %v18 = vld [vmem:[%s0 + $0x8] sm:$0xff]
  %v19 = vld [vmem:[%s0 + $0x10] sm:$0xff]
  %v20 = vld [vmem:[%s0 + $0x18] sm:$0xff]
  %v21 = vld [vmem:[%s0 + $0x20] sm:$0xff]
  %v22 = vld [vmem:[%s0 + $0x28] sm:$0xff]
  %v23 = vld [vmem:[%s0 + $0x30] sm:$0xff]
  %v24 = vld [vmem:[%s0 + $0x38] sm:$0xff]
  %v25 = vld [vmem:[%s0 + $0x40] sm:$0xff]
  %v26 = vld [vmem:[%s0 + $0x48] sm:$0xff]
  %v27 = vld [vmem:[%s0 + $0x50] sm:$0xff]
  %v28 = vld [vmem:[%s0 + $0x58] sm:$0xff]
  %v29 = vld [vmem:[%s0 + $0x60] sm:$0xff]
  %v30 = vld [vmem:[%s0 + $0x68] sm:$0xff]
  %v31 = vld [vmem:[%s0 + $0x70] sm:$0xff]
  %v32 = vld [vmem:[%s0 + $0x78] sm:$0xff]
  %v33 = vld [vmem:[%s0 + $0x80] sm:$0xff]
  %v34 = vld [vmem:[%s0 + $0x88] sm:$0xff]
  %v35 = vld [vmem:[%s0 + $0x90] sm:$0xff]
  %v36 = vld [vmem:[%s0 + $0x98] sm:$0xff]
  %v37 = vld [vmem:[%s1] sm:$0xff]
  %v38 = vld [vmem:[%s1 + $0x8] sm:$0xff]
  %v39 = vld [vmem:[%s1 + $0x10] sm:$0xff]
  %v40 = vld [vmem:[%s1 + $0x18] sm:$0xff]
  %v41 = vld [vmem:[%s1 + $0x20] sm:$0xff]
  %v42 = vld [vmem:[%s1 + $0x28] sm:$0xff]
  %v43 = vld [vmem:[%s1 + $0x30] sm:$0xff]
  %v44 = vld [vmem:[%s1 + $0x38] sm:$0xff]
  %v45 = vld [vmem:[%s1 + $0x40] sm:$0xff]
  %v46 = vld [vmem:[%s1 + $0x48] sm:$0xff]
  %v47 = vld [vmem:[%s1 + $0x50] sm:$0xff]
  %v48 = vld [vmem:[%s1 + $0x58] sm:$0xff]
  %v49 = vld [vmem:[%s1 + $0x60] sm:$0xff]
  %v50 = vld [vmem:[%s1 + $0x68] sm:$0xff]
  %v51 = vld [vmem:[%s1 + $0x70] sm:$0xff]
  %v52 = vld [vmem:[%s1 + $0x78] sm:$0xff]
  %v53 = vld [vmem:[%s1 + $0x80] sm:$0xff]
  %v54 = vld [vmem:[%s1 + $0x88] sm:$0xff]
  %v55 = vld [vmem:[%s1 + $0x90] sm:$0xff]
  %v56 = vld [vmem:[%s1 + $0x98] sm:$0xff]
  %v57 = vld [vmem:[%s1 + $0xa0] sm:$0xff]
  %v58 = vld [vmem:[%s1 + $0xa8] sm:$0xff]
  %v59 = vld [vmem:[%s1 + $0xb0] sm:$0xff]
  %v60 = vld [vmem:[%s1 + $0xb8] sm:$0xff]
  %v61 = vld [vmem:[%s1 + $0xc0] sm:$0xff]
  %v62 = vld [vmem:[%s1 + $0xc8] sm:$0xff]
  %v63 = vld [vmem:[%s1 + $0xd0] sm:$0xff]
  %v64 = vld [vmem:[%s1 + $0xd8] sm:$0xff]
  %v65 = vld [vmem:[%s1 + $0xe0] sm:$0xff]
  %v66 = vld [vmem:[%s1 + $0xe8] sm:$0xff]
  %v67 = vld [vmem:[%s1 + $0xf0] sm:$0xff]
  %v68 = vld [vmem:[%s1 + $0xf8] sm:$0xff]
  %v69 = vld [vmem:[%s1 + $0x100] sm:$0xff]
  %v70 = vld [vmem:[%s1 + $0x108] sm:$0xff]
  %v71 = vld [vmem:[%s1 + $0x110] sm:$0xff]
  %v72 = vld [vmem:[%s1 + $0x118] sm:$0xff]
  %v73 = vld [vmem:[%s1 + $0x120] sm:$0xff]
  %v74 = vld [vmem:[%s1 + $0x128] sm:$0xff]
  %v75 = vld [vmem:[%s1 + $0x130] sm:$0xff]
  %v76 = vld [vmem:[%s1 + $0x138] sm:$0xff]
  %v77 = vld [vmem:[%s1 + $0x140] sm:$0xff]
  %v78 = vld [vmem:[%s1 + $0x148] sm:$0xff]
  %v79 = vld [vmem:[%s1 + $0x150] sm:$0xff]
  %v80 = vld [vmem:[%s1 + $0x158] sm:$0xff]
  %v81 = vld [vmem:[%s1 + $0x160] sm:$0xff]
  %v82 = vld [vmem:[%s1 + $0x168] sm:$0xff]
  %v83 = vld [vmem:[%s1 + $0x170] sm:$0xff]
  %v84 = vld [vmem:[%s1 + $0x178] sm:$0xff]
  %v85 = vld [vmem:[%s1 + $0x180] sm:$0xff]
  %v86 = vld [vmem:[%s1 + $0x188] sm:$0xff]
  %v87 = vld [vmem:[%s1 + $0x190] sm:$0xff]
  %v88 = vld [vmem:[%s1 + $0x198] sm:$0xff]
  %v89 = vld [vmem:[%s1 + $0x1a0] sm:$0xff]
  %v90 = vld [vmem:[%s1 + $0x1a8] sm:$0xff]
  %v91 = vld [vmem:[%s1 + $0x1b0] sm:$0xff]
  %v92 = vld [vmem:[%s1 + $0x1b8] sm:$0xff]
  %v93 = vld [vmem:[%s1 + $0x1c0] sm:$0xff]
  %v94 = vld [vmem:[%s1 + $0x1c8] sm:$0xff]
  %v95 = vld [vmem:[%s1 + $0x1d0] sm:$0xff]
  %v96 = vld [vmem:[%s1 + $0x1d8] sm:$0xff]
  %v97 = vld [vmem:[%s1 + $0x1e0] sm:$0xff]
  %v98 = vld [vmem:[%s1 + $0x1e8] sm:$0xff]
  %v99 = vld [vmem:[%s1 + $0x1f0] sm:$0xff]
  %v100 = vld [vmem:[%s1 + $0x1f8] sm:$0xff]
  %v101 = vld [vmem:[%s1 + $0x200] sm:$0xff]
  %v102 = vld [vmem:[%s1 + $0x208] sm:$0xff]
  %v103 = vld [vmem:[%s1 + $0x210] sm:$0xff]
  %v104 = vld [vmem:[%s1 + $0x218] sm:$0xff]
  %v105 = vld [vmem:[%s1 + $0x220] sm:$0xff]
  %v106 = vld [vmem:[%s1 + $0x228] sm:$0xff]
  %v107 = vld [vmem:[%s1 + $0x230] sm:$0xff]
  %v108 = vld [vmem:[%s1 + $0x238] sm:$0xff]
  %vm109 = vcmask 523264
  %v111 = vsel %vm109, %v21, 0
  %v114 = vsel %vm109, %v26, 0
  %v117 = vsel %vm109, %v31, 0
  %v120 = vsel %vm109, %v36, 0
  %122 = vmatprep.subr.mxu0 0.0
  %123 = vmatpush1.msra.mxu0 %v52
  %124 = vmatprep.subr.mxu0 0.0
  %125 = vmatpush1.msra.mxu0 %v51
  %126 = vmatprep.subr.mxu0 0.0
  %127 = vmatpush1.msra.mxu0 %v50
  %128 = vmatprep.subr.mxu0 0.0
  %129 = vmatpush1.msra.mxu0 %v49
  %130 = vmatprep.subr.mxu0 0.0
  %131 = vmatpush1.msra.mxu0 %v48
  %132 = vmatprep.subr.mxu0 0.0
  %133 = vmatpush1.msra.mxu0 %v47
  %134 = vmatprep.subr.mxu0 0.0
  %135 = vmatpush1.msra.mxu0 %v46
  %136 = vmatprep.subr.mxu0 0.0
  %137 = vmatpush1.msra.mxu0 %v45
  %138 = vmatprep.subr.mxu0 0.0
  %139 = vmatpush1.msra.mxu0 %v44
  %140 = vmatprep.subr.mxu0 0.0
  %141 = vmatpush1.msra.mxu0 %v43
  %142 = vmatprep.subr.mxu0 0.0
  %143 = vmatpush1.msra.mxu0 %v42
  %144 = vmatprep.subr.mxu0 0.0
  %145 = vmatpush1.msra.mxu0 %v41
  %146 = vmatprep.subr.mxu0 0.0
  %147 = vmatpush1.msra.mxu0 %v40
  %148 = vmatprep.subr.mxu0 0.0
  %149 = vmatpush1.msra.mxu0 %v39
  %150 = vmatprep.subr.mxu0 0.0
  %151 = vmatpush1.msra.mxu0 %v38
  %152 = vmatprep.subr.mxu0 0.0
  %153 = vmatpush1.msra.mxu0 %v37
  %154 = vmatprep.subr.mxu0 0.0
  %155 = vmatpush2.msra.mxu0 %v68
  %156 = vmatprep.subr.mxu0 0.0
  %157 = vmatpush2.msra.mxu0 %v67
  %158 = vmatprep.subr.mxu0 0.0
  %159 = vmatpush2.msra.mxu0 %v66
  %160 = vmatprep.subr.mxu0 0.0
  %161 = vmatpush2.msra.mxu0 %v65
  %162 = vmatprep.subr.mxu0 0.0
  %163 = vmatpush2.msra.mxu0 %v64
  %164 = vmatprep.subr.mxu0 0.0
  %165 = vmatpush2.msra.mxu0 %v63
  %166 = vmatprep.subr.mxu0 0.0
  %167 = vmatpush2.msra.mxu0 %v62
  %168 = vmatprep.subr.mxu0 0.0
  %169 = vmatpush2.msra.mxu0 %v61
  %170 = vmatprep.subr.mxu0 0.0
  %171 = vmatpush2.msra.mxu0 %v60
  %172 = vmatprep.subr.mxu0 0.0
  %173 = vmatpush2.msra.mxu0 %v59
  %174 = vmatprep.subr.mxu0 0.0
  %175 = vmatpush2.msra.mxu0 %v58
  %176 = vmatprep.subr.mxu0 0.0
  %177 = vmatpush2.msra.mxu0 %v57
  %178 = vmatprep.subr.mxu0 0.0
  %179 = vmatpush2.msra.mxu0 %v56
  %180 = vmatprep.subr.mxu0 0.0
  %181 = vmatpush2.msra.mxu0 %v55
  %182 = vmatprep.subr.mxu0 0.0
  %183 = vmatpush2.msra.mxu0 %v54
  %184 = vmatprep.subr.mxu0 0.0
  %185 = vmatpush2.msra.mxu0 %v53
  %186 = vmatprep.mubr.f32.mxu0 %v18
  %187 = vmatmul.mubr.f32.gmra.mxu0 %v17
  %v188 = vpop.f32.mrf.mxu0
  %v189 = vadd.f32 0.0, %v188
  %v190 = vpop.f32.mrf.mxu0
  %191 = vmatprep.mubr.f32.mxu0 %v23
  %192 = vmatmul.mubr.f32.gmra.mxu0 %v22
  %v193 = vpop.f32.mrf.mxu0
  %v194 = vadd.f32 0.0, %v193
  %v195 = vpop.f32.mrf.mxu0
  %196 = vmatprep.mubr.f32.mxu0 %v28
  %197 = vmatmul.mubr.f32.gmra.mxu0 %v27
  %v198 = vpop.f32.mrf.mxu0
  %v199 = vadd.f32 0.0, %v198
  %v200 = vpop.f32.mrf.mxu0
  %201 = vmatprep.mubr.f32.mxu0 %v33
  %202 = vmatmul.mubr.f32.gmra.mxu0 %v32
  %v203 = vpop.f32.mrf.mxu0
  %v204 = vadd.f32 0.0, %v203
  %v205 = vpop.f32.mrf.mxu0
  %206 = vdwg.mxu0
  %207 = vmatprep.subr.mxu0 0.0
  %208 = vmatpush1.msra.mxu0 %v84
  %209 = vmatprep.subr.mxu0 0.0
  %210 = vmatpush1.msra.mxu0 %v83
  %211 = vmatprep.subr.mxu0 0.0
  %212 = vmatpush1.msra.mxu0 %v82
  %213 = vmatprep.subr.mxu0 0.0
  %214 = vmatpush1.msra.mxu0 %v81
  %215 = vmatprep.subr.mxu0 0.0
  %216 = vmatpush1.msra.mxu0 %v80
  %217 = vmatprep.subr.mxu0 0.0
  %218 = vmatpush1.msra.mxu0 %v79
  %219 = vmatprep.subr.mxu0 0.0
  %220 = vmatpush1.msra.mxu0 %v78
  %221 = vmatprep.subr.mxu0 0.0
  %222 = vmatpush1.msra.mxu0 %v77
  %223 = vmatprep.subr.mxu0 0.0
  %224 = vmatpush1.msra.mxu0 %v76
  %225 = vmatprep.subr.mxu0 0.0
  %226 = vmatpush1.msra.mxu0 %v75
  %227 = vmatprep.subr.mxu0 0.0
  %228 = vmatpush1.msra.mxu0 %v74
  %229 = vmatprep.subr.mxu0 0.0
  %230 = vmatpush1.msra.mxu0 %v73
  %231 = vmatprep.subr.mxu0 0.0
  %232 = vmatpush1.msra.mxu0 %v72
  %233 = vmatprep.subr.mxu0 0.0
  %234 = vmatpush1.msra.mxu0 %v71
  %235 = vmatprep.subr.mxu0 0.0
  %236 = vmatpush1.msra.mxu0 %v70
  %237 = vmatprep.subr.mxu0 0.0
  %238 = vmatpush1.msra.mxu0 %v69
  %239 = vmatprep.subr.mxu0 0.0
  %240 = vmatpush2.msra.mxu0 %v100
  %241 = vmatprep.subr.mxu0 0.0
  %242 = vmatpush2.msra.mxu0 %v99
  %243 = vmatprep.subr.mxu0 0.0
  %244 = vmatpush2.msra.mxu0 %v98
  %245 = vmatprep.subr.mxu0 0.0
  %246 = vmatpush2.msra.mxu0 %v97
  %247 = vmatprep.subr.mxu0 0.0
  %248 = vmatpush2.msra.mxu0 %v96
  %249 = vmatprep.subr.mxu0 0.0
  %250 = vmatpush2.msra.mxu0 %v95
  %251 = vmatprep.subr.mxu0 0.0
  %252 = vmatpush2.msra.mxu0 %v94
  %253 = vmatprep.subr.mxu0 0.0
  %254 = vmatpush2.msra.mxu0 %v93
  %255 = vmatprep.subr.mxu0 0.0
  %256 = vmatpush2.msra.mxu0 %v92
  %257 = vmatprep.subr.mxu0 0.0
  %258 = vmatpush2.msra.mxu0 %v91
  %259 = vmatprep.subr.mxu0 0.0
  %260 = vmatpush2.msra.mxu0 %v90
  %261 = vmatprep.subr.mxu0 0.0
  %262 = vmatpush2.msra.mxu0 %v89
  %263 = vmatprep.subr.mxu0 0.0
  %264 = vmatpush2.msra.mxu0 %v88
  %265 = vmatprep.subr.mxu0 0.0
  %266 = vmatpush2.msra.mxu0 %v87
  %267 = vmatprep.subr.mxu0 0.0
  %268 = vmatpush2.msra.mxu0 %v86
  %269 = vmatprep.subr.mxu0 0.0
  %270 = vmatpush2.msra.mxu0 %v85
  %271 = vmatprep.mubr.f32.mxu0 %v20
  %272 = vmatmul.mubr.f32.gmra.mxu0 %v19
  %v273 = vpop.f32.mrf.mxu0
  %v274 = vadd.f32 %v189, %v273
  %v275 = vpop.f32.mrf.mxu0
  %276 = vmatprep.mubr.f32.mxu0 %v25
  %277 = vmatmul.mubr.f32.gmra.mxu0 %v24
  %v278 = vpop.f32.mrf.mxu0
  %v279 = vadd.f32 %v194, %v278
  %v280 = vpop.f32.mrf.mxu0
  %281 = vmatprep.mubr.f32.mxu0 %v30
  %282 = vmatmul.mubr.f32.gmra.mxu0 %v29
  %v283 = vpop.f32.mrf.mxu0
  %v284 = vadd.f32 %v199, %v283
  %v285 = vpop.f32.mrf.mxu0
  %286 = vmatprep.mubr.f32.mxu0 %v35
  %287 = vmatmul.mubr.f32.gmra.mxu0 %v34
  %v288 = vpop.f32.mrf.mxu0
  %v289 = vadd.f32 %v204, %v288
  %v290 = vpop.f32.mrf.mxu0
  %291 = vdwg.mxu0
  %292 = vmatprep.subr.mxu0 0.0
  %293 = vmatpush1.msra.mxu0 0.0
  %294 = vmatprep.subr.mxu0 0.0
  %295 = vmatpush1.msra.mxu0 0.0
  %296 = vmatprep.subr.mxu0 0.0
  %297 = vmatpush1.msra.mxu0 0.0
  %298 = vmatprep.subr.mxu0 0.0
  %299 = vmatpush1.msra.mxu0 0.0
  %300 = vmatprep.subr.mxu0 0.0
  %301 = vmatpush1.msra.mxu0 0.0
  %302 = vmatprep.subr.mxu0 0.0
  %303 = vmatpush1.msra.mxu0 0.0
  %304 = vmatprep.subr.mxu0 0.0
  %305 = vmatpush1.msra.mxu0 0.0
  %306 = vmatprep.subr.mxu0 0.0
  %307 = vmatpush1.msra.mxu0 0.0
  %308 = vmatprep.subr.mxu0 0.0
  %309 = vmatpush1.msra.mxu0 %v108
  %310 = vmatprep.subr.mxu0 0.0
  %311 = vmatpush1.msra.mxu0 %v107
  %312 = vmatprep.subr.mxu0 0.0
  %313 = vmatpush1.msra.mxu0 %v106
  %314 = vmatprep.subr.mxu0 0.0
  %315 = vmatpush1.msra.mxu0 %v105
  %316 = vmatprep.subr.mxu0 0.0
  %317 = vmatpush1.msra.mxu0 %v104
  %318 = vmatprep.subr.mxu0 0.0
  %319 = vmatpush1.msra.mxu0 %v103
  %320 = vmatprep.subr.mxu0 0.0
  %321 = vmatpush1.msra.mxu0 %v102
  %322 = vmatprep.subr.mxu0 0.0
  %323 = vmatpush1.msra.mxu0 %v101
  %324 = vmatprep.subr.mxu0 0.0
  %325 = vmatpush2.msra.mxu0 0.0
  %326 = vmatprep.subr.mxu0 0.0
  %327 = vmatpush2.msra.mxu0 0.0
  %328 = vmatprep.subr.mxu0 0.0
  %329 = vmatpush2.msra.mxu0 0.0
  %330 = vmatprep.subr.mxu0 0.0
  %331 = vmatpush2.msra.mxu0 0.0
  %332 = vmatprep.subr.mxu0 0.0
  %333 = vmatpush2.msra.mxu0 0.0
  %334 = vmatprep.subr.mxu0 0.0
  %335 = vmatpush2.msra.mxu0 0.0
  %336 = vmatprep.subr.mxu0 0.0
  %337 = vmatpush2.msra.mxu0 0.0
  %338 = vmatprep.subr.mxu0 0.0
  %339 = vmatpush2.msra.mxu0 0.0
  %340 = vmatprep.subr.mxu0 0.0
  %341 = vmatpush2.msra.mxu0 0.0
  %342 = vmatprep.subr.mxu0 0.0
  %343 = vmatpush2.msra.mxu0 0.0
  %344 = vmatprep.subr.mxu0 0.0
  %345 = vmatpush2.msra.mxu0 0.0
  %346 = vmatprep.subr.mxu0 0.0
  %347 = vmatpush2.msra.mxu0 0.0
  %348 = vmatprep.subr.mxu0 0.0
  %349 = vmatpush2.msra.mxu0 0.0
  %350 = vmatprep.subr.mxu0 0.0
  %351 = vmatpush2.msra.mxu0 0.0
  %352 = vmatprep.subr.mxu0 0.0
  %353 = vmatpush2.msra.mxu0 0.0
  %354 = vmatprep.subr.mxu0 0.0
  %355 = vmatpush2.msra.mxu0 0.0
  %356 = vmatprep.mubr.f32.mxu0 0.0
  %357 = vmatmul.mubr.f32.gmra.mxu0 %v111
  %v358 = vpop.f32.mrf.mxu0
  %v359 = vadd.f32 %v274, %v358
  %v360 = vpop.f32.mrf.mxu0
  %361 = vmatprep.mubr.f32.mxu0 0.0
  %362 = vmatmul.mubr.f32.gmra.mxu0 %v114
  %v363 = vpop.f32.mrf.mxu0
  %v364 = vadd.f32 %v279, %v363
  %v365 = vpop.f32.mrf.mxu0
  %366 = vmatprep.mubr.f32.mxu0 0.0
  %367 = vmatmul.mubr.f32.gmra.mxu0 %v117
  %v368 = vpop.f32.mrf.mxu0
  %v369 = vadd.f32 %v284, %v368
  %v370 = vpop.f32.mrf.mxu0
  %371 = vmatprep.mubr.f32.mxu0 0.0
  %372 = vmatmul.mubr.f32.gmra.mxu0 %v120
  %v373 = vpop.f32.mrf.mxu0
  %v374 = vadd.f32 %v289, %v373
  %v375 = vpop.f32.mrf.mxu0
  %376 = vdwg.mxu0
  %v377 = vld [vmem:[%s2] sm:$0x1]
  %v379 = vlaneseq
  %v380 = vshrl.u32 %v379, 7
  %v381 = vsub.s32 0, %v380
  %v382 = vrot.slane %v377, %v381
  %v384 = vmul.f32 %v359, %v382
  %v385 = vmul.f32 %v364, %v382
  %v386 = vmul.f32 %v369, %v382
  %v387 = vmul.f32 %v374, %v382
  %v388 = vld [vmem:[%s3] sm:$0x1]
  %v390 = vlaneseq
  %v391 = vshrl.u32 %v390, 7
  %v392 = vsub.s32 0, %v391
  %v393 = vrot.slane %v388, %v392
  %v395 = vadd.f32 %v384, %v393
  %v396 = vadd.f32 %v385, %v393
  %v397 = vadd.f32 %v386, %v393
  %v398 = vadd.f32 %v387, %v393
  %v399 = vmax.f32 %v395, 0.0
  %v400 = vmax.f32 %v396, 0.0
  %v401 = vmax.f32 %v397, 0.0
  %v402 = vmax.f32 %v398, 0.0
  %v403 = vmin.f32 %v399, 20.0
  %v404 = vmin.f32 %v400, 20.0
  %v405 = vmin.f32 %v401, 20.0
  %v406 = vmin.f32 %v402, 20.0
  %407 = vst.msk [vmem:[%s4] sm:$0xff] %vm109, %v403
  %408 = vst.msk [vmem:[%s4 + $0x8] sm:$0xff] %vm109, %v404
  %409 = vst.msk [vmem:[%s4 + $0x10] sm:$0xff] %vm109, %v405
  %410 = vst.msk [vmem:[%s4 + $0x18] sm:$0xff] %vm109, %v406
  // Predicated region
  $region18: #{_lambda_.56} parent=0 // pred_check
    _
  $region19: #{_lambda_.56} parent=0 // pred_check_branch
    %412 = sbr.rel (0) target = $region21
  $region20: #{_lambda_.56} parent=0 // pred_region
    _
  $region21: #{_lambda_.56} parent=0 // pred_fallthru
    _
  // Predicated region
  $region22: #{_lambda_.56} parent=0 // pred_check
    _
  $region23: #{_lambda_.56} parent=0 // pred_check_branch
    %414 = sbr.rel (0) target = $region25
  $region24: #{_lambda_.56} parent=0 // pred_region
    _
  $region25: #{_lambda_.56} parent=0 // pred_fallthru
    _

// kernel: _lambda_.66
$region0: #{_lambda_.66}
  #allocation0 [shape = 'u32[]', space=smem, size = 0x4, offset = 0x4, fixed_abs, tag = 'smem constant byte address 0x4 - core index']
  #allocation1 [shape = 'u32[144,128]{1,0:T(1,128)}', space=vmem, size = 0x12000, scoped, tag = 'internal scratch']
  %s0 = inlined_call_operand.vmem [shape: f32[8,576], index: 0, kind: input, shape index: {}]
  %s1 = inlined_call_operand.vmem [shape: f32[576,128], index: 1, kind: input, shape index: {}]
  %s2 = inlined_call_operand.vmem [shape: f32[1,128], index: 2, kind: input, shape index: {}]
  %s3 = inlined_call_operand.vmem [shape: f32[1,128], index: 3, kind: input, shape index: {}]
  %s4 = inlined_call_operand.vmem [shape: f32[8,128], index: 4, kind: output, shape index: {}]
  %s5 = sld [smem:[#allocation0]]
  $region26: #{_lambda_.66} parent=0
    _
  %s7 = ssub.s32 1, %s5
  %s8 = scalar_select 0, %s7, %s5
  // Predicated region
  $region2: #{_lambda_.66} parent=0 // pred_check
    _
  $region3: #{_lambda_.66} parent=0 // pred_check_branch
    %10 = sbr.rel (0) target = $region5
  $region4: #{_lambda_.66} parent=0 // pred_region
    _
  $region5: #{_lambda_.66} parent=0 // pred_fallthru
    _
  // Predicated region
  $region6: #{_lambda_.66} parent=0 // pred_check
    _
  $region7: #{_lambda_.66} parent=0 // pred_check_branch
    %12 = sbr.rel (0) target = $region9
  $region8: #{_lambda_.66} parent=0 // pred_region
    _
  $region9: #{_lambda_.66} parent=0 // pred_fallthru
    _
  // Predicated region
  $region10: #{_lambda_.66} parent=0 // pred_check
    _
  $region11: #{_lambda_.66} parent=0 // pred_check_branch
    %14 = sbr.rel (0) target = $region13
  $region12: #{_lambda_.66} parent=0 // pred_region
    _
  $region13: #{_lambda_.66} parent=0 // pred_fallthru
    _
  // Predicated region
  $region14: #{_lambda_.66} parent=0 // pred_check
    _
  $region15: #{_lambda_.66} parent=0 // pred_check_branch
    %16 = sbr.rel (0) target = $region17
  $region16: #{_lambda_.66} parent=0 // pred_region
    _
  $region17: #{_lambda_.66} parent=0 // pred_fallthru
    _
  %v17 = vld [vmem:[%s0] sm:$0xff]
  %v18 = vld [vmem:[%s0 + $0x8] sm:$0xff]
  %v19 = vld [vmem:[%s0 + $0x10] sm:$0xff]
  %v20 = vld [vmem:[%s0 + $0x18] sm:$0xff]
  %v21 = vld [vmem:[%s0 + $0x20] sm:$0xff]
  %v22 = vld [vmem:[%s1] sm:$0xff]
  %v23 = vld [vmem:[%s1 + $0x8] sm:$0xff]
  %v24 = vld [vmem:[%s1 + $0x10] sm:$0xff]
  %v25 = vld [vmem:[%s1 + $0x18] sm:$0xff]
  %v26 = vld [vmem:[%s1 + $0x20] sm:$0xff]
  %v27 = vld [vmem:[%s1 + $0x28] sm:$0xff]
  %v28 = vld [vmem:[%s1 + $0x30] sm:$0xff]
  %v29 = vld [vmem:[%s1 + $0x38] sm:$0xff]
  %v30 = vld [vmem:[%s1 + $0x40] sm:$0xff]
  %v31 = vld [vmem:[%s1 + $0x48] sm:$0xff]
  %v32 = vld [vmem:[%s1 + $0x50] sm:$0xff]
  %v33 = vld [vmem:[%s1 + $0x58] sm:$0xff]
  %v34 = vld [vmem:[%s1 + $0x60] sm:$0xff]
  %v35 = vld [vmem:[%s1 + $0x68] sm:$0xff]
  %v36 = vld [vmem:[%s1 + $0x70] sm:$0xff]
  %v37 = vld [vmem:[%s1 + $0x78] sm:$0xff]
  %v38 = vld [vmem:[%s1 + $0x80] sm:$0xff]
  %v39 = vld [vmem:[%s1 + $0x88] sm:$0xff]
  %v40 = vld [vmem:[%s1 + $0x90] sm:$0xff]
  %v41 = vld [vmem:[%s1 + $0x98] sm:$0xff]
  %v42 = vld [vmem:[%s1 + $0xa0] sm:$0xff]
  %v43 = vld [vmem:[%s1 + $0xa8] sm:$0xff]
  %v44 = vld [vmem:[%s1 + $0xb0] sm:$0xff]
  %v45 = vld [vmem:[%s1 + $0xb8] sm:$0xff]
  %v46 = vld [vmem:[%s1 + $0xc0] sm:$0xff]
  %v47 = vld [vmem:[%s1 + $0xc8] sm:$0xff]
  %v48 = vld [vmem:[%s1 + $0xd0] sm:$0xff]
  %v49 = vld [vmem:[%s1 + $0xd8] sm:$0xff]
  %v50 = vld [vmem:[%s1 + $0xe0] sm:$0xff]
  %v51 = vld [vmem:[%s1 + $0xe8] sm:$0xff]
  %v52 = vld [vmem:[%s1 + $0xf0] sm:$0xff]
  %v53 = vld [vmem:[%s1 + $0xf8] sm:$0xff]
  %v54 = vld [vmem:[%s1 + $0x100] sm:$0xff]
  %v55 = vld [vmem:[%s1 + $0x108] sm:$0xff]
  %v56 = vld [vmem:[%s1 + $0x110] sm:$0xff]
  %v57 = vld [vmem:[%s1 + $0x118] sm:$0xff]
  %v58 = vld [vmem:[%s1 + $0x120] sm:$0xff]
  %v59 = vld [vmem:[%s1 + $0x128] sm:$0xff]
  %v60 = vld [vmem:[%s1 + $0x130] sm:$0xff]
  %v61 = vld [vmem:[%s1 + $0x138] sm:$0xff]
  %v62 = vld [vmem:[%s1 + $0x140] sm:$0xff]
  %v63 = vld [vmem:[%s1 + $0x148] sm:$0xff]
  %v64 = vld [vmem:[%s1 + $0x150] sm:$0xff]
  %v65 = vld [vmem:[%s1 + $0x158] sm:$0xff]
  %v66 = vld [vmem:[%s1 + $0x160] sm:$0xff]
  %v67 = vld [vmem:[%s1 + $0x168] sm:$0xff]
  %v68 = vld [vmem:[%s1 + $0x170] sm:$0xff]
  %v69 = vld [vmem:[%s1 + $0x178] sm:$0xff]
  %v70 = vld [vmem:[%s1 + $0x180] sm:$0xff]
  %v71 = vld [vmem:[%s1 + $0x188] sm:$0xff]
  %v72 = vld [vmem:[%s1 + $0x190] sm:$0xff]
  %v73 = vld [vmem:[%s1 + $0x198] sm:$0xff]
  %v74 = vld [vmem:[%s1 + $0x1a0] sm:$0xff]
  %v75 = vld [vmem:[%s1 + $0x1a8] sm:$0xff]
  %v76 = vld [vmem:[%s1 + $0x1b0] sm:$0xff]
  %v77 = vld [vmem:[%s1 + $0x1b8] sm:$0xff]
  %v78 = vld [vmem:[%s1 + $0x1c0] sm:$0xff]
  %v79 = vld [vmem:[%s1 + $0x1c8] sm:$0xff]
  %v80 = vld [vmem:[%s1 + $0x1d0] sm:$0xff]
  %v81 = vld [vmem:[%s1 + $0x1d8] sm:$0xff]
  %v82 = vld [vmem:[%s1 + $0x1e0] sm:$0xff]
  %v83 = vld [vmem:[%s1 + $0x1e8] sm:$0xff]
  %v84 = vld [vmem:[%s1 + $0x1f0] sm:$0xff]
  %v85 = vld [vmem:[%s1 + $0x1f8] sm:$0xff]
  %v86 = vld [vmem:[%s1 + $0x200] sm:$0xff]
  %v87 = vld [vmem:[%s1 + $0x208] sm:$0xff]
  %v88 = vld [vmem:[%s1 + $0x210] sm:$0xff]
  %v89 = vld [vmem:[%s1 + $0x218] sm:$0xff]
  %v90 = vld [vmem:[%s1 + $0x220] sm:$0xff]
  %v91 = vld [vmem:[%s1 + $0x228] sm:$0xff]
  %v92 = vld [vmem:[%s1 + $0x230] sm:$0xff]
  %v93 = vld [vmem:[%s1 + $0x238] sm:$0xff]
  %vm94 = vcmask 523264
  %v96 = vsel %vm94, %v21, 0
  %98 = vmatprep.subr.mxu0 0.0
  %99 = vmatpush1.msra.mxu0 %v37
  %100 = vmatprep.subr.mxu0 0.0
  %101 = vmatpush1.msra.mxu0 %v36
  %102 = vmatprep.subr.mxu0 0.0
  %103 = vmatpush1.msra.mxu0 %v35
  %104 = vmatprep.subr.mxu0 0.0
  %105 = vmatpush1.msra.mxu0 %v34
  %106 = vmatprep.subr.mxu0 0.0
  %107 = vmatpush1.msra.mxu0 %v33
  %108 = vmatprep.subr.mxu0 0.0
  %109 = vmatpush1.msra.mxu0 %v32
  %110 = vmatprep.subr.mxu0 0.0
  %111 = vmatpush1.msra.mxu0 %v31
  %112 = vmatprep.subr.mxu0 0.0
  %113 = vmatpush1.msra.mxu0 %v30
  %114 = vmatprep.subr.mxu0 0.0
  %115 = vmatpush1.msra.mxu0 %v29
  %116 = vmatprep.subr.mxu0 0.0
  %117 = vmatpush1.msra.mxu0 %v28
  %118 = vmatprep.subr.mxu0 0.0
  %119 = vmatpush1.msra.mxu0 %v27
  %120 = vmatprep.subr.mxu0 0.0
  %121 = vmatpush1.msra.mxu0 %v26
  %122 = vmatprep.subr.mxu0 0.0
  %123 = vmatpush1.msra.mxu0 %v25
  %124 = vmatprep.subr.mxu0 0.0
  %125 = vmatpush1.msra.mxu0 %v24
  %126 = vmatprep.subr.mxu0 0.0
  %127 = vmatpush1.msra.mxu0 %v23
  %128 = vmatprep.subr.mxu0 0.0
  %129 = vmatpush1.msra.mxu0 %v22
  %130 = vmatprep.subr.mxu0 0.0
  %131 = vmatpush2.msra.mxu0 %v53
  %132 = vmatprep.subr.mxu0 0.0
  %133 = vmatpush2.msra.mxu0 %v52
  %134 = vmatprep.subr.mxu0 0.0
  %135 = vmatpush2.msra.mxu0 %v51
  %136 = vmatprep.subr.mxu0 0.0
  %137 = vmatpush2.msra.mxu0 %v50
  %138 = vmatprep.subr.mxu0 0.0
  %139 = vmatpush2.msra.mxu0 %v49
  %140 = vmatprep.subr.mxu0 0.0
  %141 = vmatpush2.msra.mxu0 %v48
  %142 = vmatprep.subr.mxu0 0.0
  %143 = vmatpush2.msra.mxu0 %v47
  %144 = vmatprep.subr.mxu0 0.0
  %145 = vmatpush2.msra.mxu0 %v46
  %146 = vmatprep.subr.mxu0 0.0
  %147 = vmatpush2.msra.mxu0 %v45
  %148 = vmatprep.subr.mxu0 0.0
  %149 = vmatpush2.msra.mxu0 %v44
  %150 = vmatprep.subr.mxu0 0.0
  %151 = vmatpush2.msra.mxu0 %v43
  %152 = vmatprep.subr.mxu0 0.0
  %153 = vmatpush2.msra.mxu0 %v42
  %154 = vmatprep.subr.mxu0 0.0
  %155 = vmatpush2.msra.mxu0 %v41
  %156 = vmatprep.subr.mxu0 0.0
  %157 = vmatpush2.msra.mxu0 %v40
  %158 = vmatprep.subr.mxu0 0.0
  %159 = vmatpush2.msra.mxu0 %v39
  %160 = vmatprep.subr.mxu0 0.0
  %161 = vmatpush2.msra.mxu0 %v38
  %162 = vmatprep.mubr.f32.mxu0 %v18
  %163 = vmatmul.mubr.f32.gmra.mxu0 %v17
  %v164 = vpop.f32.mrf.mxu0
  %v165 = vadd.f32 0.0, %v164
  %v166 = vpop.f32.mrf.mxu0
  %167 = vdwg.mxu0
  %168 = vmatprep.subr.mxu0 0.0
  %169 = vmatpush1.msra.mxu0 %v69
  %170 = vmatprep.subr.mxu0 0.0
  %171 = vmatpush1.msra.mxu0 %v68
  %172 = vmatprep.subr.mxu0 0.0
  %173 = vmatpush1.msra.mxu0 %v67
  %174 = vmatprep.subr.mxu0 0.0
  %175 = vmatpush1.msra.mxu0 %v66
  %176 = vmatprep.subr.mxu0 0.0
  %177 = vmatpush1.msra.mxu0 %v65
  %178 = vmatprep.subr.mxu0 0.0
  %179 = vmatpush1.msra.mxu0 %v64
  %180 = vmatprep.subr.mxu0 0.0
  %181 = vmatpush1.msra.mxu0 %v63
  %182 = vmatprep.subr.mxu0 0.0
  %183 = vmatpush1.msra.mxu0 %v62
  %184 = vmatprep.subr.mxu0 0.0
  %185 = vmatpush1.msra.mxu0 %v61
  %186 = vmatprep.subr.mxu0 0.0
  %187 = vmatpush1.msra.mxu0 %v60
  %188 = vmatprep.subr.mxu0 0.0
  %189 = vmatpush1.msra.mxu0 %v59
  %190 = vmatprep.subr.mxu0 0.0
  %191 = vmatpush1.msra.mxu0 %v58
  %192 = vmatprep.subr.mxu0 0.0
  %193 = vmatpush1.msra.mxu0 %v57
  %194 = vmatprep.subr.mxu0 0.0
  %195 = vmatpush1.msra.mxu0 %v56
  %196 = vmatprep.subr.mxu0 0.0
  %197 = vmatpush1.msra.mxu0 %v55
  %198 = vmatprep.subr.mxu0 0.0
  %199 = vmatpush1.msra.mxu0 %v54
  %200 = vmatprep.subr.mxu0 0.0
  %201 = vmatpush2.msra.mxu0 %v85
  %202 = vmatprep.subr.mxu0 0.0
  %203 = vmatpush2.msra.mxu0 %v84
  %204 = vmatprep.subr.mxu0 0.0
  %205 = vmatpush2.msra.mxu0 %v83
  %206 = vmatprep.subr.mxu0 0.0
  %207 = vmatpush2.msra.mxu0 %v82
  %208 = vmatprep.subr.mxu0 0.0
  %209 = vmatpush2.msra.mxu0 %v81
  %210 = vmatprep.subr.mxu0 0.0
  %211 = vmatpush2.msra.mxu0 %v80
  %212 = vmatprep.subr.mxu0 0.0
  %213 = vmatpush2.msra.mxu0 %v79
  %214 = vmatprep.subr.mxu0 0.0
  %215 = vmatpush2.msra.mxu0 %v78
  %216 = vmatprep.subr.mxu0 0.0
  %217 = vmatpush2.msra.mxu0 %v77
  %218 = vmatprep.subr.mxu0 0.0
  %219 = vmatpush2.msra.mxu0 %v76
  %220 = vmatprep.subr.mxu0 0.0
  %221 = vmatpush2.msra.mxu0 %v75
  %222 = vmatprep.subr.mxu0 0.0
  %223 = vmatpush2.msra.mxu0 %v74
  %224 = vmatprep.subr.mxu0 0.0
  %225 = vmatpush2.msra.mxu0 %v73
  %226 = vmatprep.subr.mxu0 0.0
  %227 = vmatpush2.msra.mxu0 %v72
  %228 = vmatprep.subr.mxu0 0.0
  %229 = vmatpush2.msra.mxu0 %v71
  %230 = vmatprep.subr.mxu0 0.0
  %231 = vmatpush2.msra.mxu0 %v70
  %232 = vmatprep.mubr.f32.mxu0 %v20
  %233 = vmatmul.mubr.f32.gmra.mxu0 %v19
  %v234 = vpop.f32.mrf.mxu0
  %v235 = vadd.f32 %v165, %v234
  %v236 = vpop.f32.mrf.mxu0
  %237 = vdwg.mxu0
  %238 = vmatprep.subr.mxu0 0.0
  %239 = vmatpush1.msra.mxu0 0.0
  %240 = vmatprep.subr.mxu0 0.0
  %241 = vmatpush1.msra.mxu0 0.0
  %242 = vmatprep.subr.mxu0 0.0
  %243 = vmatpush1.msra.mxu0 0.0
  %244 = vmatprep.subr.mxu0 0.0
  %245 = vmatpush1.msra.mxu0 0.0
  %246 = vmatprep.subr.mxu0 0.0
  %247 = vmatpush1.msra.mxu0 0.0
  %248 = vmatprep.subr.mxu0 0.0
  %249 = vmatpush1.msra.mxu0 0.0
  %250 = vmatprep.subr.mxu0 0.0
  %251 = vmatpush1.msra.mxu0 0.0
  %252 = vmatprep.subr.mxu0 0.0
  %253 = vmatpush1.msra.mxu0 0.0
  %254 = vmatprep.subr.mxu0 0.0
  %255 = vmatpush1.msra.mxu0 %v93
  %256 = vmatprep.subr.mxu0 0.0
  %257 = vmatpush1.msra.mxu0 %v92
  %258 = vmatprep.subr.mxu0 0.0
  %259 = vmatpush1.msra.mxu0 %v91
  %260 = vmatprep.subr.mxu0 0.0
  %261 = vmatpush1.msra.mxu0 %v90
  %262 = vmatprep.subr.mxu0 0.0
  %263 = vmatpush1.msra.mxu0 %v89
  %264 = vmatprep.subr.mxu0 0.0
  %265 = vmatpush1.msra.mxu0 %v88
  %266 = vmatprep.subr.mxu0 0.0
  %267 = vmatpush1.msra.mxu0 %v87
  %268 = vmatprep.subr.mxu0 0.0
  %269 = vmatpush1.msra.mxu0 %v86
  %270 = vmatprep.subr.mxu0 0.0
  %271 = vmatpush2.msra.mxu0 0.0
  %272 = vmatprep.subr.mxu0 0.0
  %273 = vmatpush2.msra.mxu0 0.0
  %274 = vmatprep.subr.mxu0 0.0
  %275 = vmatpush2.msra.mxu0 0.0
  %276 = vmatprep.subr.mxu0 0.0
  %277 = vmatpush2.msra.mxu0 0.0
  %278 = vmatprep.subr.mxu0 0.0
  %279 = vmatpush2.msra.mxu0 0.0
  %280 = vmatprep.subr.mxu0 0.0
  %281 = vmatpush2.msra.mxu0 0.0
  %282 = vmatprep.subr.mxu0 0.0
  %283 = vmatpush2.msra.mxu0 0.0
  %284 = vmatprep.subr.mxu0 0.0
  %285 = vmatpush2.msra.mxu0 0.0
  %286 = vmatprep.subr.mxu0 0.0
  %287 = vmatpush2.msra.mxu0 0.0
  %288 = vmatprep.subr.mxu0 0.0
  %289 = vmatpush2.msra.mxu0 0.0
  %290 = vmatprep.subr.mxu0 0.0
  %291 = vmatpush2.msra.mxu0 0.0
  %292 = vmatprep.subr.mxu0 0.0
  %293 = vmatpush2.msra.mxu0 0.0
  %294 = vmatprep.subr.mxu0 0.0
  %295 = vmatpush2.msra.mxu0 0.0
  %296 = vmatprep.subr.mxu0 0.0
  %297 = vmatpush2.msra.mxu0 0.0
  %298 = vmatprep.subr.mxu0 0.0
  %299 = vmatpush2.msra.mxu0 0.0
  %300 = vmatprep.subr.mxu0 0.0
  %301 = vmatpush2.msra.mxu0 0.0
  %302 = vmatprep.mubr.f32.mxu0 0.0
  %303 = vmatmul.mubr.f32.gmra.mxu0 %v96
  %v304 = vpop.f32.mrf.mxu0
  %v305 = vadd.f32 %v235, %v304
  %v306 = vpop.f32.mrf.mxu0
  %307 = vdwg.mxu0
  %v308 = vld [vmem:[%s2] sm:$0x1]
  %v310 = vlaneseq
  %v311 = vshrl.u32 %v310, 7
  %v312 = vsub.s32 0, %v311
  %v313 = vrot.slane %v308, %v312
  %v315 = vmul.f32 %v305, %v313
  %v316 = vld [vmem:[%s3] sm:$0x1]
  %v318 = vlaneseq
  %v319 = vshrl.u32 %v318, 7
  %v320 = vsub.s32 0, %v319
  %v321 = vrot.slane %v316, %v320
  %v323 = vadd.f32 %v315, %v321
  %v324 = vmax.f32 %v323, 0.0
  %v325 = vmin.f32 %v324, 20.0
  %326 = vst [vmem:[%s4] sm:$0xff] %v325
  // Predicated region
  $region18: #{_lambda_.66} parent=0 // pred_check
    _
  $region19: #{_lambda_.66} parent=0 // pred_check_branch
    %328 = sbr.rel (0) target = $region21
  $region20: #{_lambda_.66} parent=0 // pred_region
    _
  $region21: #{_lambda_.66} parent=0 // pred_fallthru
    _
  // Predicated region
  $region22: #{_lambda_.66} parent=0 // pred_check
    _
  $region23: #{_lambda_.66} parent=0 // pred_check_branch
    %330 = sbr.rel (0) target = $region25
  $region24: #{_lambda_.66} parent=0 // pred_region
    _
  $region25: #{_lambda_.66} parent=0 // pred_fallthru
    _

// kernel: _lambda_.67
$region0: #{_lambda_.67}
  #allocation0 [shape = 'u32[]', space=smem, size = 0x4, offset = 0x4, fixed_abs, tag = 'smem constant byte address 0x4 - core index']
  #allocation1 [shape = 'u32[144,128]{1,0:T(1,128)}', space=vmem, size = 0x12000, scoped, tag = 'internal scratch']
  %s0 = inlined_call_operand.vmem [shape: f32[8,64], index: 0, kind: input, shape index: {}]
  %s1 = inlined_call_operand.vmem [shape: f32[64,128], index: 1, kind: input, shape index: {}]
  %s2 = inlined_call_operand.vmem [shape: f32[1,128], index: 2, kind: input, shape index: {}]
  %s3 = inlined_call_operand.vmem [shape: f32[1,128], index: 3, kind: input, shape index: {}]
  %s4 = inlined_call_operand.vmem [shape: f32[8,128], index: 4, kind: output, shape index: {}]
  %s5 = sld [smem:[#allocation0]]
  $region26: #{_lambda_.67} parent=0
    _
  %s7 = ssub.s32 1, %s5
  %s8 = scalar_select 0, %s7, %s5
  // Predicated region
  $region2: #{_lambda_.67} parent=0 // pred_check
    _
  $region3: #{_lambda_.67} parent=0 // pred_check_branch
    %10 = sbr.rel (0) target = $region5
  $region4: #{_lambda_.67} parent=0 // pred_region
    _
  $region5: #{_lambda_.67} parent=0 // pred_fallthru
    _
  // Predicated region
  $region6: #{_lambda_.67} parent=0 // pred_check
    _
  $region7: #{_lambda_.67} parent=0 // pred_check_branch
    %12 = sbr.rel (0) target = $region9
  $region8: #{_lambda_.67} parent=0 // pred_region
    _
  $region9: #{_lambda_.67} parent=0 // pred_fallthru
    _
  // Predicated region
  $region10: #{_lambda_.67} parent=0 // pred_check
    _
  $region11: #{_lambda_.67} parent=0 // pred_check_branch
    %14 = sbr.rel (0) target = $region13
  $region12: #{_lambda_.67} parent=0 // pred_region
    _
  $region13: #{_lambda_.67} parent=0 // pred_fallthru
    _
  // Predicated region
  $region14: #{_lambda_.67} parent=0 // pred_check
    _
  $region15: #{_lambda_.67} parent=0 // pred_check_branch
    %16 = sbr.rel (0) target = $region17
  $region16: #{_lambda_.67} parent=0 // pred_region
    _
  $region17: #{_lambda_.67} parent=0 // pred_fallthru
    _
  %v17 = vld [vmem:[%s0] sm:$0xff]
  %v18 = vld [vmem:[%s1] sm:$0xff]
  %v19 = vld [vmem:[%s1 + $0x8] sm:$0xff]
  %v20 = vld [vmem:[%s1 + $0x10] sm:$0xff]
  %v21 = vld [vmem:[%s1 + $0x18] sm:$0xff]
  %v22 = vld [vmem:[%s1 + $0x20] sm:$0xff]
  %v23 = vld [vmem:[%s1 + $0x28] sm:$0xff]
  %v24 = vld [vmem:[%s1 + $0x30] sm:$0xff]
  %v25 = vld [vmem:[%s1 + $0x38] sm:$0xff]
  %vm26 = vcmask 523264
  %v28 = vsel %vm26, %v17, 0
  %30 = vmatprep.subr.mxu0 0.0
  %31 = vmatpush1.msra.mxu0 0.0
  %32 = vmatprep.subr.mxu0 0.0
  %33 = vmatpush1.msra.mxu0 0.0
  %34 = vmatprep.subr.mxu0 0.0
  %35 = vmatpush1.msra.mxu0 0.0
  %36 = vmatprep.subr.mxu0 0.0
  %37 = vmatpush1.msra.mxu0 0.0
  %38 = vmatprep.subr.mxu0 0.0
  %39 = vmatpush1.msra.mxu0 0.0
  %40 = vmatprep.subr.mxu0 0.0
  %41 = vmatpush1.msra.mxu0 0.0
  %42 = vmatprep.subr.mxu0 0.0
  %43 = vmatpush1.msra.mxu0 0.0
  %44 = vmatprep.subr.mxu0 0.0
  %45 = vmatpush1.msra.mxu0 0.0
  %46 = vmatprep.subr.mxu0 0.0
  %47 = vmatpush1.msra.mxu0 %v25
  %48 = vmatprep.subr.mxu0 0.0
  %49 = vmatpush1.msra.mxu0 %v24
  %50 = vmatprep.subr.mxu0 0.0
  %51 = vmatpush1.msra.mxu0 %v23
  %52 = vmatprep.subr.mxu0 0.0
  %53 = vmatpush1.msra.mxu0 %v22
  %54 = vmatprep.subr.mxu0 0.0
  %55 = vmatpush1.msra.mxu0 %v21
  %56 = vmatprep.subr.mxu0 0.0
  %57 = vmatpush1.msra.mxu0 %v20
  %58 = vmatprep.subr.mxu0 0.0
  %59 = vmatpush1.msra.mxu0 %v19
  %60 = vmatprep.subr.mxu0 0.0
  %61 = vmatpush1.msra.mxu0 %v18
  %62 = vmatprep.subr.mxu0 0.0
  %63 = vmatpush2.msra.mxu0 0.0
  %64 = vmatprep.subr.mxu0 0.0
  %65 = vmatpush2.msra.mxu0 0.0
  %66 = vmatprep.subr.mxu0 0.0
  %67 = vmatpush2.msra.mxu0 0.0
  %68 = vmatprep.subr.mxu0 0.0
  %69 = vmatpush2.msra.mxu0 0.0
  %70 = vmatprep.subr.mxu0 0.0
  %71 = vmatpush2.msra.mxu0 0.0
  %72 = vmatprep.subr.mxu0 0.0
  %73 = vmatpush2.msra.mxu0 0.0
  %74 = vmatprep.subr.mxu0 0.0
  %75 = vmatpush2.msra.mxu0 0.0
  %76 = vmatprep.subr.mxu0 0.0
  %77 = vmatpush2.msra.mxu0 0.0
  %78 = vmatprep.subr.mxu0 0.0
  %79 = vmatpush2.msra.mxu0 0.0
  %80 = vmatprep.subr.mxu0 0.0
  %81 = vmatpush2.msra.mxu0 0.0
  %82 = vmatprep.subr.mxu0 0.0
  %83 = vmatpush2.msra.mxu0 0.0
  %84 = vmatprep.subr.mxu0 0.0
  %85 = vmatpush2.msra.mxu0 0.0
  %86 = vmatprep.subr.mxu0 0.0
  %87 = vmatpush2.msra.mxu0 0.0
  %88 = vmatprep.subr.mxu0 0.0
  %89 = vmatpush2.msra.mxu0 0.0
  %90 = vmatprep.subr.mxu0 0.0
  %91 = vmatpush2.msra.mxu0 0.0
  %92 = vmatprep.subr.mxu0 0.0
  %93 = vmatpush2.msra.mxu0 0.0
  %94 = vmatprep.mubr.f32.mxu0 0.0
  %95 = vmatmul.mubr.f32.gmra.mxu0 %v28
  %v96 = vpop.f32.mrf.mxu0
  %v97 = vadd.f32 0.0, %v96
  %v98 = vpop.f32.mrf.mxu0
  %99 = vdwg.mxu0
  %v100 = vld [vmem:[%s2] sm:$0x1]
  %v102 = vlaneseq
  %v103 = vshrl.u32 %v102, 7
  %v104 = vsub.s32 0, %v103
  %v105 = vrot.slane %v100, %v104
  %v107 = vmul.f32 %v97, %v105
  %v108 = vld [vmem:[%s3] sm:$0x1]
  %v110 = vlaneseq
  %v111 = vshrl.u32 %v110, 7
  %v112 = vsub.s32 0, %v111
  %v113 = vrot.slane %v108, %v112
  %v115 = vadd.f32 %v107, %v113
  %116 = vst [vmem:[%s4] sm:$0xff] %v115
  // Predicated region
  $region18: #{_lambda_.67} parent=0 // pred_check
    _
  $region19: #{_lambda_.67} parent=0 // pred_check_branch
    %118 = sbr.rel (0) target = $region21
  $region20: #{_lambda_.67} parent=0 // pred_region
    _
  $region21: #{_lambda_.67} parent=0 // pred_fallthru
    _
  // Predicated region
  $region22: #{_lambda_.67} parent=0 // pred_check
    _
  $region23: #{_lambda_.67} parent=0 // pred_check_branch
    %120 = sbr.rel (0) target = $region25
  $region24: #{_lambda_.67} parent=0 // pred_region
    _
  $region25: #{_lambda_.67} parent=0 // pred_fallthru
    _

// kernel: _lambda_.69
$region0: #{_lambda_.69}
  #allocation0 [shape = 'u32[]', space=smem, size = 0x4, offset = 0x4, fixed_abs, tag = 'smem constant byte address 0x4 - core index']
  #allocation1 [shape = 'u32[144,128]{1,0:T(1,128)}', space=vmem, size = 0x12000, scoped, tag = 'internal scratch']
  %s0 = inlined_call_operand.vmem [shape: f32[8,1152], index: 0, kind: input, shape index: {}]
  %s1 = inlined_call_operand.vmem [shape: f32[1152,128], index: 1, kind: input, shape index: {}]
  %s2 = inlined_call_operand.vmem [shape: f32[1,128], index: 2, kind: input, shape index: {}]
  %s3 = inlined_call_operand.vmem [shape: f32[1,128], index: 3, kind: input, shape index: {}]
  %s4 = inlined_call_operand.vmem [shape: f32[8,128], index: 4, kind: output, shape index: {}]
  %s5 = sld [smem:[#allocation0]]
  $region26: #{_lambda_.69} parent=0
    _
  %s7 = ssub.s32 1, %s5
  %s8 = scalar_select 0, %s7, %s5
  // Predicated region
  $region2: #{_lambda_.69} parent=0 // pred_check
    _
  $region3: #{_lambda_.69} parent=0 // pred_check_branch
    %10 = sbr.rel (0) target = $region5
  $region4: #{_lambda_.69} parent=0 // pred_region
    _
  $region5: #{_lambda_.69} parent=0 // pred_fallthru
    _
  // Predicated region
  $region6: #{_lambda_.69} parent=0 // pred_check
    _
  $region7: #{_lambda_.69} parent=0 // pred_check_branch
    %12 = sbr.rel (0) target = $region9
  $region8: #{_lambda_.69} parent=0 // pred_region
    _
  $region9: #{_lambda_.69} parent=0 // pred_fallthru
    _
  // Predicated region
  $region10: #{_lambda_.69} parent=0 // pred_check
    _
  $region11: #{_lambda_.69} parent=0 // pred_check_branch
    %14 = sbr.rel (0) target = $region13
  $region12: #{_lambda_.69} parent=0 // pred_region
    _
  $region13: #{_lambda_.69} parent=0 // pred_fallthru
    _
  // Predicated region
  $region14: #{_lambda_.69} parent=0 // pred_check
    _
  $region15: #{_lambda_.69} parent=0 // pred_check_branch
    %16 = sbr.rel (0) target = $region17
  $region16: #{_lambda_.69} parent=0 // pred_region
    _
  $region17: #{_lambda_.69} parent=0 // pred_fallthru
    _
  %v17 = vld [vmem:[%s0] sm:$0xff]
  %v18 = vld [vmem:[%s0 + $0x8] sm:$0xff]
  %v19 = vld [vmem:[%s0 + $0x10] sm:$0xff]
  %v20 = vld [vmem:[%s0 + $0x18] sm:$0xff]
  %v21 = vld [vmem:[%s0 + $0x20] sm:$0xff]
  %v22 = vld [vmem:[%s0 + $0x28] sm:$0xff]
  %v23 = vld [vmem:[%s0 + $0x30] sm:$0xff]
  %v24 = vld [vmem:[%s0 + $0x38] sm:$0xff]
  %v25 = vld [vmem:[%s0 + $0x40] sm:$0xff]
  %v26 = vld [vmem:[%s1] sm:$0xff]
  %v27 = vld [vmem:[%s1 + $0x8] sm:$0xff]
  %v28 = vld [vmem:[%s1 + $0x10] sm:$0xff]
  %v29 = vld [vmem:[%s1 + $0x18] sm:$0xff]
  %v30 = vld [vmem:[%s1 + $0x20] sm:$0xff]
  %v31 = vld [vmem:[%s1 + $0x28] sm:$0xff]
  %v32 = vld [vmem:[%s1 + $0x30] sm:$0xff]
  %v33 = vld [vmem:[%s1 + $0x38] sm:$0xff]
  %v34 = vld [vmem:[%s1 + $0x40] sm:$0xff]
  %v35 = vld [vmem:[%s1 + $0x48] sm:$0xff]
  %v36 = vld [vmem:[%s1 + $0x50] sm:$0xff]
  %v37 = vld [vmem:[%s1 + $0x58] sm:$0xff]
  %v38 = vld [vmem:[%s1 + $0x60] sm:$0xff]
  %v39 = vld [vmem:[%s1 + $0x68] sm:$0xff]
  %v40 = vld [vmem:[%s1 + $0x70] sm:$0xff]
  %v41 = vld [vmem:[%s1 + $0x78] sm:$0xff]
  %v42 = vld [vmem:[%s1 + $0x80] sm:$0xff]
  %v43 = vld [vmem:[%s1 + $0x88] sm:$0xff]
  %v44 = vld [vmem:[%s1 + $0x90] sm:$0xff]
  %v45 = vld [vmem:[%s1 + $0x98] sm:$0xff]
  %v46 = vld [vmem:[%s1 + $0xa0] sm:$0xff]
  %v47 = vld [vmem:[%s1 + $0xa8] sm:$0xff]
  %v48 = vld [vmem:[%s1 + $0xb0] sm:$0xff]
  %v49 = vld [vmem:[%s1 + $0xb8] sm:$0xff]
  %v50 = vld [vmem:[%s1 + $0xc0] sm:$0xff]
  %v51 = vld [vmem:[%s1 + $0xc8] sm:$0xff]
  %v52 = vld [vmem:[%s1 + $0xd0] sm:$0xff]
  %v53 = vld [vmem:[%s1 + $0xd8] sm:$0xff]
  %v54 = vld [vmem:[%s1 + $0xe0] sm:$0xff]
  %v55 = vld [vmem:[%s1 + $0xe8] sm:$0xff]
  %v56 = vld [vmem:[%s1 + $0xf0] sm:$0xff]
  %v57 = vld [vmem:[%s1 + $0xf8] sm:$0xff]
  %v58 = vld [vmem:[%s1 + $0x100] sm:$0xff]
  %v59 = vld [vmem:[%s1 + $0x108] sm:$0xff]
  %v60 = vld [vmem:[%s1 + $0x110] sm:$0xff]
  %v61 = vld [vmem:[%s1 + $0x118] sm:$0xff]
  %v62 = vld [vmem:[%s1 + $0x120] sm:$0xff]
  %v63 = vld [vmem:[%s1 + $0x128] sm:$0xff]
  %v64 = vld [vmem:[%s1 + $0x130] sm:$0xff]
  %v65 = vld [vmem:[%s1 + $0x138] sm:$0xff]
  %v66 = vld [vmem:[%s1 + $0x140] sm:$0xff]
  %v67 = vld [vmem:[%s1 + $0x148] sm:$0xff]
  %v68 = vld [vmem:[%s1 + $0x150] sm:$0xff]
  %v69 = vld [vmem:[%s1 + $0x158] sm:$0xff]
  %v70 = vld [vmem:[%s1 + $0x160] sm:$0xff]
  %v71 = vld [vmem:[%s1 + $0x168] sm:$0xff]
  %v72 = vld [vmem:[%s1 + $0x170] sm:$0xff]
  %v73 = vld [vmem:[%s1 + $0x178] sm:$0xff]
  %v74 = vld [vmem:[%s1 + $0x180] sm:$0xff]
  %v75 = vld [vmem:[%s1 + $0x188] sm:$0xff]
  %v76 = vld [vmem:[%s1 + $0x190] sm:$0xff]
  %v77 = vld [vmem:[%s1 + $0x198] sm:$0xff]
  %v78 = vld [vmem:[%s1 + $0x1a0] sm:$0xff]
  %v79 = vld [vmem:[%s1 + $0x1a8] sm:$0xff]
  %v80 = vld [vmem:[%s1 + $0x1b0] sm:$0xff]
  %v81 = vld [vmem:[%s1 + $0x1b8] sm:$0xff]
  %v82 = vld [vmem:[%s1 + $0x1c0] sm:$0xff]
  %v83 = vld [vmem:[%s1 + $0x1c8] sm:$0xff]
  %v84 = vld [vmem:[%s1 + $0x1d0] sm:$0xff]
  %v85 = vld [vmem:[%s1 + $0x1d8] sm:$0xff]
  %v86 = vld [vmem:[%s1 + $0x1e0] sm:$0xff]
  %v87 = vld [vmem:[%s1 + $0x1e8] sm:$0xff]
  %v88 = vld [vmem:[%s1 + $0x1f0] sm:$0xff]
  %v89 = vld [vmem:[%s1 + $0x1f8] sm:$0xff]
  %v90 = vld [vmem:[%s1 + $0x200] sm:$0xff]
  %v91 = vld [vmem:[%s1 + $0x208] sm:$0xff]
  %v92 = vld [vmem:[%s1 + $0x210] sm:$0xff]
  %v93 = vld [vmem:[%s1 + $0x218] sm:$0xff]
  %v94 = vld [vmem:[%s1 + $0x220] sm:$0xff]
  %v95 = vld [vmem:[%s1 + $0x228] sm:$0xff]
  %v96 = vld [vmem:[%s1 + $0x230] sm:$0xff]
  %v97 = vld [vmem:[%s1 + $0x238] sm:$0xff]
  %v98 = vld [vmem:[%s1 + $0x240] sm:$0xff]
  %v99 = vld [vmem:[%s1 + $0x248] sm:$0xff]
  %v100 = vld [vmem:[%s1 + $0x250] sm:$0xff]
  %v101 = vld [vmem:[%s1 + $0x258] sm:$0xff]
  %v102 = vld [vmem:[%s1 + $0x260] sm:$0xff]
  %v103 = vld [vmem:[%s1 + $0x268] sm:$0xff]
  %v104 = vld [vmem:[%s1 + $0x270] sm:$0xff]
  %v105 = vld [vmem:[%s1 + $0x278] sm:$0xff]
  %v106 = vld [vmem:[%s1 + $0x280] sm:$0xff]
  %v107 = vld [vmem:[%s1 + $0x288] sm:$0xff]
  %v108 = vld [vmem:[%s1 + $0x290] sm:$0xff]
  %v109 = vld [vmem:[%s1 + $0x298] sm:$0xff]
  %v110 = vld [vmem:[%s1 + $0x2a0] sm:$0xff]
  %v111 = vld [vmem:[%s1 + $0x2a8] sm:$0xff]
  %v112 = vld [vmem:[%s1 + $0x2b0] sm:$0xff]
  %v113 = vld [vmem:[%s1 + $0x2b8] sm:$0xff]
  %v114 = vld [vmem:[%s1 + $0x2c0] sm:$0xff]
  %v115 = vld [vmem:[%s1 + $0x2c8] sm:$0xff]
  %v116 = vld [vmem:[%s1 + $0x2d0] sm:$0xff]
  %v117 = vld [vmem:[%s1 + $0x2d8] sm:$0xff]
  %v118 = vld [vmem:[%s1 + $0x2e0] sm:$0xff]
  %v119 = vld [vmem:[%s1 + $0x2e8] sm:$0xff]
  %v120 = vld [vmem:[%s1 + $0x2f0] sm:$0xff]
  %v121 = vld [vmem:[%s1 + $0x2f8] sm:$0xff]
  %v122 = vld [vmem:[%s1 + $0x300] sm:$0xff]
  %v123 = vld [vmem:[%s1 + $0x308] sm:$0xff]
  %v124 = vld [vmem:[%s1 + $0x310] sm:$0xff]
  %v125 = vld [vmem:[%s1 + $0x318] sm:$0xff]
  %v126 = vld [vmem:[%s1 + $0x320] sm:$0xff]
  %v127 = vld [vmem:[%s1 + $0x328] sm:$0xff]
  %v128 = vld [vmem:[%s1 + $0x330] sm:$0xff]
  %v129 = vld [vmem:[%s1 + $0x338] sm:$0xff]
  %v130 = vld [vmem:[%s1 + $0x340] sm:$0xff]
  %v131 = vld [vmem:[%s1 + $0x348] sm:$0xff]
  %v132 = vld [vmem:[%s1 + $0x350] sm:$0xff]
  %v133 = vld [vmem:[%s1 + $0x358] sm:$0xff]
  %v134 = vld [vmem:[%s1 + $0x360] sm:$0xff]
  %v135 = vld [vmem:[%s1 + $0x368] sm:$0xff]
  %v136 = vld [vmem:[%s1 + $0x370] sm:$0xff]
  %v137 = vld [vmem:[%s1 + $0x378] sm:$0xff]
  %v138 = vld [vmem:[%s1 + $0x380] sm:$0xff]
  %v139 = vld [vmem:[%s1 + $0x388] sm:$0xff]
  %v140 = vld [vmem:[%s1 + $0x390] sm:$0xff]
  %v141 = vld [vmem:[%s1 + $0x398] sm:$0xff]
  %v142 = vld [vmem:[%s1 + $0x3a0] sm:$0xff]
  %v143 = vld [vmem:[%s1 + $0x3a8] sm:$0xff]
  %v144 = vld [vmem:[%s1 + $0x3b0] sm:$0xff]
  %v145 = vld [vmem:[%s1 + $0x3b8] sm:$0xff]
  %v146 = vld [vmem:[%s1 + $0x3c0] sm:$0xff]
  %v147 = vld [vmem:[%s1 + $0x3c8] sm:$0xff]
  %v148 = vld [vmem:[%s1 + $0x3d0] sm:$0xff]
  %v149 = vld [vmem:[%s1 + $0x3d8] sm:$0xff]
  %v150 = vld [vmem:[%s1 + $0x3e0] sm:$0xff]
  %v151 = vld [vmem:[%s1 + $0x3e8] sm:$0xff]
  %v152 = vld [vmem:[%s1 + $0x3f0] sm:$0xff]
  %v153 = vld [vmem:[%s1 + $0x3f8] sm:$0xff]
  %v154 = vld [vmem:[%s1 + $0x400] sm:$0xff]
  %v155 = vld [vmem:[%s1 + $0x408] sm:$0xff]
  %v156 = vld [vmem:[%s1 + $0x410] sm:$0xff]
  %v157 = vld [vmem:[%s1 + $0x418] sm:$0xff]
  %v158 = vld [vmem:[%s1 + $0x420] sm:$0xff]
  %v159 = vld [vmem:[%s1 + $0x428] sm:$0xff]
  %v160 = vld [vmem:[%s1 + $0x430] sm:$0xff]
  %v161 = vld [vmem:[%s1 + $0x438] sm:$0xff]
  %v162 = vld [vmem:[%s1 + $0x440] sm:$0xff]
  %v163 = vld [vmem:[%s1 + $0x448] sm:$0xff]
  %v164 = vld [vmem:[%s1 + $0x450] sm:$0xff]
  %v165 = vld [vmem:[%s1 + $0x458] sm:$0xff]
  %v166 = vld [vmem:[%s1 + $0x460] sm:$0xff]
  %v167 = vld [vmem:[%s1 + $0x468] sm:$0xff]
  %v168 = vld [vmem:[%s1 + $0x470] sm:$0xff]
  %v169 = vld [vmem:[%s1 + $0x478] sm:$0xff]
  %170 = vmatprep.subr.mxu0 0.0
  %171 = vmatpush1.msra.mxu0 %v41
  %172 = vmatprep.subr.mxu0 0.0
  %173 = vmatpush1.msra.mxu0 %v40
  %174 = vmatprep.subr.mxu0 0.0
  %175 = vmatpush1.msra.mxu0 %v39
  %176 = vmatprep.subr.mxu0 0.0
  %177 = vmatpush1.msra.mxu0 %v38
  %178 = vmatprep.subr.mxu0 0.0
  %179 = vmatpush1.msra.mxu0 %v37
  %180 = vmatprep.subr.mxu0 0.0
  %181 = vmatpush1.msra.mxu0 %v36
  %182 = vmatprep.subr.mxu0 0.0
  %183 = vmatpush1.msra.mxu0 %v35
  %184 = vmatprep.subr.mxu0 0.0
  %185 = vmatpush1.msra.mxu0 %v34
  %186 = vmatprep.subr.mxu0 0.0
  %187 = vmatpush1.msra.mxu0 %v33
  %188 = vmatprep.subr.mxu0 0.0
  %189 = vmatpush1.msra.mxu0 %v32
  %190 = vmatprep.subr.mxu0 0.0
  %191 = vmatpush1.msra.mxu0 %v31
  %192 = vmatprep.subr.mxu0 0.0
  %193 = vmatpush1.msra.mxu0 %v30
  %194 = vmatprep.subr.mxu0 0.0
  %195 = vmatpush1.msra.mxu0 %v29
  %196 = vmatprep.subr.mxu0 0.0
  %197 = vmatpush1.msra.mxu0 %v28
  %198 = vmatprep.subr.mxu0 0.0
  %199 = vmatpush1.msra.mxu0 %v27
  %200 = vmatprep.subr.mxu0 0.0
  %201 = vmatpush1.msra.mxu0 %v26
  %202 = vmatprep.subr.mxu0 0.0
  %203 = vmatpush2.msra.mxu0 %v57
  %204 = vmatprep.subr.mxu0 0.0
  %205 = vmatpush2.msra.mxu0 %v56
  %206 = vmatprep.subr.mxu0 0.0
  %207 = vmatpush2.msra.mxu0 %v55
  %208 = vmatprep.subr.mxu0 0.0
  %209 = vmatpush2.msra.mxu0 %v54
  %210 = vmatprep.subr.mxu0 0.0
  %211 = vmatpush2.msra.mxu0 %v53
  %212 = vmatprep.subr.mxu0 0.0
  %213 = vmatpush2.msra.mxu0 %v52
  %214 = vmatprep.subr.mxu0 0.0
  %215 = vmatpush2.msra.mxu0 %v51
  %216 = vmatprep.subr.mxu0 0.0
  %217 = vmatpush2.msra.mxu0 %v50
  %218 = vmatprep.subr.mxu0 0.0
  %219 = vmatpush2.msra.mxu0 %v49
  %220 = vmatprep.subr.mxu0 0.0
  %221 = vmatpush2.msra.mxu0 %v48
  %222 = vmatprep.subr.mxu0 0.0
  %223 = vmatpush2.msra.mxu0 %v47
  %224 = vmatprep.subr.mxu0 0.0
  %225 = vmatpush2.msra.mxu0 %v46
  %226 = vmatprep.subr.mxu0 0.0
  %227 = vmatpush2.msra.mxu0 %v45
  %228 = vmatprep.subr.mxu0 0.0
  %229 = vmatpush2.msra.mxu0 %v44
  %230 = vmatprep.subr.mxu0 0.0
  %231 = vmatpush2.msra.mxu0 %v43
  %232 = vmatprep.subr.mxu0 0.0
  %233 = vmatpush2.msra.mxu0 %v42
  %234 = vmatprep.mubr.f32.mxu0 %v18
  %235 = vmatmul.mubr.f32.gmra.mxu0 %v17
  %v236 = vpop.f32.mrf.mxu0
  %v237 = vadd.f32 0.0, %v236
  %v238 = vpop.f32.mrf.mxu0
  %239 = vdwg.mxu0
  %240 = vmatprep.subr.mxu0 0.0
  %241 = vmatpush1.msra.mxu0 %v73
  %242 = vmatprep.subr.mxu0 0.0
  %243 = vmatpush1.msra.mxu0 %v72
  %244 = vmatprep.subr.mxu0 0.0
  %245 = vmatpush1.msra.mxu0 %v71
  %246 = vmatprep.subr.mxu0 0.0
  %247 = vmatpush1.msra.mxu0 %v70
  %248 = vmatprep.subr.mxu0 0.0
  %249 = vmatpush1.msra.mxu0 %v69
  %250 = vmatprep.subr.mxu0 0.0
  %251 = vmatpush1.msra.mxu0 %v68
  %252 = vmatprep.subr.mxu0 0.0
  %253 = vmatpush1.msra.mxu0 %v67
  %254 = vmatprep.subr.mxu0 0.0
  %255 = vmatpush1.msra.mxu0 %v66
  %256 = vmatprep.subr.mxu0 0.0
  %257 = vmatpush1.msra.mxu0 %v65
  %258 = vmatprep.subr.mxu0 0.0
  %259 = vmatpush1.msra.mxu0 %v64
  %260 = vmatprep.subr.mxu0 0.0
  %261 = vmatpush1.msra.mxu0 %v63
  %262 = vmatprep.subr.mxu0 0.0
  %263 = vmatpush1.msra.mxu0 %v62
  %264 = vmatprep.subr.mxu0 0.0
  %265 = vmatpush1.msra.mxu0 %v61
  %266 = vmatprep.subr.mxu0 0.0
  %267 = vmatpush1.msra.mxu0 %v60
  %268 = vmatprep.subr.mxu0 0.0
  %269 = vmatpush1.msra.mxu0 %v59
  %270 = vmatprep.subr.mxu0 0.0
  %271 = vmatpush1.msra.mxu0 %v58
  %272 = vmatprep.subr.mxu0 0.0
  %273 = vmatpush2.msra.mxu0 %v89
  %274 = vmatprep.subr.mxu0 0.0
  %275 = vmatpush2.msra.mxu0 %v88
  %276 = vmatprep.subr.mxu0 0.0
  %277 = vmatpush2.msra.mxu0 %v87
  %278 = vmatprep.subr.mxu0 0.0
  %279 = vmatpush2.msra.mxu0 %v86
  %280 = vmatprep.subr.mxu0 0.0
  %281 = vmatpush2.msra.mxu0 %v85
  %282 = vmatprep.subr.mxu0 0.0
  %283 = vmatpush2.msra.mxu0 %v84
  %284 = vmatprep.subr.mxu0 0.0
  %285 = vmatpush2.msra.mxu0 %v83
  %286 = vmatprep.subr.mxu0 0.0
  %287 = vmatpush2.msra.mxu0 %v82
  %288 = vmatprep.subr.mxu0 0.0
  %289 = vmatpush2.msra.mxu0 %v81
  %290 = vmatprep.subr.mxu0 0.0
  %291 = vmatpush2.msra.mxu0 %v80
  %292 = vmatprep.subr.mxu0 0.0
  %293 = vmatpush2.msra.mxu0 %v79
  %294 = vmatprep.subr.mxu0 0.0
  %295 = vmatpush2.msra.mxu0 %v78
  %296 = vmatprep.subr.mxu0 0.0
  %297 = vmatpush2.msra.mxu0 %v77
  %298 = vmatprep.subr.mxu0 0.0
  %299 = vmatpush2.msra.mxu0 %v76
  %300 = vmatprep.subr.mxu0 0.0
  %301 = vmatpush2.msra.mxu0 %v75
  %302 = vmatprep.subr.mxu0 0.0
  %303 = vmatpush2.msra.mxu0 %v74
  %304 = vmatprep.mubr.f32.mxu0 %v20
  %305 = vmatmul.mubr.f32.gmra.mxu0 %v19
  %v306 = vpop.f32.mrf.mxu0
  %v307 = vadd.f32 %v237, %v306
  %v308 = vpop.f32.mrf.mxu0
  %309 = vdwg.mxu0
  %310 = vmatprep.subr.mxu0 0.0
  %311 = vmatpush1.msra.mxu0 %v105
  %312 = vmatprep.subr.mxu0 0.0
  %313 = vmatpush1.msra.mxu0 %v104
  %314 = vmatprep.subr.mxu0 0.0
  %315 = vmatpush1.msra.mxu0 %v103
  %316 = vmatprep.subr.mxu0 0.0
  %317 = vmatpush1.msra.mxu0 %v102
  %318 = vmatprep.subr.mxu0 0.0
  %319 = vmatpush1.msra.mxu0 %v101
  %320 = vmatprep.subr.mxu0 0.0
  %321 = vmatpush1.msra.mxu0 %v100
  %322 = vmatprep.subr.mxu0 0.0
  %323 = vmatpush1.msra.mxu0 %v99
  %324 = vmatprep.subr.mxu0 0.0
  %325 = vmatpush1.msra.mxu0 %v98
  %326 = vmatprep.subr.mxu0 0.0
  %327 = vmatpush1.msra.mxu0 %v97
  %328 = vmatprep.subr.mxu0 0.0
  %329 = vmatpush1.msra.mxu0 %v96
  %330 = vmatprep.subr.mxu0 0.0
  %331 = vmatpush1.msra.mxu0 %v95
  %332 = vmatprep.subr.mxu0 0.0
  %333 = vmatpush1.msra.mxu0 %v94
  %334 = vmatprep.subr.mxu0 0.0
  %335 = vmatpush1.msra.mxu0 %v93
  %336 = vmatprep.subr.mxu0 0.0
  %337 = vmatpush1.msra.mxu0 %v92
  %338 = vmatprep.subr.mxu0 0.0
  %339 = vmatpush1.msra.mxu0 %v91
  %340 = vmatprep.subr.mxu0 0.0
  %341 = vmatpush1.msra.mxu0 %v90
  %342 = vmatprep.subr.mxu0 0.0
  %343 = vmatpush2.msra.mxu0 %v121
  %344 = vmatprep.subr.mxu0 0.0
  %345 = vmatpush2.msra.mxu0 %v120
  %346 = vmatprep.subr.mxu0 0.0
  %347 = vmatpush2.msra.mxu0 %v119
  %348 = vmatprep.subr.mxu0 0.0
  %349 = vmatpush2.msra.mxu0 %v118
  %350 = vmatprep.subr.mxu0 0.0
  %351 = vmatpush2.msra.mxu0 %v117
  %352 = vmatprep.subr.mxu0 0.0
  %353 = vmatpush2.msra.mxu0 %v116
  %354 = vmatprep.subr.mxu0 0.0
  %355 = vmatpush2.msra.mxu0 %v115
  %356 = vmatprep.subr.mxu0 0.0
  %357 = vmatpush2.msra.mxu0 %v114
  %358 = vmatprep.subr.mxu0 0.0
  %359 = vmatpush2.msra.mxu0 %v113
  %360 = vmatprep.subr.mxu0 0.0
  %361 = vmatpush2.msra.mxu0 %v112
  %362 = vmatprep.subr.mxu0 0.0
  %363 = vmatpush2.msra.mxu0 %v111
  %364 = vmatprep.subr.mxu0 0.0
  %365 = vmatpush2.msra.mxu0 %v110
  %366 = vmatprep.subr.mxu0 0.0
  %367 = vmatpush2.msra.mxu0 %v109
  %368 = vmatprep.subr.mxu0 0.0
  %369 = vmatpush2.msra.mxu0 %v108
  %370 = vmatprep.subr.mxu0 0.0
  %371 = vmatpush2.msra.mxu0 %v107
  %372 = vmatprep.subr.mxu0 0.0
  %373 = vmatpush2.msra.mxu0 %v106
  %374 = vmatprep.mubr.f32.mxu0 %v22
  %375 = vmatmul.mubr.f32.gmra.mxu0 %v21
  %v376 = vpop.f32.mrf.mxu0
  %v377 = vadd.f32 %v307, %v376
  %v378 = vpop.f32.mrf.mxu0
  %379 = vdwg.mxu0
  %380 = vmatprep.subr.mxu0 0.0
  %381 = vmatpush1.msra.mxu0 %v137
  %382 = vmatprep.subr.mxu0 0.0
  %383 = vmatpush1.msra.mxu0 %v136
  %384 = vmatprep.subr.mxu0 0.0
  %385 = vmatpush1.msra.mxu0 %v135
  %386 = vmatprep.subr.mxu0 0.0
  %387 = vmatpush1.msra.mxu0 %v134
  %388 = vmatprep.subr.mxu0 0.0
  %389 = vmatpush1.msra.mxu0 %v133
  %390 = vmatprep.subr.mxu0 0.0
  %391 = vmatpush1.msra.mxu0 %v132
  %392 = vmatprep.subr.mxu0 0.0
  %393 = vmatpush1.msra.mxu0 %v131
  %394 = vmatprep.subr.mxu0 0.0
  %395 = vmatpush1.msra.mxu0 %v130
  %396 = vmatprep.subr.mxu0 0.0
  %397 = vmatpush1.msra.mxu0 %v129
  %398 = vmatprep.subr.mxu0 0.0
  %399 = vmatpush1.msra.mxu0 %v128
  %400 = vmatprep.subr.mxu0 0.0
  %401 = vmatpush1.msra.mxu0 %v127
  %402 = vmatprep.subr.mxu0 0.0
  %403 = vmatpush1.msra.mxu0 %v126
  %404 = vmatprep.subr.mxu0 0.0
  %405 = vmatpush1.msra.mxu0 %v125
  %406 = vmatprep.subr.mxu0 0.0
  %407 = vmatpush1.msra.mxu0 %v124
  %408 = vmatprep.subr.mxu0 0.0
  %409 = vmatpush1.msra.mxu0 %v123
  %410 = vmatprep.subr.mxu0 0.0
  %411 = vmatpush1.msra.mxu0 %v122
  %412 = vmatprep.subr.mxu0 0.0
  %413 = vmatpush2.msra.mxu0 %v153
  %414 = vmatprep.subr.mxu0 0.0
  %415 = vmatpush2.msra.mxu0 %v152
  %416 = vmatprep.subr.mxu0 0.0
  %417 = vmatpush2.msra.mxu0 %v151
  %418 = vmatprep.subr.mxu0 0.0
  %419 = vmatpush2.msra.mxu0 %v150
  %420 = vmatprep.subr.mxu0 0.0
  %421 = vmatpush2.msra.mxu0 %v149
  %422 = vmatprep.subr.mxu0 0.0
  %423 = vmatpush2.msra.mxu0 %v148
  %424 = vmatprep.subr.mxu0 0.0
  %425 = vmatpush2.msra.mxu0 %v147
  %426 = vmatprep.subr.mxu0 0.0
  %427 = vmatpush2.msra.mxu0 %v146
  %428 = vmatprep.subr.mxu0 0.0
  %429 = vmatpush2.msra.mxu0 %v145
  %430 = vmatprep.subr.mxu0 0.0
  %431 = vmatpush2.msra.mxu0 %v144
  %432 = vmatprep.subr.mxu0 0.0
  %433 = vmatpush2.msra.mxu0 %v143
  %434 = vmatprep.subr.mxu0 0.0
  %435 = vmatpush2.msra.mxu0 %v142
  %436 = vmatprep.subr.mxu0 0.0
  %437 = vmatpush2.msra.mxu0 %v141
  %438 = vmatprep.subr.mxu0 0.0
  %439 = vmatpush2.msra.mxu0 %v140
  %440 = vmatprep.subr.mxu0 0.0
  %441 = vmatpush2.msra.mxu0 %v139
  %442 = vmatprep.subr.mxu0 0.0
  %443 = vmatpush2.msra.mxu0 %v138
  %444 = vmatprep.mubr.f32.mxu0 %v24
  %445 = vmatmul.mubr.f32.gmra.mxu0 %v23
  %v446 = vpop.f32.mrf.mxu0
  %v447 = vadd.f32 %v377, %v446
  %v448 = vpop.f32.mrf.mxu0
  %449 = vdwg.mxu0
  %450 = vmatprep.subr.mxu0 0.0
  %451 = vmatpush1.msra.mxu0 %v169
  %452 = vmatprep.subr.mxu0 0.0
  %453 = vmatpush1.msra.mxu0 %v168
  %454 = vmatprep.subr.mxu0 0.0
  %455 = vmatpush1.msra.mxu0 %v167
  %456 = vmatprep.subr.mxu0 0.0
  %457 = vmatpush1.msra.mxu0 %v166
  %458 = vmatprep.subr.mxu0 0.0
  %459 = vmatpush1.msra.mxu0 %v165
  %460 = vmatprep.subr.mxu0 0.0
  %461 = vmatpush1.msra.mxu0 %v164
  %462 = vmatprep.subr.mxu0 0.0
  %463 = vmatpush1.msra.mxu0 %v163
  %464 = vmatprep.subr.mxu0 0.0
  %465 = vmatpush1.msra.mxu0 %v162
  %466 = vmatprep.subr.mxu0 0.0
  %467 = vmatpush1.msra.mxu0 %v161
  %468 = vmatprep.subr.mxu0 0.0
  %469 = vmatpush1.msra.mxu0 %v160
  %470 = vmatprep.subr.mxu0 0.0
  %471 = vmatpush1.msra.mxu0 %v159
  %472 = vmatprep.subr.mxu0 0.0
  %473 = vmatpush1.msra.mxu0 %v158
  %474 = vmatprep.subr.mxu0 0.0
  %475 = vmatpush1.msra.mxu0 %v157
  %476 = vmatprep.subr.mxu0 0.0
  %477 = vmatpush1.msra.mxu0 %v156
  %478 = vmatprep.subr.mxu0 0.0
  %479 = vmatpush1.msra.mxu0 %v155
  %480 = vmatprep.subr.mxu0 0.0
  %481 = vmatpush1.msra.mxu0 %v154
  %482 = vmatprep.subr.mxu0 0.0
  %483 = vmatpush2.msra.mxu0 0.0
  %484 = vmatprep.subr.mxu0 0.0
  %485 = vmatpush2.msra.mxu0 0.0
  %486 = vmatprep.subr.mxu0 0.0
  %487 = vmatpush2.msra.mxu0 0.0
  %488 = vmatprep.subr.mxu0 0.0
  %489 = vmatpush2.msra.mxu0 0.0
  %490 = vmatprep.subr.mxu0 0.0
  %491 = vmatpush2.msra.mxu0 0.0
  %492 = vmatprep.subr.mxu0 0.0
  %493 = vmatpush2.msra.mxu0 0.0
  %494 = vmatprep.subr.mxu0 0.0
  %495 = vmatpush2.msra.mxu0 0.0
  %496 = vmatprep.subr.mxu0 0.0
  %497 = vmatpush2.msra.mxu0 0.0
  %498 = vmatprep.subr.mxu0 0.0
  %499 = vmatpush2.msra.mxu0 0.0
  %500 = vmatprep.subr.mxu0 0.0
  %501 = vmatpush2.msra.mxu0 0.0
  %502 = vmatprep.subr.mxu0 0.0
  %503 = vmatpush2.msra.mxu0 0.0
  %504 = vmatprep.subr.mxu0 0.0
  %505 = vmatpush2.msra.mxu0 0.0
  %506 = vmatprep.subr.mxu0 0.0
  %507 = vmatpush2.msra.mxu0 0.0
  %508 = vmatprep.subr.mxu0 0.0
  %509 = vmatpush2.msra.mxu0 0.0
  %510 = vmatprep.subr.mxu0 0.0
  %511 = vmatpush2.msra.mxu0 0.0
  %512 = vmatprep.subr.mxu0 0.0
  %513 = vmatpush2.msra.mxu0 0.0
  %514 = vmatprep.mubr.f32.mxu0 0.0
  %515 = vmatmul.mubr.f32.gmra.mxu0 %v25
  %v516 = vpop.f32.mrf.mxu0
  %v517 = vadd.f32 %v447, %v516
  %v518 = vpop.f32.mrf.mxu0
  %519 = vdwg.mxu0
  %v520 = vld [vmem:[%s2] sm:$0x1]
  %v522 = vlaneseq
  %v523 = vshrl.u32 %v522, 7
  %v524 = vsub.s32 0, %v523
  %v525 = vrot.slane %v520, %v524
  %v527 = vmul.f32 %v517, %v525
  %v528 = vld [vmem:[%s3] sm:$0x1]
  %v530 = vlaneseq
  %v531 = vshrl.u32 %v530, 7
  %v532 = vsub.s32 0, %v531
  %v533 = vrot.slane %v528, %v532
  %v535 = vadd.f32 %v527, %v533
  %v536 = vmax.f32 %v535, 0.0
  %v537 = vmin.f32 %v536, 20.0
  %538 = vst [vmem:[%s4] sm:$0xff] %v537
  // Predicated region
  $region18: #{_lambda_.69} parent=0 // pred_check
    _
  $region19: #{_lambda_.69} parent=0 // pred_check_branch
    %540 = sbr.rel (0) target = $region21
  $region20: #{_lambda_.69} parent=0 // pred_region
    _
  $region21: #{_lambda_.69} parent=0 // pred_fallthru
    _
  // Predicated region
  $region22: #{_lambda_.69} parent=0 // pred_check
    _
  $region23: #{_lambda_.69} parent=0 // pred_check_branch
    %542 = sbr.rel (0) target = $region25
  $region24: #{_lambda_.69} parent=0 // pred_region
    _
  $region25: #{_lambda_.69} parent=0 // pred_fallthru
    _

// kernel: _lambda_.68
$region0: #{_lambda_.68}
  #allocation0 [shape = 'u32[]', space=smem, size = 0x4, offset = 0x4, fixed_abs, tag = 'smem constant byte address 0x4 - core index']
  #allocation1 [shape = 'u32[144,128]{1,0:T(1,128)}', space=vmem, size = 0x12000, scoped, tag = 'internal scratch']
  %s0 = inlined_call_operand.vmem [shape: f32[8,1152], index: 0, kind: input, shape index: {}]
  %s1 = inlined_call_operand.vmem [shape: f32[1152,128], index: 1, kind: input, shape index: {}]
  %s2 = inlined_call_operand.vmem [shape: f32[1,128], index: 2, kind: input, shape index: {}]
  %s3 = inlined_call_operand.vmem [shape: f32[1,128], index: 3, kind: input, shape index: {}]
  %s4 = inlined_call_operand.vmem [shape: f32[8,128], index: 4, kind: input, shape index: {}]
  %s5 = inlined_call_operand.vmem [shape: f32[8,128], index: 5, kind: output, shape index: {}]
  %s6 = sld [smem:[#allocation0]]
  $region30: #{_lambda_.68} parent=0
    _
  %s8 = ssub.s32 1, %s6
  %s9 = scalar_select 0, %s8, %s6
  // Predicated region
  $region2: #{_lambda_.68} parent=0 // pred_check
    _
  $region3: #{_lambda_.68} parent=0 // pred_check_branch
    %11 = sbr.rel (0) target = $region5
  $region4: #{_lambda_.68} parent=0 // pred_region
    _
  $region5: #{_lambda_.68} parent=0 // pred_fallthru
    _
  // Predicated region
  $region6: #{_lambda_.68} parent=0 // pred_check
    _
  $region7: #{_lambda_.68} parent=0 // pred_check_branch
    %13 = sbr.rel (0) target = $region9
  $region8: #{_lambda_.68} parent=0 // pred_region
    _
  $region9: #{_lambda_.68} parent=0 // pred_fallthru
    _
  // Predicated region
  $region10: #{_lambda_.68} parent=0 // pred_check
    _
  $region11: #{_lambda_.68} parent=0 // pred_check_branch
    %15 = sbr.rel (0) target = $region13
  $region12: #{_lambda_.68} parent=0 // pred_region
    _
  $region13: #{_lambda_.68} parent=0 // pred_fallthru
    _
  // Predicated region
  $region14: #{_lambda_.68} parent=0 // pred_check
    _
  $region15: #{_lambda_.68} parent=0 // pred_check_branch
    %17 = sbr.rel (0) target = $region17
  $region16: #{_lambda_.68} parent=0 // pred_region
    _
  $region17: #{_lambda_.68} parent=0 // pred_fallthru
    _
  // Predicated region
  $region18: #{_lambda_.68} parent=0 // pred_check
    _
  $region19: #{_lambda_.68} parent=0 // pred_check_branch
    %19 = sbr.rel (0) target = $region21
  $region20: #{_lambda_.68} parent=0 // pred_region
    _
  $region21: #{_lambda_.68} parent=0 // pred_fallthru
    _
  %v20 = vld [vmem:[%s0] sm:$0xff]
  %v21 = vld [vmem:[%s0 + $0x8] sm:$0xff]
  %v22 = vld [vmem:[%s0 + $0x10] sm:$0xff]
  %v23 = vld [vmem:[%s0 + $0x18] sm:$0xff]
  %v24 = vld [vmem:[%s0 + $0x20] sm:$0xff]
  %v25 = vld [vmem:[%s0 + $0x28] sm:$0xff]
  %v26 = vld [vmem:[%s0 + $0x30] sm:$0xff]
  %v27 = vld [vmem:[%s0 + $0x38] sm:$0xff]
  %v28 = vld [vmem:[%s0 + $0x40] sm:$0xff]
  %v29 = vld [vmem:[%s1] sm:$0xff]
  %v30 = vld [vmem:[%s1 + $0x8] sm:$0xff]
  %v31 = vld [vmem:[%s1 + $0x10] sm:$0xff]
  %v32 = vld [vmem:[%s1 + $0x18] sm:$0xff]
  %v33 = vld [vmem:[%s1 + $0x20] sm:$0xff]
  %v34 = vld [vmem:[%s1 + $0x28] sm:$0xff]
  %v35 = vld [vmem:[%s1 + $0x30] sm:$0xff]
  %v36 = vld [vmem:[%s1 + $0x38] sm:$0xff]
  %v37 = vld [vmem:[%s1 + $0x40] sm:$0xff]
  %v38 = vld [vmem:[%s1 + $0x48] sm:$0xff]
  %v39 = vld [vmem:[%s1 + $0x50] sm:$0xff]
  %v40 = vld [vmem:[%s1 + $0x58] sm:$0xff]
  %v41 = vld [vmem:[%s1 + $0x60] sm:$0xff]
  %v42 = vld [vmem:[%s1 + $0x68] sm:$0xff]
  %v43 = vld [vmem:[%s1 + $0x70] sm:$0xff]
  %v44 = vld [vmem:[%s1 + $0x78] sm:$0xff]
  %v45 = vld [vmem:[%s1 + $0x80] sm:$0xff]
  %v46 = vld [vmem:[%s1 + $0x88] sm:$0xff]
  %v47 = vld [vmem:[%s1 + $0x90] sm:$0xff]
  %v48 = vld [vmem:[%s1 + $0x98] sm:$0xff]
  %v49 = vld [vmem:[%s1 + $0xa0] sm:$0xff]
  %v50 = vld [vmem:[%s1 + $0xa8] sm:$0xff]
  %v51 = vld [vmem:[%s1 + $0xb0] sm:$0xff]
  %v52 = vld [vmem:[%s1 + $0xb8] sm:$0xff]
  %v53 = vld [vmem:[%s1 + $0xc0] sm:$0xff]
  %v54 = vld [vmem:[%s1 + $0xc8] sm:$0xff]
  %v55 = vld [vmem:[%s1 + $0xd0] sm:$0xff]
  %v56 = vld [vmem:[%s1 + $0xd8] sm:$0xff]
  %v57 = vld [vmem:[%s1 + $0xe0] sm:$0xff]
  %v58 = vld [vmem:[%s1 + $0xe8] sm:$0xff]
  %v59 = vld [vmem:[%s1 + $0xf0] sm:$0xff]
  %v60 = vld [vmem:[%s1 + $0xf8] sm:$0xff]
  %v61 = vld [vmem:[%s1 + $0x100] sm:$0xff]
  %v62 = vld [vmem:[%s1 + $0x108] sm:$0xff]
  %v63 = vld [vmem:[%s1 + $0x110] sm:$0xff]
  %v64 = vld [vmem:[%s1 + $0x118] sm:$0xff]
  %v65 = vld [vmem:[%s1 + $0x120] sm:$0xff]
  %v66 = vld [vmem:[%s1 + $0x128] sm:$0xff]
  %v67 = vld [vmem:[%s1 + $0x130] sm:$0xff]
  %v68 = vld [vmem:[%s1 + $0x138] sm:$0xff]
  %v69 = vld [vmem:[%s1 + $0x140] sm:$0xff]
  %v70 = vld [vmem:[%s1 + $0x148] sm:$0xff]
  %v71 = vld [vmem:[%s1 + $0x150] sm:$0xff]
  %v72 = vld [vmem:[%s1 + $0x158] sm:$0xff]
  %v73 = vld [vmem:[%s1 + $0x160] sm:$0xff]
  %v74 = vld [vmem:[%s1 + $0x168] sm:$0xff]
  %v75 = vld [vmem:[%s1 + $0x170] sm:$0xff]
  %v76 = vld [vmem:[%s1 + $0x178] sm:$0xff]
  %v77 = vld [vmem:[%s1 + $0x180] sm:$0xff]
  %v78 = vld [vmem:[%s1 + $0x188] sm:$0xff]
  %v79 = vld [vmem:[%s1 + $0x190] sm:$0xff]
  %v80 = vld [vmem:[%s1 + $0x198] sm:$0xff]
  %v81 = vld [vmem:[%s1 + $0x1a0] sm:$0xff]
  %v82 = vld [vmem:[%s1 + $0x1a8] sm:$0xff]
  %v83 = vld [vmem:[%s1 + $0x1b0] sm:$0xff]
  %v84 = vld [vmem:[%s1 + $0x1b8] sm:$0xff]
  %v85 = vld [vmem:[%s1 + $0x1c0] sm:$0xff]
  %v86 = vld [vmem:[%s1 + $0x1c8] sm:$0xff]
  %v87 = vld [vmem:[%s1 + $0x1d0] sm:$0xff]
  %v88 = vld [vmem:[%s1 + $0x1d8] sm:$0xff]
  %v89 = vld [vmem:[%s1 + $0x1e0] sm:$0xff]
  %v90 = vld [vmem:[%s1 + $0x1e8] sm:$0xff]
  %v91 = vld [vmem:[%s1 + $0x1f0] sm:$0xff]
  %v92 = vld [vmem:[%s1 + $0x1f8] sm:$0xff]
  %v93 = vld [vmem:[%s1 + $0x200] sm:$0xff]
  %v94 = vld [vmem:[%s1 + $0x208] sm:$0xff]
  %v95 = vld [vmem:[%s1 + $0x210] sm:$0xff]
  %v96 = vld [vmem:[%s1 + $0x218] sm:$0xff]
  %v97 = vld [vmem:[%s1 + $0x220] sm:$0xff]
  %v98 = vld [vmem:[%s1 + $0x228] sm:$0xff]
  %v99 = vld [vmem:[%s1 + $0x230] sm:$0xff]
  %v100 = vld [vmem:[%s1 + $0x238] sm:$0xff]
  %v101 = vld [vmem:[%s1 + $0x240] sm:$0xff]
  %v102 = vld [vmem:[%s1 + $0x248] sm:$0xff]
  %v103 = vld [vmem:[%s1 + $0x250] sm:$0xff]
  %v104 = vld [vmem:[%s1 + $0x258] sm:$0xff]
  %v105 = vld [vmem:[%s1 + $0x260] sm:$0xff]
  %v106 = vld [vmem:[%s1 + $0x268] sm:$0xff]
  %v107 = vld [vmem:[%s1 + $0x270] sm:$0xff]
  %v108 = vld [vmem:[%s1 + $0x278] sm:$0xff]
  %v109 = vld [vmem:[%s1 + $0x280] sm:$0xff]
  %v110 = vld [vmem:[%s1 + $0x288] sm:$0xff]
  %v111 = vld [vmem:[%s1 + $0x290] sm:$0xff]
  %v112 = vld [vmem:[%s1 + $0x298] sm:$0xff]
  %v113 = vld [vmem:[%s1 + $0x2a0] sm:$0xff]
  %v114 = vld [vmem:[%s1 + $0x2a8] sm:$0xff]
  %v115 = vld [vmem:[%s1 + $0x2b0] sm:$0xff]
  %v116 = vld [vmem:[%s1 + $0x2b8] sm:$0xff]
  %v117 = vld [vmem:[%s1 + $0x2c0] sm:$0xff]
  %v118 = vld [vmem:[%s1 + $0x2c8] sm:$0xff]
  %v119 = vld [vmem:[%s1 + $0x2d0] sm:$0xff]
  %v120 = vld [vmem:[%s1 + $0x2d8] sm:$0xff]
  %v121 = vld [vmem:[%s1 + $0x2e0] sm:$0xff]
  %v122 = vld [vmem:[%s1 + $0x2e8] sm:$0xff]
  %v123 = vld [vmem:[%s1 + $0x2f0] sm:$0xff]
  %v124 = vld [vmem:[%s1 + $0x2f8] sm:$0xff]
  %v125 = vld [vmem:[%s1 + $0x300] sm:$0xff]
  %v126 = vld [vmem:[%s1 + $0x308] sm:$0xff]
  %v127 = vld [vmem:[%s1 + $0x310] sm:$0xff]
  %v128 = vld [vmem:[%s1 + $0x318] sm:$0xff]
  %v129 = vld [vmem:[%s1 + $0x320] sm:$0xff]
  %v130 = vld [vmem:[%s1 + $0x328] sm:$0xff]
  %v131 = vld [vmem:[%s1 + $0x330] sm:$0xff]
  %v132 = vld [vmem:[%s1 + $0x338] sm:$0xff]
  %v133 = vld [vmem:[%s1 + $0x340] sm:$0xff]
  %v134 = vld [vmem:[%s1 + $0x348] sm:$0xff]
  %v135 = vld [vmem:[%s1 + $0x350] sm:$0xff]
  %v136 = vld [vmem:[%s1 + $0x358] sm:$0xff]
  %v137 = vld [vmem:[%s1 + $0x360] sm:$0xff]
  %v138 = vld [vmem:[%s1 + $0x368] sm:$0xff]
  %v139 = vld [vmem:[%s1 + $0x370] sm:$0xff]
  %v140 = vld [vmem:[%s1 + $0x378] sm:$0xff]
  %v141 = vld [vmem:[%s1 + $0x380] sm:$0xff]
  %v142 = vld [vmem:[%s1 + $0x388] sm:$0xff]
  %v143 = vld [vmem:[%s1 + $0x390] sm:$0xff]
  %v144 = vld [vmem:[%s1 + $0x398] sm:$0xff]
  %v145 = vld [vmem:[%s1 + $0x3a0] sm:$0xff]
  %v146 = vld [vmem:[%s1 + $0x3a8] sm:$0xff]
  %v147 = vld [vmem:[%s1 + $0x3b0] sm:$0xff]
  %v148 = vld [vmem:[%s1 + $0x3b8] sm:$0xff]
  %v149 = vld [vmem:[%s1 + $0x3c0] sm:$0xff]
  %v150 = vld [vmem:[%s1 + $0x3c8] sm:$0xff]
  %v151 = vld [vmem:[%s1 + $0x3d0] sm:$0xff]
  %v152 = vld [vmem:[%s1 + $0x3d8] sm:$0xff]
  %v153 = vld [vmem:[%s1 + $0x3e0] sm:$0xff]
  %v154 = vld [vmem:[%s1 + $0x3e8] sm:$0xff]
  %v155 = vld [vmem:[%s1 + $0x3f0] sm:$0xff]
  %v156 = vld [vmem:[%s1 + $0x3f8] sm:$0xff]
  %v157 = vld [vmem:[%s1 + $0x400] sm:$0xff]
  %v158 = vld [vmem:[%s1 + $0x408] sm:$0xff]
  %v159 = vld [vmem:[%s1 + $0x410] sm:$0xff]
  %v160 = vld [vmem:[%s1 + $0x418] sm:$0xff]
  %v161 = vld [vmem:[%s1 + $0x420] sm:$0xff]
  %v162 = vld [vmem:[%s1 + $0x428] sm:$0xff]
  %v163 = vld [vmem:[%s1 + $0x430] sm:$0xff]
  %v164 = vld [vmem:[%s1 + $0x438] sm:$0xff]
  %v165 = vld [vmem:[%s1 + $0x440] sm:$0xff]
  %v166 = vld [vmem:[%s1 + $0x448] sm:$0xff]
  %v167 = vld [vmem:[%s1 + $0x450] sm:$0xff]
  %v168 = vld [vmem:[%s1 + $0x458] sm:$0xff]
  %v169 = vld [vmem:[%s1 + $0x460] sm:$0xff]
  %v170 = vld [vmem:[%s1 + $0x468] sm:$0xff]
  %v171 = vld [vmem:[%s1 + $0x470] sm:$0xff]
  %v172 = vld [vmem:[%s1 + $0x478] sm:$0xff]
  %173 = vmatprep.subr.mxu0 0.0
  %174 = vmatpush1.msra.mxu0 %v44
  %175 = vmatprep.subr.mxu0 0.0
  %176 = vmatpush1.msra.mxu0 %v43
  %177 = vmatprep.subr.mxu0 0.0
  %178 = vmatpush1.msra.mxu0 %v42
  %179 = vmatprep.subr.mxu0 0.0
  %180 = vmatpush1.msra.mxu0 %v41
  %181 = vmatprep.subr.mxu0 0.0
  %182 = vmatpush1.msra.mxu0 %v40
  %183 = vmatprep.subr.mxu0 0.0
  %184 = vmatpush1.msra.mxu0 %v39
  %185 = vmatprep.subr.mxu0 0.0
  %186 = vmatpush1.msra.mxu0 %v38
  %187 = vmatprep.subr.mxu0 0.0
  %188 = vmatpush1.msra.mxu0 %v37
  %189 = vmatprep.subr.mxu0 0.0
  %190 = vmatpush1.msra.mxu0 %v36
  %191 = vmatprep.subr.mxu0 0.0
  %192 = vmatpush1.msra.mxu0 %v35
  %193 = vmatprep.subr.mxu0 0.0
  %194 = vmatpush1.msra.mxu0 %v34
  %195 = vmatprep.subr.mxu0 0.0
  %196 = vmatpush1.msra.mxu0 %v33
  %197 = vmatprep.subr.mxu0 0.0
  %198 = vmatpush1.msra.mxu0 %v32
  %199 = vmatprep.subr.mxu0 0.0
  %200 = vmatpush1.msra.mxu0 %v31
  %201 = vmatprep.subr.mxu0 0.0
  %202 = vmatpush1.msra.mxu0 %v30
  %203 = vmatprep.subr.mxu0 0.0
  %204 = vmatpush1.msra.mxu0 %v29
  %205 = vmatprep.subr.mxu0 0.0
  %206 = vmatpush2.msra.mxu0 %v60
  %207 = vmatprep.subr.mxu0 0.0
  %208 = vmatpush2.msra.mxu0 %v59
  %209 = vmatprep.subr.mxu0 0.0
  %210 = vmatpush2.msra.mxu0 %v58
  %211 = vmatprep.subr.mxu0 0.0
  %212 = vmatpush2.msra.mxu0 %v57
  %213 = vmatprep.subr.mxu0 0.0
  %214 = vmatpush2.msra.mxu0 %v56
  %215 = vmatprep.subr.mxu0 0.0
  %216 = vmatpush2.msra.mxu0 %v55
  %217 = vmatprep.subr.mxu0 0.0
  %218 = vmatpush2.msra.mxu0 %v54
  %219 = vmatprep.subr.mxu0 0.0
  %220 = vmatpush2.msra.mxu0 %v53
  %221 = vmatprep.subr.mxu0 0.0
  %222 = vmatpush2.msra.mxu0 %v52
  %223 = vmatprep.subr.mxu0 0.0
  %224 = vmatpush2.msra.mxu0 %v51
  %225 = vmatprep.subr.mxu0 0.0
  %226 = vmatpush2.msra.mxu0 %v50
  %227 = vmatprep.subr.mxu0 0.0
  %228 = vmatpush2.msra.mxu0 %v49
  %229 = vmatprep.subr.mxu0 0.0
  %230 = vmatpush2.msra.mxu0 %v48
  %231 = vmatprep.subr.mxu0 0.0
  %232 = vmatpush2.msra.mxu0 %v47
  %233 = vmatprep.subr.mxu0 0.0
  %234 = vmatpush2.msra.mxu0 %v46
  %235 = vmatprep.subr.mxu0 0.0
  %236 = vmatpush2.msra.mxu0 %v45
  %237 = vmatprep.mubr.f32.mxu0 %v21
  %238 = vmatmul.mubr.f32.gmra.mxu0 %v20
  %v239 = vpop.f32.mrf.mxu0
  %v240 = vadd.f32 0.0, %v239
  %v241 = vpop.f32.mrf.mxu0
  %242 = vdwg.mxu0
  %243 = vmatprep.subr.mxu0 0.0
  %244 = vmatpush1.msra.mxu0 %v76
  %245 = vmatprep.subr.mxu0 0.0
  %246 = vmatpush1.msra.mxu0 %v75
  %247 = vmatprep.subr.mxu0 0.0
  %248 = vmatpush1.msra.mxu0 %v74
  %249 = vmatprep.subr.mxu0 0.0
  %250 = vmatpush1.msra.mxu0 %v73
  %251 = vmatprep.subr.mxu0 0.0
  %252 = vmatpush1.msra.mxu0 %v72
  %253 = vmatprep.subr.mxu0 0.0
  %254 = vmatpush1.msra.mxu0 %v71
  %255 = vmatprep.subr.mxu0 0.0
  %256 = vmatpush1.msra.mxu0 %v70
  %257 = vmatprep.subr.mxu0 0.0
  %258 = vmatpush1.msra.mxu0 %v69
  %259 = vmatprep.subr.mxu0 0.0
  %260 = vmatpush1.msra.mxu0 %v68
  %261 = vmatprep.subr.mxu0 0.0
  %262 = vmatpush1.msra.mxu0 %v67
  %263 = vmatprep.subr.mxu0 0.0
  %264 = vmatpush1.msra.mxu0 %v66
  %265 = vmatprep.subr.mxu0 0.0
  %266 = vmatpush1.msra.mxu0 %v65
  %267 = vmatprep.subr.mxu0 0.0
  %268 = vmatpush1.msra.mxu0 %v64
  %269 = vmatprep.subr.mxu0 0.0
  %270 = vmatpush1.msra.mxu0 %v63
  %271 = vmatprep.subr.mxu0 0.0
  %272 = vmatpush1.msra.mxu0 %v62
  %273 = vmatprep.subr.mxu0 0.0
  %274 = vmatpush1.msra.mxu0 %v61
  %275 = vmatprep.subr.mxu0 0.0
  %276 = vmatpush2.msra.mxu0 %v92
  %277 = vmatprep.subr.mxu0 0.0
  %278 = vmatpush2.msra.mxu0 %v91
  %279 = vmatprep.subr.mxu0 0.0
  %280 = vmatpush2.msra.mxu0 %v90
  %281 = vmatprep.subr.mxu0 0.0
  %282 = vmatpush2.msra.mxu0 %v89
  %283 = vmatprep.subr.mxu0 0.0
  %284 = vmatpush2.msra.mxu0 %v88
  %285 = vmatprep.subr.mxu0 0.0
  %286 = vmatpush2.msra.mxu0 %v87
  %287 = vmatprep.subr.mxu0 0.0
  %288 = vmatpush2.msra.mxu0 %v86
  %289 = vmatprep.subr.mxu0 0.0
  %290 = vmatpush2.msra.mxu0 %v85
  %291 = vmatprep.subr.mxu0 0.0
  %292 = vmatpush2.msra.mxu0 %v84
  %293 = vmatprep.subr.mxu0 0.0
  %294 = vmatpush2.msra.mxu0 %v83
  %295 = vmatprep.subr.mxu0 0.0
  %296 = vmatpush2.msra.mxu0 %v82
  %297 = vmatprep.subr.mxu0 0.0
  %298 = vmatpush2.msra.mxu0 %v81
  %299 = vmatprep.subr.mxu0 0.0
  %300 = vmatpush2.msra.mxu0 %v80
  %301 = vmatprep.subr.mxu0 0.0
  %302 = vmatpush2.msra.mxu0 %v79
  %303 = vmatprep.subr.mxu0 0.0
  %304 = vmatpush2.msra.mxu0 %v78
  %305 = vmatprep.subr.mxu0 0.0
  %306 = vmatpush2.msra.mxu0 %v77
  %307 = vmatprep.mubr.f32.mxu0 %v23
  %308 = vmatmul.mubr.f32.gmra.mxu0 %v22
  %v309 = vpop.f32.mrf.mxu0
  %v310 = vadd.f32 %v240, %v309
  %v311 = vpop.f32.mrf.mxu0
  %312 = vdwg.mxu0
  %313 = vmatprep.subr.mxu0 0.0
  %314 = vmatpush1.msra.mxu0 %v108
  %315 = vmatprep.subr.mxu0 0.0
  %316 = vmatpush1.msra.mxu0 %v107
  %317 = vmatprep.subr.mxu0 0.0
  %318 = vmatpush1.msra.mxu0 %v106
  %319 = vmatprep.subr.mxu0 0.0
  %320 = vmatpush1.msra.mxu0 %v105
  %321 = vmatprep.subr.mxu0 0.0
  %322 = vmatpush1.msra.mxu0 %v104
  %323 = vmatprep.subr.mxu0 0.0
  %324 = vmatpush1.msra.mxu0 %v103
  %325 = vmatprep.subr.mxu0 0.0
  %326 = vmatpush1.msra.mxu0 %v102
  %327 = vmatprep.subr.mxu0 0.0
  %328 = vmatpush1.msra.mxu0 %v101
  %329 = vmatprep.subr.mxu0 0.0
  %330 = vmatpush1.msra.mxu0 %v100
  %331 = vmatprep.subr.mxu0 0.0
  %332 = vmatpush1.msra.mxu0 %v99
  %333 = vmatprep.subr.mxu0 0.0
  %334 = vmatpush1.msra.mxu0 %v98
  %335 = vmatprep.subr.mxu0 0.0
  %336 = vmatpush1.msra.mxu0 %v97
  %337 = vmatprep.subr.mxu0 0.0
  %338 = vmatpush1.msra.mxu0 %v96
  %339 = vmatprep.subr.mxu0 0.0
  %340 = vmatpush1.msra.mxu0 %v95
  %341 = vmatprep.subr.mxu0 0.0
  %342 = vmatpush1.msra.mxu0 %v94
  %343 = vmatprep.subr.mxu0 0.0
  %344 = vmatpush1.msra.mxu0 %v93
  %345 = vmatprep.subr.mxu0 0.0
  %346 = vmatpush2.msra.mxu0 %v124
  %347 = vmatprep.subr.mxu0 0.0
  %348 = vmatpush2.msra.mxu0 %v123
  %349 = vmatprep.subr.mxu0 0.0
  %350 = vmatpush2.msra.mxu0 %v122
  %351 = vmatprep.subr.mxu0 0.0
  %352 = vmatpush2.msra.mxu0 %v121
  %353 = vmatprep.subr.mxu0 0.0
  %354 = vmatpush2.msra.mxu0 %v120
  %355 = vmatprep.subr.mxu0 0.0
  %356 = vmatpush2.msra.mxu0 %v119
  %357 = vmatprep.subr.mxu0 0.0
  %358 = vmatpush2.msra.mxu0 %v118
  %359 = vmatprep.subr.mxu0 0.0
  %360 = vmatpush2.msra.mxu0 %v117
  %361 = vmatprep.subr.mxu0 0.0
  %362 = vmatpush2.msra.mxu0 %v116
  %363 = vmatprep.subr.mxu0 0.0
  %364 = vmatpush2.msra.mxu0 %v115
  %365 = vmatprep.subr.mxu0 0.0
  %366 = vmatpush2.msra.mxu0 %v114
  %367 = vmatprep.subr.mxu0 0.0
  %368 = vmatpush2.msra.mxu0 %v113
  %369 = vmatprep.subr.mxu0 0.0
  %370 = vmatpush2.msra.mxu0 %v112
  %371 = vmatprep.subr.mxu0 0.0
  %372 = vmatpush2.msra.mxu0 %v111
  %373 = vmatprep.subr.mxu0 0.0
  %374 = vmatpush2.msra.mxu0 %v110
  %375 = vmatprep.subr.mxu0 0.0
  %376 = vmatpush2.msra.mxu0 %v109
  %377 = vmatprep.mubr.f32.mxu0 %v25
  %378 = vmatmul.mubr.f32.gmra.mxu0 %v24
  %v379 = vpop.f32.mrf.mxu0
  %v380 = vadd.f32 %v310, %v379
  %v381 = vpop.f32.mrf.mxu0
  %382 = vdwg.mxu0
  %383 = vmatprep.subr.mxu0 0.0
  %384 = vmatpush1.msra.mxu0 %v140
  %385 = vmatprep.subr.mxu0 0.0
  %386 = vmatpush1.msra.mxu0 %v139
  %387 = vmatprep.subr.mxu0 0.0
  %388 = vmatpush1.msra.mxu0 %v138
  %389 = vmatprep.subr.mxu0 0.0
  %390 = vmatpush1.msra.mxu0 %v137
  %391 = vmatprep.subr.mxu0 0.0
  %392 = vmatpush1.msra.mxu0 %v136
  %393 = vmatprep.subr.mxu0 0.0
  %394 = vmatpush1.msra.mxu0 %v135
  %395 = vmatprep.subr.mxu0 0.0
  %396 = vmatpush1.msra.mxu0 %v134
  %397 = vmatprep.subr.mxu0 0.0
  %398 = vmatpush1.msra.mxu0 %v133
  %399 = vmatprep.subr.mxu0 0.0
  %400 = vmatpush1.msra.mxu0 %v132
  %401 = vmatprep.subr.mxu0 0.0
  %402 = vmatpush1.msra.mxu0 %v131
  %403 = vmatprep.subr.mxu0 0.0
  %404 = vmatpush1.msra.mxu0 %v130
  %405 = vmatprep.subr.mxu0 0.0
  %406 = vmatpush1.msra.mxu0 %v129
  %407 = vmatprep.subr.mxu0 0.0
  %408 = vmatpush1.msra.mxu0 %v128
  %409 = vmatprep.subr.mxu0 0.0
  %410 = vmatpush1.msra.mxu0 %v127
  %411 = vmatprep.subr.mxu0 0.0
  %412 = vmatpush1.msra.mxu0 %v126
  %413 = vmatprep.subr.mxu0 0.0
  %414 = vmatpush1.msra.mxu0 %v125
  %415 = vmatprep.subr.mxu0 0.0
  %416 = vmatpush2.msra.mxu0 %v156
  %417 = vmatprep.subr.mxu0 0.0
  %418 = vmatpush2.msra.mxu0 %v155
  %419 = vmatprep.subr.mxu0 0.0
  %420 = vmatpush2.msra.mxu0 %v154
  %421 = vmatprep.subr.mxu0 0.0
  %422 = vmatpush2.msra.mxu0 %v153
  %423 = vmatprep.subr.mxu0 0.0
  %424 = vmatpush2.msra.mxu0 %v152
  %425 = vmatprep.subr.mxu0 0.0
  %426 = vmatpush2.msra.mxu0 %v151
  %427 = vmatprep.subr.mxu0 0.0
  %428 = vmatpush2.msra.mxu0 %v150
  %429 = vmatprep.subr.mxu0 0.0
  %430 = vmatpush2.msra.mxu0 %v149
  %431 = vmatprep.subr.mxu0 0.0
  %432 = vmatpush2.msra.mxu0 %v148
  %433 = vmatprep.subr.mxu0 0.0
  %434 = vmatpush2.msra.mxu0 %v147
  %435 = vmatprep.subr.mxu0 0.0
  %436 = vmatpush2.msra.mxu0 %v146
  %437 = vmatprep.subr.mxu0 0.0
  %438 = vmatpush2.msra.mxu0 %v145
  %439 = vmatprep.subr.mxu0 0.0
  %440 = vmatpush2.msra.mxu0 %v144
  %441 = vmatprep.subr.mxu0 0.0
  %442 = vmatpush2.msra.mxu0 %v143
  %443 = vmatprep.subr.mxu0 0.0
  %444 = vmatpush2.msra.mxu0 %v142
  %445 = vmatprep.subr.mxu0 0.0
  %446 = vmatpush2.msra.mxu0 %v141
  %447 = vmatprep.mubr.f32.mxu0 %v27
  %448 = vmatmul.mubr.f32.gmra.mxu0 %v26
  %v449 = vpop.f32.mrf.mxu0
  %v450 = vadd.f32 %v380, %v449
  %v451 = vpop.f32.mrf.mxu0
  %452 = vdwg.mxu0
  %453 = vmatprep.subr.mxu0 0.0
  %454 = vmatpush1.msra.mxu0 %v172
  %455 = vmatprep.subr.mxu0 0.0
  %456 = vmatpush1.msra.mxu0 %v171
  %457 = vmatprep.subr.mxu0 0.0
  %458 = vmatpush1.msra.mxu0 %v170
  %459 = vmatprep.subr.mxu0 0.0
  %460 = vmatpush1.msra.mxu0 %v169
  %461 = vmatprep.subr.mxu0 0.0
  %462 = vmatpush1.msra.mxu0 %v168
  %463 = vmatprep.subr.mxu0 0.0
  %464 = vmatpush1.msra.mxu0 %v167
  %465 = vmatprep.subr.mxu0 0.0
  %466 = vmatpush1.msra.mxu0 %v166
  %467 = vmatprep.subr.mxu0 0.0
  %468 = vmatpush1.msra.mxu0 %v165
  %469 = vmatprep.subr.mxu0 0.0
  %470 = vmatpush1.msra.mxu0 %v164
  %471 = vmatprep.subr.mxu0 0.0
  %472 = vmatpush1.msra.mxu0 %v163
  %473 = vmatprep.subr.mxu0 0.0
  %474 = vmatpush1.msra.mxu0 %v162
  %475 = vmatprep.subr.mxu0 0.0
  %476 = vmatpush1.msra.mxu0 %v161
  %477 = vmatprep.subr.mxu0 0.0
  %478 = vmatpush1.msra.mxu0 %v160
  %479 = vmatprep.subr.mxu0 0.0
  %480 = vmatpush1.msra.mxu0 %v159
  %481 = vmatprep.subr.mxu0 0.0
  %482 = vmatpush1.msra.mxu0 %v158
  %483 = vmatprep.subr.mxu0 0.0
  %484 = vmatpush1.msra.mxu0 %v157
  %485 = vmatprep.subr.mxu0 0.0
  %486 = vmatpush2.msra.mxu0 0.0
  %487 = vmatprep.subr.mxu0 0.0
  %488 = vmatpush2.msra.mxu0 0.0
  %489 = vmatprep.subr.mxu0 0.0
  %490 = vmatpush2.msra.mxu0 0.0
  %491 = vmatprep.subr.mxu0 0.0
  %492 = vmatpush2.msra.mxu0 0.0
  %493 = vmatprep.subr.mxu0 0.0
  %494 = vmatpush2.msra.mxu0 0.0
  %495 = vmatprep.subr.mxu0 0.0
  %496 = vmatpush2.msra.mxu0 0.0
  %497 = vmatprep.subr.mxu0 0.0
  %498 = vmatpush2.msra.mxu0 0.0
  %499 = vmatprep.subr.mxu0 0.0
  %500 = vmatpush2.msra.mxu0 0.0
  %501 = vmatprep.subr.mxu0 0.0
  %502 = vmatpush2.msra.mxu0 0.0
  %503 = vmatprep.subr.mxu0 0.0
  %504 = vmatpush2.msra.mxu0 0.0
  %505 = vmatprep.subr.mxu0 0.0
  %506 = vmatpush2.msra.mxu0 0.0
  %507 = vmatprep.subr.mxu0 0.0
  %508 = vmatpush2.msra.mxu0 0.0
  %509 = vmatprep.subr.mxu0 0.0
  %510 = vmatpush2.msra.mxu0 0.0
  %511 = vmatprep.subr.mxu0 0.0
  %512 = vmatpush2.msra.mxu0 0.0
  %513 = vmatprep.subr.mxu0 0.0
  %514 = vmatpush2.msra.mxu0 0.0
  %515 = vmatprep.subr.mxu0 0.0
  %516 = vmatpush2.msra.mxu0 0.0
  %517 = vmatprep.mubr.f32.mxu0 0.0
  %518 = vmatmul.mubr.f32.gmra.mxu0 %v28
  %v519 = vpop.f32.mrf.mxu0
  %v520 = vadd.f32 %v450, %v519
  %v521 = vpop.f32.mrf.mxu0
  %522 = vdwg.mxu0
  %v523 = vld [vmem:[%s2] sm:$0x1]
  %v525 = vlaneseq
  %v526 = vshrl.u32 %v525, 7
  %v527 = vsub.s32 0, %v526
  %v528 = vrot.slane %v523, %v527
  %v530 = vmul.f32 %v520, %v528
  %v531 = vld [vmem:[%s3] sm:$0x1]
  %v533 = vlaneseq
  %v534 = vshrl.u32 %v533, 7
  %v535 = vsub.s32 0, %v534
  %v536 = vrot.slane %v531, %v535
  %v538 = vadd.f32 %v530, %v536
  %v539 = vld [vmem:[%s4] sm:$0xff]
  %v540 = vadd.f32 %v538, %v539
  %v541 = vmax.f32 %v540, 0.0
  %v542 = vmin.f32 %v541, 20.0
  %543 = vst [vmem:[%s5] sm:$0xff] %v542
  // Predicated region
  $region22: #{_lambda_.68} parent=0 // pred_check
    _
  $region23: #{_lambda_.68} parent=0 // pred_check_branch
    %545 = sbr.rel (0) target = $region25
  $region24: #{_lambda_.68} parent=0 // pred_region
    _
  $region25: #{_lambda_.68} parent=0 // pred_fallthru
    _
  // Predicated region
  $region26: #{_lambda_.68} parent=0 // pred_check
    _
  $region27: #{_lambda_.68} parent=0 // pred_check_branch
    %547 = sbr.rel (0) target = $region29
  $region28: #{_lambda_.68} parent=0 // pred_region
    _
  $region29: #{_lambda_.68} parent=0 // pred_fallthru
    _

// kernel: _lambda_.73
$region0: #{_lambda_.73}
  #allocation0 [shape = 'u32[]', space=smem, size = 0x4, offset = 0x4, fixed_abs, tag = 'smem constant byte address 0x4 - core index']
  #allocation1 [shape = 'u32[144,128]{1,0:T(1,128)}', space=vmem, size = 0x12000, scoped, tag = 'internal scratch']
  %s0 = inlined_call_operand.vmem [shape: f32[8,128], index: 0, kind: input, shape index: {}]
  %s1 = inlined_call_operand.vmem [shape: f32[2,8], index: 1, kind: input, shape index: {}]
  %s2 = inlined_call_operand.vmem [shape: f32[128,64], index: 2, kind: input, shape index: {}]
  %s3 = inlined_call_operand.vmem [shape: f32[1,64], index: 3, kind: input, shape index: {}]
  %s4 = inlined_call_operand.hbm [shape: f32[2,64], index: 4, kind: output, shape index: {}]
  %s5 = sld [smem:[#allocation0]]
  $region26: #{_lambda_.73} parent=0
    _
  %s7 = ssub.s32 1, %s5
  %s8 = scalar_select 0, %s7, %s5
  $region1: #{_lambda_.73} parent=0
    #allocation2 [shape = 'u8[1024]{0}', space=vmem, size = 0x400, scoped, tag = 'output window, operand 0, single buffered']
    #allocation3 [shape = 's32[1]{0}', space=sflag, size = 0x4, scoped, tag = 'scoped memory for _lambda_.73']
    %9 = vsyncpa [#allocation3], 0
    // Predicated region
    $region2: #{_lambda_.73} parent=1 // pred_check
      _
    $region3: #{_lambda_.73} parent=1 // pred_check_branch
      %11 = sbr.rel (0) target = $region5
    $region4: #{_lambda_.73} parent=1 // pred_region
      _
    $region5: #{_lambda_.73} parent=1 // pred_fallthru
      _
    // Predicated region
    $region6: #{_lambda_.73} parent=1 // pred_check
      _
    $region7: #{_lambda_.73} parent=1 // pred_check_branch
      %13 = sbr.rel (0) target = $region9
    $region8: #{_lambda_.73} parent=1 // pred_region
      _
    $region9: #{_lambda_.73} parent=1 // pred_fallthru
      _
    // Predicated region
    $region10: #{_lambda_.73} parent=1 // pred_check
      _
    $region11: #{_lambda_.73} parent=1 // pred_check_branch
      %15 = sbr.rel (0) target = $region13
    $region12: #{_lambda_.73} parent=1 // pred_region
      _
    $region13: #{_lambda_.73} parent=1 // pred_fallthru
      _
    // Predicated region
    $region14: #{_lambda_.73} parent=1 // pred_check
      _
    $region15: #{_lambda_.73} parent=1 // pred_check_branch
      %17 = sbr.rel (0) target = $region17
    $region16: #{_lambda_.73} parent=1 // pred_region
      _
    $region17: #{_lambda_.73} parent=1 // pred_fallthru
      _
    %v18 = vld [vmem:[%s1] sm:$0x3]
    %v19 = vld [vmem:[%s0] sm:$0xff]
    %vm20 = vcmask 64512
    %v22 = vsel %vm20, %v18, 0
    %24 = vmatprep.subr.mxu0 0.0
    %25 = vmatpush1.msra.mxu0 0.0
    %26 = vmatprep.subr.mxu0 0.0
    %27 = vmatpush1.msra.mxu0 0.0
    %28 = vmatprep.subr.mxu0 0.0
    %29 = vmatpush1.msra.mxu0 0.0
    %30 = vmatprep.subr.mxu0 0.0
    %31 = vmatpush1.msra.mxu0 0.0
    %32 = vmatprep.subr.mxu0 0.0
    %33 = vmatpush1.msra.mxu0 0.0
    %34 = vmatprep.subr.mxu0 0.0
    %35 = vmatpush1.msra.mxu0 0.0
    %36 = vmatprep.subr.mxu0 0.0
    %37 = vmatpush1.msra.mxu0 0.0
    %38 = vmatprep.subr.mxu0 0.0
    %39 = vmatpush1.msra.mxu0 0.0
    %40 = vmatprep.subr.mxu0 0.0
    %41 = vmatpush1.msra.mxu0 0.0
    %42 = vmatprep.subr.mxu0 0.0
    %43 = vmatpush1.msra.mxu0 0.0
    %44 = vmatprep.subr.mxu0 0.0
    %45 = vmatpush1.msra.mxu0 0.0
    %46 = vmatprep.subr.mxu0 0.0
    %47 = vmatpush1.msra.mxu0 0.0
    %48 = vmatprep.subr.mxu0 0.0
    %49 = vmatpush1.msra.mxu0 0.0
    %50 = vmatprep.subr.mxu0 0.0
    %51 = vmatpush1.msra.mxu0 0.0
    %52 = vmatprep.subr.mxu0 0.0
    %53 = vmatpush1.msra.mxu0 0.0
    %54 = vmatprep.subr.mxu0 0.0
    %55 = vmatpush1.msra.mxu0 %v19
    %56 = vmatprep.subr.mxu0 0.0
    %57 = vmatpush2.msra.mxu0 0.0
    %58 = vmatprep.subr.mxu0 0.0
    %59 = vmatpush2.msra.mxu0 0.0
    %60 = vmatprep.subr.mxu0 0.0
    %61 = vmatpush2.msra.mxu0 0.0
    %62 = vmatprep.subr.mxu0 0.0
    %63 = vmatpush2.msra.mxu0 0.0
    %64 = vmatprep.subr.mxu0 0.0
    %65 = vmatpush2.msra.mxu0 0.0
    %66 = vmatprep.subr.mxu0 0.0
    %67 = vmatpush2.msra.mxu0 0.0
    %68 = vmatprep.subr.mxu0 0.0
    %69 = vmatpush2.msra.mxu0 0.0
    %70 = vmatprep.subr.mxu0 0.0
    %71 = vmatpush2.msra.mxu0 0.0
    %72 = vmatprep.subr.mxu0 0.0
    %73 = vmatpush2.msra.mxu0 0.0
    %74 = vmatprep.subr.mxu0 0.0
    %75 = vmatpush2.msra.mxu0 0.0
    %76 = vmatprep.subr.mxu0 0.0
    %77 = vmatpush2.msra.mxu0 0.0
    %78 = vmatprep.subr.mxu0 0.0
    %79 = vmatpush2.msra.mxu0 0.0
    %80 = vmatprep.subr.mxu0 0.0
    %81 = vmatpush2.msra.mxu0 0.0
    %82 = vmatprep.subr.mxu0 0.0
    %83 = vmatpush2.msra.mxu0 0.0
    %84 = vmatprep.subr.mxu0 0.0
    %85 = vmatpush2.msra.mxu0 0.0
    %86 = vmatprep.subr.mxu0 0.0
    %87 = vmatpush2.msra.mxu0 0.0
    %88 = vmatprep.mubr.f32.mxu0 0.0
    %89 = vmatmul.mubr.f32.gmra.mxu0 %v22
    %v90 = vpop.f32.mrf.mxu0
    %v91 = vadd.f32 0.0, %v90
    %v92 = vpop.f32.mrf.mxu0
    %93 = vdwg.mxu0
    %v94 = vld [vmem:[%s2] sm:$0xff]
    %v95 = vld [vmem:[%s2 + $0x8] sm:$0xff]
    %v96 = vld [vmem:[%s2 + $0x10] sm:$0xff]
    %v97 = vld [vmem:[%s2 + $0x18] sm:$0xff]
    %v98 = vld [vmem:[%s2 + $0x20] sm:$0xff]
    %v99 = vld [vmem:[%s2 + $0x28] sm:$0xff]
    %v100 = vld [vmem:[%s2 + $0x30] sm:$0xff]
    %v101 = vld [vmem:[%s2 + $0x38] sm:$0xff]
    %v102 = vld [vmem:[%s2 + $0x40] sm:$0xff]
    %v103 = vld [vmem:[%s2 + $0x48] sm:$0xff]
    %v104 = vld [vmem:[%s2 + $0x50] sm:$0xff]
    %v105 = vld [vmem:[%s2 + $0x58] sm:$0xff]
    %v106 = vld [vmem:[%s2 + $0x60] sm:$0xff]
    %v107 = vld [vmem:[%s2 + $0x68] sm:$0xff]
    %v108 = vld [vmem:[%s2 + $0x70] sm:$0xff]
    %v109 = vld [vmem:[%s2 + $0x78] sm:$0xff]
    %v110 = vld [vmem:[%s3] sm:$0x1]
    %v112 = vlaneseq
    %v113 = vshrl.u32 %v112, 7
    %v114 = vsub.s32 0, %v113
    %v115 = vrot.slane %v110, %v114
    %117 = vmatprep.subr.mxu0 0.0
    %118 = vmatpush1.msra.mxu0 %v109
    %119 = vmatprep.subr.mxu0 0.0
    %120 = vmatpush1.msra.mxu0 %v108
    %121 = vmatprep.subr.mxu0 0.0
    %122 = vmatpush1.msra.mxu0 %v107
    %123 = vmatprep.subr.mxu0 0.0
    %124 = vmatpush1.msra.mxu0 %v106
    %125 = vmatprep.subr.mxu0 0.0
    %126 = vmatpush1.msra.mxu0 %v105
    %127 = vmatprep.subr.mxu0 0.0
    %128 = vmatpush1.msra.mxu0 %v104
    %129 = vmatprep.subr.mxu0 0.0
    %130 = vmatpush1.msra.mxu0 %v103
    %131 = vmatprep.subr.mxu0 0.0
    %132 = vmatpush1.msra.mxu0 %v102
    %133 = vmatprep.subr.mxu0 0.0
    %134 = vmatpush1.msra.mxu0 %v101
    %135 = vmatprep.subr.mxu0 0.0
    %136 = vmatpush1.msra.mxu0 %v100
    %137 = vmatprep.subr.mxu0 0.0
    %138 = vmatpush1.msra.mxu0 %v99
    %139 = vmatprep.subr.mxu0 0.0
    %140 = vmatpush1.msra.mxu0 %v98
    %141 = vmatprep.subr.mxu0 0.0
    %142 = vmatpush1.msra.mxu0 %v97
    %143 = vmatprep.subr.mxu0 0.0
    %144 = vmatpush1.msra.mxu0 %v96
    %145 = vmatprep.subr.mxu0 0.0
    %146 = vmatpush1.msra.mxu0 %v95
    %147 = vmatprep.subr.mxu0 0.0
    %148 = vmatpush1.msra.mxu0 %v94
    %149 = vmatprep.subr.mxu0 0.0
    %150 = vmatpush2.msra.mxu0 0.0
    %151 = vmatprep.subr.mxu0 0.0
    %152 = vmatpush2.msra.mxu0 0.0
    %153 = vmatprep.subr.mxu0 0.0
    %154 = vmatpush2.msra.mxu0 0.0
    %155 = vmatprep.subr.mxu0 0.0
    %156 = vmatpush2.msra.mxu0 0.0
    %157 = vmatprep.subr.mxu0 0.0
    %158 = vmatpush2.msra.mxu0 0.0
    %159 = vmatprep.subr.mxu0 0.0
    %160 = vmatpush2.msra.mxu0 0.0
    %161 = vmatprep.subr.mxu0 0.0
    %162 = vmatpush2.msra.mxu0 0.0
    %163 = vmatprep.subr.mxu0 0.0
    %164 = vmatpush2.msra.mxu0 0.0
    %165 = vmatprep.subr.mxu0 0.0
    %166 = vmatpush2.msra.mxu0 0.0
    %167 = vmatprep.subr.mxu0 0.0
    %168 = vmatpush2.msra.mxu0 0.0
    %169 = vmatprep.subr.mxu0 0.0
    %170 = vmatpush2.msra.mxu0 0.0
    %171 = vmatprep.subr.mxu0 0.0
    %172 = vmatpush2.msra.mxu0 0.0
    %173 = vmatprep.subr.mxu0 0.0
    %174 = vmatpush2.msra.mxu0 0.0
    %175 = vmatprep.subr.mxu0 0.0
    %176 = vmatpush2.msra.mxu0 0.0
    %177 = vmatprep.subr.mxu0 0.0
    %178 = vmatpush2.msra.mxu0 0.0
    %179 = vmatprep.subr.mxu0 0.0
    %180 = vmatpush2.msra.mxu0 0.0
    %181 = vmatprep.mubr.f32.mxu0 0.0
    %182 = vmatmul.mubr.f32.gmra.mxu0 %v91
    %v183 = vpop.f32.mrf.mxu0
    %v184 = vadd.f32 %v115, %v183
    %v185 = vpop.f32.mrf.mxu0
    %186 = vdwg.mxu0
    %v187 = vmul.f32 %v184, %v184
    %vm188 = vcmask 517120
    %v189 = vsel %vm188, %v187, 0.0
    %190 = vadd.xlane.f32.xlu0 %v189
    %v191 = vpop.xlane.xlu0 %190
    %v192 = vadd.f32 %v191, 1e-10
    %v193 = vrsqrt.pop %v192
    %v194 = vmul.f32 %v184, %v193
    %195 = vst.msk [vmem:[#allocation2] sm:$0x3] %vm188, %v194
    // Predicated region
    $region18: #{_lambda_.73} parent=1 // pred_check
      _
    $region19: #{_lambda_.73} parent=1 // pred_check_branch
      %197 = sbr.rel (0) target = $region21
    $region20: #{_lambda_.73} parent=1 // pred_region
      %s199 = ssub.s32 32, 32
      %200 = vsyncadd [#allocation3], %s199
      %s202 = sshll.u32 [#allocation2], 4
      %s203 = int_to_ptr.vmem [resolvable:$true] %s202
      %205 = dma.vmem_to_hbm [thread:$0]  %s203, 32, %s4, [#allocation3]
    $region21: #{_lambda_.73} parent=1 // pred_fallthru
      _
    // Predicated region
    $region22: #{_lambda_.73} parent=1 // pred_check
      _
    $region23: #{_lambda_.73} parent=1 // pred_check_branch
      %207 = sbr.rel (0) target = $region25
    $region24: #{_lambda_.73} parent=1 // pred_region
      %208 = dma.done [#allocation3], 32
    $region25: #{_lambda_.73} parent=1 // pred_fallthru
      _
    %209 = vsyncpa [#allocation3], 1

</llo_original>
